<compile_context>
chip_gen: v7x
topology: tpu7x:2x2x1
jax: 0.10.0
libtpu: 0.0.40
codegen_flags: <defaults>
</compile_context>

<pallas_src>
import jax
import jax.numpy as jnp
from jax.experimental import pallas as pl
from jax.experimental.pallas import tpu as pltpu


# ----------------------------------------------------------------------------
# Fused whole-network kernel: one grid step == one branch.
# ----------------------------------------------------------------------------
def _testnetn_kernel(
    x_ref,                                   # (Cin, S0)      per-branch input
    m16_ref, m8_ref, t4_ref,                 # conv boundary masks / shift mats
    sel1_ref, sel2_ref,                      # 2x2 maxpool selection matrices
    up1_ref, up2_ref,                        # bilinear 2x upsample matrices
    g1_ref, be1_ref, g2_ref, be2_ref,        # BN affine params, shape (C, 1)
    g3_ref, be3_ref, g4_ref, be4_ref,
    w1_ref, b1_ref,                          # conv1: (9, 34, Cin), (34, 1)
    w2_ref, b2_ref,                          # conv2: (9, 15, 34),  (15, 1)
    w3_ref, b3_ref,                          # conv3: (9, 2, 15),   (2, 1)
    wt1_ref, bt1_ref,                        # ct1 as equiv conv: (9,2,2),(2,1)
    wt2_ref, bt2_ref,                        # ct2 1x1: (2, 2), (2, 1)
    out_ref,                                 # (2, S0)
):
    def bn(v, g_ref, b_ref):
        # nn.BatchNorm2d (training mode): per-channel batch stats, biased var.
        mu = jnp.mean(v, axis=1, keepdims=True)
        vc = v - mu
        var = jnp.mean(vc * vc, axis=1, keepdims=True)
        return vc * jax.lax.rsqrt(var + 1e-5) * g_ref[...] + b_ref[...]

    def conv3x3(v, w_ref, b_ref, m_ref, row_w, relu=True):
        # 3x3 / stride 1 / pad 1 conv in (C, S) layout:
        # 9 accumulated MXU matmuls over rolled + boundary-masked activations.
        cin, s = v.shape
        cout = w_ref.shape[1]
        acc = jnp.zeros((cout, s), jnp.float32)
        k = 0
        for ody in (-1, 0, 1):
            for odx in (-1, 0, 1):
                off = ody * row_w + odx
                if off == 0:
                    tap = v
                else:
                    # pltpu.roll follows jnp.roll semantics -> tap[m] = v[m+off]
                    tap = pltpu.roll(v, (-off) % s, axis=1) * m_ref[k]
                acc = acc + jnp.dot(w_ref[k], tap,
                                    preferred_element_type=jnp.float32)
                k += 1
        acc = acc + b_ref[...]
        return jnp.maximum(acc, 0.0) if relu else acc

    def conv3x3_small(v, w_ref, b_ref, t_ref):
        # Same conv, but taps come from precomputed (S,S) shift/mask matrices
        # (used at the 4x4 level to avoid sub-vreg lane rolls).
        cout = w_ref.shape[1]
        s = v.shape[1]
        acc = jnp.zeros((cout, s), jnp.float32)
        for k in range(9):
            wv = jnp.dot(w_ref[k], v, preferred_element_type=jnp.float32)
            acc = acc + jnp.dot(wv, t_ref[k],
                                preferred_element_type=jnp.float32)
        return jnp.maximum(acc + b_ref[...], 0.0)

    def maxpool2x2(v, sel_ref, row_w):
        s = v.shape[1]
        m1 = jnp.maximum(v, pltpu.roll(v, s - 1, axis=1))        # (x, x+1)
        m2 = jnp.maximum(m1, pltpu.roll(m1, s - row_w, axis=1))  # + row below
        return jnp.dot(m2, sel_ref[...], preferred_element_type=jnp.float32)

    def upsample(v, up_ref):
        return jnp.dot(v, up_ref[...], preferred_element_type=jnp.float32)

    x = x_ref[...]                                               # (Cin, 512)

    # ---- encoder --------------------------------------------------------
    h = maxpool2x2(
        conv3x3(bn(x, g1_ref, be1_ref), w1_ref, b1_ref, m16_ref, 16),
        sel1_ref, 16)                                            # (34, 128)
    h = maxpool2x2(
        conv3x3(bn(h, g2_ref, be2_ref), w2_ref, b2_ref, m8_ref, 8),
        sel2_ref, 8)                                             # (15, 32)
    h = conv3x3_small(bn(h, g3_ref, be3_ref), w3_ref, b3_ref, t4_ref)  # (2, 32)

    # ---- decoder --------------------------------------------------------
    h = upsample(bn(h, g4_ref, be4_ref), up1_ref)                # (2, 128)
    h = conv3x3(h, wt1_ref, bt1_ref, m8_ref, 8)                  # ct1 -> (2,128)
    h = upsample(bn(h, g4_ref, be4_ref), up2_ref)                # (2, 512)
    h = jnp.dot(wt2_ref[...], h,
                preferred_element_type=jnp.float32) + bt2_ref[...]
    h = jnp.maximum(h, 0.0)                                      # ct2 + ReLU

    # channel softmax (sublane axis, C=2); lane-dense (2, 512) store
    mx = jnp.max(h, axis=0, keepdims=True)
    e = jnp.exp(h - mx)
    out_ref[...] = (e / jnp.sum(e, axis=0, keepdims=True)).astype(out_ref.dtype)


# ----------------------------------------------------------------------------
# Static spatial operators (built once in JAX; tiny, VMEM-resident constants)
# ----------------------------------------------------------------------------
def _bilinear_1d(n_in, n_out):
    # PyTorch bilinear interpolation weights, align_corners=False (default).
    o = jnp.arange(n_out, dtype=jnp.float32)
    src = jnp.maximum((o + 0.5) * (n_in / n_out) - 0.5, 0.0)
    i0 = jnp.clip(jnp.floor(src).astype(jnp.int32), 0, n_in - 1)
    i1 = jnp.minimum(i0 + 1, n_in - 1)
    f = src - i0.astype(jnp.float32)
    a = jnp.zeros((n_out, n_in), jnp.float32)
    a = a.at[jnp.arange(n_out), i0].add(1.0 - f)
    a = a.at[jnp.arange(n_out), i1].add(f)
    return a


def _upsample_matrix(n, h, w):
    m = jnp.kron(_bilinear_1d(h, 2 * h).T, _bilinear_1d(w, 2 * w).T)
    return jnp.kron(jnp.eye(n, dtype=jnp.float32), m)    # (n*h*w, n*2h*2w)


def _conv_masks(n, h, w):
    yy, xx = jnp.meshgrid(jnp.arange(h), jnp.arange(w), indexing="ij")
    yy = jnp.tile(yy.reshape(-1), n)
    xx = jnp.tile(xx.reshape(-1), n)
    rows = []
    for ody in (-1, 0, 1):
        for odx in (-1, 0, 1):
            ok = ((yy + ody >= 0) & (yy + ody < h) &
                  (xx + odx >= 0) & (xx + odx < w))
            rows.append(ok.astype(jnp.float32))
    return jnp.stack(rows).reshape(9, 1, n * h * w)


def _shift_matrices(n, h, w):
    # T[k, src, dst] = 1 iff src == dst + off_k and tap k is in-bounds at dst.
    s = n * h * w
    yy, xx = jnp.meshgrid(jnp.arange(h), jnp.arange(w), indexing="ij")
    yy = jnp.tile(yy.reshape(-1), n)
    xx = jnp.tile(xx.reshape(-1), n)
    dst = jnp.arange(s)
    mats = []
    for ody in (-1, 0, 1):
        for odx in (-1, 0, 1):
            ok = ((yy + ody >= 0) & (yy + ody < h) &
                  (xx + odx >= 0) & (xx + odx < w))
            src = jnp.clip(dst + ody * w + odx, 0, s - 1)
            t = jnp.zeros((s, s), jnp.float32).at[src, dst].add(
                jnp.where(ok, 1.0, 0.0))
            mats.append(t)
    return jnp.stack(mats)                                # (9, s, s)


def _pool_select(n, h, w):
    ho, wo = h // 2, w // 2
    s_in, s_out = n * h * w, n * ho * wo
    nn_, yo, xo = jnp.meshgrid(jnp.arange(n), jnp.arange(ho), jnp.arange(wo),
                               indexing="ij")
    mo = (nn_ * ho * wo + yo * wo + xo).reshape(-1)
    mi = (nn_ * h * w + 2 * yo * w + 2 * xo).reshape(-1)
    return jnp.zeros((s_in, s_out), jnp.float32).at[mi, mo].set(1.0)


def _pack_conv(w_oihw):
    # (Cout, Cin, 3, 3) -> (9, Cout, Cin), tap index k = ky*3 + kx.
    co, ci = w_oihw.shape[0], w_oihw.shape[1]
    return jnp.transpose(w_oihw, (2, 3, 0, 1)).reshape(9, co, ci)


def _pack_convT(w_iohw):
    # ConvTranspose2d(k=3,s=1,p=1) == conv with flipped, io-swapped weight.
    w_eq = jnp.transpose(w_iohw[:, :, ::-1, ::-1], (1, 0, 2, 3))
    return _pack_conv(w_eq)


# ----------------------------------------------------------------------------
# Forward pass (mirrors TestNetn.forward)
# ----------------------------------------------------------------------------
def testnetn_forward(x_nchw, channel_idx, params):
    """x_nchw: (N, C_total, H, W); channel_idx: (branch_num, input_channels)."""
    n, _, h, w = x_nchw.shape
    b, cin = channel_idx.shape
    s0 = n * h * w

    # per-branch channel gather + lane-dense (C, N*H*W) layout (tiny, XLA side)
    xb = jnp.transpose(x_nchw[:, channel_idx], (1, 2, 0, 3, 4))
    xb = xb.reshape(b, cin, s0).astype(jnp.float32)

    m16 = _conv_masks(n, h, w)                      # conv1 @ 16x16
    m8 = _conv_masks(n, h // 2, w // 2)             # conv2 / ct1 @ 8x8
    t4 = _shift_matrices(n, h // 4, w // 4)         # conv3 @ 4x4
    sel1 = _pool_select(n, h, w)
    sel2 = _pool_select(n, h // 2, w // 2)
    up1 = _upsample_matrix(n, h // 4, w // 4)
    up2 = _upsample_matrix(n, h // 2, w // 2)

    (w1, b1), (w2, b2), (w3, b3) = params["conv1"], params["conv2"], params["conv3"]
    (wt1, bt1), (wt2, bt2) = params["ct1"], params["ct2"]
    g1, be1 = params["bn1"]
    g2, be2 = params["bn2"]
    g3, be3 = params["bn3"]
    g4, be4 = params["bn4"]

    def col(v):
        return v.reshape(-1, 1).astype(jnp.float32)

    operands = (
        xb, m16, m8, t4, sel1, sel2, up1, up2,
        col(g1), col(be1), col(g2), col(be2), col(g3), col(be3), col(g4), col(be4),
        _pack_conv(w1), col(b1), _pack_conv(w2), col(b2), _pack_conv(w3), col(b3),
        _pack_convT(wt1), col(bt1),
        wt2[:, :, 0, 0].T.astype(jnp.float32), col(bt2),
    )

    def const_spec(shape):
        r = len(shape)
        return pl.BlockSpec(shape, lambda i, _r=r: (0,) * _r)

    in_specs = [pl.BlockSpec((None, cin, s0), lambda i: (i, 0, 0))]
    in_specs += [const_spec(op.shape) for op in operands[1:]]

    out = pl.pallas_call(
        _testnetn_kernel,
        out_shape=jax.ShapeDtypeStruct((b, 2, s0), jnp.float32),
        grid_spec=pltpu.PrefetchScalarGridSpec(
            num_scalar_prefetch=0,
            grid=(b,),
            in_specs=in_specs,
            out_specs=pl.BlockSpec((None, 2, s0), lambda i: (i, 0, 0)),
        ),
        compiler_params=pltpu.CompilerParams(
            dimension_semantics=("parallel",),      # v7x: split branches on 2 TCs
            vmem_limit_bytes=32 * 1024 * 1024,
        ),
        cost_estimate=pl.CostEstimate(
            flops=int(2e7), transcendentals=4 * s0, bytes_accessed=int(2e6)),
    )(*operands)

    # (B, 2, N*H*W) -> PyTorch output layout: per-branch results concatenated
    # along the batch dim: (B*N, 2, H, W).
    out = out.reshape(b, 2, n, h, w)
    return jnp.transpose(out, (0, 2, 1, 3, 4)).reshape(b * n, 2, h, w)


# ----------------------------------------------------------------------------
# Deterministic parameter init (shapes from TestNetn.__init__)
# ----------------------------------------------------------------------------
def init_params(input_channels, seed=42):
    ks = jax.random.split(jax.random.PRNGKey(seed), 5)

    def conv_p(key, cout, cin, k):
        kw, kb = jax.random.split(key)
        bound = 1.0 / float(cin * k * k) ** 0.5
        wgt = jax.random.uniform(kw, (cout, cin, k, k), jnp.float32, -bound, bound)
        bias = jax.random.uniform(kb, (cout,), jnp.float32, -bound, bound)
        return wgt, bias

    def convT_p(key, cin, cout, k):
        kw, kb = jax.random.split(key)
        bound = 1.0 / float(cout * k * k) ** 0.5
        wgt = jax.random.uniform(kw, (cin, cout, k, k), jnp.float32, -bound, bound)
        bias = jax.random.uniform(kb, (cout,), jnp.float32, -bound, bound)
        return wgt, bias

    def bn_p(c):
        return jnp.ones((c,), jnp.float32), jnp.zeros((c,), jnp.float32)

    return {
        "conv1": conv_p(ks[0], 34, input_channels, 3),
        "conv2": conv_p(ks[1], 15, 34, 3),
        "conv3": conv_p(ks[2], 2, 15, 3),
        "ct1": convT_p(ks[3], 2, 2, 3),
        "ct2": convT_p(ks[4], 2, 2, 1),
        "bn1": bn_p(input_channels),
        "bn2": bn_p(34),
        "bn3": bn_p(15),
        "bn4": bn_p(2),
    }


if __name__ == "__main__":
    key = jax.random.PRNGKey(0)
    n, c_total, h, w = 2, 8, 16, 16
    input_channels, branch_num = 4, 2

    x = jax.random.normal(key, (n, c_total, h, w), dtype=jnp.float32)
    channel = jnp.array([[0, 1, 2, 3], [4, 5, 6, 7]], dtype=jnp.int32)
    params = init_params(input_channels)

    fwd = jax.jit(lambda xx, ch: testnetn_forward(xx, ch, params))
    out = jax.block_until_ready(fwd(x, channel))

    assert out.shape == (branch_num * n, 2, h, w), out.shape
    # channel softmax must sum to 1
    assert bool(jnp.allclose(jnp.sum(out, axis=1), 1.0, atol=1e-5))
    print("KERNEL_OK")
</pallas_src>

<mosaic_0001>
module attributes {stable_mosaic.version = 11 : i64} {
  func.func private @main(%arg0: i32) attributes {dimension_semantics = [#tpu.dimension_semantics<core_parallel>], iteration_bounds = array<i64: 2>, tpu.core_type = #tpu.core_type<sc_scalar_subcore>, window_params = []} {
    return
  }
}

module attributes {stable_mosaic.version = 11 : i64} {
  func.func private @main(%arg0: i32) attributes {dimension_semantics = [#tpu.dimension_semantics<core_parallel>], iteration_bounds = array<i64: 2>, tpu.core_type = #tpu.core_type<sc_scalar_subcore>, window_params = []} {
    return
  }
}

module attributes {stable_mosaic.version = 11 : i64} {
  func.func @_testnetn_kernel(%arg0: i32, %arg1: memref<1x4x512xf32, #tpu.memory_space<vmem>>, %arg2: memref<9x1x512xf32, #tpu.memory_space<vmem>>, %arg3: memref<9x1x128xf32, #tpu.memory_space<vmem>>, %arg4: memref<9x32x32xf32, #tpu.memory_space<vmem>>, %arg5: memref<512x128xf32, #tpu.memory_space<vmem>>, %arg6: memref<128x32xf32, #tpu.memory_space<vmem>>, %arg7: memref<32x128xf32, #tpu.memory_space<vmem>>, %arg8: memref<128x512xf32, #tpu.memory_space<vmem>>, %arg9: memref<4x1xf32, #tpu.memory_space<vmem>>, %arg10: memref<4x1xf32, #tpu.memory_space<vmem>>, %arg11: memref<34x1xf32, #tpu.memory_space<vmem>>, %arg12: memref<34x1xf32, #tpu.memory_space<vmem>>, %arg13: memref<15x1xf32, #tpu.memory_space<vmem>>, %arg14: memref<15x1xf32, #tpu.memory_space<vmem>>, %arg15: memref<2x1xf32, #tpu.memory_space<vmem>>, %arg16: memref<2x1xf32, #tpu.memory_space<vmem>>, %arg17: memref<9x34x4xf32, #tpu.memory_space<vmem>>, %arg18: memref<34x1xf32, #tpu.memory_space<vmem>>, %arg19: memref<9x15x34xf32, #tpu.memory_space<vmem>>, %arg20: memref<15x1xf32, #tpu.memory_space<vmem>>, %arg21: memref<9x2x15xf32, #tpu.memory_space<vmem>>, %arg22: memref<2x1xf32, #tpu.memory_space<vmem>>, %arg23: memref<9x2x2xf32, #tpu.memory_space<vmem>>, %arg24: memref<2x1xf32, #tpu.memory_space<vmem>>, %arg25: memref<2x2xf32, #tpu.memory_space<vmem>>, %arg26: memref<2x1xf32, #tpu.memory_space<vmem>>, %arg27: memref<1x2x512xf32, #tpu.memory_space<vmem>>) attributes {dimension_semantics = [#tpu.dimension_semantics<parallel>], iteration_bounds = array<i64: 2>, scalar_prefetch = 0 : i64, scratch_operands = 0 : i64, tpu.core_type = #tpu.core_type<tc>, window_params = [{transform_indices = @transform_0, window_bounds = array<i64: 1, 4, 512>}, {pipeline_mode = #tpu.pipeline_mode<synchronous>, transform_indices = @transform_1, window_bounds = array<i64: 9, 1, 512>}, {pipeline_mode = #tpu.pipeline_mode<synchronous>, transform_indices = @transform_2, window_bounds = array<i64: 9, 1, 128>}, {pipeline_mode = #tpu.pipeline_mode<synchronous>, transform_indices = @transform_3, window_bounds = array<i64: 9, 32, 32>}, {pipeline_mode = #tpu.pipeline_mode<synchronous>, transform_indices = @transform_4, window_bounds = array<i64: 512, 128>}, {pipeline_mode = #tpu.pipeline_mode<synchronous>, transform_indices = @transform_5, window_bounds = array<i64: 128, 32>}, {pipeline_mode = #tpu.pipeline_mode<synchronous>, transform_indices = @transform_6, window_bounds = array<i64: 32, 128>}, {pipeline_mode = #tpu.pipeline_mode<synchronous>, transform_indices = @transform_7, window_bounds = array<i64: 128, 512>}, {pipeline_mode = #tpu.pipeline_mode<synchronous>, transform_indices = @transform_8, window_bounds = array<i64: 4, 1>}, {pipeline_mode = #tpu.pipeline_mode<synchronous>, transform_indices = @transform_9, window_bounds = array<i64: 4, 1>}, {pipeline_mode = #tpu.pipeline_mode<synchronous>, transform_indices = @transform_10, window_bounds = array<i64: 34, 1>}, {pipeline_mode = #tpu.pipeline_mode<synchronous>, transform_indices = @transform_11, window_bounds = array<i64: 34, 1>}, {pipeline_mode = #tpu.pipeline_mode<synchronous>, transform_indices = @transform_12, window_bounds = array<i64: 15, 1>}, {pipeline_mode = #tpu.pipeline_mode<synchronous>, transform_indices = @transform_13, window_bounds = array<i64: 15, 1>}, {pipeline_mode = #tpu.pipeline_mode<synchronous>, transform_indices = @transform_14, window_bounds = array<i64: 2, 1>}, {pipeline_mode = #tpu.pipeline_mode<synchronous>, transform_indices = @transform_15, window_bounds = array<i64: 2, 1>}, {pipeline_mode = #tpu.pipeline_mode<synchronous>, transform_indices = @transform_16, window_bounds = array<i64: 9, 34, 4>}, {pipeline_mode = #tpu.pipeline_mode<synchronous>, transform_indices = @transform_17, window_bounds = array<i64: 34, 1>}, {pipeline_mode = #tpu.pipeline_mode<synchronous>, transform_indices = @transform_18, window_bounds = array<i64: 9, 15, 34>}, {pipeline_mode = #tpu.pipeline_mode<synchronous>, transform_indices = @transform_19, window_bounds = array<i64: 15, 1>}, {pipeline_mode = #tpu.pipeline_mode<synchronous>, transform_indices = @transform_20, window_bounds = array<i64: 9, 2, 15>}, {pipeline_mode = #tpu.pipeline_mode<synchronous>, transform_indices = @transform_21, window_bounds = array<i64: 2, 1>}, {pipeline_mode = #tpu.pipeline_mode<synchronous>, transform_indices = @transform_22, window_bounds = array<i64: 9, 2, 2>}, {pipeline_mode = #tpu.pipeline_mode<synchronous>, transform_indices = @transform_23, window_bounds = array<i64: 2, 1>}, {pipeline_mode = #tpu.pipeline_mode<synchronous>, transform_indices = @transform_24, window_bounds = array<i64: 2, 2>}, {pipeline_mode = #tpu.pipeline_mode<synchronous>, transform_indices = @transform_25, window_bounds = array<i64: 2, 1>}, {transform_indices = @transform_26, window_bounds = array<i64: 1, 2, 512>}]} {
    %c0 = arith.constant 0 : index
    %c0_0 = arith.constant 0 : index
    %c0_1 = arith.constant 0 : index
    %0 = vector.load %arg1[%c0, %c0_0, %c0_1] : memref<1x4x512xf32, #tpu.memory_space<vmem>>, vector<1x4x512xf32>
    %1 = vector.shape_cast %0 : vector<1x4x512xf32> to vector<4x512xf32>
    %cst = arith.constant dense<0.000000e+00> : vector<4xf32>
    %2 = vector.multi_reduction <add>, %1, %cst [1] : vector<4x512xf32> to vector<4xf32>
    %3 = vector.shape_cast %2 : vector<4xf32> to vector<4x1xf32>
    %cst_2 = arith.constant 5.120000e+02 : f32
    %4 = vector.broadcast %cst_2 : f32 to vector<4x1xf32>
    %5 = arith.divf %3, %4 : vector<4x1xf32>
    %6 = vector.broadcast %5 : vector<4x1xf32> to vector<4x512xf32>
    %7 = arith.subf %1, %6 : vector<4x512xf32>
    %8 = arith.mulf %7, %7 : vector<4x512xf32>
    %cst_3 = arith.constant dense<0.000000e+00> : vector<4xf32>
    %9 = vector.multi_reduction <add>, %8, %cst_3 [1] : vector<4x512xf32> to vector<4xf32>
    %10 = vector.shape_cast %9 : vector<4xf32> to vector<4x1xf32>
    %cst_4 = arith.constant 5.120000e+02 : f32
    %11 = vector.broadcast %cst_4 : f32 to vector<4x1xf32>
    %12 = arith.divf %10, %11 : vector<4x1xf32>
    %cst_5 = arith.constant 9.99999974E-6 : f32
    %13 = vector.broadcast %cst_5 : f32 to vector<4x1xf32>
    %14 = arith.addf %12, %13 : vector<4x1xf32>
    %15 = math.rsqrt %14 : vector<4x1xf32>
    %16 = vector.broadcast %15 : vector<4x1xf32> to vector<4x512xf32>
    %17 = arith.mulf %7, %16 : vector<4x512xf32>
    %c0_6 = arith.constant 0 : index
    %c0_7 = arith.constant 0 : index
    %18 = vector.load %arg9[%c0_6, %c0_7] : memref<4x1xf32, #tpu.memory_space<vmem>>, vector<4x1xf32>
    %19 = vector.broadcast %18 : vector<4x1xf32> to vector<4x512xf32>
    %20 = arith.mulf %17, %19 : vector<4x512xf32>
    %c0_8 = arith.constant 0 : index
    %c0_9 = arith.constant 0 : index
    %21 = vector.load %arg10[%c0_8, %c0_9] : memref<4x1xf32, #tpu.memory_space<vmem>>, vector<4x1xf32>
    %22 = vector.broadcast %21 : vector<4x1xf32> to vector<4x512xf32>
    %23 = arith.addf %20, %22 : vector<4x512xf32>
    %cst_10 = arith.constant 0.000000e+00 : f32
    %24 = vector.broadcast %cst_10 : f32 to vector<34x512xf32>
    %c17_i32 = arith.constant 17 : i32
    %25 = tpu.dynamic_rotate %23 by %c17_i32 dim 1 : vector<4x512xf32>, i32 -> vector<4x512xf32>
    %c0_11 = arith.constant 0 : index
    %c0_12 = arith.constant 0 : index
    %c0_13 = arith.constant 0 : index
    %26 = vector.load %arg2[%c0_11, %c0_12, %c0_13] : memref<9x1x512xf32, #tpu.memory_space<vmem>>, vector<1x1x512xf32>
    %27 = vector.shape_cast %26 : vector<1x1x512xf32> to vector<1x512xf32>
    %28 = vector.broadcast %27 : vector<1x512xf32> to vector<4x512xf32>
    %29 = arith.mulf %25, %28 : vector<4x512xf32>
    %c0_14 = arith.constant 0 : index
    %c0_15 = arith.constant 0 : index
    %c0_16 = arith.constant 0 : index
    %30 = vector.load %arg17[%c0_14, %c0_15, %c0_16] : memref<9x34x4xf32, #tpu.memory_space<vmem>>, vector<1x34x4xf32>
    %31 = vector.shape_cast %30 : vector<1x34x4xf32> to vector<34x4xf32>
    %cst_17 = arith.constant dense<0.000000e+00> : vector<34x512xf32>
    %32 = tpu.matmul %31, %29, %cst_17 {dimension_numbers = #tpu.dot_dimension_numbers<[1], [0], [0], [1], [0, 0, 1, 1], [], []>} : vector<34x4xf32>, vector<4x512xf32>, vector<34x512xf32> -> vector<34x512xf32>
    %33 = arith.addf %24, %32 : vector<34x512xf32>
    %c16_i32 = arith.constant 16 : i32
    %34 = tpu.dynamic_rotate %23 by %c16_i32 dim 1 : vector<4x512xf32>, i32 -> vector<4x512xf32>
    %c1 = arith.constant 1 : index
    %c0_18 = arith.constant 0 : index
    %c0_19 = arith.constant 0 : index
    %35 = vector.load %arg2[%c1, %c0_18, %c0_19] : memref<9x1x512xf32, #tpu.memory_space<vmem>>, vector<1x1x512xf32>
    %36 = vector.shape_cast %35 : vector<1x1x512xf32> to vector<1x512xf32>
    %37 = vector.broadcast %36 : vector<1x512xf32> to vector<4x512xf32>
    %38 = arith.mulf %34, %37 : vector<4x512xf32>
    %c1_20 = arith.constant 1 : index
    %c0_21 = arith.constant 0 : index
    %c0_22 = arith.constant 0 : index
    %39 = vector.load %arg17[%c1_20, %c0_21, %c0_22] : memref<9x34x4xf32, #tpu.memory_space<vmem>>, vector<1x34x4xf32>
    %40 = vector.shape_cast %39 : vector<1x34x4xf32> to vector<34x4xf32>
    %cst_23 = arith.constant dense<0.000000e+00> : vector<34x512xf32>
    %41 = tpu.matmul %40, %38, %cst_23 {dimension_numbers = #tpu.dot_dimension_numbers<[1], [0], [0], [1], [0, 0, 1, 1], [], []>} : vector<34x4xf32>, vector<4x512xf32>, vector<34x512xf32> -> vector<34x512xf32>
    %42 = arith.addf %33, %41 : vector<34x512xf32>
    %c15_i32 = arith.constant 15 : i32
    %43 = tpu.dynamic_rotate %23 by %c15_i32 dim 1 : vector<4x512xf32>, i32 -> vector<4x512xf32>
    %c2 = arith.constant 2 : index
    %c0_24 = arith.constant 0 : index
    %c0_25 = arith.constant 0 : index
    %44 = vector.load %arg2[%c2, %c0_24, %c0_25] : memref<9x1x512xf32, #tpu.memory_space<vmem>>, vector<1x1x512xf32>
    %45 = vector.shape_cast %44 : vector<1x1x512xf32> to vector<1x512xf32>
    %46 = vector.broadcast %45 : vector<1x512xf32> to vector<4x512xf32>
    %47 = arith.mulf %43, %46 : vector<4x512xf32>
    %c2_26 = arith.constant 2 : index
    %c0_27 = arith.constant 0 : index
    %c0_28 = arith.constant 0 : index
    %48 = vector.load %arg17[%c2_26, %c0_27, %c0_28] : memref<9x34x4xf32, #tpu.memory_space<vmem>>, vector<1x34x4xf32>
    %49 = vector.shape_cast %48 : vector<1x34x4xf32> to vector<34x4xf32>
    %cst_29 = arith.constant dense<0.000000e+00> : vector<34x512xf32>
    %50 = tpu.matmul %49, %47, %cst_29 {dimension_numbers = #tpu.dot_dimension_numbers<[1], [0], [0], [1], [0, 0, 1, 1], [], []>} : vector<34x4xf32>, vector<4x512xf32>, vector<34x512xf32> -> vector<34x512xf32>
    %51 = arith.addf %42, %50 : vector<34x512xf32>
    %c1_i32 = arith.constant 1 : i32
    %52 = tpu.dynamic_rotate %23 by %c1_i32 dim 1 : vector<4x512xf32>, i32 -> vector<4x512xf32>
    %c3 = arith.constant 3 : index
    %c0_30 = arith.constant 0 : index
    %c0_31 = arith.constant 0 : index
    %53 = vector.load %arg2[%c3, %c0_30, %c0_31] : memref<9x1x512xf32, #tpu.memory_space<vmem>>, vector<1x1x512xf32>
    %54 = vector.shape_cast %53 : vector<1x1x512xf32> to vector<1x512xf32>
    %55 = vector.broadcast %54 : vector<1x512xf32> to vector<4x512xf32>
    %56 = arith.mulf %52, %55 : vector<4x512xf32>
    %c3_32 = arith.constant 3 : index
    %c0_33 = arith.constant 0 : index
    %c0_34 = arith.constant 0 : index
    %57 = vector.load %arg17[%c3_32, %c0_33, %c0_34] : memref<9x34x4xf32, #tpu.memory_space<vmem>>, vector<1x34x4xf32>
    %58 = vector.shape_cast %57 : vector<1x34x4xf32> to vector<34x4xf32>
    %cst_35 = arith.constant dense<0.000000e+00> : vector<34x512xf32>
    %59 = tpu.matmul %58, %56, %cst_35 {dimension_numbers = #tpu.dot_dimension_numbers<[1], [0], [0], [1], [0, 0, 1, 1], [], []>} : vector<34x4xf32>, vector<4x512xf32>, vector<34x512xf32> -> vector<34x512xf32>
    %60 = arith.addf %51, %59 : vector<34x512xf32>
    %c4 = arith.constant 4 : index
    %c0_36 = arith.constant 0 : index
    %c0_37 = arith.constant 0 : index
    %61 = vector.load %arg17[%c4, %c0_36, %c0_37] : memref<9x34x4xf32, #tpu.memory_space<vmem>>, vector<1x34x4xf32>
    %62 = vector.shape_cast %61 : vector<1x34x4xf32> to vector<34x4xf32>
    %cst_38 = arith.constant dense<0.000000e+00> : vector<34x512xf32>
    %63 = tpu.matmul %62, %23, %cst_38 {dimension_numbers = #tpu.dot_dimension_numbers<[1], [0], [0], [1], [0, 0, 1, 1], [], []>} : vector<34x4xf32>, vector<4x512xf32>, vector<34x512xf32> -> vector<34x512xf32>
    %64 = arith.addf %60, %63 : vector<34x512xf32>
    %c511_i32 = arith.constant 511 : i32
    %65 = tpu.dynamic_rotate %23 by %c511_i32 dim 1 : vector<4x512xf32>, i32 -> vector<4x512xf32>
    %c5 = arith.constant 5 : index
    %c0_39 = arith.constant 0 : index
    %c0_40 = arith.constant 0 : index
    %66 = vector.load %arg2[%c5, %c0_39, %c0_40] : memref<9x1x512xf32, #tpu.memory_space<vmem>>, vector<1x1x512xf32>
    %67 = vector.shape_cast %66 : vector<1x1x512xf32> to vector<1x512xf32>
    %68 = vector.broadcast %67 : vector<1x512xf32> to vector<4x512xf32>
    %69 = arith.mulf %65, %68 : vector<4x512xf32>
    %c5_41 = arith.constant 5 : index
    %c0_42 = arith.constant 0 : index
    %c0_43 = arith.constant 0 : index
    %70 = vector.load %arg17[%c5_41, %c0_42, %c0_43] : memref<9x34x4xf32, #tpu.memory_space<vmem>>, vector<1x34x4xf32>
    %71 = vector.shape_cast %70 : vector<1x34x4xf32> to vector<34x4xf32>
    %cst_44 = arith.constant dense<0.000000e+00> : vector<34x512xf32>
    %72 = tpu.matmul %71, %69, %cst_44 {dimension_numbers = #tpu.dot_dimension_numbers<[1], [0], [0], [1], [0, 0, 1, 1], [], []>} : vector<34x4xf32>, vector<4x512xf32>, vector<34x512xf32> -> vector<34x512xf32>
    %73 = arith.addf %64, %72 : vector<34x512xf32>
    %c497_i32 = arith.constant 497 : i32
    %74 = tpu.dynamic_rotate %23 by %c497_i32 dim 1 : vector<4x512xf32>, i32 -> vector<4x512xf32>
    %c6 = arith.constant 6 : index
    %c0_45 = arith.constant 0 : index
    %c0_46 = arith.constant 0 : index
    %75 = vector.load %arg2[%c6, %c0_45, %c0_46] : memref<9x1x512xf32, #tpu.memory_space<vmem>>, vector<1x1x512xf32>
    %76 = vector.shape_cast %75 : vector<1x1x512xf32> to vector<1x512xf32>
    %77 = vector.broadcast %76 : vector<1x512xf32> to vector<4x512xf32>
    %78 = arith.mulf %74, %77 : vector<4x512xf32>
    %c6_47 = arith.constant 6 : index
    %c0_48 = arith.constant 0 : index
    %c0_49 = arith.constant 0 : index
    %79 = vector.load %arg17[%c6_47, %c0_48, %c0_49] : memref<9x34x4xf32, #tpu.memory_space<vmem>>, vector<1x34x4xf32>
    %80 = vector.shape_cast %79 : vector<1x34x4xf32> to vector<34x4xf32>
    %cst_50 = arith.constant dense<0.000000e+00> : vector<34x512xf32>
    %81 = tpu.matmul %80, %78, %cst_50 {dimension_numbers = #tpu.dot_dimension_numbers<[1], [0], [0], [1], [0, 0, 1, 1], [], []>} : vector<34x4xf32>, vector<4x512xf32>, vector<34x512xf32> -> vector<34x512xf32>
    %82 = arith.addf %73, %81 : vector<34x512xf32>
    %c496_i32 = arith.constant 496 : i32
    %83 = tpu.dynamic_rotate %23 by %c496_i32 dim 1 : vector<4x512xf32>, i32 -> vector<4x512xf32>
    %c7 = arith.constant 7 : index
    %c0_51 = arith.constant 0 : index
    %c0_52 = arith.constant 0 : index
    %84 = vector.load %arg2[%c7, %c0_51, %c0_52] : memref<9x1x512xf32, #tpu.memory_space<vmem>>, vector<1x1x512xf32>
    %85 = vector.shape_cast %84 : vector<1x1x512xf32> to vector<1x512xf32>
    %86 = vector.broadcast %85 : vector<1x512xf32> to vector<4x512xf32>
    %87 = arith.mulf %83, %86 : vector<4x512xf32>
    %c7_53 = arith.constant 7 : index
    %c0_54 = arith.constant 0 : index
    %c0_55 = arith.constant 0 : index
    %88 = vector.load %arg17[%c7_53, %c0_54, %c0_55] : memref<9x34x4xf32, #tpu.memory_space<vmem>>, vector<1x34x4xf32>
    %89 = vector.shape_cast %88 : vector<1x34x4xf32> to vector<34x4xf32>
    %cst_56 = arith.constant dense<0.000000e+00> : vector<34x512xf32>
    %90 = tpu.matmul %89, %87, %cst_56 {dimension_numbers = #tpu.dot_dimension_numbers<[1], [0], [0], [1], [0, 0, 1, 1], [], []>} : vector<34x4xf32>, vector<4x512xf32>, vector<34x512xf32> -> vector<34x512xf32>
    %91 = arith.addf %82, %90 : vector<34x512xf32>
    %c495_i32 = arith.constant 495 : i32
    %92 = tpu.dynamic_rotate %23 by %c495_i32 dim 1 : vector<4x512xf32>, i32 -> vector<4x512xf32>
    %c8 = arith.constant 8 : index
    %c0_57 = arith.constant 0 : index
    %c0_58 = arith.constant 0 : index
    %93 = vector.load %arg2[%c8, %c0_57, %c0_58] : memref<9x1x512xf32, #tpu.memory_space<vmem>>, vector<1x1x512xf32>
    %94 = vector.shape_cast %93 : vector<1x1x512xf32> to vector<1x512xf32>
    %95 = vector.broadcast %94 : vector<1x512xf32> to vector<4x512xf32>
    %96 = arith.mulf %92, %95 : vector<4x512xf32>
    %c8_59 = arith.constant 8 : index
    %c0_60 = arith.constant 0 : index
    %c0_61 = arith.constant 0 : index
    %97 = vector.load %arg17[%c8_59, %c0_60, %c0_61] : memref<9x34x4xf32, #tpu.memory_space<vmem>>, vector<1x34x4xf32>
    %98 = vector.shape_cast %97 : vector<1x34x4xf32> to vector<34x4xf32>
    %cst_62 = arith.constant dense<0.000000e+00> : vector<34x512xf32>
    %99 = tpu.matmul %98, %96, %cst_62 {dimension_numbers = #tpu.dot_dimension_numbers<[1], [0], [0], [1], [0, 0, 1, 1], [], []>} : vector<34x4xf32>, vector<4x512xf32>, vector<34x512xf32> -> vector<34x512xf32>
    %100 = arith.addf %91, %99 : vector<34x512xf32>
    %c0_63 = arith.constant 0 : index
    %c0_64 = arith.constant 0 : index
    %101 = vector.load %arg18[%c0_63, %c0_64] : memref<34x1xf32, #tpu.memory_space<vmem>>, vector<34x1xf32>
    %102 = vector.broadcast %101 : vector<34x1xf32> to vector<34x512xf32>
    %103 = arith.addf %100, %102 : vector<34x512xf32>
    %cst_65 = arith.constant 0.000000e+00 : f32
    %104 = vector.broadcast %cst_65 : f32 to vector<34x512xf32>
    %105 = arith.maximumf %103, %104 : vector<34x512xf32>
    %c511_i32_66 = arith.constant 511 : i32
    %106 = tpu.dynamic_rotate %105 by %c511_i32_66 dim 1 : vector<34x512xf32>, i32 -> vector<34x512xf32>
    %107 = arith.maximumf %105, %106 : vector<34x512xf32>
    %c496_i32_67 = arith.constant 496 : i32
    %108 = tpu.dynamic_rotate %107 by %c496_i32_67 dim 1 : vector<34x512xf32>, i32 -> vector<34x512xf32>
    %109 = arith.maximumf %107, %108 : vector<34x512xf32>
    %c0_68 = arith.constant 0 : index
    %c0_69 = arith.constant 0 : index
    %110 = vector.load %arg5[%c0_68, %c0_69] : memref<512x128xf32, #tpu.memory_space<vmem>>, vector<512x128xf32>
    %cst_70 = arith.constant dense<0.000000e+00> : vector<34x128xf32>
    %111 = tpu.matmul %109, %110, %cst_70 {dimension_numbers = #tpu.dot_dimension_numbers<[1], [0], [0], [1], [0, 0, 1, 1], [], []>} : vector<34x512xf32>, vector<512x128xf32>, vector<34x128xf32> -> vector<34x128xf32>
    %cst_71 = arith.constant dense<0.000000e+00> : vector<34xf32>
    %112 = vector.multi_reduction <add>, %111, %cst_71 [1] : vector<34x128xf32> to vector<34xf32>
    %113 = vector.shape_cast %112 : vector<34xf32> to vector<34x1xf32>
    %cst_72 = arith.constant 1.280000e+02 : f32
    %114 = vector.broadcast %cst_72 : f32 to vector<34x1xf32>
    %115 = arith.divf %113, %114 : vector<34x1xf32>
    %116 = vector.broadcast %115 : vector<34x1xf32> to vector<34x128xf32>
    %117 = arith.subf %111, %116 : vector<34x128xf32>
    %118 = arith.mulf %117, %117 : vector<34x128xf32>
    %cst_73 = arith.constant dense<0.000000e+00> : vector<34xf32>
    %119 = vector.multi_reduction <add>, %118, %cst_73 [1] : vector<34x128xf32> to vector<34xf32>
    %120 = vector.shape_cast %119 : vector<34xf32> to vector<34x1xf32>
    %cst_74 = arith.constant 1.280000e+02 : f32
    %121 = vector.broadcast %cst_74 : f32 to vector<34x1xf32>
    %122 = arith.divf %120, %121 : vector<34x1xf32>
    %cst_75 = arith.constant 9.99999974E-6 : f32
    %123 = vector.broadcast %cst_75 : f32 to vector<34x1xf32>
    %124 = arith.addf %122, %123 : vector<34x1xf32>
    %125 = math.rsqrt %124 : vector<34x1xf32>
    %126 = vector.broadcast %125 : vector<34x1xf32> to vector<34x128xf32>
    %127 = arith.mulf %117, %126 : vector<34x128xf32>
    %c0_76 = arith.constant 0 : index
    %c0_77 = arith.constant 0 : index
    %128 = vector.load %arg11[%c0_76, %c0_77] : memref<34x1xf32, #tpu.memory_space<vmem>>, vector<34x1xf32>
    %129 = vector.broadcast %128 : vector<34x1xf32> to vector<34x128xf32>
    %130 = arith.mulf %127, %129 : vector<34x128xf32>
    %c0_78 = arith.constant 0 : index
    %c0_79 = arith.constant 0 : index
    %131 = vector.load %arg12[%c0_78, %c0_79] : memref<34x1xf32, #tpu.memory_space<vmem>>, vector<34x1xf32>
    %132 = vector.broadcast %131 : vector<34x1xf32> to vector<34x128xf32>
    %133 = arith.addf %130, %132 : vector<34x128xf32>
    %cst_80 = arith.constant 0.000000e+00 : f32
    %134 = vector.broadcast %cst_80 : f32 to vector<15x128xf32>
    %c9_i32 = arith.constant 9 : i32
    %135 = tpu.dynamic_rotate %133 by %c9_i32 dim 1 : vector<34x128xf32>, i32 -> vector<34x128xf32>
    %c0_81 = arith.constant 0 : index
    %c0_82 = arith.constant 0 : index
    %c0_83 = arith.constant 0 : index
    %136 = vector.load %arg3[%c0_81, %c0_82, %c0_83] : memref<9x1x128xf32, #tpu.memory_space<vmem>>, vector<1x1x128xf32>
    %137 = vector.shape_cast %136 : vector<1x1x128xf32> to vector<1x128xf32>
    %138 = vector.broadcast %137 : vector<1x128xf32> to vector<34x128xf32>
    %139 = arith.mulf %135, %138 : vector<34x128xf32>
    %c0_84 = arith.constant 0 : index
    %c0_85 = arith.constant 0 : index
    %c0_86 = arith.constant 0 : index
    %140 = vector.load %arg19[%c0_84, %c0_85, %c0_86] : memref<9x15x34xf32, #tpu.memory_space<vmem>>, vector<1x15x34xf32>
    %141 = vector.shape_cast %140 : vector<1x15x34xf32> to vector<15x34xf32>
    %cst_87 = arith.constant dense<0.000000e+00> : vector<15x128xf32>
    %142 = tpu.matmul %141, %139, %cst_87 {dimension_numbers = #tpu.dot_dimension_numbers<[1], [0], [0], [1], [0, 0, 1, 1], [], []>} : vector<15x34xf32>, vector<34x128xf32>, vector<15x128xf32> -> vector<15x128xf32>
    %143 = arith.addf %134, %142 : vector<15x128xf32>
    %c8_i32 = arith.constant 8 : i32
    %144 = tpu.dynamic_rotate %133 by %c8_i32 dim 1 : vector<34x128xf32>, i32 -> vector<34x128xf32>
    %c1_88 = arith.constant 1 : index
    %c0_89 = arith.constant 0 : index
    %c0_90 = arith.constant 0 : index
    %145 = vector.load %arg3[%c1_88, %c0_89, %c0_90] : memref<9x1x128xf32, #tpu.memory_space<vmem>>, vector<1x1x128xf32>
    %146 = vector.shape_cast %145 : vector<1x1x128xf32> to vector<1x128xf32>
    %147 = vector.broadcast %146 : vector<1x128xf32> to vector<34x128xf32>
    %148 = arith.mulf %144, %147 : vector<34x128xf32>
    %c1_91 = arith.constant 1 : index
    %c0_92 = arith.constant 0 : index
    %c0_93 = arith.constant 0 : index
    %149 = vector.load %arg19[%c1_91, %c0_92, %c0_93] : memref<9x15x34xf32, #tpu.memory_space<vmem>>, vector<1x15x34xf32>
    %150 = vector.shape_cast %149 : vector<1x15x34xf32> to vector<15x34xf32>
    %cst_94 = arith.constant dense<0.000000e+00> : vector<15x128xf32>
    %151 = tpu.matmul %150, %148, %cst_94 {dimension_numbers = #tpu.dot_dimension_numbers<[1], [0], [0], [1], [0, 0, 1, 1], [], []>} : vector<15x34xf32>, vector<34x128xf32>, vector<15x128xf32> -> vector<15x128xf32>
    %152 = arith.addf %143, %151 : vector<15x128xf32>
    %c7_i32 = arith.constant 7 : i32
    %153 = tpu.dynamic_rotate %133 by %c7_i32 dim 1 : vector<34x128xf32>, i32 -> vector<34x128xf32>
    %c2_95 = arith.constant 2 : index
    %c0_96 = arith.constant 0 : index
    %c0_97 = arith.constant 0 : index
    %154 = vector.load %arg3[%c2_95, %c0_96, %c0_97] : memref<9x1x128xf32, #tpu.memory_space<vmem>>, vector<1x1x128xf32>
    %155 = vector.shape_cast %154 : vector<1x1x128xf32> to vector<1x128xf32>
    %156 = vector.broadcast %155 : vector<1x128xf32> to vector<34x128xf32>
    %157 = arith.mulf %153, %156 : vector<34x128xf32>
    %c2_98 = arith.constant 2 : index
    %c0_99 = arith.constant 0 : index
    %c0_100 = arith.constant 0 : index
    %158 = vector.load %arg19[%c2_98, %c0_99, %c0_100] : memref<9x15x34xf32, #tpu.memory_space<vmem>>, vector<1x15x34xf32>
    %159 = vector.shape_cast %158 : vector<1x15x34xf32> to vector<15x34xf32>
    %cst_101 = arith.constant dense<0.000000e+00> : vector<15x128xf32>
    %160 = tpu.matmul %159, %157, %cst_101 {dimension_numbers = #tpu.dot_dimension_numbers<[1], [0], [0], [1], [0, 0, 1, 1], [], []>} : vector<15x34xf32>, vector<34x128xf32>, vector<15x128xf32> -> vector<15x128xf32>
    %161 = arith.addf %152, %160 : vector<15x128xf32>
    %c1_i32_102 = arith.constant 1 : i32
    %162 = tpu.dynamic_rotate %133 by %c1_i32_102 dim 1 : vector<34x128xf32>, i32 -> vector<34x128xf32>
    %c3_103 = arith.constant 3 : index
    %c0_104 = arith.constant 0 : index
    %c0_105 = arith.constant 0 : index
    %163 = vector.load %arg3[%c3_103, %c0_104, %c0_105] : memref<9x1x128xf32, #tpu.memory_space<vmem>>, vector<1x1x128xf32>
    %164 = vector.shape_cast %163 : vector<1x1x128xf32> to vector<1x128xf32>
    %165 = vector.broadcast %164 : vector<1x128xf32> to vector<34x128xf32>
    %166 = arith.mulf %162, %165 : vector<34x128xf32>
    %c3_106 = arith.constant 3 : index
    %c0_107 = arith.constant 0 : index
    %c0_108 = arith.constant 0 : index
    %167 = vector.load %arg19[%c3_106, %c0_107, %c0_108] : memref<9x15x34xf32, #tpu.memory_space<vmem>>, vector<1x15x34xf32>
    %168 = vector.shape_cast %167 : vector<1x15x34xf32> to vector<15x34xf32>
    %cst_109 = arith.constant dense<0.000000e+00> : vector<15x128xf32>
    %169 = tpu.matmul %168, %166, %cst_109 {dimension_numbers = #tpu.dot_dimension_numbers<[1], [0], [0], [1], [0, 0, 1, 1], [], []>} : vector<15x34xf32>, vector<34x128xf32>, vector<15x128xf32> -> vector<15x128xf32>
    %170 = arith.addf %161, %169 : vector<15x128xf32>
    %c4_110 = arith.constant 4 : index
    %c0_111 = arith.constant 0 : index
    %c0_112 = arith.constant 0 : index
    %171 = vector.load %arg19[%c4_110, %c0_111, %c0_112] : memref<9x15x34xf32, #tpu.memory_space<vmem>>, vector<1x15x34xf32>
    %172 = vector.shape_cast %171 : vector<1x15x34xf32> to vector<15x34xf32>
    %cst_113 = arith.constant dense<0.000000e+00> : vector<15x128xf32>
    %173 = tpu.matmul %172, %133, %cst_113 {dimension_numbers = #tpu.dot_dimension_numbers<[1], [0], [0], [1], [0, 0, 1, 1], [], []>} : vector<15x34xf32>, vector<34x128xf32>, vector<15x128xf32> -> vector<15x128xf32>
    %174 = arith.addf %170, %173 : vector<15x128xf32>
    %c127_i32 = arith.constant 127 : i32
    %175 = tpu.dynamic_rotate %133 by %c127_i32 dim 1 : vector<34x128xf32>, i32 -> vector<34x128xf32>
    %c5_114 = arith.constant 5 : index
    %c0_115 = arith.constant 0 : index
    %c0_116 = arith.constant 0 : index
    %176 = vector.load %arg3[%c5_114, %c0_115, %c0_116] : memref<9x1x128xf32, #tpu.memory_space<vmem>>, vector<1x1x128xf32>
    %177 = vector.shape_cast %176 : vector<1x1x128xf32> to vector<1x128xf32>
    %178 = vector.broadcast %177 : vector<1x128xf32> to vector<34x128xf32>
    %179 = arith.mulf %175, %178 : vector<34x128xf32>
    %c5_117 = arith.constant 5 : index
    %c0_118 = arith.constant 0 : index
    %c0_119 = arith.constant 0 : index
    %180 = vector.load %arg19[%c5_117, %c0_118, %c0_119] : memref<9x15x34xf32, #tpu.memory_space<vmem>>, vector<1x15x34xf32>
    %181 = vector.shape_cast %180 : vector<1x15x34xf32> to vector<15x34xf32>
    %cst_120 = arith.constant dense<0.000000e+00> : vector<15x128xf32>
    %182 = tpu.matmul %181, %179, %cst_120 {dimension_numbers = #tpu.dot_dimension_numbers<[1], [0], [0], [1], [0, 0, 1, 1], [], []>} : vector<15x34xf32>, vector<34x128xf32>, vector<15x128xf32> -> vector<15x128xf32>
    %183 = arith.addf %174, %182 : vector<15x128xf32>
    %c121_i32 = arith.constant 121 : i32
    %184 = tpu.dynamic_rotate %133 by %c121_i32 dim 1 : vector<34x128xf32>, i32 -> vector<34x128xf32>
    %c6_121 = arith.constant 6 : index
    %c0_122 = arith.constant 0 : index
    %c0_123 = arith.constant 0 : index
    %185 = vector.load %arg3[%c6_121, %c0_122, %c0_123] : memref<9x1x128xf32, #tpu.memory_space<vmem>>, vector<1x1x128xf32>
    %186 = vector.shape_cast %185 : vector<1x1x128xf32> to vector<1x128xf32>
    %187 = vector.broadcast %186 : vector<1x128xf32> to vector<34x128xf32>
    %188 = arith.mulf %184, %187 : vector<34x128xf32>
    %c6_124 = arith.constant 6 : index
    %c0_125 = arith.constant 0 : index
    %c0_126 = arith.constant 0 : index
    %189 = vector.load %arg19[%c6_124, %c0_125, %c0_126] : memref<9x15x34xf32, #tpu.memory_space<vmem>>, vector<1x15x34xf32>
    %190 = vector.shape_cast %189 : vector<1x15x34xf32> to vector<15x34xf32>
    %cst_127 = arith.constant dense<0.000000e+00> : vector<15x128xf32>
    %191 = tpu.matmul %190, %188, %cst_127 {dimension_numbers = #tpu.dot_dimension_numbers<[1], [0], [0], [1], [0, 0, 1, 1], [], []>} : vector<15x34xf32>, vector<34x128xf32>, vector<15x128xf32> -> vector<15x128xf32>
    %192 = arith.addf %183, %191 : vector<15x128xf32>
    %c120_i32 = arith.constant 120 : i32
    %193 = tpu.dynamic_rotate %133 by %c120_i32 dim 1 : vector<34x128xf32>, i32 -> vector<34x128xf32>
    %c7_128 = arith.constant 7 : index
    %c0_129 = arith.constant 0 : index
    %c0_130 = arith.constant 0 : index
    %194 = vector.load %arg3[%c7_128, %c0_129, %c0_130] : memref<9x1x128xf32, #tpu.memory_space<vmem>>, vector<1x1x128xf32>
    %195 = vector.shape_cast %194 : vector<1x1x128xf32> to vector<1x128xf32>
    %196 = vector.broadcast %195 : vector<1x128xf32> to vector<34x128xf32>
    %197 = arith.mulf %193, %196 : vector<34x128xf32>
    %c7_131 = arith.constant 7 : index
    %c0_132 = arith.constant 0 : index
    %c0_133 = arith.constant 0 : index
    %198 = vector.load %arg19[%c7_131, %c0_132, %c0_133] : memref<9x15x34xf32, #tpu.memory_space<vmem>>, vector<1x15x34xf32>
    %199 = vector.shape_cast %198 : vector<1x15x34xf32> to vector<15x34xf32>
    %cst_134 = arith.constant dense<0.000000e+00> : vector<15x128xf32>
    %200 = tpu.matmul %199, %197, %cst_134 {dimension_numbers = #tpu.dot_dimension_numbers<[1], [0], [0], [1], [0, 0, 1, 1], [], []>} : vector<15x34xf32>, vector<34x128xf32>, vector<15x128xf32> -> vector<15x128xf32>
    %201 = arith.addf %192, %200 : vector<15x128xf32>
    %c119_i32 = arith.constant 119 : i32
    %202 = tpu.dynamic_rotate %133 by %c119_i32 dim 1 : vector<34x128xf32>, i32 -> vector<34x128xf32>
    %c8_135 = arith.constant 8 : index
    %c0_136 = arith.constant 0 : index
    %c0_137 = arith.constant 0 : index
    %203 = vector.load %arg3[%c8_135, %c0_136, %c0_137] : memref<9x1x128xf32, #tpu.memory_space<vmem>>, vector<1x1x128xf32>
    %204 = vector.shape_cast %203 : vector<1x1x128xf32> to vector<1x128xf32>
    %205 = vector.broadcast %204 : vector<1x128xf32> to vector<34x128xf32>
    %206 = arith.mulf %202, %205 : vector<34x128xf32>
    %c8_138 = arith.constant 8 : index
    %c0_139 = arith.constant 0 : index
    %c0_140 = arith.constant 0 : index
    %207 = vector.load %arg19[%c8_138, %c0_139, %c0_140] : memref<9x15x34xf32, #tpu.memory_space<vmem>>, vector<1x15x34xf32>
    %208 = vector.shape_cast %207 : vector<1x15x34xf32> to vector<15x34xf32>
    %cst_141 = arith.constant dense<0.000000e+00> : vector<15x128xf32>
    %209 = tpu.matmul %208, %206, %cst_141 {dimension_numbers = #tpu.dot_dimension_numbers<[1], [0], [0], [1], [0, 0, 1, 1], [], []>} : vector<15x34xf32>, vector<34x128xf32>, vector<15x128xf32> -> vector<15x128xf32>
    %210 = arith.addf %201, %209 : vector<15x128xf32>
    %c0_142 = arith.constant 0 : index
    %c0_143 = arith.constant 0 : index
    %211 = vector.load %arg20[%c0_142, %c0_143] : memref<15x1xf32, #tpu.memory_space<vmem>>, vector<15x1xf32>
    %212 = vector.broadcast %211 : vector<15x1xf32> to vector<15x128xf32>
    %213 = arith.addf %210, %212 : vector<15x128xf32>
    %cst_144 = arith.constant 0.000000e+00 : f32
    %214 = vector.broadcast %cst_144 : f32 to vector<15x128xf32>
    %215 = arith.maximumf %213, %214 : vector<15x128xf32>
    %c127_i32_145 = arith.constant 127 : i32
    %216 = tpu.dynamic_rotate %215 by %c127_i32_145 dim 1 : vector<15x128xf32>, i32 -> vector<15x128xf32>
    %217 = arith.maximumf %215, %216 : vector<15x128xf32>
    %c120_i32_146 = arith.constant 120 : i32
    %218 = tpu.dynamic_rotate %217 by %c120_i32_146 dim 1 : vector<15x128xf32>, i32 -> vector<15x128xf32>
    %219 = arith.maximumf %217, %218 : vector<15x128xf32>
    %c0_147 = arith.constant 0 : index
    %c0_148 = arith.constant 0 : index
    %220 = vector.load %arg6[%c0_147, %c0_148] : memref<128x32xf32, #tpu.memory_space<vmem>>, vector<128x32xf32>
    %cst_149 = arith.constant dense<0.000000e+00> : vector<15x32xf32>
    %221 = tpu.matmul %219, %220, %cst_149 {dimension_numbers = #tpu.dot_dimension_numbers<[1], [0], [0], [1], [0, 0, 1, 1], [], []>} : vector<15x128xf32>, vector<128x32xf32>, vector<15x32xf32> -> vector<15x32xf32>
    %cst_150 = arith.constant dense<0.000000e+00> : vector<15xf32>
    %222 = vector.multi_reduction <add>, %221, %cst_150 [1] : vector<15x32xf32> to vector<15xf32>
    %223 = vector.shape_cast %222 : vector<15xf32> to vector<15x1xf32>
    %cst_151 = arith.constant 3.200000e+01 : f32
    %224 = vector.broadcast %cst_151 : f32 to vector<15x1xf32>
    %225 = arith.divf %223, %224 : vector<15x1xf32>
    %226 = vector.broadcast %225 : vector<15x1xf32> to vector<15x32xf32>
    %227 = arith.subf %221, %226 : vector<15x32xf32>
    %228 = arith.mulf %227, %227 : vector<15x32xf32>
    %cst_152 = arith.constant dense<0.000000e+00> : vector<15xf32>
    %229 = vector.multi_reduction <add>, %228, %cst_152 [1] : vector<15x32xf32> to vector<15xf32>
    %230 = vector.shape_cast %229 : vector<15xf32> to vector<15x1xf32>
    %cst_153 = arith.constant 3.200000e+01 : f32
    %231 = vector.broadcast %cst_153 : f32 to vector<15x1xf32>
    %232 = arith.divf %230, %231 : vector<15x1xf32>
    %cst_154 = arith.constant 9.99999974E-6 : f32
    %233 = vector.broadcast %cst_154 : f32 to vector<15x1xf32>
    %234 = arith.addf %232, %233 : vector<15x1xf32>
    %235 = math.rsqrt %234 : vector<15x1xf32>
    %236 = vector.broadcast %235 : vector<15x1xf32> to vector<15x32xf32>
    %237 = arith.mulf %227, %236 : vector<15x32xf32>
    %c0_155 = arith.constant 0 : index
    %c0_156 = arith.constant 0 : index
    %238 = vector.load %arg13[%c0_155, %c0_156] : memref<15x1xf32, #tpu.memory_space<vmem>>, vector<15x1xf32>
    %239 = vector.broadcast %238 : vector<15x1xf32> to vector<15x32xf32>
    %240 = arith.mulf %237, %239 : vector<15x32xf32>
    %c0_157 = arith.constant 0 : index
    %c0_158 = arith.constant 0 : index
    %241 = vector.load %arg14[%c0_157, %c0_158] : memref<15x1xf32, #tpu.memory_space<vmem>>, vector<15x1xf32>
    %242 = vector.broadcast %241 : vector<15x1xf32> to vector<15x32xf32>
    %243 = arith.addf %240, %242 : vector<15x32xf32>
    %cst_159 = arith.constant 0.000000e+00 : f32
    %244 = vector.broadcast %cst_159 : f32 to vector<2x32xf32>
    %c0_160 = arith.constant 0 : index
    %c0_161 = arith.constant 0 : index
    %c0_162 = arith.constant 0 : index
    %245 = vector.load %arg21[%c0_160, %c0_161, %c0_162] : memref<9x2x15xf32, #tpu.memory_space<vmem>>, vector<1x2x15xf32>
    %246 = vector.shape_cast %245 : vector<1x2x15xf32> to vector<2x15xf32>
    %cst_163 = arith.constant dense<0.000000e+00> : vector<2x32xf32>
    %247 = tpu.matmul %246, %243, %cst_163 {dimension_numbers = #tpu.dot_dimension_numbers<[1], [0], [0], [1], [0, 0, 1, 1], [], []>} : vector<2x15xf32>, vector<15x32xf32>, vector<2x32xf32> -> vector<2x32xf32>
    %c0_164 = arith.constant 0 : index
    %c0_165 = arith.constant 0 : index
    %c0_166 = arith.constant 0 : index
    %248 = vector.load %arg4[%c0_164, %c0_165, %c0_166] : memref<9x32x32xf32, #tpu.memory_space<vmem>>, vector<1x32x32xf32>
    %249 = vector.shape_cast %248 : vector<1x32x32xf32> to vector<32x32xf32>
    %cst_167 = arith.constant dense<0.000000e+00> : vector<2x32xf32>
    %250 = tpu.matmul %247, %249, %cst_167 {dimension_numbers = #tpu.dot_dimension_numbers<[1], [0], [0], [1], [0, 0, 1, 1], [], []>} : vector<2x32xf32>, vector<32x32xf32>, vector<2x32xf32> -> vector<2x32xf32>
    %251 = arith.addf %244, %250 : vector<2x32xf32>
    %c1_168 = arith.constant 1 : index
    %c0_169 = arith.constant 0 : index
    %c0_170 = arith.constant 0 : index
    %252 = vector.load %arg21[%c1_168, %c0_169, %c0_170] : memref<9x2x15xf32, #tpu.memory_space<vmem>>, vector<1x2x15xf32>
    %253 = vector.shape_cast %252 : vector<1x2x15xf32> to vector<2x15xf32>
    %cst_171 = arith.constant dense<0.000000e+00> : vector<2x32xf32>
    %254 = tpu.matmul %253, %243, %cst_171 {dimension_numbers = #tpu.dot_dimension_numbers<[1], [0], [0], [1], [0, 0, 1, 1], [], []>} : vector<2x15xf32>, vector<15x32xf32>, vector<2x32xf32> -> vector<2x32xf32>
    %c1_172 = arith.constant 1 : index
    %c0_173 = arith.constant 0 : index
    %c0_174 = arith.constant 0 : index
    %255 = vector.load %arg4[%c1_172, %c0_173, %c0_174] : memref<9x32x32xf32, #tpu.memory_space<vmem>>, vector<1x32x32xf32>
    %256 = vector.shape_cast %255 : vector<1x32x32xf32> to vector<32x32xf32>
    %cst_175 = arith.constant dense<0.000000e+00> : vector<2x32xf32>
    %257 = tpu.matmul %254, %256, %cst_175 {dimension_numbers = #tpu.dot_dimension_numbers<[1], [0], [0], [1], [0, 0, 1, 1], [], []>} : vector<2x32xf32>, vector<32x32xf32>, vector<2x32xf32> -> vector<2x32xf32>
    %258 = arith.addf %251, %257 : vector<2x32xf32>
    %c2_176 = arith.constant 2 : index
    %c0_177 = arith.constant 0 : index
    %c0_178 = arith.constant 0 : index
    %259 = vector.load %arg21[%c2_176, %c0_177, %c0_178] : memref<9x2x15xf32, #tpu.memory_space<vmem>>, vector<1x2x15xf32>
    %260 = vector.shape_cast %259 : vector<1x2x15xf32> to vector<2x15xf32>
    %cst_179 = arith.constant dense<0.000000e+00> : vector<2x32xf32>
    %261 = tpu.matmul %260, %243, %cst_179 {dimension_numbers = #tpu.dot_dimension_numbers<[1], [0], [0], [1], [0, 0, 1, 1], [], []>} : vector<2x15xf32>, vector<15x32xf32>, vector<2x32xf32> -> vector<2x32xf32>
    %c2_180 = arith.constant 2 : index
    %c0_181 = arith.constant 0 : index
    %c0_182 = arith.constant 0 : index
    %262 = vector.load %arg4[%c2_180, %c0_181, %c0_182] : memref<9x32x32xf32, #tpu.memory_space<vmem>>, vector<1x32x32xf32>
    %263 = vector.shape_cast %262 : vector<1x32x32xf32> to vector<32x32xf32>
    %cst_183 = arith.constant dense<0.000000e+00> : vector<2x32xf32>
    %264 = tpu.matmul %261, %263, %cst_183 {dimension_numbers = #tpu.dot_dimension_numbers<[1], [0], [0], [1], [0, 0, 1, 1], [], []>} : vector<2x32xf32>, vector<32x32xf32>, vector<2x32xf32> -> vector<2x32xf32>
    %265 = arith.addf %258, %264 : vector<2x32xf32>
    %c3_184 = arith.constant 3 : index
    %c0_185 = arith.constant 0 : index
    %c0_186 = arith.constant 0 : index
    %266 = vector.load %arg21[%c3_184, %c0_185, %c0_186] : memref<9x2x15xf32, #tpu.memory_space<vmem>>, vector<1x2x15xf32>
    %267 = vector.shape_cast %266 : vector<1x2x15xf32> to vector<2x15xf32>
    %cst_187 = arith.constant dense<0.000000e+00> : vector<2x32xf32>
    %268 = tpu.matmul %267, %243, %cst_187 {dimension_numbers = #tpu.dot_dimension_numbers<[1], [0], [0], [1], [0, 0, 1, 1], [], []>} : vector<2x15xf32>, vector<15x32xf32>, vector<2x32xf32> -> vector<2x32xf32>
    %c3_188 = arith.constant 3 : index
    %c0_189 = arith.constant 0 : index
    %c0_190 = arith.constant 0 : index
    %269 = vector.load %arg4[%c3_188, %c0_189, %c0_190] : memref<9x32x32xf32, #tpu.memory_space<vmem>>, vector<1x32x32xf32>
    %270 = vector.shape_cast %269 : vector<1x32x32xf32> to vector<32x32xf32>
    %cst_191 = arith.constant dense<0.000000e+00> : vector<2x32xf32>
    %271 = tpu.matmul %268, %270, %cst_191 {dimension_numbers = #tpu.dot_dimension_numbers<[1], [0], [0], [1], [0, 0, 1, 1], [], []>} : vector<2x32xf32>, vector<32x32xf32>, vector<2x32xf32> -> vector<2x32xf32>
    %272 = arith.addf %265, %271 : vector<2x32xf32>
    %c4_192 = arith.constant 4 : index
    %c0_193 = arith.constant 0 : index
    %c0_194 = arith.constant 0 : index
    %273 = vector.load %arg21[%c4_192, %c0_193, %c0_194] : memref<9x2x15xf32, #tpu.memory_space<vmem>>, vector<1x2x15xf32>
    %274 = vector.shape_cast %273 : vector<1x2x15xf32> to vector<2x15xf32>
    %cst_195 = arith.constant dense<0.000000e+00> : vector<2x32xf32>
    %275 = tpu.matmul %274, %243, %cst_195 {dimension_numbers = #tpu.dot_dimension_numbers<[1], [0], [0], [1], [0, 0, 1, 1], [], []>} : vector<2x15xf32>, vector<15x32xf32>, vector<2x32xf32> -> vector<2x32xf32>
    %c4_196 = arith.constant 4 : index
    %c0_197 = arith.constant 0 : index
    %c0_198 = arith.constant 0 : index
    %276 = vector.load %arg4[%c4_196, %c0_197, %c0_198] : memref<9x32x32xf32, #tpu.memory_space<vmem>>, vector<1x32x32xf32>
    %277 = vector.shape_cast %276 : vector<1x32x32xf32> to vector<32x32xf32>
    %cst_199 = arith.constant dense<0.000000e+00> : vector<2x32xf32>
    %278 = tpu.matmul %275, %277, %cst_199 {dimension_numbers = #tpu.dot_dimension_numbers<[1], [0], [0], [1], [0, 0, 1, 1], [], []>} : vector<2x32xf32>, vector<32x32xf32>, vector<2x32xf32> -> vector<2x32xf32>
    %279 = arith.addf %272, %278 : vector<2x32xf32>
    %c5_200 = arith.constant 5 : index
    %c0_201 = arith.constant 0 : index
    %c0_202 = arith.constant 0 : index
    %280 = vector.load %arg21[%c5_200, %c0_201, %c0_202] : memref<9x2x15xf32, #tpu.memory_space<vmem>>, vector<1x2x15xf32>
    %281 = vector.shape_cast %280 : vector<1x2x15xf32> to vector<2x15xf32>
    %cst_203 = arith.constant dense<0.000000e+00> : vector<2x32xf32>
    %282 = tpu.matmul %281, %243, %cst_203 {dimension_numbers = #tpu.dot_dimension_numbers<[1], [0], [0], [1], [0, 0, 1, 1], [], []>} : vector<2x15xf32>, vector<15x32xf32>, vector<2x32xf32> -> vector<2x32xf32>
    %c5_204 = arith.constant 5 : index
    %c0_205 = arith.constant 0 : index
    %c0_206 = arith.constant 0 : index
    %283 = vector.load %arg4[%c5_204, %c0_205, %c0_206] : memref<9x32x32xf32, #tpu.memory_space<vmem>>, vector<1x32x32xf32>
    %284 = vector.shape_cast %283 : vector<1x32x32xf32> to vector<32x32xf32>
    %cst_207 = arith.constant dense<0.000000e+00> : vector<2x32xf32>
    %285 = tpu.matmul %282, %284, %cst_207 {dimension_numbers = #tpu.dot_dimension_numbers<[1], [0], [0], [1], [0, 0, 1, 1], [], []>} : vector<2x32xf32>, vector<32x32xf32>, vector<2x32xf32> -> vector<2x32xf32>
    %286 = arith.addf %279, %285 : vector<2x32xf32>
    %c6_208 = arith.constant 6 : index
    %c0_209 = arith.constant 0 : index
    %c0_210 = arith.constant 0 : index
    %287 = vector.load %arg21[%c6_208, %c0_209, %c0_210] : memref<9x2x15xf32, #tpu.memory_space<vmem>>, vector<1x2x15xf32>
    %288 = vector.shape_cast %287 : vector<1x2x15xf32> to vector<2x15xf32>
    %cst_211 = arith.constant dense<0.000000e+00> : vector<2x32xf32>
    %289 = tpu.matmul %288, %243, %cst_211 {dimension_numbers = #tpu.dot_dimension_numbers<[1], [0], [0], [1], [0, 0, 1, 1], [], []>} : vector<2x15xf32>, vector<15x32xf32>, vector<2x32xf32> -> vector<2x32xf32>
    %c6_212 = arith.constant 6 : index
    %c0_213 = arith.constant 0 : index
    %c0_214 = arith.constant 0 : index
    %290 = vector.load %arg4[%c6_212, %c0_213, %c0_214] : memref<9x32x32xf32, #tpu.memory_space<vmem>>, vector<1x32x32xf32>
    %291 = vector.shape_cast %290 : vector<1x32x32xf32> to vector<32x32xf32>
    %cst_215 = arith.constant dense<0.000000e+00> : vector<2x32xf32>
    %292 = tpu.matmul %289, %291, %cst_215 {dimension_numbers = #tpu.dot_dimension_numbers<[1], [0], [0], [1], [0, 0, 1, 1], [], []>} : vector<2x32xf32>, vector<32x32xf32>, vector<2x32xf32> -> vector<2x32xf32>
    %293 = arith.addf %286, %292 : vector<2x32xf32>
    %c7_216 = arith.constant 7 : index
    %c0_217 = arith.constant 0 : index
    %c0_218 = arith.constant 0 : index
    %294 = vector.load %arg21[%c7_216, %c0_217, %c0_218] : memref<9x2x15xf32, #tpu.memory_space<vmem>>, vector<1x2x15xf32>
    %295 = vector.shape_cast %294 : vector<1x2x15xf32> to vector<2x15xf32>
    %cst_219 = arith.constant dense<0.000000e+00> : vector<2x32xf32>
    %296 = tpu.matmul %295, %243, %cst_219 {dimension_numbers = #tpu.dot_dimension_numbers<[1], [0], [0], [1], [0, 0, 1, 1], [], []>} : vector<2x15xf32>, vector<15x32xf32>, vector<2x32xf32> -> vector<2x32xf32>
    %c7_220 = arith.constant 7 : index
    %c0_221 = arith.constant 0 : index
    %c0_222 = arith.constant 0 : index
    %297 = vector.load %arg4[%c7_220, %c0_221, %c0_222] : memref<9x32x32xf32, #tpu.memory_space<vmem>>, vector<1x32x32xf32>
    %298 = vector.shape_cast %297 : vector<1x32x32xf32> to vector<32x32xf32>
    %cst_223 = arith.constant dense<0.000000e+00> : vector<2x32xf32>
    %299 = tpu.matmul %296, %298, %cst_223 {dimension_numbers = #tpu.dot_dimension_numbers<[1], [0], [0], [1], [0, 0, 1, 1], [], []>} : vector<2x32xf32>, vector<32x32xf32>, vector<2x32xf32> -> vector<2x32xf32>
    %300 = arith.addf %293, %299 : vector<2x32xf32>
    %c8_224 = arith.constant 8 : index
    %c0_225 = arith.constant 0 : index
    %c0_226 = arith.constant 0 : index
    %301 = vector.load %arg21[%c8_224, %c0_225, %c0_226] : memref<9x2x15xf32, #tpu.memory_space<vmem>>, vector<1x2x15xf32>
    %302 = vector.shape_cast %301 : vector<1x2x15xf32> to vector<2x15xf32>
    %cst_227 = arith.constant dense<0.000000e+00> : vector<2x32xf32>
    %303 = tpu.matmul %302, %243, %cst_227 {dimension_numbers = #tpu.dot_dimension_numbers<[1], [0], [0], [1], [0, 0, 1, 1], [], []>} : vector<2x15xf32>, vector<15x32xf32>, vector<2x32xf32> -> vector<2x32xf32>
    %c8_228 = arith.constant 8 : index
    %c0_229 = arith.constant 0 : index
    %c0_230 = arith.constant 0 : index
    %304 = vector.load %arg4[%c8_228, %c0_229, %c0_230] : memref<9x32x32xf32, #tpu.memory_space<vmem>>, vector<1x32x32xf32>
    %305 = vector.shape_cast %304 : vector<1x32x32xf32> to vector<32x32xf32>
    %cst_231 = arith.constant dense<0.000000e+00> : vector<2x32xf32>
    %306 = tpu.matmul %303, %305, %cst_231 {dimension_numbers = #tpu.dot_dimension_numbers<[1], [0], [0], [1], [0, 0, 1, 1], [], []>} : vector<2x32xf32>, vector<32x32xf32>, vector<2x32xf32> -> vector<2x32xf32>
    %307 = arith.addf %300, %306 : vector<2x32xf32>
    %c0_232 = arith.constant 0 : index
    %c0_233 = arith.constant 0 : index
    %308 = vector.load %arg22[%c0_232, %c0_233] : memref<2x1xf32, #tpu.memory_space<vmem>>, vector<2x1xf32>
    %309 = vector.broadcast %308 : vector<2x1xf32> to vector<2x32xf32>
    %310 = arith.addf %307, %309 : vector<2x32xf32>
    %cst_234 = arith.constant 0.000000e+00 : f32
    %311 = vector.broadcast %cst_234 : f32 to vector<2x32xf32>
    %312 = arith.maximumf %310, %311 : vector<2x32xf32>
    %cst_235 = arith.constant dense<0.000000e+00> : vector<2xf32>
    %313 = vector.multi_reduction <add>, %312, %cst_235 [1] : vector<2x32xf32> to vector<2xf32>
    %314 = vector.shape_cast %313 : vector<2xf32> to vector<2x1xf32>
    %cst_236 = arith.constant 3.200000e+01 : f32
    %315 = vector.broadcast %cst_236 : f32 to vector<2x1xf32>
    %316 = arith.divf %314, %315 : vector<2x1xf32>
    %317 = vector.broadcast %316 : vector<2x1xf32> to vector<2x32xf32>
    %318 = arith.subf %312, %317 : vector<2x32xf32>
    %319 = arith.mulf %318, %318 : vector<2x32xf32>
    %cst_237 = arith.constant dense<0.000000e+00> : vector<2xf32>
    %320 = vector.multi_reduction <add>, %319, %cst_237 [1] : vector<2x32xf32> to vector<2xf32>
    %321 = vector.shape_cast %320 : vector<2xf32> to vector<2x1xf32>
    %cst_238 = arith.constant 3.200000e+01 : f32
    %322 = vector.broadcast %cst_238 : f32 to vector<2x1xf32>
    %323 = arith.divf %321, %322 : vector<2x1xf32>
    %cst_239 = arith.constant 9.99999974E-6 : f32
    %324 = vector.broadcast %cst_239 : f32 to vector<2x1xf32>
    %325 = arith.addf %323, %324 : vector<2x1xf32>
    %326 = math.rsqrt %325 : vector<2x1xf32>
    %327 = vector.broadcast %326 : vector<2x1xf32> to vector<2x32xf32>
    %328 = arith.mulf %318, %327 : vector<2x32xf32>
    %c0_240 = arith.constant 0 : index
    %c0_241 = arith.constant 0 : index
    %329 = vector.load %arg15[%c0_240, %c0_241] : memref<2x1xf32, #tpu.memory_space<vmem>>, vector<2x1xf32>
    %330 = vector.broadcast %329 : vector<2x1xf32> to vector<2x32xf32>
    %331 = arith.mulf %328, %330 : vector<2x32xf32>
    %c0_242 = arith.constant 0 : index
    %c0_243 = arith.constant 0 : index
    %332 = vector.load %arg16[%c0_242, %c0_243] : memref<2x1xf32, #tpu.memory_space<vmem>>, vector<2x1xf32>
    %333 = vector.broadcast %332 : vector<2x1xf32> to vector<2x32xf32>
    %334 = arith.addf %331, %333 : vector<2x32xf32>
    %c0_244 = arith.constant 0 : index
    %c0_245 = arith.constant 0 : index
    %335 = vector.load %arg7[%c0_244, %c0_245] : memref<32x128xf32, #tpu.memory_space<vmem>>, vector<32x128xf32>
    %cst_246 = arith.constant dense<0.000000e+00> : vector<2x128xf32>
    %336 = tpu.matmul %334, %335, %cst_246 {dimension_numbers = #tpu.dot_dimension_numbers<[1], [0], [0], [1], [0, 0, 1, 1], [], []>} : vector<2x32xf32>, vector<32x128xf32>, vector<2x128xf32> -> vector<2x128xf32>
    %cst_247 = arith.constant 0.000000e+00 : f32
    %337 = vector.broadcast %cst_247 : f32 to vector<2x128xf32>
    %c9_i32_248 = arith.constant 9 : i32
    %338 = tpu.dynamic_rotate %336 by %c9_i32_248 dim 1 : vector<2x128xf32>, i32 -> vector<2x128xf32>
    %c0_249 = arith.constant 0 : index
    %c0_250 = arith.constant 0 : index
    %c0_251 = arith.constant 0 : index
    %339 = vector.load %arg3[%c0_249, %c0_250, %c0_251] : memref<9x1x128xf32, #tpu.memory_space<vmem>>, vector<1x1x128xf32>
    %340 = vector.shape_cast %339 : vector<1x1x128xf32> to vector<1x128xf32>
    %341 = vector.broadcast %340 : vector<1x128xf32> to vector<2x128xf32>
    %342 = arith.mulf %338, %341 : vector<2x128xf32>
    %c0_252 = arith.constant 0 : index
    %c0_253 = arith.constant 0 : index
    %c0_254 = arith.constant 0 : index
    %343 = vector.load %arg23[%c0_252, %c0_253, %c0_254] : memref<9x2x2xf32, #tpu.memory_space<vmem>>, vector<1x2x2xf32>
    %344 = vector.shape_cast %343 : vector<1x2x2xf32> to vector<2x2xf32>
    %cst_255 = arith.constant dense<0.000000e+00> : vector<2x128xf32>
    %345 = tpu.matmul %344, %342, %cst_255 {dimension_numbers = #tpu.dot_dimension_numbers<[1], [0], [0], [1], [0, 0, 1, 1], [], []>} : vector<2x2xf32>, vector<2x128xf32>, vector<2x128xf32> -> vector<2x128xf32>
    %346 = arith.addf %337, %345 : vector<2x128xf32>
    %c8_i32_256 = arith.constant 8 : i32
    %347 = tpu.dynamic_rotate %336 by %c8_i32_256 dim 1 : vector<2x128xf32>, i32 -> vector<2x128xf32>
    %c1_257 = arith.constant 1 : index
    %c0_258 = arith.constant 0 : index
    %c0_259 = arith.constant 0 : index
    %348 = vector.load %arg3[%c1_257, %c0_258, %c0_259] : memref<9x1x128xf32, #tpu.memory_space<vmem>>, vector<1x1x128xf32>
    %349 = vector.shape_cast %348 : vector<1x1x128xf32> to vector<1x128xf32>
    %350 = vector.broadcast %349 : vector<1x128xf32> to vector<2x128xf32>
    %351 = arith.mulf %347, %350 : vector<2x128xf32>
    %c1_260 = arith.constant 1 : index
    %c0_261 = arith.constant 0 : index
    %c0_262 = arith.constant 0 : index
    %352 = vector.load %arg23[%c1_260, %c0_261, %c0_262] : memref<9x2x2xf32, #tpu.memory_space<vmem>>, vector<1x2x2xf32>
    %353 = vector.shape_cast %352 : vector<1x2x2xf32> to vector<2x2xf32>
    %cst_263 = arith.constant dense<0.000000e+00> : vector<2x128xf32>
    %354 = tpu.matmul %353, %351, %cst_263 {dimension_numbers = #tpu.dot_dimension_numbers<[1], [0], [0], [1], [0, 0, 1, 1], [], []>} : vector<2x2xf32>, vector<2x128xf32>, vector<2x128xf32> -> vector<2x128xf32>
    %355 = arith.addf %346, %354 : vector<2x128xf32>
    %c7_i32_264 = arith.constant 7 : i32
    %356 = tpu.dynamic_rotate %336 by %c7_i32_264 dim 1 : vector<2x128xf32>, i32 -> vector<2x128xf32>
    %c2_265 = arith.constant 2 : index
    %c0_266 = arith.constant 0 : index
    %c0_267 = arith.constant 0 : index
    %357 = vector.load %arg3[%c2_265, %c0_266, %c0_267] : memref<9x1x128xf32, #tpu.memory_space<vmem>>, vector<1x1x128xf32>
    %358 = vector.shape_cast %357 : vector<1x1x128xf32> to vector<1x128xf32>
    %359 = vector.broadcast %358 : vector<1x128xf32> to vector<2x128xf32>
    %360 = arith.mulf %356, %359 : vector<2x128xf32>
    %c2_268 = arith.constant 2 : index
    %c0_269 = arith.constant 0 : index
    %c0_270 = arith.constant 0 : index
    %361 = vector.load %arg23[%c2_268, %c0_269, %c0_270] : memref<9x2x2xf32, #tpu.memory_space<vmem>>, vector<1x2x2xf32>
    %362 = vector.shape_cast %361 : vector<1x2x2xf32> to vector<2x2xf32>
    %cst_271 = arith.constant dense<0.000000e+00> : vector<2x128xf32>
    %363 = tpu.matmul %362, %360, %cst_271 {dimension_numbers = #tpu.dot_dimension_numbers<[1], [0], [0], [1], [0, 0, 1, 1], [], []>} : vector<2x2xf32>, vector<2x128xf32>, vector<2x128xf32> -> vector<2x128xf32>
    %364 = arith.addf %355, %363 : vector<2x128xf32>
    %c1_i32_272 = arith.constant 1 : i32
    %365 = tpu.dynamic_rotate %336 by %c1_i32_272 dim 1 : vector<2x128xf32>, i32 -> vector<2x128xf32>
    %c3_273 = arith.constant 3 : index
    %c0_274 = arith.constant 0 : index
    %c0_275 = arith.constant 0 : index
    %366 = vector.load %arg3[%c3_273, %c0_274, %c0_275] : memref<9x1x128xf32, #tpu.memory_space<vmem>>, vector<1x1x128xf32>
    %367 = vector.shape_cast %366 : vector<1x1x128xf32> to vector<1x128xf32>
    %368 = vector.broadcast %367 : vector<1x128xf32> to vector<2x128xf32>
    %369 = arith.mulf %365, %368 : vector<2x128xf32>
    %c3_276 = arith.constant 3 : index
    %c0_277 = arith.constant 0 : index
    %c0_278 = arith.constant 0 : index
    %370 = vector.load %arg23[%c3_276, %c0_277, %c0_278] : memref<9x2x2xf32, #tpu.memory_space<vmem>>, vector<1x2x2xf32>
    %371 = vector.shape_cast %370 : vector<1x2x2xf32> to vector<2x2xf32>
    %cst_279 = arith.constant dense<0.000000e+00> : vector<2x128xf32>
    %372 = tpu.matmul %371, %369, %cst_279 {dimension_numbers = #tpu.dot_dimension_numbers<[1], [0], [0], [1], [0, 0, 1, 1], [], []>} : vector<2x2xf32>, vector<2x128xf32>, vector<2x128xf32> -> vector<2x128xf32>
    %373 = arith.addf %364, %372 : vector<2x128xf32>
    %c4_280 = arith.constant 4 : index
    %c0_281 = arith.constant 0 : index
    %c0_282 = arith.constant 0 : index
    %374 = vector.load %arg23[%c4_280, %c0_281, %c0_282] : memref<9x2x2xf32, #tpu.memory_space<vmem>>, vector<1x2x2xf32>
    %375 = vector.shape_cast %374 : vector<1x2x2xf32> to vector<2x2xf32>
    %cst_283 = arith.constant dense<0.000000e+00> : vector<2x128xf32>
    %376 = tpu.matmul %375, %336, %cst_283 {dimension_numbers = #tpu.dot_dimension_numbers<[1], [0], [0], [1], [0, 0, 1, 1], [], []>} : vector<2x2xf32>, vector<2x128xf32>, vector<2x128xf32> -> vector<2x128xf32>
    %377 = arith.addf %373, %376 : vector<2x128xf32>
    %c127_i32_284 = arith.constant 127 : i32
    %378 = tpu.dynamic_rotate %336 by %c127_i32_284 dim 1 : vector<2x128xf32>, i32 -> vector<2x128xf32>
    %c5_285 = arith.constant 5 : index
    %c0_286 = arith.constant 0 : index
    %c0_287 = arith.constant 0 : index
    %379 = vector.load %arg3[%c5_285, %c0_286, %c0_287] : memref<9x1x128xf32, #tpu.memory_space<vmem>>, vector<1x1x128xf32>
    %380 = vector.shape_cast %379 : vector<1x1x128xf32> to vector<1x128xf32>
    %381 = vector.broadcast %380 : vector<1x128xf32> to vector<2x128xf32>
    %382 = arith.mulf %378, %381 : vector<2x128xf32>
    %c5_288 = arith.constant 5 : index
    %c0_289 = arith.constant 0 : index
    %c0_290 = arith.constant 0 : index
    %383 = vector.load %arg23[%c5_288, %c0_289, %c0_290] : memref<9x2x2xf32, #tpu.memory_space<vmem>>, vector<1x2x2xf32>
    %384 = vector.shape_cast %383 : vector<1x2x2xf32> to vector<2x2xf32>
    %cst_291 = arith.constant dense<0.000000e+00> : vector<2x128xf32>
    %385 = tpu.matmul %384, %382, %cst_291 {dimension_numbers = #tpu.dot_dimension_numbers<[1], [0], [0], [1], [0, 0, 1, 1], [], []>} : vector<2x2xf32>, vector<2x128xf32>, vector<2x128xf32> -> vector<2x128xf32>
    %386 = arith.addf %377, %385 : vector<2x128xf32>
    %c121_i32_292 = arith.constant 121 : i32
    %387 = tpu.dynamic_rotate %336 by %c121_i32_292 dim 1 : vector<2x128xf32>, i32 -> vector<2x128xf32>
    %c6_293 = arith.constant 6 : index
    %c0_294 = arith.constant 0 : index
    %c0_295 = arith.constant 0 : index
    %388 = vector.load %arg3[%c6_293, %c0_294, %c0_295] : memref<9x1x128xf32, #tpu.memory_space<vmem>>, vector<1x1x128xf32>
    %389 = vector.shape_cast %388 : vector<1x1x128xf32> to vector<1x128xf32>
    %390 = vector.broadcast %389 : vector<1x128xf32> to vector<2x128xf32>
    %391 = arith.mulf %387, %390 : vector<2x128xf32>
    %c6_296 = arith.constant 6 : index
    %c0_297 = arith.constant 0 : index
    %c0_298 = arith.constant 0 : index
    %392 = vector.load %arg23[%c6_296, %c0_297, %c0_298] : memref<9x2x2xf32, #tpu.memory_space<vmem>>, vector<1x2x2xf32>
    %393 = vector.shape_cast %392 : vector<1x2x2xf32> to vector<2x2xf32>
    %cst_299 = arith.constant dense<0.000000e+00> : vector<2x128xf32>
    %394 = tpu.matmul %393, %391, %cst_299 {dimension_numbers = #tpu.dot_dimension_numbers<[1], [0], [0], [1], [0, 0, 1, 1], [], []>} : vector<2x2xf32>, vector<2x128xf32>, vector<2x128xf32> -> vector<2x128xf32>
    %395 = arith.addf %386, %394 : vector<2x128xf32>
    %c120_i32_300 = arith.constant 120 : i32
    %396 = tpu.dynamic_rotate %336 by %c120_i32_300 dim 1 : vector<2x128xf32>, i32 -> vector<2x128xf32>
    %c7_301 = arith.constant 7 : index
    %c0_302 = arith.constant 0 : index
    %c0_303 = arith.constant 0 : index
    %397 = vector.load %arg3[%c7_301, %c0_302, %c0_303] : memref<9x1x128xf32, #tpu.memory_space<vmem>>, vector<1x1x128xf32>
    %398 = vector.shape_cast %397 : vector<1x1x128xf32> to vector<1x128xf32>
    %399 = vector.broadcast %398 : vector<1x128xf32> to vector<2x128xf32>
    %400 = arith.mulf %396, %399 : vector<2x128xf32>
    %c7_304 = arith.constant 7 : index
    %c0_305 = arith.constant 0 : index
    %c0_306 = arith.constant 0 : index
    %401 = vector.load %arg23[%c7_304, %c0_305, %c0_306] : memref<9x2x2xf32, #tpu.memory_space<vmem>>, vector<1x2x2xf32>
    %402 = vector.shape_cast %401 : vector<1x2x2xf32> to vector<2x2xf32>
    %cst_307 = arith.constant dense<0.000000e+00> : vector<2x128xf32>
    %403 = tpu.matmul %402, %400, %cst_307 {dimension_numbers = #tpu.dot_dimension_numbers<[1], [0], [0], [1], [0, 0, 1, 1], [], []>} : vector<2x2xf32>, vector<2x128xf32>, vector<2x128xf32> -> vector<2x128xf32>
    %404 = arith.addf %395, %403 : vector<2x128xf32>
    %c119_i32_308 = arith.constant 119 : i32
    %405 = tpu.dynamic_rotate %336 by %c119_i32_308 dim 1 : vector<2x128xf32>, i32 -> vector<2x128xf32>
    %c8_309 = arith.constant 8 : index
    %c0_310 = arith.constant 0 : index
    %c0_311 = arith.constant 0 : index
    %406 = vector.load %arg3[%c8_309, %c0_310, %c0_311] : memref<9x1x128xf32, #tpu.memory_space<vmem>>, vector<1x1x128xf32>
    %407 = vector.shape_cast %406 : vector<1x1x128xf32> to vector<1x128xf32>
    %408 = vector.broadcast %407 : vector<1x128xf32> to vector<2x128xf32>
    %409 = arith.mulf %405, %408 : vector<2x128xf32>
    %c8_312 = arith.constant 8 : index
    %c0_313 = arith.constant 0 : index
    %c0_314 = arith.constant 0 : index
    %410 = vector.load %arg23[%c8_312, %c0_313, %c0_314] : memref<9x2x2xf32, #tpu.memory_space<vmem>>, vector<1x2x2xf32>
    %411 = vector.shape_cast %410 : vector<1x2x2xf32> to vector<2x2xf32>
    %cst_315 = arith.constant dense<0.000000e+00> : vector<2x128xf32>
    %412 = tpu.matmul %411, %409, %cst_315 {dimension_numbers = #tpu.dot_dimension_numbers<[1], [0], [0], [1], [0, 0, 1, 1], [], []>} : vector<2x2xf32>, vector<2x128xf32>, vector<2x128xf32> -> vector<2x128xf32>
    %413 = arith.addf %404, %412 : vector<2x128xf32>
    %c0_316 = arith.constant 0 : index
    %c0_317 = arith.constant 0 : index
    %414 = vector.load %arg24[%c0_316, %c0_317] : memref<2x1xf32, #tpu.memory_space<vmem>>, vector<2x1xf32>
    %415 = vector.broadcast %414 : vector<2x1xf32> to vector<2x128xf32>
    %416 = arith.addf %413, %415 : vector<2x128xf32>
    %cst_318 = arith.constant 0.000000e+00 : f32
    %417 = vector.broadcast %cst_318 : f32 to vector<2x128xf32>
    %418 = arith.maximumf %416, %417 : vector<2x128xf32>
    %cst_319 = arith.constant dense<0.000000e+00> : vector<2xf32>
    %419 = vector.multi_reduction <add>, %418, %cst_319 [1] : vector<2x128xf32> to vector<2xf32>
    %420 = vector.shape_cast %419 : vector<2xf32> to vector<2x1xf32>
    %cst_320 = arith.constant 1.280000e+02 : f32
    %421 = vector.broadcast %cst_320 : f32 to vector<2x1xf32>
    %422 = arith.divf %420, %421 : vector<2x1xf32>
    %423 = vector.broadcast %422 : vector<2x1xf32> to vector<2x128xf32>
    %424 = arith.subf %418, %423 : vector<2x128xf32>
    %425 = arith.mulf %424, %424 : vector<2x128xf32>
    %cst_321 = arith.constant dense<0.000000e+00> : vector<2xf32>
    %426 = vector.multi_reduction <add>, %425, %cst_321 [1] : vector<2x128xf32> to vector<2xf32>
    %427 = vector.shape_cast %426 : vector<2xf32> to vector<2x1xf32>
    %cst_322 = arith.constant 1.280000e+02 : f32
    %428 = vector.broadcast %cst_322 : f32 to vector<2x1xf32>
    %429 = arith.divf %427, %428 : vector<2x1xf32>
    %cst_323 = arith.constant 9.99999974E-6 : f32
    %430 = vector.broadcast %cst_323 : f32 to vector<2x1xf32>
    %431 = arith.addf %429, %430 : vector<2x1xf32>
    %432 = math.rsqrt %431 : vector<2x1xf32>
    %433 = vector.broadcast %432 : vector<2x1xf32> to vector<2x128xf32>
    %434 = arith.mulf %424, %433 : vector<2x128xf32>
    %c0_324 = arith.constant 0 : index
    %c0_325 = arith.constant 0 : index
    %435 = vector.load %arg15[%c0_324, %c0_325] : memref<2x1xf32, #tpu.memory_space<vmem>>, vector<2x1xf32>
    %436 = vector.broadcast %435 : vector<2x1xf32> to vector<2x128xf32>
    %437 = arith.mulf %434, %436 : vector<2x128xf32>
    %c0_326 = arith.constant 0 : index
    %c0_327 = arith.constant 0 : index
    %438 = vector.load %arg16[%c0_326, %c0_327] : memref<2x1xf32, #tpu.memory_space<vmem>>, vector<2x1xf32>
    %439 = vector.broadcast %438 : vector<2x1xf32> to vector<2x128xf32>
    %440 = arith.addf %437, %439 : vector<2x128xf32>
    %c0_328 = arith.constant 0 : index
    %c0_329 = arith.constant 0 : index
    %441 = vector.load %arg8[%c0_328, %c0_329] : memref<128x512xf32, #tpu.memory_space<vmem>>, vector<128x512xf32>
    %cst_330 = arith.constant dense<0.000000e+00> : vector<2x512xf32>
    %442 = tpu.matmul %440, %441, %cst_330 {dimension_numbers = #tpu.dot_dimension_numbers<[1], [0], [0], [1], [0, 0, 1, 1], [], []>} : vector<2x128xf32>, vector<128x512xf32>, vector<2x512xf32> -> vector<2x512xf32>
    %c0_331 = arith.constant 0 : index
    %c0_332 = arith.constant 0 : index
    %443 = vector.load %arg25[%c0_331, %c0_332] : memref<2x2xf32, #tpu.memory_space<vmem>>, vector<2x2xf32>
    %cst_333 = arith.constant dense<0.000000e+00> : vector<2x512xf32>
    %444 = tpu.matmul %443, %442, %cst_333 {dimension_numbers = #tpu.dot_dimension_numbers<[1], [0], [0], [1], [0, 0, 1, 1], [], []>} : vector<2x2xf32>, vector<2x512xf32>, vector<2x512xf32> -> vector<2x512xf32>
    %c0_334 = arith.constant 0 : index
    %c0_335 = arith.constant 0 : index
    %445 = vector.load %arg26[%c0_334, %c0_335] : memref<2x1xf32, #tpu.memory_space<vmem>>, vector<2x1xf32>
    %446 = vector.broadcast %445 : vector<2x1xf32> to vector<2x512xf32>
    %447 = arith.addf %444, %446 : vector<2x512xf32>
    %cst_336 = arith.constant 0.000000e+00 : f32
    %448 = vector.broadcast %cst_336 : f32 to vector<2x512xf32>
    %449 = arith.maximumf %447, %448 : vector<2x512xf32>
    %cst_337 = arith.constant dense<0xFF800000> : vector<512xf32>
    %450 = vector.multi_reduction <maximumf>, %449, %cst_337 [0] : vector<2x512xf32> to vector<512xf32>
    %451 = vector.shape_cast %450 : vector<512xf32> to vector<1x512xf32>
    %452 = vector.broadcast %451 : vector<1x512xf32> to vector<2x512xf32>
    %453 = arith.subf %449, %452 : vector<2x512xf32>
    %454 = math.exp %453 : vector<2x512xf32>
    %cst_338 = arith.constant dense<0.000000e+00> : vector<512xf32>
    %455 = vector.multi_reduction <add>, %454, %cst_338 [0] : vector<2x512xf32> to vector<512xf32>
    %456 = vector.shape_cast %455 : vector<512xf32> to vector<1x512xf32>
    %457 = vector.broadcast %456 : vector<1x512xf32> to vector<2x512xf32>
    %458 = arith.divf %454, %457 : vector<2x512xf32>
    %c0_339 = arith.constant 0 : index
    %c0_340 = arith.constant 0 : index
    %c0_341 = arith.constant 0 : index
    %459 = vector.load %arg27[%c0_339, %c0_340, %c0_341] : memref<1x2x512xf32, #tpu.memory_space<vmem>>, vector<1x2x512xf32>
    %460 = vector.shape_cast %459 : vector<1x2x512xf32> to vector<2x512xf32>
    %461 = vector.shape_cast %458 : vector<2x512xf32> to vector<1x2x512xf32>
    tpu.vector_store %arg27[%c0_339, %c0_340, %c0_341], %461 {strides = array<i32>} : memref<1x2x512xf32, #tpu.memory_space<vmem>>, vector<1x2x512xf32>,
    return
  }
  func.func @transform_0(%arg0: i32) -> (i32, i32, i32) {
    %c0_i32 = arith.constant 0 : i32
    %c0_i32_0 = arith.constant 0 : i32
    %c0_i32_1 = arith.constant 0 : i32
    return %arg0, %c0_i32, %c0_i32_0 : i32, i32, i32
  }
  func.func @transform_1(%arg0: i32) -> (i32, i32, i32) {
    %c0_i32 = arith.constant 0 : i32
    %c0_i32_0 = arith.constant 0 : i32
    %c0_i32_1 = arith.constant 0 : i32
    %c0_i32_2 = arith.constant 0 : i32
    return %c0_i32, %c0_i32_0, %c0_i32_1 : i32, i32, i32
  }
  func.func @transform_2(%arg0: i32) -> (i32, i32, i32) {
    %c0_i32 = arith.constant 0 : i32
    %c0_i32_0 = arith.constant 0 : i32
    %c0_i32_1 = arith.constant 0 : i32
    %c0_i32_2 = arith.constant 0 : i32
    return %c0_i32, %c0_i32_0, %c0_i32_1 : i32, i32, i32
  }
  func.func @transform_3(%arg0: i32) -> (i32, i32, i32) {
    %c0_i32 = arith.constant 0 : i32
    %c0_i32_0 = arith.constant 0 : i32
    %c0_i32_1 = arith.constant 0 : i32
    %c0_i32_2 = arith.constant 0 : i32
    return %c0_i32, %c0_i32_0, %c0_i32_1 : i32, i32, i32
  }
  func.func @transform_4(%arg0: i32) -> (i32, i32) {
    %c0_i32 = arith.constant 0 : i32
    %c0_i32_0 = arith.constant 0 : i32
    %c0_i32_1 = arith.constant 0 : i32
    return %c0_i32, %c0_i32_0 : i32, i32
  }
  func.func @transform_5(%arg0: i32) -> (i32, i32) {
    %c0_i32 = arith.constant 0 : i32
    %c0_i32_0 = arith.constant 0 : i32
    %c0_i32_1 = arith.constant 0 : i32
    return %c0_i32, %c0_i32_0 : i32, i32
  }
  func.func @transform_6(%arg0: i32) -> (i32, i32) {
    %c0_i32 = arith.constant 0 : i32
    %c0_i32_0 = arith.constant 0 : i32
    %c0_i32_1 = arith.constant 0 : i32
    return %c0_i32, %c0_i32_0 : i32, i32
  }
  func.func @transform_7(%arg0: i32) -> (i32, i32) {
    %c0_i32 = arith.constant 0 : i32
    %c0_i32_0 = arith.constant 0 : i32
    %c0_i32_1 = arith.constant 0 : i32
    return %c0_i32, %c0_i32_0 : i32, i32
  }
  func.func @transform_8(%arg0: i32) -> (i32, i32) {
    %c0_i32 = arith.constant 0 : i32
    %c0_i32_0 = arith.constant 0 : i32
    %c0_i32_1 = arith.constant 0 : i32
    return %c0_i32, %c0_i32_0 : i32, i32
  }
  func.func @transform_9(%arg0: i32) -> (i32, i32) {
    %c0_i32 = arith.constant 0 : i32
    %c0_i32_0 = arith.constant 0 : i32
    %c0_i32_1 = arith.constant 0 : i32
    return %c0_i32, %c0_i32_0 : i32, i32
  }
  func.func @transform_10(%arg0: i32) -> (i32, i32) {
    %c0_i32 = arith.constant 0 : i32
    %c0_i32_0 = arith.constant 0 : i32
    %c0_i32_1 = arith.constant 0 : i32
    return %c0_i32, %c0_i32_0 : i32, i32
  }
  func.func @transform_11(%arg0: i32) -> (i32, i32) {
    %c0_i32 = arith.constant 0 : i32
    %c0_i32_0 = arith.constant 0 : i32
    %c0_i32_1 = arith.constant 0 : i32
    return %c0_i32, %c0_i32_0 : i32, i32
  }
  func.func @transform_12(%arg0: i32) -> (i32, i32) {
    %c0_i32 = arith.constant 0 : i32
    %c0_i32_0 = arith.constant 0 : i32
    %c0_i32_1 = arith.constant 0 : i32
    return %c0_i32, %c0_i32_0 : i32, i32
  }
  func.func @transform_13(%arg0: i32) -> (i32, i32) {
    %c0_i32 = arith.constant 0 : i32
    %c0_i32_0 = arith.constant 0 : i32
    %c0_i32_1 = arith.constant 0 : i32
    return %c0_i32, %c0_i32_0 : i32, i32
  }
  func.func @transform_14(%arg0: i32) -> (i32, i32) {
    %c0_i32 = arith.constant 0 : i32
    %c0_i32_0 = arith.constant 0 : i32
    %c0_i32_1 = arith.constant 0 : i32
    return %c0_i32, %c0_i32_0 : i32, i32
  }
  func.func @transform_15(%arg0: i32) -> (i32, i32) {
    %c0_i32 = arith.constant 0 : i32
    %c0_i32_0 = arith.constant 0 : i32
    %c0_i32_1 = arith.constant 0 : i32
    return %c0_i32, %c0_i32_0 : i32, i32
  }
  func.func @transform_16(%arg0: i32) -> (i32, i32, i32) {
    %c0_i32 = arith.constant 0 : i32
    %c0_i32_0 = arith.constant 0 : i32
    %c0_i32_1 = arith.constant 0 : i32
    %c0_i32_2 = arith.constant 0 : i32
    return %c0_i32, %c0_i32_0, %c0_i32_1 : i32, i32, i32
  }
  func.func @transform_17(%arg0: i32) -> (i32, i32) {
    %c0_i32 = arith.constant 0 : i32
    %c0_i32_0 = arith.constant 0 : i32
    %c0_i32_1 = arith.constant 0 : i32
    return %c0_i32, %c0_i32_0 : i32, i32
  }
  func.func @transform_18(%arg0: i32) -> (i32, i32, i32) {
    %c0_i32 = arith.constant 0 : i32
    %c0_i32_0 = arith.constant 0 : i32
    %c0_i32_1 = arith.constant 0 : i32
    %c0_i32_2 = arith.constant 0 : i32
    return %c0_i32, %c0_i32_0, %c0_i32_1 : i32, i32, i32
  }
  func.func @transform_19(%arg0: i32) -> (i32, i32) {
    %c0_i32 = arith.constant 0 : i32
    %c0_i32_0 = arith.constant 0 : i32
    %c0_i32_1 = arith.constant 0 : i32
    return %c0_i32, %c0_i32_0 : i32, i32
  }
  func.func @transform_20(%arg0: i32) -> (i32, i32, i32) {
    %c0_i32 = arith.constant 0 : i32
    %c0_i32_0 = arith.constant 0 : i32
    %c0_i32_1 = arith.constant 0 : i32
    %c0_i32_2 = arith.constant 0 : i32
    return %c0_i32, %c0_i32_0, %c0_i32_1 : i32, i32, i32
  }
  func.func @transform_21(%arg0: i32) -> (i32, i32) {
    %c0_i32 = arith.constant 0 : i32
    %c0_i32_0 = arith.constant 0 : i32
    %c0_i32_1 = arith.constant 0 : i32
    return %c0_i32, %c0_i32_0 : i32, i32
  }
  func.func @transform_22(%arg0: i32) -> (i32, i32, i32) {
    %c0_i32 = arith.constant 0 : i32
    %c0_i32_0 = arith.constant 0 : i32
    %c0_i32_1 = arith.constant 0 : i32
    %c0_i32_2 = arith.constant 0 : i32
    return %c0_i32, %c0_i32_0, %c0_i32_1 : i32, i32, i32
  }
  func.func @transform_23(%arg0: i32) -> (i32, i32) {
    %c0_i32 = arith.constant 0 : i32
    %c0_i32_0 = arith.constant 0 : i32
    %c0_i32_1 = arith.constant 0 : i32
    return %c0_i32, %c0_i32_0 : i32, i32
  }
  func.func @transform_24(%arg0: i32) -> (i32, i32) {
    %c0_i32 = arith.constant 0 : i32
    %c0_i32_0 = arith.constant 0 : i32
    %c0_i32_1 = arith.constant 0 : i32
    return %c0_i32, %c0_i32_0 : i32, i32
  }
  func.func @transform_25(%arg0: i32) -> (i32, i32) {
    %c0_i32 = arith.constant 0 : i32
    %c0_i32_0 = arith.constant 0 : i32
    %c0_i32_1 = arith.constant 0 : i32
    return %c0_i32, %c0_i32_0 : i32, i32
  }
  func.func @transform_26(%arg0: i32) -> (i32, i32, i32) {
    %c0_i32 = arith.constant 0 : i32
    %c0_i32_0 = arith.constant 0 : i32
    %c0_i32_1 = arith.constant 0 : i32
    return %arg0, %c0_i32, %c0_i32_0 : i32, i32, i32
  }
}

</mosaic_0001>

<llo_original>
// kernel: _lambda_.1
$region0: #{_lambda_.1}
  #allocation0 [shape = 'u32[]', space=smem, size = 0x4, offset = 0x4, fixed_abs, tag = 'smem constant byte address 0x4 - core index']
  #allocation1 [shape = 'u32[144,128]{1,0:T(1,128)}', space=vmem, size = 0x12000, scoped, tag = 'internal scratch']
  %s0 = inlined_call_operand.vmem [shape: f32[2,4,512], index: 0, kind: input, shape index: {}]
  %s1 = inlined_call_operand.vmem [shape: f32[9,1,512], index: 1, kind: input, shape index: {}]
  %s2 = inlined_call_operand.vmem [shape: f32[9,1,128], index: 2, kind: input, shape index: {}]
  %s3 = inlined_call_operand.vmem [shape: f32[9,32,32], index: 3, kind: input, shape index: {}]
  %s4 = inlined_call_operand.vmem [shape: f32[512,128], index: 4, kind: input, shape index: {}]
  %s5 = inlined_call_operand.vmem [shape: f32[128,32], index: 5, kind: input, shape index: {}]
  %s6 = inlined_call_operand.vmem [shape: f32[32,128], index: 6, kind: input, shape index: {}]
  %s7 = inlined_call_operand.vmem [shape: f32[128,512], index: 7, kind: input, shape index: {}]
  %s8 = inlined_call_operand.vmem [shape: f32[4,1], index: 8, kind: input, shape index: {}]
  %s9 = inlined_call_operand.vmem [shape: f32[4,1], index: 9, kind: input, shape index: {}]
  %s10 = inlined_call_operand.vmem [shape: f32[34,1], index: 10, kind: input, shape index: {}]
  %s11 = inlined_call_operand.vmem [shape: f32[34,1], index: 11, kind: input, shape index: {}]
  %s12 = inlined_call_operand.vmem [shape: f32[15,1], index: 12, kind: input, shape index: {}]
  %s13 = inlined_call_operand.vmem [shape: f32[15,1], index: 13, kind: input, shape index: {}]
  %s14 = inlined_call_operand.vmem [shape: f32[2,1], index: 14, kind: input, shape index: {}]
  %s15 = inlined_call_operand.vmem [shape: f32[2,1], index: 15, kind: input, shape index: {}]
  %s16 = inlined_call_operand.vmem [shape: f32[9,34,4], index: 16, kind: input, shape index: {}]
  %s17 = inlined_call_operand.vmem [shape: f32[34,1], index: 17, kind: input, shape index: {}]
  %s18 = inlined_call_operand.vmem [shape: f32[9,15,34], index: 18, kind: input, shape index: {}]
  %s19 = inlined_call_operand.vmem [shape: f32[15,1], index: 19, kind: input, shape index: {}]
  %s20 = inlined_call_operand.vmem [shape: f32[9,2,15], index: 20, kind: input, shape index: {}]
  %s21 = inlined_call_operand.vmem [shape: f32[2,1], index: 21, kind: input, shape index: {}]
  %s22 = inlined_call_operand.vmem [shape: f32[9,2,2], index: 22, kind: input, shape index: {}]
  %s23 = inlined_call_operand.vmem [shape: f32[2,1], index: 23, kind: input, shape index: {}]
  %s24 = inlined_call_operand.vmem [shape: f32[2,2], index: 24, kind: input, shape index: {}]
  %s25 = inlined_call_operand.vmem [shape: f32[2,1], index: 25, kind: input, shape index: {}]
  %s26 = inlined_call_operand.vmem [shape: f32[2,2,512], index: 26, kind: output, shape index: {}]
  %s27 = sld [smem:[#allocation0]]
  $region137: #{_lambda_.1} parent=0
    _
  %s29 = ssub.s32 1, %s27
  %s30 = scalar_select 0, %s29, %s27
  loop: start=0, step=1, limit=4
  $region2: #{_lambda_.1} parent=0 // loop_pre_header
    _
  $region3: #{_lambda_.1} parent=0 // loop_header
    %s32 = sphi 0, %s36
    %p33 = scmp.ge.s32.totalorder %s32, 4
    %s42 = sphi 0, %s44
    %s45 = sphi 0, %s42
    %s46 = sphi 0, %s45
    %s62 = sphi 0, %s46
    %s66 = sphi 0, %s66
    %s68 = sphi 0, %s66
    %s69 = sphi 0, %s68
    %s83 = sphi 0, %s69
    %s87 = sphi 0, %s87
    %s89 = sphi 0, %s87
    %s90 = sphi 0, %s89
    %s104 = sphi 0, %s90
    %s108 = sphi 0, %s108
    %s110 = sphi 0, %s108
    %s111 = sphi 0, %s110
    %s125 = sphi 0, %s111
    %s129 = sphi 0, %s129
    %s131 = sphi 0, %s129
    %s132 = sphi 0, %s131
    %s146 = sphi 0, %s132
    %s150 = sphi 0, %s150
    %s152 = sphi 0, %s150
    %s153 = sphi 0, %s152
    %s167 = sphi 0, %s153
    %s171 = sphi 0, %s171
    %s173 = sphi 0, %s171
    %s174 = sphi 0, %s173
    %s188 = sphi 0, %s174
    %s192 = sphi 0, %s192
    %s194 = sphi 0, %s192
    %s195 = sphi 0, %s194
    %s209 = sphi 0, %s195
    %s213 = sphi 0, %s213
    %s215 = sphi 0, %s213
    %s216 = sphi 0, %s215
    %s230 = sphi 0, %s216
    %s234 = sphi 0, %s234
    %s236 = sphi 0, %s234
    %s237 = sphi 0, %s236
    %s251 = sphi 0, %s237
    %s255 = sphi 0, %s255
    %s257 = sphi 0, %s255
    %s258 = sphi 0, %s257
    %s272 = sphi 0, %s258
    %s276 = sphi 0, %s276
    %s278 = sphi 0, %s276
    %s279 = sphi 0, %s278
    %s293 = sphi 0, %s279
    %s297 = sphi 0, %s297
    %s299 = sphi 0, %s297
    %s300 = sphi 0, %s299
    %s314 = sphi 0, %s300
    %s318 = sphi 0, %s318
    %s320 = sphi 0, %s318
    %s321 = sphi 0, %s320
    %s335 = sphi 0, %s321
    %s339 = sphi 0, %s339
    %s341 = sphi 0, %s339
    %s342 = sphi 0, %s341
    %s356 = sphi 0, %s342
    %s360 = sphi 0, %s360
    %s362 = sphi 0, %s360
    %s363 = sphi 0, %s362
    %s377 = sphi 0, %s363
    %s381 = sphi 0, %s381
    %s383 = sphi 0, %s381
    %s384 = sphi 0, %s383
    %s398 = sphi 0, %s384
    %s402 = sphi 0, %s402
    %s404 = sphi 0, %s402
    %s405 = sphi 0, %s404
    %s419 = sphi 0, %s405
    %s423 = sphi 0, %s423
    %s425 = sphi 0, %s423
    %s426 = sphi 0, %s425
    %s440 = sphi 0, %s426
    %s444 = sphi 0, %s444
    %s446 = sphi 0, %s444
    %s447 = sphi 0, %s446
    %s461 = sphi 0, %s447
    %s465 = sphi 0, %s465
    %s467 = sphi 0, %s465
    %s468 = sphi 0, %s467
    %s482 = sphi 0, %s468
    %s486 = sphi 0, %s486
    %s488 = sphi 0, %s486
    %s489 = sphi 0, %s488
    %s503 = sphi 0, %s489
    %s507 = sphi 0, %s507
    %s509 = sphi 0, %s507
    %s510 = sphi 0, %s509
    %s524 = sphi 0, %s510
    %s528 = sphi 0, %s528
    %s530 = sphi 0, %s528
    %s531 = sphi 0, %s530
    %s545 = sphi 0, %s531
    %s549 = sphi 0, %s549
    %s551 = sphi 0, %s549
    %s552 = sphi 0, %s551
    %s566 = sphi 0, %s552
    %s570 = sphi 0, %s570
    %s572 = sphi 0, %s570
    %s573 = sphi 0, %s572
    %s587 = sphi 0, %s573
    %s593 = sphi 0, %s595
    %s596 = sphi 0, %s593
    %s597 = sphi 0, %s596
    %s613 = sphi 0, %s597
  $region4: #{_lambda_.1} parent=0 // loop_header_branch
    %35 = sbr.rel (%p33) target = $region8
  $region5: #{_lambda_.1} parent=0 // loop_body
    %s37 = ssub.s32 %s32, 1
    %s38 = ssub.s32 %s32, 2
    %s39 = sadd.s32 %s32, 1
    %s40 = ssub.s32 %s32, %s39
    %p41 = scmp.eq.s32.totalorder %s40, 0
    %s43 = sadd.s32 %s42, 1
    %s44 = scalar_select %p41, %s42, %s43
    %p47 = pneg %p41
    %p48 = scmp.eq.s32.totalorder %s32, 1
    %p49 = por %p47, %p48
    %p50 = scmp.ne.s32.totalorder %s42, %s45
    %p51 = scmp.eq.s32.totalorder %s32, 0
    %p52 = por %p50, %p51
    %p53 = scmp.ne.s32.totalorder %s42, %s45
    %p54 = scmp.eq.s32.totalorder %s37, 1
    %p55 = por %p53, %p54
    %p56 = scmp.ne.s32.totalorder %s45, %s46
    %p57 = scmp.eq.s32.totalorder %s37, 0
    %p58 = por %p56, %p57
    %p59 = scmp.ne.s32.totalorder %s45, %s46
    %p60 = scmp.eq.s32.totalorder %s38, 1
    %p61 = por %p59, %p60
    %p63 = scmp.ne.s32.totalorder %s46, %s62
    %p64 = scmp.eq.s32.totalorder %s38, 0
    %p65 = por %p63, %p64
    %s67 = sadd.s32 %s66, 1
    %p70 = scmp.eq.s32.totalorder %s32, 1
    %p71 = scmp.ne.s32.totalorder %s66, %s68
    %p72 = scmp.eq.s32.totalorder %s32, 0
    %p73 = por %p71, %p72
    %p74 = scmp.ne.s32.totalorder %s66, %s68
    %p75 = scmp.eq.s32.totalorder %s37, 1
    %p76 = por %p74, %p75
    %p77 = scmp.ne.s32.totalorder %s68, %s69
    %p78 = scmp.eq.s32.totalorder %s37, 0
    %p79 = por %p77, %p78
    %p80 = scmp.ne.s32.totalorder %s68, %s69
    %p81 = scmp.eq.s32.totalorder %s38, 1
    %p82 = por %p80, %p81
    %p84 = scmp.ne.s32.totalorder %s69, %s83
    %p85 = scmp.eq.s32.totalorder %s38, 0
    %p86 = por %p84, %p85
    %s88 = sadd.s32 %s87, 1
    %p91 = scmp.eq.s32.totalorder %s32, 1
    %p92 = scmp.ne.s32.totalorder %s87, %s89
    %p93 = scmp.eq.s32.totalorder %s32, 0
    %p94 = por %p92, %p93
    %p95 = scmp.ne.s32.totalorder %s87, %s89
    %p96 = scmp.eq.s32.totalorder %s37, 1
    %p97 = por %p95, %p96
    %p98 = scmp.ne.s32.totalorder %s89, %s90
    %p99 = scmp.eq.s32.totalorder %s37, 0
    %p100 = por %p98, %p99
    %p101 = scmp.ne.s32.totalorder %s89, %s90
    %p102 = scmp.eq.s32.totalorder %s38, 1
    %p103 = por %p101, %p102
    %p105 = scmp.ne.s32.totalorder %s90, %s104
    %p106 = scmp.eq.s32.totalorder %s38, 0
    %p107 = por %p105, %p106
    %s109 = sadd.s32 %s108, 1
    %p112 = scmp.eq.s32.totalorder %s32, 1
    %p113 = scmp.ne.s32.totalorder %s108, %s110
    %p114 = scmp.eq.s32.totalorder %s32, 0
    %p115 = por %p113, %p114
    %p116 = scmp.ne.s32.totalorder %s108, %s110
    %p117 = scmp.eq.s32.totalorder %s37, 1
    %p118 = por %p116, %p117
    %p119 = scmp.ne.s32.totalorder %s110, %s111
    %p120 = scmp.eq.s32.totalorder %s37, 0
    %p121 = por %p119, %p120
    %p122 = scmp.ne.s32.totalorder %s110, %s111
    %p123 = scmp.eq.s32.totalorder %s38, 1
    %p124 = por %p122, %p123
    %p126 = scmp.ne.s32.totalorder %s111, %s125
    %p127 = scmp.eq.s32.totalorder %s38, 0
    %p128 = por %p126, %p127
    %s130 = sadd.s32 %s129, 1
    %p133 = scmp.eq.s32.totalorder %s32, 1
    %p134 = scmp.ne.s32.totalorder %s129, %s131
    %p135 = scmp.eq.s32.totalorder %s32, 0
    %p136 = por %p134, %p135
    %p137 = scmp.ne.s32.totalorder %s129, %s131
    %p138 = scmp.eq.s32.totalorder %s37, 1
    %p139 = por %p137, %p138
    %p140 = scmp.ne.s32.totalorder %s131, %s132
    %p141 = scmp.eq.s32.totalorder %s37, 0
    %p142 = por %p140, %p141
    %p143 = scmp.ne.s32.totalorder %s131, %s132
    %p144 = scmp.eq.s32.totalorder %s38, 1
    %p145 = por %p143, %p144
    %p147 = scmp.ne.s32.totalorder %s132, %s146
    %p148 = scmp.eq.s32.totalorder %s38, 0
    %p149 = por %p147, %p148
    %s151 = sadd.s32 %s150, 1
    %p154 = scmp.eq.s32.totalorder %s32, 1
    %p155 = scmp.ne.s32.totalorder %s150, %s152
    %p156 = scmp.eq.s32.totalorder %s32, 0
    %p157 = por %p155, %p156
    %p158 = scmp.ne.s32.totalorder %s150, %s152
    %p159 = scmp.eq.s32.totalorder %s37, 1
    %p160 = por %p158, %p159
    %p161 = scmp.ne.s32.totalorder %s152, %s153
    %p162 = scmp.eq.s32.totalorder %s37, 0
    %p163 = por %p161, %p162
    %p164 = scmp.ne.s32.totalorder %s152, %s153
    %p165 = scmp.eq.s32.totalorder %s38, 1
    %p166 = por %p164, %p165
    %p168 = scmp.ne.s32.totalorder %s153, %s167
    %p169 = scmp.eq.s32.totalorder %s38, 0
    %p170 = por %p168, %p169
    %s172 = sadd.s32 %s171, 1
    %p175 = scmp.eq.s32.totalorder %s32, 1
    %p176 = scmp.ne.s32.totalorder %s171, %s173
    %p177 = scmp.eq.s32.totalorder %s32, 0
    %p178 = por %p176, %p177
    %p179 = scmp.ne.s32.totalorder %s171, %s173
    %p180 = scmp.eq.s32.totalorder %s37, 1
    %p181 = por %p179, %p180
    %p182 = scmp.ne.s32.totalorder %s173, %s174
    %p183 = scmp.eq.s32.totalorder %s37, 0
    %p184 = por %p182, %p183
    %p185 = scmp.ne.s32.totalorder %s173, %s174
    %p186 = scmp.eq.s32.totalorder %s38, 1
    %p187 = por %p185, %p186
    %p189 = scmp.ne.s32.totalorder %s174, %s188
    %p190 = scmp.eq.s32.totalorder %s38, 0
    %p191 = por %p189, %p190
    %s193 = sadd.s32 %s192, 1
    %p196 = scmp.eq.s32.totalorder %s32, 1
    %p197 = scmp.ne.s32.totalorder %s192, %s194
    %p198 = scmp.eq.s32.totalorder %s32, 0
    %p199 = por %p197, %p198
    %p200 = scmp.ne.s32.totalorder %s192, %s194
    %p201 = scmp.eq.s32.totalorder %s37, 1
    %p202 = por %p200, %p201
    %p203 = scmp.ne.s32.totalorder %s194, %s195
    %p204 = scmp.eq.s32.totalorder %s37, 0
    %p205 = por %p203, %p204
    %p206 = scmp.ne.s32.totalorder %s194, %s195
    %p207 = scmp.eq.s32.totalorder %s38, 1
    %p208 = por %p206, %p207
    %p210 = scmp.ne.s32.totalorder %s195, %s209
    %p211 = scmp.eq.s32.totalorder %s38, 0
    %p212 = por %p210, %p211
    %s214 = sadd.s32 %s213, 1
    %p217 = scmp.eq.s32.totalorder %s32, 1
    %p218 = scmp.ne.s32.totalorder %s213, %s215
    %p219 = scmp.eq.s32.totalorder %s32, 0
    %p220 = por %p218, %p219
    %p221 = scmp.ne.s32.totalorder %s213, %s215
    %p222 = scmp.eq.s32.totalorder %s37, 1
    %p223 = por %p221, %p222
    %p224 = scmp.ne.s32.totalorder %s215, %s216
    %p225 = scmp.eq.s32.totalorder %s37, 0
    %p226 = por %p224, %p225
    %p227 = scmp.ne.s32.totalorder %s215, %s216
    %p228 = scmp.eq.s32.totalorder %s38, 1
    %p229 = por %p227, %p228
    %p231 = scmp.ne.s32.totalorder %s216, %s230
    %p232 = scmp.eq.s32.totalorder %s38, 0
    %p233 = por %p231, %p232
    %s235 = sadd.s32 %s234, 1
    %p238 = scmp.eq.s32.totalorder %s32, 1
    %p239 = scmp.ne.s32.totalorder %s234, %s236
    %p240 = scmp.eq.s32.totalorder %s32, 0
    %p241 = por %p239, %p240
    %p242 = scmp.ne.s32.totalorder %s234, %s236
    %p243 = scmp.eq.s32.totalorder %s37, 1
    %p244 = por %p242, %p243
    %p245 = scmp.ne.s32.totalorder %s236, %s237
    %p246 = scmp.eq.s32.totalorder %s37, 0
    %p247 = por %p245, %p246
    %p248 = scmp.ne.s32.totalorder %s236, %s237
    %p249 = scmp.eq.s32.totalorder %s38, 1
    %p250 = por %p248, %p249
    %p252 = scmp.ne.s32.totalorder %s237, %s251
    %p253 = scmp.eq.s32.totalorder %s38, 0
    %p254 = por %p252, %p253
    %s256 = sadd.s32 %s255, 1
    %p259 = scmp.eq.s32.totalorder %s32, 1
    %p260 = scmp.ne.s32.totalorder %s255, %s257
    %p261 = scmp.eq.s32.totalorder %s32, 0
    %p262 = por %p260, %p261
    %p263 = scmp.ne.s32.totalorder %s255, %s257
    %p264 = scmp.eq.s32.totalorder %s37, 1
    %p265 = por %p263, %p264
    %p266 = scmp.ne.s32.totalorder %s257, %s258
    %p267 = scmp.eq.s32.totalorder %s37, 0
    %p268 = por %p266, %p267
    %p269 = scmp.ne.s32.totalorder %s257, %s258
    %p270 = scmp.eq.s32.totalorder %s38, 1
    %p271 = por %p269, %p270
    %p273 = scmp.ne.s32.totalorder %s258, %s272
    %p274 = scmp.eq.s32.totalorder %s38, 0
    %p275 = por %p273, %p274
    %s277 = sadd.s32 %s276, 1
    %p280 = scmp.eq.s32.totalorder %s32, 1
    %p281 = scmp.ne.s32.totalorder %s276, %s278
    %p282 = scmp.eq.s32.totalorder %s32, 0
    %p283 = por %p281, %p282
    %p284 = scmp.ne.s32.totalorder %s276, %s278
    %p285 = scmp.eq.s32.totalorder %s37, 1
    %p286 = por %p284, %p285
    %p287 = scmp.ne.s32.totalorder %s278, %s279
    %p288 = scmp.eq.s32.totalorder %s37, 0
    %p289 = por %p287, %p288
    %p290 = scmp.ne.s32.totalorder %s278, %s279
    %p291 = scmp.eq.s32.totalorder %s38, 1
    %p292 = por %p290, %p291
    %p294 = scmp.ne.s32.totalorder %s279, %s293
    %p295 = scmp.eq.s32.totalorder %s38, 0
    %p296 = por %p294, %p295
    %s298 = sadd.s32 %s297, 1
    %p301 = scmp.eq.s32.totalorder %s32, 1
    %p302 = scmp.ne.s32.totalorder %s297, %s299
    %p303 = scmp.eq.s32.totalorder %s32, 0
    %p304 = por %p302, %p303
    %p305 = scmp.ne.s32.totalorder %s297, %s299
    %p306 = scmp.eq.s32.totalorder %s37, 1
    %p307 = por %p305, %p306
    %p308 = scmp.ne.s32.totalorder %s299, %s300
    %p309 = scmp.eq.s32.totalorder %s37, 0
    %p310 = por %p308, %p309
    %p311 = scmp.ne.s32.totalorder %s299, %s300
    %p312 = scmp.eq.s32.totalorder %s38, 1
    %p313 = por %p311, %p312
    %p315 = scmp.ne.s32.totalorder %s300, %s314
    %p316 = scmp.eq.s32.totalorder %s38, 0
    %p317 = por %p315, %p316
    %s319 = sadd.s32 %s318, 1
    %p322 = scmp.eq.s32.totalorder %s32, 1
    %p323 = scmp.ne.s32.totalorder %s318, %s320
    %p324 = scmp.eq.s32.totalorder %s32, 0
    %p325 = por %p323, %p324
    %p326 = scmp.ne.s32.totalorder %s318, %s320
    %p327 = scmp.eq.s32.totalorder %s37, 1
    %p328 = por %p326, %p327
    %p329 = scmp.ne.s32.totalorder %s320, %s321
    %p330 = scmp.eq.s32.totalorder %s37, 0
    %p331 = por %p329, %p330
    %p332 = scmp.ne.s32.totalorder %s320, %s321
    %p333 = scmp.eq.s32.totalorder %s38, 1
    %p334 = por %p332, %p333
    %p336 = scmp.ne.s32.totalorder %s321, %s335
    %p337 = scmp.eq.s32.totalorder %s38, 0
    %p338 = por %p336, %p337
    %s340 = sadd.s32 %s339, 1
    %p343 = scmp.eq.s32.totalorder %s32, 1
    %p344 = scmp.ne.s32.totalorder %s339, %s341
    %p345 = scmp.eq.s32.totalorder %s32, 0
    %p346 = por %p344, %p345
    %p347 = scmp.ne.s32.totalorder %s339, %s341
    %p348 = scmp.eq.s32.totalorder %s37, 1
    %p349 = por %p347, %p348
    %p350 = scmp.ne.s32.totalorder %s341, %s342
    %p351 = scmp.eq.s32.totalorder %s37, 0
    %p352 = por %p350, %p351
    %p353 = scmp.ne.s32.totalorder %s341, %s342
    %p354 = scmp.eq.s32.totalorder %s38, 1
    %p355 = por %p353, %p354
    %p357 = scmp.ne.s32.totalorder %s342, %s356
    %p358 = scmp.eq.s32.totalorder %s38, 0
    %p359 = por %p357, %p358
    %s361 = sadd.s32 %s360, 1
    %p364 = scmp.eq.s32.totalorder %s32, 1
    %p365 = scmp.ne.s32.totalorder %s360, %s362
    %p366 = scmp.eq.s32.totalorder %s32, 0
    %p367 = por %p365, %p366
    %p368 = scmp.ne.s32.totalorder %s360, %s362
    %p369 = scmp.eq.s32.totalorder %s37, 1
    %p370 = por %p368, %p369
    %p371 = scmp.ne.s32.totalorder %s362, %s363
    %p372 = scmp.eq.s32.totalorder %s37, 0
    %p373 = por %p371, %p372
    %p374 = scmp.ne.s32.totalorder %s362, %s363
    %p375 = scmp.eq.s32.totalorder %s38, 1
    %p376 = por %p374, %p375
    %p378 = scmp.ne.s32.totalorder %s363, %s377
    %p379 = scmp.eq.s32.totalorder %s38, 0
    %p380 = por %p378, %p379
    %s382 = sadd.s32 %s381, 1
    %p385 = scmp.eq.s32.totalorder %s32, 1
    %p386 = scmp.ne.s32.totalorder %s381, %s383
    %p387 = scmp.eq.s32.totalorder %s32, 0
    %p388 = por %p386, %p387
    %p389 = scmp.ne.s32.totalorder %s381, %s383
    %p390 = scmp.eq.s32.totalorder %s37, 1
    %p391 = por %p389, %p390
    %p392 = scmp.ne.s32.totalorder %s383, %s384
    %p393 = scmp.eq.s32.totalorder %s37, 0
    %p394 = por %p392, %p393
    %p395 = scmp.ne.s32.totalorder %s383, %s384
    %p396 = scmp.eq.s32.totalorder %s38, 1
    %p397 = por %p395, %p396
    %p399 = scmp.ne.s32.totalorder %s384, %s398
    %p400 = scmp.eq.s32.totalorder %s38, 0
    %p401 = por %p399, %p400
    %s403 = sadd.s32 %s402, 1
    %p406 = scmp.eq.s32.totalorder %s32, 1
    %p407 = scmp.ne.s32.totalorder %s402, %s404
    %p408 = scmp.eq.s32.totalorder %s32, 0
    %p409 = por %p407, %p408
    %p410 = scmp.ne.s32.totalorder %s402, %s404
    %p411 = scmp.eq.s32.totalorder %s37, 1
    %p412 = por %p410, %p411
    %p413 = scmp.ne.s32.totalorder %s404, %s405
    %p414 = scmp.eq.s32.totalorder %s37, 0
    %p415 = por %p413, %p414
    %p416 = scmp.ne.s32.totalorder %s404, %s405
    %p417 = scmp.eq.s32.totalorder %s38, 1
    %p418 = por %p416, %p417
    %p420 = scmp.ne.s32.totalorder %s405, %s419
    %p421 = scmp.eq.s32.totalorder %s38, 0
    %p422 = por %p420, %p421
    %s424 = sadd.s32 %s423, 1
    %p427 = scmp.eq.s32.totalorder %s32, 1
    %p428 = scmp.ne.s32.totalorder %s423, %s425
    %p429 = scmp.eq.s32.totalorder %s32, 0
    %p430 = por %p428, %p429
    %p431 = scmp.ne.s32.totalorder %s423, %s425
    %p432 = scmp.eq.s32.totalorder %s37, 1
    %p433 = por %p431, %p432
    %p434 = scmp.ne.s32.totalorder %s425, %s426
    %p435 = scmp.eq.s32.totalorder %s37, 0
    %p436 = por %p434, %p435
    %p437 = scmp.ne.s32.totalorder %s425, %s426
    %p438 = scmp.eq.s32.totalorder %s38, 1
    %p439 = por %p437, %p438
    %p441 = scmp.ne.s32.totalorder %s426, %s440
    %p442 = scmp.eq.s32.totalorder %s38, 0
    %p443 = por %p441, %p442
    %s445 = sadd.s32 %s444, 1
    %p448 = scmp.eq.s32.totalorder %s32, 1
    %p449 = scmp.ne.s32.totalorder %s444, %s446
    %p450 = scmp.eq.s32.totalorder %s32, 0
    %p451 = por %p449, %p450
    %p452 = scmp.ne.s32.totalorder %s444, %s446
    %p453 = scmp.eq.s32.totalorder %s37, 1
    %p454 = por %p452, %p453
    %p455 = scmp.ne.s32.totalorder %s446, %s447
    %p456 = scmp.eq.s32.totalorder %s37, 0
    %p457 = por %p455, %p456
    %p458 = scmp.ne.s32.totalorder %s446, %s447
    %p459 = scmp.eq.s32.totalorder %s38, 1
    %p460 = por %p458, %p459
    %p462 = scmp.ne.s32.totalorder %s447, %s461
    %p463 = scmp.eq.s32.totalorder %s38, 0
    %p464 = por %p462, %p463
    %s466 = sadd.s32 %s465, 1
    %p469 = scmp.eq.s32.totalorder %s32, 1
    %p470 = scmp.ne.s32.totalorder %s465, %s467
    %p471 = scmp.eq.s32.totalorder %s32, 0
    %p472 = por %p470, %p471
    %p473 = scmp.ne.s32.totalorder %s465, %s467
    %p474 = scmp.eq.s32.totalorder %s37, 1
    %p475 = por %p473, %p474
    %p476 = scmp.ne.s32.totalorder %s467, %s468
    %p477 = scmp.eq.s32.totalorder %s37, 0
    %p478 = por %p476, %p477
    %p479 = scmp.ne.s32.totalorder %s467, %s468
    %p480 = scmp.eq.s32.totalorder %s38, 1
    %p481 = por %p479, %p480
    %p483 = scmp.ne.s32.totalorder %s468, %s482
    %p484 = scmp.eq.s32.totalorder %s38, 0
    %p485 = por %p483, %p484
    %s487 = sadd.s32 %s486, 1
    %p490 = scmp.eq.s32.totalorder %s32, 1
    %p491 = scmp.ne.s32.totalorder %s486, %s488
    %p492 = scmp.eq.s32.totalorder %s32, 0
    %p493 = por %p491, %p492
    %p494 = scmp.ne.s32.totalorder %s486, %s488
    %p495 = scmp.eq.s32.totalorder %s37, 1
    %p496 = por %p494, %p495
    %p497 = scmp.ne.s32.totalorder %s488, %s489
    %p498 = scmp.eq.s32.totalorder %s37, 0
    %p499 = por %p497, %p498
    %p500 = scmp.ne.s32.totalorder %s488, %s489
    %p501 = scmp.eq.s32.totalorder %s38, 1
    %p502 = por %p500, %p501
    %p504 = scmp.ne.s32.totalorder %s489, %s503
    %p505 = scmp.eq.s32.totalorder %s38, 0
    %p506 = por %p504, %p505
    %s508 = sadd.s32 %s507, 1
    %p511 = scmp.eq.s32.totalorder %s32, 1
    %p512 = scmp.ne.s32.totalorder %s507, %s509
    %p513 = scmp.eq.s32.totalorder %s32, 0
    %p514 = por %p512, %p513
    %p515 = scmp.ne.s32.totalorder %s507, %s509
    %p516 = scmp.eq.s32.totalorder %s37, 1
    %p517 = por %p515, %p516
    %p518 = scmp.ne.s32.totalorder %s509, %s510
    %p519 = scmp.eq.s32.totalorder %s37, 0
    %p520 = por %p518, %p519
    %p521 = scmp.ne.s32.totalorder %s509, %s510
    %p522 = scmp.eq.s32.totalorder %s38, 1
    %p523 = por %p521, %p522
    %p525 = scmp.ne.s32.totalorder %s510, %s524
    %p526 = scmp.eq.s32.totalorder %s38, 0
    %p527 = por %p525, %p526
    %s529 = sadd.s32 %s528, 1
    %p532 = scmp.eq.s32.totalorder %s32, 1
    %p533 = scmp.ne.s32.totalorder %s528, %s530
    %p534 = scmp.eq.s32.totalorder %s32, 0
    %p535 = por %p533, %p534
    %p536 = scmp.ne.s32.totalorder %s528, %s530
    %p537 = scmp.eq.s32.totalorder %s37, 1
    %p538 = por %p536, %p537
    %p539 = scmp.ne.s32.totalorder %s530, %s531
    %p540 = scmp.eq.s32.totalorder %s37, 0
    %p541 = por %p539, %p540
    %p542 = scmp.ne.s32.totalorder %s530, %s531
    %p543 = scmp.eq.s32.totalorder %s38, 1
    %p544 = por %p542, %p543
    %p546 = scmp.ne.s32.totalorder %s531, %s545
    %p547 = scmp.eq.s32.totalorder %s38, 0
    %p548 = por %p546, %p547
    %s550 = sadd.s32 %s549, 1
    %p553 = scmp.eq.s32.totalorder %s32, 1
    %p554 = scmp.ne.s32.totalorder %s549, %s551
    %p555 = scmp.eq.s32.totalorder %s32, 0
    %p556 = por %p554, %p555
    %p557 = scmp.ne.s32.totalorder %s549, %s551
    %p558 = scmp.eq.s32.totalorder %s37, 1
    %p559 = por %p557, %p558
    %p560 = scmp.ne.s32.totalorder %s551, %s552
    %p561 = scmp.eq.s32.totalorder %s37, 0
    %p562 = por %p560, %p561
    %p563 = scmp.ne.s32.totalorder %s551, %s552
    %p564 = scmp.eq.s32.totalorder %s38, 1
    %p565 = por %p563, %p564
    %p567 = scmp.ne.s32.totalorder %s552, %s566
    %p568 = scmp.eq.s32.totalorder %s38, 0
    %p569 = por %p567, %p568
    %s571 = sadd.s32 %s570, 1
    %p574 = scmp.eq.s32.totalorder %s32, 1
    %p575 = scmp.ne.s32.totalorder %s570, %s572
    %p576 = scmp.eq.s32.totalorder %s32, 0
    %p577 = por %p575, %p576
    %p578 = scmp.ne.s32.totalorder %s570, %s572
    %p579 = scmp.eq.s32.totalorder %s37, 1
    %p580 = por %p578, %p579
    %p581 = scmp.ne.s32.totalorder %s572, %s573
    %p582 = scmp.eq.s32.totalorder %s37, 0
    %p583 = por %p581, %p582
    %p584 = scmp.ne.s32.totalorder %s572, %s573
    %p585 = scmp.eq.s32.totalorder %s38, 1
    %p586 = por %p584, %p585
    %p588 = scmp.ne.s32.totalorder %s573, %s587
    %p589 = scmp.eq.s32.totalorder %s38, 0
    %p590 = por %p588, %p589
    %s591 = ssub.s32 %s32, %s39
    %p592 = scmp.eq.s32.totalorder %s591, 0
    %s594 = sadd.s32 %s593, 1
    %s595 = scalar_select %p592, %s593, %s594
    %p598 = pneg %p592
    %p599 = scmp.eq.s32.totalorder %s32, 1
    %p600 = por %p598, %p599
    %p601 = scmp.ne.s32.totalorder %s593, %s596
    %p602 = scmp.eq.s32.totalorder %s32, 0
    %p603 = por %p601, %p602
    %p604 = scmp.ne.s32.totalorder %s593, %s596
    %p605 = scmp.eq.s32.totalorder %s37, 1
    %p606 = por %p604, %p605
    %p607 = scmp.ne.s32.totalorder %s596, %s597
    %p608 = scmp.eq.s32.totalorder %s37, 0
    %p609 = por %p607, %p608
    %p610 = scmp.ne.s32.totalorder %s596, %s597
    %p611 = scmp.eq.s32.totalorder %s38, 1
    %p612 = por %p610, %p611
    %p614 = scmp.ne.s32.totalorder %s597, %s613
    %p615 = scmp.eq.s32.totalorder %s38, 0
    %p616 = por %p614, %p615
    %p617 = scmp.le.s32.totalorder 1, %s32
    %p618 = scmp.lt.s32.totalorder %s32, 3
    %p619 = pnand %p617, %p618
    %p620 = pneg %p619
    // Predicated region
    $region9: #{_lambda_.1} parent=5 // pred_check
      _
    $region10: #{_lambda_.1} parent=5 // pred_check_branch
      %622 = sbr.rel (%p619) target = $region12
    $region11: #{_lambda_.1} parent=5 // pred_region
      %s623 = ssub.s32 %s32, 1
      // Predicated region
      $region13: #{_lambda_.1} parent=11 // pred_check
        %p624 = pneg %p79
      $region14: #{_lambda_.1} parent=11 // pred_check_branch
        %626 = sbr.rel (%p624) target = $region16
      $region15: #{_lambda_.1} parent=11 // pred_region
        _
      $region16: #{_lambda_.1} parent=11 // pred_fallthru
        _
      // Predicated region
      $region17: #{_lambda_.1} parent=11 // pred_check
        %p627 = pneg %p100
      $region18: #{_lambda_.1} parent=11 // pred_check_branch
        %629 = sbr.rel (%p627) target = $region20
      $region19: #{_lambda_.1} parent=11 // pred_region
        _
      $region20: #{_lambda_.1} parent=11 // pred_fallthru
        _
      // Predicated region
      $region21: #{_lambda_.1} parent=11 // pred_check
        %p630 = pneg %p121
      $region22: #{_lambda_.1} parent=11 // pred_check_branch
        %632 = sbr.rel (%p630) target = $region24
      $region23: #{_lambda_.1} parent=11 // pred_region
        _
      $region24: #{_lambda_.1} parent=11 // pred_fallthru
        _
      // Predicated region
      $region25: #{_lambda_.1} parent=11 // pred_check
        %p633 = pneg %p142
      $region26: #{_lambda_.1} parent=11 // pred_check_branch
        %635 = sbr.rel (%p633) target = $region28
      $region27: #{_lambda_.1} parent=11 // pred_region
        _
      $region28: #{_lambda_.1} parent=11 // pred_fallthru
        _
      // Predicated region
      $region29: #{_lambda_.1} parent=11 // pred_check
        %p636 = pneg %p163
      $region30: #{_lambda_.1} parent=11 // pred_check_branch
        %638 = sbr.rel (%p636) target = $region32
      $region31: #{_lambda_.1} parent=11 // pred_region
        _
      $region32: #{_lambda_.1} parent=11 // pred_fallthru
        _
      // Predicated region
      $region33: #{_lambda_.1} parent=11 // pred_check
        %p639 = pneg %p184
      $region34: #{_lambda_.1} parent=11 // pred_check_branch
        %641 = sbr.rel (%p639) target = $region36
      $region35: #{_lambda_.1} parent=11 // pred_region
        _
      $region36: #{_lambda_.1} parent=11 // pred_fallthru
        _
      // Predicated region
      $region37: #{_lambda_.1} parent=11 // pred_check
        %p642 = pneg %p205
      $region38: #{_lambda_.1} parent=11 // pred_check_branch
        %644 = sbr.rel (%p642) target = $region40
      $region39: #{_lambda_.1} parent=11 // pred_region
        _
      $region40: #{_lambda_.1} parent=11 // pred_fallthru
        _
      // Predicated region
      $region41: #{_lambda_.1} parent=11 // pred_check
        %p645 = pneg %p226
      $region42: #{_lambda_.1} parent=11 // pred_check_branch
        %647 = sbr.rel (%p645) target = $region44
      $region43: #{_lambda_.1} parent=11 // pred_region
        _
      $region44: #{_lambda_.1} parent=11 // pred_fallthru
        _
      // Predicated region
      $region45: #{_lambda_.1} parent=11 // pred_check
        %p648 = pneg %p247
      $region46: #{_lambda_.1} parent=11 // pred_check_branch
        %650 = sbr.rel (%p648) target = $region48
      $region47: #{_lambda_.1} parent=11 // pred_region
        _
      $region48: #{_lambda_.1} parent=11 // pred_fallthru
        _
      // Predicated region
      $region49: #{_lambda_.1} parent=11 // pred_check
        %p651 = pneg %p268
      $region50: #{_lambda_.1} parent=11 // pred_check_branch
        %653 = sbr.rel (%p651) target = $region52
      $region51: #{_lambda_.1} parent=11 // pred_region
        _
      $region52: #{_lambda_.1} parent=11 // pred_fallthru
        _
      // Predicated region
      $region53: #{_lambda_.1} parent=11 // pred_check
        %p654 = pneg %p289
      $region54: #{_lambda_.1} parent=11 // pred_check_branch
        %656 = sbr.rel (%p654) target = $region56
      $region55: #{_lambda_.1} parent=11 // pred_region
        _
      $region56: #{_lambda_.1} parent=11 // pred_fallthru
        _
      // Predicated region
      $region57: #{_lambda_.1} parent=11 // pred_check
        %p657 = pneg %p310
      $region58: #{_lambda_.1} parent=11 // pred_check_branch
        %659 = sbr.rel (%p657) target = $region60
      $region59: #{_lambda_.1} parent=11 // pred_region
        _
      $region60: #{_lambda_.1} parent=11 // pred_fallthru
        _
      // Predicated region
      $region61: #{_lambda_.1} parent=11 // pred_check
        %p660 = pneg %p331
      $region62: #{_lambda_.1} parent=11 // pred_check_branch
        %662 = sbr.rel (%p660) target = $region64
      $region63: #{_lambda_.1} parent=11 // pred_region
        _
      $region64: #{_lambda_.1} parent=11 // pred_fallthru
        _
      // Predicated region
      $region65: #{_lambda_.1} parent=11 // pred_check
        %p663 = pneg %p352
      $region66: #{_lambda_.1} parent=11 // pred_check_branch
        %665 = sbr.rel (%p663) target = $region68
      $region67: #{_lambda_.1} parent=11 // pred_region
        _
      $region68: #{_lambda_.1} parent=11 // pred_fallthru
        _
      // Predicated region
      $region69: #{_lambda_.1} parent=11 // pred_check
        %p666 = pneg %p373
      $region70: #{_lambda_.1} parent=11 // pred_check_branch
        %668 = sbr.rel (%p666) target = $region72
      $region71: #{_lambda_.1} parent=11 // pred_region
        _
      $region72: #{_lambda_.1} parent=11 // pred_fallthru
        _
      // Predicated region
      $region73: #{_lambda_.1} parent=11 // pred_check
        %p669 = pneg %p394
      $region74: #{_lambda_.1} parent=11 // pred_check_branch
        %671 = sbr.rel (%p669) target = $region76
      $region75: #{_lambda_.1} parent=11 // pred_region
        _
      $region76: #{_lambda_.1} parent=11 // pred_fallthru
        _
      // Predicated region
      $region77: #{_lambda_.1} parent=11 // pred_check
        %p672 = pneg %p415
      $region78: #{_lambda_.1} parent=11 // pred_check_branch
        %674 = sbr.rel (%p672) target = $region80
      $region79: #{_lambda_.1} parent=11 // pred_region
        _
      $region80: #{_lambda_.1} parent=11 // pred_fallthru
        _
      // Predicated region
      $region81: #{_lambda_.1} parent=11 // pred_check
        %p675 = pneg %p436
      $region82: #{_lambda_.1} parent=11 // pred_check_branch
        %677 = sbr.rel (%p675) target = $region84
      $region83: #{_lambda_.1} parent=11 // pred_region
        _
      $region84: #{_lambda_.1} parent=11 // pred_fallthru
        _
      // Predicated region
      $region85: #{_lambda_.1} parent=11 // pred_check
        %p678 = pneg %p457
      $region86: #{_lambda_.1} parent=11 // pred_check_branch
        %680 = sbr.rel (%p678) target = $region88
      $region87: #{_lambda_.1} parent=11 // pred_region
        _
      $region88: #{_lambda_.1} parent=11 // pred_fallthru
        _
      // Predicated region
      $region89: #{_lambda_.1} parent=11 // pred_check
        %p681 = pneg %p478
      $region90: #{_lambda_.1} parent=11 // pred_check_branch
        %683 = sbr.rel (%p681) target = $region92
      $region91: #{_lambda_.1} parent=11 // pred_region
        _
      $region92: #{_lambda_.1} parent=11 // pred_fallthru
        _
      // Predicated region
      $region93: #{_lambda_.1} parent=11 // pred_check
        %p684 = pneg %p499
      $region94: #{_lambda_.1} parent=11 // pred_check_branch
        %686 = sbr.rel (%p684) target = $region96
      $region95: #{_lambda_.1} parent=11 // pred_region
        _
      $region96: #{_lambda_.1} parent=11 // pred_fallthru
        _
      // Predicated region
      $region97: #{_lambda_.1} parent=11 // pred_check
        %p687 = pneg %p520
      $region98: #{_lambda_.1} parent=11 // pred_check_branch
        %689 = sbr.rel (%p687) target = $region100
      $region99: #{_lambda_.1} parent=11 // pred_region
        _
      $region100: #{_lambda_.1} parent=11 // pred_fallthru
        _
      // Predicated region
      $region101: #{_lambda_.1} parent=11 // pred_check
        %p690 = pneg %p541
      $region102: #{_lambda_.1} parent=11 // pred_check_branch
        %692 = sbr.rel (%p690) target = $region104
      $region103: #{_lambda_.1} parent=11 // pred_region
        _
      $region104: #{_lambda_.1} parent=11 // pred_fallthru
        _
      // Predicated region
      $region105: #{_lambda_.1} parent=11 // pred_check
        %p693 = pneg %p562
      $region106: #{_lambda_.1} parent=11 // pred_check_branch
        %695 = sbr.rel (%p693) target = $region108
      $region107: #{_lambda_.1} parent=11 // pred_region
        _
      $region108: #{_lambda_.1} parent=11 // pred_fallthru
        _
      // Predicated region
      $region109: #{_lambda_.1} parent=11 // pred_check
        %p696 = pneg %p583
      $region110: #{_lambda_.1} parent=11 // pred_check_branch
        %698 = sbr.rel (%p696) target = $region112
      $region111: #{_lambda_.1} parent=11 // pred_region
        _
      $region112: #{_lambda_.1} parent=11 // pred_fallthru
        _
    $region12: #{_lambda_.1} parent=5 // pred_fallthru
      _
    %p699 = scmp.lt.s32.totalorder %s32, 2
    // Predicated region
    $region113: #{_lambda_.1} parent=5 // pred_check
      %p700 = pneg %p699
    $region114: #{_lambda_.1} parent=5 // pred_check_branch
      %702 = sbr.rel (%p700) target = $region116
    $region115: #{_lambda_.1} parent=5 // pred_region
      // Predicated region
      $region117: #{_lambda_.1} parent=115 // pred_check
        %p703 = pneg %p52
      $region118: #{_lambda_.1} parent=115 // pred_check_branch
        %705 = sbr.rel (%p703) target = $region120
      $region119: #{_lambda_.1} parent=115 // pred_region
        %p706 = scmp.lt.s32.totalorder %s32, 1
        %s707 = scalar_select %p706, %s32, 1
        %s708 = smul.addr %s707, 4
        %s709 = smul.addr %s708, 4
        %s710 = scalar_lea.vmem %s0, %s709
      $region120: #{_lambda_.1} parent=115 // pred_fallthru
        _
    $region116: #{_lambda_.1} parent=5 // pred_fallthru
      _
    %p711 = scmp.le.s32.totalorder 1, %s32
    %p712 = scmp.lt.s32.totalorder %s32, 3
    %p713 = pnand %p711, %p712
    %p714 = pneg %p713
    // Predicated region
    $region121: #{_lambda_.1} parent=5 // pred_check
      _
    $region122: #{_lambda_.1} parent=5 // pred_check_branch
      %716 = sbr.rel (%p713) target = $region124
    $region123: #{_lambda_.1} parent=5 // pred_region
      %s717 = ssub.s32 %s32, 1
      %p718 = scmp.lt.s32.totalorder %s37, 1
      %s719 = scalar_select %p718, %s37, 1
      %s720 = smul.addr %s719, 4
      %s721 = smul.addr %s720, 4
      %s722 = scalar_lea.vmem %s0, %s721
      %p723 = pneg %p58
      %p724 = pneg %p55
      %p725 = pneg %p79
      %p726 = pneg %p76
      %p727 = pneg %p100
      %p728 = pneg %p97
      %p729 = pneg %p121
      %p730 = pneg %p118
      %p731 = pneg %p142
      %p732 = pneg %p139
      %p733 = pneg %p163
      %p734 = pneg %p160
      %p735 = pneg %p184
      %p736 = pneg %p181
      %p737 = pneg %p205
      %p738 = pneg %p202
      %p739 = pneg %p226
      %p740 = pneg %p223
      %p741 = pneg %p247
      %p742 = pneg %p244
      %p743 = pneg %p268
      %p744 = pneg %p265
      %p745 = pneg %p289
      %p746 = pneg %p286
      %p747 = pneg %p310
      %p748 = pneg %p307
      %p749 = pneg %p331
      %p750 = pneg %p328
      %p751 = pneg %p352
      %p752 = pneg %p349
      %p753 = pneg %p373
      %p754 = pneg %p370
      %p755 = pneg %p394
      %p756 = pneg %p391
      %p757 = pneg %p415
      %p758 = pneg %p412
      %p759 = pneg %p436
      %p760 = pneg %p433
      %p761 = pneg %p457
      %p762 = pneg %p454
      %p763 = pneg %p478
      %p764 = pneg %p475
      %p765 = pneg %p499
      %p766 = pneg %p496
      %p767 = pneg %p520
      %p768 = pneg %p517
      %p769 = pneg %p541
      %p770 = pneg %p538
      %p771 = pneg %p562
      %p772 = pneg %p559
      %p773 = pneg %p583
      %p774 = pneg %p580
      %p775 = pneg %p609
      %p776 = pneg %p606
      %p777 = scmp.lt.s32.totalorder %s37, 1
      %s778 = scalar_select %p777, %s37, 1
      %s779 = smul.addr %s778, 4
      %s780 = smul.addr %s779, 2
      %s781 = scalar_lea.vmem %s26, %s780
      %p782 = scmp.lt.s32.totalorder %s37, 1
      %s783 = scalar_select %p782, %s37, 1
      %s784 = smul.addr %s783, 4
      %s785 = smul.addr %s784, 4
      %s786 = scalar_lea.vmem %s0, %s785
      %p787 = scmp.lt.s32.totalorder %s37, 1
      %s788 = scalar_select %p787, %s37, 1
      %s789 = smul.addr %s788, 4
      %s790 = smul.addr %s789, 2
      %s791 = scalar_lea.vmem %s26, %s790
      %v792 = vld [vmem:[%s786] sm:$0xff]
      %v793 = vld [vmem:[%s786 + $0x8] sm:$0xff]
      %v796 = vcombine.high %v792, %v792
      %v797 = vcombine.high %v793, %v793
      %vm800 = vcmask 1043456
      %v801 = vsel %vm800, %v792, 0.0
      %v802 = vsel %vm800, %v796, 0.0
      %v803 = vadd.f32 %v801, %v802
      %v804 = vsel %vm800, %v793, 0.0
      %v805 = vadd.f32 %v803, %v804
      %v806 = vsel %vm800, %v797, 0.0
      %v807 = vadd.f32 %v805, %v806
      %808 = vadd.xlane.f32.xlu0 %v807
      %v809 = vpop.xlane.xlu0 %808
      %v810 = vrcp.pop 512.0
      %v811 = vmul.f32 %v809, %v810
      %v814 = vunpack.c.l.s4 839922192
      %v815 = vunpack.c.0.s8 %v814
      %v816 = vlaneseq
      %v817 = vshrl.u32 %v816, 7
      %v818 = vsub.s32 %v815, %v817
      %v819 = vrot.slane %v811, %v818
      %v821 = vsub.f32 %v792, %v819
      %v822 = vsub.f32 %v793, %v819
      %v823 = vmul.f32 %v821, %v821
      %v824 = vmul.f32 %v822, %v822
      %v827 = vcombine.high %v823, %v823
      %v828 = vcombine.high %v824, %v824
      %v831 = vsel %vm800, %v823, 0.0
      %v832 = vsel %vm800, %v827, 0.0
      %v833 = vadd.f32 %v831, %v832
      %v834 = vsel %vm800, %v824, 0.0
      %v835 = vadd.f32 %v833, %v834
      %v836 = vsel %vm800, %v828, 0.0
      %v837 = vadd.f32 %v835, %v836
      %838 = vadd.xlane.f32.xlu0 %v837
      %v839 = vpop.xlane.xlu0 %838
      %v840 = vmul.f32 %v839, %v810
      %v841 = vadd.f32 %v840, 1e-05
      %v842 = vrsqrt.pop %v841
      %v845 = vunpack.c.l.s4 839922192
      %v846 = vunpack.c.0.s8 %v845
      %v847 = vlaneseq
      %v848 = vshrl.u32 %v847, 7
      %v849 = vsub.s32 %v846, %v848
      %v850 = vrot.slane %v842, %v849
      %v852 = vmul.f32 %v821, %v850
      %v853 = vmul.f32 %v822, %v850
      %v854 = vld [vmem:[%s8] sm:$0xf]
      %856 = vset.pattern.permute.xlu0 0
      %857 = vperm.xlu0 %856, %v854
      %v858 = vpop.permute.xlu0 %857
      %v860 = vunpack.c.l.s4 839922192
      %v861 = vunpack.c.0.s8 %v860
      %v862 = vlaneseq
      %v863 = vshrl.u32 %v862, 7
      %v864 = vsub.s32 %v861, %v863
      %v865 = vrot.slane %v858, %v864
      %v867 = vmul.f32 %v852, %v865
      %v868 = vmul.f32 %v853, %v865
      %v869 = vld [vmem:[%s9] sm:$0xf]
      %871 = vset.pattern.permute.xlu0 0
      %872 = vperm.xlu0 %871, %v869
      %v873 = vpop.permute.xlu0 %872
      %v875 = vunpack.c.l.s4 839922192
      %v876 = vunpack.c.0.s8 %v875
      %v877 = vlaneseq
      %v878 = vshrl.u32 %v877, 7
      %v879 = vsub.s32 %v876, %v878
      %v880 = vrot.slane %v873, %v879
      %v882 = vadd.f32 %v867, %v880
      %v883 = vadd.f32 %v868, %v880
      %v886 = vcombine.high %v882, %v882
      %v887 = vcombine.high %v883, %v883
      %890 = vrot.lane.b32.xlu0 %v882, 17
      %v891 = vpop.permute.xlu0 %890
      %892 = vrot.lane.b32.xlu0 %v886, 17
      %v893 = vpop.permute.xlu0 %892
      %894 = vrot.lane.b32.xlu0 %v883, 17
      %v895 = vpop.permute.xlu0 %894
      %896 = vrot.lane.b32.xlu0 %v887, 17
      %v897 = vpop.permute.xlu0 %896
      %v898 = vlaneseq
      %v899 = vand.u32 %v898, 127
      %vm900 = vcmp.lt.s32.totalorder %v899, 17
      %v901 = vsel %vm900, %v895, %v897
      %v902 = vsel %vm900, %v893, %v895
      %v903 = vsel %vm900, %v891, %v893
      %v904 = vsel %vm900, %v897, %v891
      %v905 = vld [vmem:[%s1] sm:$0xf]
      %v907 = vlaneseq
      %v908 = vshrl.u32 %v907, 7
      %v909 = vsub.s32 0, %v908
      %v910 = vrot.slane %v905, %v909
      %v911 = vlaneseq
      %v912 = vshrl.u32 %v911, 7
      %v913 = vsub.s32 1, %v912
      %v914 = vrot.slane %v905, %v913
      %v915 = vlaneseq
      %v916 = vshrl.u32 %v915, 7
      %v917 = vsub.s32 2, %v916
      %v918 = vrot.slane %v905, %v917
      %v919 = vlaneseq
      %v920 = vshrl.u32 %v919, 7
      %v921 = vsub.s32 3, %v920
      %v922 = vrot.slane %v905, %v921
      %v927 = vmul.f32 %v904, %v910
      %v928 = vmul.f32 %v903, %v914
      %v929 = vmul.f32 %v902, %v918
      %v930 = vmul.f32 %v901, %v922
      %v931 = vld [vmem:[%s16] sm:$0xff]
      %v932 = vld [vmem:[%s16 + $0x8] sm:$0xff]
      %v933 = vld [vmem:[%s16 + $0x10] sm:$0xff]
      %v934 = vld [vmem:[%s16 + $0x18] sm:$0xff]
      %v935 = vld [vmem:[%s16 + $0x20] sm:$0x3]
      %936 = vrot.lane.b32.xlu0 %v882, 16
      %v937 = vpop.permute.xlu0 %936
      %938 = vrot.lane.b32.xlu0 %v886, 16
      %v939 = vpop.permute.xlu0 %938
      %940 = vrot.lane.b32.xlu0 %v883, 16
      %v941 = vpop.permute.xlu0 %940
      %942 = vrot.lane.b32.xlu0 %v887, 16
      %v943 = vpop.permute.xlu0 %942
      %vm944 = vcmp.lt.s32.totalorder %v899, 16
      %v945 = vsel %vm944, %v941, %v943
      %v946 = vsel %vm944, %v939, %v941
      %v947 = vsel %vm944, %v937, %v939
      %v948 = vsel %vm944, %v943, %v937
      %s949 = scalar_lea.vmem %s1, 4
      %v950 = vld [vmem:[%s949] sm:$0xf]
      %v952 = vlaneseq
      %v953 = vshrl.u32 %v952, 7
      %v954 = vsub.s32 0, %v953
      %v955 = vrot.slane %v950, %v954
      %v956 = vlaneseq
      %v957 = vshrl.u32 %v956, 7
      %v958 = vsub.s32 1, %v957
      %v959 = vrot.slane %v950, %v958
      %v960 = vlaneseq
      %v961 = vshrl.u32 %v960, 7
      %v962 = vsub.s32 2, %v961
      %v963 = vrot.slane %v950, %v962
      %v964 = vlaneseq
      %v965 = vshrl.u32 %v964, 7
      %v966 = vsub.s32 3, %v965
      %v967 = vrot.slane %v950, %v966
      %v972 = vmul.f32 %v948, %v955
      %v973 = vmul.f32 %v947, %v959
      %v974 = vmul.f32 %v946, %v963
      %v975 = vmul.f32 %v945, %v967
      %s976 = scalar_lea.vmem %s16, 40
      %v977 = vld [vmem:[%s976] sm:$0xff]
      %v978 = vld [vmem:[%s976 + $0x8] sm:$0xff]
      %v979 = vld [vmem:[%s976 + $0x10] sm:$0xff]
      %v980 = vld [vmem:[%s976 + $0x18] sm:$0xff]
      %v981 = vld [vmem:[%s976 + $0x20] sm:$0x3]
      %vm982 = vcmask 31744
      %v984 = vsel %vm982, %v977, 0
      %v987 = vsel %vm982, %v978, 0
      %v990 = vsel %vm982, %v979, 0
      %v993 = vsel %vm982, %v980, 0
      %v996 = vsel %vm982, %v981, 0
      %v999 = vsel %vm800, %v972, 0
      %v1002 = vsel %vm800, %v973, 0
      %v1005 = vsel %vm800, %v974, 0
      %v1008 = vsel %vm800, %v975, 0
      %1010 = vmatprep.subr.mxu0 %v1002
      %1011 = vmatpush1.msra.mxu0 %v999
      %1012 = vmatprep.subr.mxu0 0.0
      %1013 = vmatpush1.msra.mxu0 0.0
      %1014 = vmatprep.subr.mxu0 0.0
      %1015 = vmatpush1.msra.mxu0 0.0
      %1016 = vmatprep.subr.mxu0 0.0
      %1017 = vmatpush1.msra.mxu0 0.0
      %1018 = vmatprep.subr.mxu0 0.0
      %1019 = vmatpush1.msra.mxu0 0.0
      %1020 = vmatprep.subr.mxu0 0.0
      %1021 = vmatpush1.msra.mxu0 0.0
      %1022 = vmatprep.subr.mxu0 0.0
      %1023 = vmatpush1.msra.mxu0 0.0
      %1024 = vmatprep.subr.mxu0 0.0
      %1025 = vmatpush1.msra.mxu0 0.0
      %1026 = vmatprep.subr.mxu0 0.0
      %1027 = vmatpush1.msra.mxu0 0.0
      %1028 = vmatprep.subr.mxu0 0.0
      %1029 = vmatpush1.msra.mxu0 0.0
      %1030 = vmatprep.subr.mxu0 0.0
      %1031 = vmatpush1.msra.mxu0 0.0
      %1032 = vmatprep.subr.mxu0 0.0
      %1033 = vmatpush1.msra.mxu0 0.0
      %1034 = vmatprep.subr.mxu0 0.0
      %1035 = vmatpush1.msra.mxu0 0.0
      %1036 = vmatprep.subr.mxu0 0.0
      %1037 = vmatpush1.msra.mxu0 0.0
      %1038 = vmatprep.subr.mxu0 0.0
      %1039 = vmatpush1.msra.mxu0 0.0
      %1040 = vmatprep.subr.mxu0 0.0
      %1041 = vmatpush1.msra.mxu0 0.0
      %1042 = vmatprep.subr.mxu0 0.0
      %1043 = vmatpush1.msra.mxu0 0.0
      %1044 = vmatprep.subr.mxu0 0.0
      %1045 = vmatpush1.msra.mxu0 0.0
      %1046 = vmatprep.subr.mxu0 0.0
      %1047 = vmatpush1.msra.mxu0 0.0
      %1048 = vmatprep.subr.mxu0 0.0
      %1049 = vmatpush1.msra.mxu0 0.0
      %1050 = vmatprep.subr.mxu0 0.0
      %1051 = vmatpush1.msra.mxu0 0.0
      %1052 = vmatprep.subr.mxu0 0.0
      %1053 = vmatpush1.msra.mxu0 0.0
      %1054 = vmatprep.subr.mxu0 0.0
      %1055 = vmatpush1.msra.mxu0 0.0
      %1056 = vmatprep.subr.mxu0 0.0
      %1057 = vmatpush1.msra.mxu0 0.0
      %1058 = vmatprep.subr.mxu0 0.0
      %1059 = vmatpush1.msra.mxu0 0.0
      %1060 = vmatprep.subr.mxu0 0.0
      %1061 = vmatpush1.msra.mxu0 0.0
      %1062 = vmatprep.subr.mxu0 0.0
      %1063 = vmatpush1.msra.mxu0 0.0
      %1064 = vmatprep.subr.mxu0 0.0
      %1065 = vmatpush1.msra.mxu0 0.0
      %1066 = vmatprep.subr.mxu0 0.0
      %1067 = vmatpush1.msra.mxu0 0.0
      %1068 = vmatprep.subr.mxu0 0.0
      %1069 = vmatpush1.msra.mxu0 0.0
      %1070 = vmatprep.subr.mxu0 0.0
      %1071 = vmatpush1.msra.mxu0 0.0
      %1072 = vmatprep.subr.mxu0 0.0
      %1073 = vmatpush1.msra.mxu0 0.0
      %1074 = vmatprep.mubr.f32.mxu0 0.0
      %1075 = vmatmul.mubr.f32.gmra.mrb[0].mxu0 %v984
      %v1076 = vpop.f32.mrb[0].mxu0
      %v1077 = vadd.f32 0.0, %v1076
      %v1078 = vpop.f32.mrb[0].mxu0
      %v1079 = vadd.f32 0.0, %v1078
      %1080 = vmatprep.mubr.f32.mxu0 0.0
      %1081 = vmatmul.mubr.f32.gmra.mrb[0].mxu0 %v987
      %v1082 = vpop.f32.mrb[0].mxu0
      %v1083 = vadd.f32 0.0, %v1082
      %v1084 = vpop.f32.mrb[0].mxu0
      %v1085 = vadd.f32 0.0, %v1084
      %1086 = vmatprep.mubr.f32.mxu0 0.0
      %1087 = vmatmul.mubr.f32.gmra.mrb[0].mxu0 %v990
      %v1088 = vpop.f32.mrb[0].mxu0
      %v1089 = vadd.f32 0.0, %v1088
      %v1090 = vpop.f32.mrb[0].mxu0
      %v1091 = vadd.f32 0.0, %v1090
      %1092 = vmatprep.mubr.f32.mxu0 0.0
      %1093 = vmatmul.mubr.f32.gmra.mrb[0].mxu0 %v993
      %v1094 = vpop.f32.mrb[0].mxu0
      %v1095 = vadd.f32 0.0, %v1094
      %v1096 = vpop.f32.mrb[0].mxu0
      %v1097 = vadd.f32 0.0, %v1096
      %1098 = vmatprep.mubr.f32.mxu0 0.0
      %1099 = vmatmul.mubr.f32.gmra.mrb[0].mxu0 %v996
      %v1100 = vpop.f32.mrb[0].mxu0
      %v1101 = vadd.f32 0.0, %v1100
      %v1102 = vpop.f32.mrb[0].mxu0
      %v1103 = vadd.f32 0.0, %v1102
      %1104 = vdwg.mxu0
      %1105 = vmatprep.subr.mxu0 %v1008
      %1106 = vmatpush1.msra.mxu0 %v1005
      %1107 = vmatprep.subr.mxu0 0.0
      %1108 = vmatpush1.msra.mxu0 0.0
      %1109 = vmatprep.subr.mxu0 0.0
      %1110 = vmatpush1.msra.mxu0 0.0
      %1111 = vmatprep.subr.mxu0 0.0
      %1112 = vmatpush1.msra.mxu0 0.0
      %1113 = vmatprep.subr.mxu0 0.0
      %1114 = vmatpush1.msra.mxu0 0.0
      %1115 = vmatprep.subr.mxu0 0.0
      %1116 = vmatpush1.msra.mxu0 0.0
      %1117 = vmatprep.subr.mxu0 0.0
      %1118 = vmatpush1.msra.mxu0 0.0
      %1119 = vmatprep.subr.mxu0 0.0
      %1120 = vmatpush1.msra.mxu0 0.0
      %1121 = vmatprep.subr.mxu0 0.0
      %1122 = vmatpush1.msra.mxu0 0.0
      %1123 = vmatprep.subr.mxu0 0.0
      %1124 = vmatpush1.msra.mxu0 0.0
      %1125 = vmatprep.subr.mxu0 0.0
      %1126 = vmatpush1.msra.mxu0 0.0
      %1127 = vmatprep.subr.mxu0 0.0
      %1128 = vmatpush1.msra.mxu0 0.0
      %1129 = vmatprep.subr.mxu0 0.0
      %1130 = vmatpush1.msra.mxu0 0.0
      %1131 = vmatprep.subr.mxu0 0.0
      %1132 = vmatpush1.msra.mxu0 0.0
      %1133 = vmatprep.subr.mxu0 0.0
      %1134 = vmatpush1.msra.mxu0 0.0
      %1135 = vmatprep.subr.mxu0 0.0
      %1136 = vmatpush1.msra.mxu0 0.0
      %1137 = vmatprep.subr.mxu0 0.0
      %1138 = vmatpush1.msra.mxu0 0.0
      %1139 = vmatprep.subr.mxu0 0.0
      %1140 = vmatpush1.msra.mxu0 0.0
      %1141 = vmatprep.subr.mxu0 0.0
      %1142 = vmatpush1.msra.mxu0 0.0
      %1143 = vmatprep.subr.mxu0 0.0
      %1144 = vmatpush1.msra.mxu0 0.0
      %1145 = vmatprep.subr.mxu0 0.0
      %1146 = vmatpush1.msra.mxu0 0.0
      %1147 = vmatprep.subr.mxu0 0.0
      %1148 = vmatpush1.msra.mxu0 0.0
      %1149 = vmatprep.subr.mxu0 0.0
      %1150 = vmatpush1.msra.mxu0 0.0
      %1151 = vmatprep.subr.mxu0 0.0
      %1152 = vmatpush1.msra.mxu0 0.0
      %1153 = vmatprep.subr.mxu0 0.0
      %1154 = vmatpush1.msra.mxu0 0.0
      %1155 = vmatprep.subr.mxu0 0.0
      %1156 = vmatpush1.msra.mxu0 0.0
      %1157 = vmatprep.subr.mxu0 0.0
      %1158 = vmatpush1.msra.mxu0 0.0
      %1159 = vmatprep.subr.mxu0 0.0
      %1160 = vmatpush1.msra.mxu0 0.0
      %1161 = vmatprep.subr.mxu0 0.0
      %1162 = vmatpush1.msra.mxu0 0.0
      %1163 = vmatprep.subr.mxu0 0.0
      %1164 = vmatpush1.msra.mxu0 0.0
      %1165 = vmatprep.subr.mxu0 0.0
      %1166 = vmatpush1.msra.mxu0 0.0
      %1167 = vmatprep.subr.mxu0 0.0
      %1168 = vmatpush1.msra.mxu0 0.0
      %1169 = vmatprep.mubr.f32.mxu0 0.0
      %1170 = vmatmul.mubr.f32.gmra.mrb[0].mxu0 %v984
      %v1171 = vpop.f32.mrb[0].mxu0
      %v1172 = vadd.f32 0.0, %v1171
      %v1173 = vpop.f32.mrb[0].mxu0
      %v1174 = vadd.f32 0.0, %v1173
      %1175 = vmatprep.mubr.f32.mxu0 0.0
      %1176 = vmatmul.mubr.f32.gmra.mrb[0].mxu0 %v987
      %v1177 = vpop.f32.mrb[0].mxu0
      %v1178 = vadd.f32 0.0, %v1177
      %v1179 = vpop.f32.mrb[0].mxu0
      %v1180 = vadd.f32 0.0, %v1179
      %1181 = vmatprep.mubr.f32.mxu0 0.0
      %1182 = vmatmul.mubr.f32.gmra.mrb[0].mxu0 %v990
      %v1183 = vpop.f32.mrb[0].mxu0
      %v1184 = vadd.f32 0.0, %v1183
      %v1185 = vpop.f32.mrb[0].mxu0
      %v1186 = vadd.f32 0.0, %v1185
      %1187 = vmatprep.mubr.f32.mxu0 0.0
      %1188 = vmatmul.mubr.f32.gmra.mrb[0].mxu0 %v993
      %v1189 = vpop.f32.mrb[0].mxu0
      %v1190 = vadd.f32 0.0, %v1189
      %v1191 = vpop.f32.mrb[0].mxu0
      %v1192 = vadd.f32 0.0, %v1191
      %1193 = vmatprep.mubr.f32.mxu0 0.0
      %1194 = vmatmul.mubr.f32.gmra.mrb[0].mxu0 %v996
      %v1195 = vpop.f32.mrb[0].mxu0
      %v1196 = vadd.f32 0.0, %v1195
      %v1197 = vpop.f32.mrb[0].mxu0
      %v1198 = vadd.f32 0.0, %v1197
      %1199 = vdwg.mxu0
      %v1201 = vsel %vm982, %v931, 0
      %v1204 = vsel %vm982, %v932, 0
      %v1207 = vsel %vm982, %v933, 0
      %v1210 = vsel %vm982, %v934, 0
      %v1213 = vsel %vm982, %v935, 0
      %v1216 = vsel %vm800, %v927, 0
      %v1219 = vsel %vm800, %v928, 0
      %v1222 = vsel %vm800, %v929, 0
      %v1225 = vsel %vm800, %v930, 0
      %1227 = vmatprep.subr.mxu0 %v1219
      %1228 = vmatpush1.msra.mxu0 %v1216
      %1229 = vmatprep.subr.mxu0 0.0
      %1230 = vmatpush1.msra.mxu0 0.0
      %1231 = vmatprep.subr.mxu0 0.0
      %1232 = vmatpush1.msra.mxu0 0.0
      %1233 = vmatprep.subr.mxu0 0.0
      %1234 = vmatpush1.msra.mxu0 0.0
      %1235 = vmatprep.subr.mxu0 0.0
      %1236 = vmatpush1.msra.mxu0 0.0
      %1237 = vmatprep.subr.mxu0 0.0
      %1238 = vmatpush1.msra.mxu0 0.0
      %1239 = vmatprep.subr.mxu0 0.0
      %1240 = vmatpush1.msra.mxu0 0.0
      %1241 = vmatprep.subr.mxu0 0.0
      %1242 = vmatpush1.msra.mxu0 0.0
      %1243 = vmatprep.subr.mxu0 0.0
      %1244 = vmatpush1.msra.mxu0 0.0
      %1245 = vmatprep.subr.mxu0 0.0
      %1246 = vmatpush1.msra.mxu0 0.0
      %1247 = vmatprep.subr.mxu0 0.0
      %1248 = vmatpush1.msra.mxu0 0.0
      %1249 = vmatprep.subr.mxu0 0.0
      %1250 = vmatpush1.msra.mxu0 0.0
      %1251 = vmatprep.subr.mxu0 0.0
      %1252 = vmatpush1.msra.mxu0 0.0
      %1253 = vmatprep.subr.mxu0 0.0
      %1254 = vmatpush1.msra.mxu0 0.0
      %1255 = vmatprep.subr.mxu0 0.0
      %1256 = vmatpush1.msra.mxu0 0.0
      %1257 = vmatprep.subr.mxu0 0.0
      %1258 = vmatpush1.msra.mxu0 0.0
      %1259 = vmatprep.subr.mxu0 0.0
      %1260 = vmatpush1.msra.mxu0 0.0
      %1261 = vmatprep.subr.mxu0 0.0
      %1262 = vmatpush1.msra.mxu0 0.0
      %1263 = vmatprep.subr.mxu0 0.0
      %1264 = vmatpush1.msra.mxu0 0.0
      %1265 = vmatprep.subr.mxu0 0.0
      %1266 = vmatpush1.msra.mxu0 0.0
      %1267 = vmatprep.subr.mxu0 0.0
      %1268 = vmatpush1.msra.mxu0 0.0
      %1269 = vmatprep.subr.mxu0 0.0
      %1270 = vmatpush1.msra.mxu0 0.0
      %1271 = vmatprep.subr.mxu0 0.0
      %1272 = vmatpush1.msra.mxu0 0.0
      %1273 = vmatprep.subr.mxu0 0.0
      %1274 = vmatpush1.msra.mxu0 0.0
      %1275 = vmatprep.subr.mxu0 0.0
      %1276 = vmatpush1.msra.mxu0 0.0
      %1277 = vmatprep.subr.mxu0 0.0
      %1278 = vmatpush1.msra.mxu0 0.0
      %1279 = vmatprep.subr.mxu0 0.0
      %1280 = vmatpush1.msra.mxu0 0.0
      %1281 = vmatprep.subr.mxu0 0.0
      %1282 = vmatpush1.msra.mxu0 0.0
      %1283 = vmatprep.subr.mxu0 0.0
      %1284 = vmatpush1.msra.mxu0 0.0
      %1285 = vmatprep.subr.mxu0 0.0
      %1286 = vmatpush1.msra.mxu0 0.0
      %1287 = vmatprep.subr.mxu0 0.0
      %1288 = vmatpush1.msra.mxu0 0.0
      %1289 = vmatprep.subr.mxu0 0.0
      %1290 = vmatpush1.msra.mxu0 0.0
      %1291 = vmatprep.mubr.f32.mxu0 0.0
      %1292 = vmatmul.mubr.f32.gmra.mrb[0].mxu0 %v1201
      %v1293 = vpop.f32.mrb[0].mxu0
      %v1294 = vadd.f32 %v1077, %v1293
      %v1295 = vpop.f32.mrb[0].mxu0
      %v1296 = vadd.f32 %v1079, %v1295
      %1297 = vmatprep.mubr.f32.mxu0 0.0
      %1298 = vmatmul.mubr.f32.gmra.mrb[0].mxu0 %v1204
      %v1299 = vpop.f32.mrb[0].mxu0
      %v1300 = vadd.f32 %v1083, %v1299
      %v1301 = vpop.f32.mrb[0].mxu0
      %v1302 = vadd.f32 %v1085, %v1301
      %1303 = vmatprep.mubr.f32.mxu0 0.0
      %1304 = vmatmul.mubr.f32.gmra.mrb[0].mxu0 %v1207
      %v1305 = vpop.f32.mrb[0].mxu0
      %v1306 = vadd.f32 %v1089, %v1305
      %v1307 = vpop.f32.mrb[0].mxu0
      %v1308 = vadd.f32 %v1091, %v1307
      %1309 = vmatprep.mubr.f32.mxu0 0.0
      %1310 = vmatmul.mubr.f32.gmra.mrb[0].mxu0 %v1210
      %v1311 = vpop.f32.mrb[0].mxu0
      %v1312 = vadd.f32 %v1095, %v1311
      %v1313 = vpop.f32.mrb[0].mxu0
      %v1314 = vadd.f32 %v1097, %v1313
      %1315 = vmatprep.mubr.f32.mxu0 0.0
      %1316 = vmatmul.mubr.f32.gmra.mrb[0].mxu0 %v1213
      %v1317 = vpop.f32.mrb[0].mxu0
      %v1318 = vadd.f32 %v1101, %v1317
      %v1319 = vpop.f32.mrb[0].mxu0
      %v1320 = vadd.f32 %v1103, %v1319
      %1321 = vdwg.mxu0
      %1322 = vmatprep.subr.mxu0 %v1225
      %1323 = vmatpush1.msra.mxu0 %v1222
      %1324 = vmatprep.subr.mxu0 0.0
      %1325 = vmatpush1.msra.mxu0 0.0
      %1326 = vmatprep.subr.mxu0 0.0
      %1327 = vmatpush1.msra.mxu0 0.0
      %1328 = vmatprep.subr.mxu0 0.0
      %1329 = vmatpush1.msra.mxu0 0.0
      %1330 = vmatprep.subr.mxu0 0.0
      %1331 = vmatpush1.msra.mxu0 0.0
      %1332 = vmatprep.subr.mxu0 0.0
      %1333 = vmatpush1.msra.mxu0 0.0
      %1334 = vmatprep.subr.mxu0 0.0
      %1335 = vmatpush1.msra.mxu0 0.0
      %1336 = vmatprep.subr.mxu0 0.0
      %1337 = vmatpush1.msra.mxu0 0.0
      %1338 = vmatprep.subr.mxu0 0.0
      %1339 = vmatpush1.msra.mxu0 0.0
      %1340 = vmatprep.subr.mxu0 0.0
      %1341 = vmatpush1.msra.mxu0 0.0
      %1342 = vmatprep.subr.mxu0 0.0
      %1343 = vmatpush1.msra.mxu0 0.0
      %1344 = vmatprep.subr.mxu0 0.0
      %1345 = vmatpush1.msra.mxu0 0.0
      %1346 = vmatprep.subr.mxu0 0.0
      %1347 = vmatpush1.msra.mxu0 0.0
      %1348 = vmatprep.subr.mxu0 0.0
      %1349 = vmatpush1.msra.mxu0 0.0
      %1350 = vmatprep.subr.mxu0 0.0
      %1351 = vmatpush1.msra.mxu0 0.0
      %1352 = vmatprep.subr.mxu0 0.0
      %1353 = vmatpush1.msra.mxu0 0.0
      %1354 = vmatprep.subr.mxu0 0.0
      %1355 = vmatpush1.msra.mxu0 0.0
      %1356 = vmatprep.subr.mxu0 0.0
      %1357 = vmatpush1.msra.mxu0 0.0
      %1358 = vmatprep.subr.mxu0 0.0
      %1359 = vmatpush1.msra.mxu0 0.0
      %1360 = vmatprep.subr.mxu0 0.0
      %1361 = vmatpush1.msra.mxu0 0.0
      %1362 = vmatprep.subr.mxu0 0.0
      %1363 = vmatpush1.msra.mxu0 0.0
      %1364 = vmatprep.subr.mxu0 0.0
      %1365 = vmatpush1.msra.mxu0 0.0
      %1366 = vmatprep.subr.mxu0 0.0
      %1367 = vmatpush1.msra.mxu0 0.0
      %1368 = vmatprep.subr.mxu0 0.0
      %1369 = vmatpush1.msra.mxu0 0.0
      %1370 = vmatprep.subr.mxu0 0.0
      %1371 = vmatpush1.msra.mxu0 0.0
      %1372 = vmatprep.subr.mxu0 0.0
      %1373 = vmatpush1.msra.mxu0 0.0
      %1374 = vmatprep.subr.mxu0 0.0
      %1375 = vmatpush1.msra.mxu0 0.0
      %1376 = vmatprep.subr.mxu0 0.0
      %1377 = vmatpush1.msra.mxu0 0.0
      %1378 = vmatprep.subr.mxu0 0.0
      %1379 = vmatpush1.msra.mxu0 0.0
      %1380 = vmatprep.subr.mxu0 0.0
      %1381 = vmatpush1.msra.mxu0 0.0
      %1382 = vmatprep.subr.mxu0 0.0
      %1383 = vmatpush1.msra.mxu0 0.0
      %1384 = vmatprep.subr.mxu0 0.0
      %1385 = vmatpush1.msra.mxu0 0.0
      %1386 = vmatprep.mubr.f32.mxu0 0.0
      %1387 = vmatmul.mubr.f32.gmra.mrb[0].mxu0 %v1201
      %v1388 = vpop.f32.mrb[0].mxu0
      %v1389 = vadd.f32 %v1172, %v1388
      %v1390 = vpop.f32.mrb[0].mxu0
      %v1391 = vadd.f32 %v1174, %v1390
      %1392 = vmatprep.mubr.f32.mxu0 0.0
      %1393 = vmatmul.mubr.f32.gmra.mrb[0].mxu0 %v1204
      %v1394 = vpop.f32.mrb[0].mxu0
      %v1395 = vadd.f32 %v1178, %v1394
      %v1396 = vpop.f32.mrb[0].mxu0
      %v1397 = vadd.f32 %v1180, %v1396
      %1398 = vmatprep.mubr.f32.mxu0 0.0
      %1399 = vmatmul.mubr.f32.gmra.mrb[0].mxu0 %v1207
      %v1400 = vpop.f32.mrb[0].mxu0
      %v1401 = vadd.f32 %v1184, %v1400
      %v1402 = vpop.f32.mrb[0].mxu0
      %v1403 = vadd.f32 %v1186, %v1402
      %1404 = vmatprep.mubr.f32.mxu0 0.0
      %1405 = vmatmul.mubr.f32.gmra.mrb[0].mxu0 %v1210
      %v1406 = vpop.f32.mrb[0].mxu0
      %v1407 = vadd.f32 %v1190, %v1406
      %v1408 = vpop.f32.mrb[0].mxu0
      %v1409 = vadd.f32 %v1192, %v1408
      %1410 = vmatprep.mubr.f32.mxu0 0.0
      %1411 = vmatmul.mubr.f32.gmra.mrb[0].mxu0 %v1213
      %v1412 = vpop.f32.mrb[0].mxu0
      %v1413 = vadd.f32 %v1196, %v1412
      %v1414 = vpop.f32.mrb[0].mxu0
      %v1415 = vadd.f32 %v1198, %v1414
      %1416 = vdwg.mxu0
      %1417 = vrot.lane.b32.xlu0 %v882, 15
      %v1418 = vpop.permute.xlu0 %1417
      %1419 = vrot.lane.b32.xlu0 %v886, 15
      %v1420 = vpop.permute.xlu0 %1419
      %1421 = vrot.lane.b32.xlu0 %v883, 15
      %v1422 = vpop.permute.xlu0 %1421
      %1423 = vrot.lane.b32.xlu0 %v887, 15
      %v1424 = vpop.permute.xlu0 %1423
      %vm1425 = vcmp.lt.s32.totalorder %v899, 15
      %v1426 = vsel %vm1425, %v1422, %v1424
      %v1427 = vsel %vm1425, %v1420, %v1422
      %v1428 = vsel %vm1425, %v1418, %v1420
      %v1429 = vsel %vm1425, %v1424, %v1418
      %s1430 = scalar_lea.vmem %s1, 8
      %v1431 = vld [vmem:[%s1430] sm:$0xf]
      %v1433 = vlaneseq
      %v1434 = vshrl.u32 %v1433, 7
      %v1435 = vsub.s32 0, %v1434
      %v1436 = vrot.slane %v1431, %v1435
      %v1437 = vlaneseq
      %v1438 = vshrl.u32 %v1437, 7
      %v1439 = vsub.s32 1, %v1438
      %v1440 = vrot.slane %v1431, %v1439
      %v1441 = vlaneseq
      %v1442 = vshrl.u32 %v1441, 7
      %v1443 = vsub.s32 2, %v1442
      %v1444 = vrot.slane %v1431, %v1443
      %v1445 = vlaneseq
      %v1446 = vshrl.u32 %v1445, 7
      %v1447 = vsub.s32 3, %v1446
      %v1448 = vrot.slane %v1431, %v1447
      %v1453 = vmul.f32 %v1429, %v1436
      %v1454 = vmul.f32 %v1428, %v1440
      %v1455 = vmul.f32 %v1427, %v1444
      %v1456 = vmul.f32 %v1426, %v1448
      %s1457 = scalar_lea.vmem %s16, 80
      %v1458 = vld [vmem:[%s1457] sm:$0xff]
      %v1459 = vld [vmem:[%s1457 + $0x8] sm:$0xff]
      %v1460 = vld [vmem:[%s1457 + $0x10] sm:$0xff]
      %v1461 = vld [vmem:[%s1457 + $0x18] sm:$0xff]
      %v1462 = vld [vmem:[%s1457 + $0x20] sm:$0x3]
      %v1464 = vsel %vm982, %v1458, 0
      %v1467 = vsel %vm982, %v1459, 0
      %v1470 = vsel %vm982, %v1460, 0
      %v1473 = vsel %vm982, %v1461, 0
      %v1476 = vsel %vm982, %v1462, 0
      %v1479 = vsel %vm800, %v1453, 0
      %v1482 = vsel %vm800, %v1454, 0
      %v1485 = vsel %vm800, %v1455, 0
      %v1488 = vsel %vm800, %v1456, 0
      %1490 = vmatprep.subr.mxu0 %v1482
      %1491 = vmatpush1.msra.mxu0 %v1479
      %1492 = vmatprep.subr.mxu0 0.0
      %1493 = vmatpush1.msra.mxu0 0.0
      %1494 = vmatprep.subr.mxu0 0.0
      %1495 = vmatpush1.msra.mxu0 0.0
      %1496 = vmatprep.subr.mxu0 0.0
      %1497 = vmatpush1.msra.mxu0 0.0
      %1498 = vmatprep.subr.mxu0 0.0
      %1499 = vmatpush1.msra.mxu0 0.0
      %1500 = vmatprep.subr.mxu0 0.0
      %1501 = vmatpush1.msra.mxu0 0.0
      %1502 = vmatprep.subr.mxu0 0.0
      %1503 = vmatpush1.msra.mxu0 0.0
      %1504 = vmatprep.subr.mxu0 0.0
      %1505 = vmatpush1.msra.mxu0 0.0
      %1506 = vmatprep.subr.mxu0 0.0
      %1507 = vmatpush1.msra.mxu0 0.0
      %1508 = vmatprep.subr.mxu0 0.0
      %1509 = vmatpush1.msra.mxu0 0.0
      %1510 = vmatprep.subr.mxu0 0.0
      %1511 = vmatpush1.msra.mxu0 0.0
      %1512 = vmatprep.subr.mxu0 0.0
      %1513 = vmatpush1.msra.mxu0 0.0
      %1514 = vmatprep.subr.mxu0 0.0
      %1515 = vmatpush1.msra.mxu0 0.0
      %1516 = vmatprep.subr.mxu0 0.0
      %1517 = vmatpush1.msra.mxu0 0.0
      %1518 = vmatprep.subr.mxu0 0.0
      %1519 = vmatpush1.msra.mxu0 0.0
      %1520 = vmatprep.subr.mxu0 0.0
      %1521 = vmatpush1.msra.mxu0 0.0
      %1522 = vmatprep.subr.mxu0 0.0
      %1523 = vmatpush1.msra.mxu0 0.0
      %1524 = vmatprep.subr.mxu0 0.0
      %1525 = vmatpush1.msra.mxu0 0.0
      %1526 = vmatprep.subr.mxu0 0.0
      %1527 = vmatpush1.msra.mxu0 0.0
      %1528 = vmatprep.subr.mxu0 0.0
      %1529 = vmatpush1.msra.mxu0 0.0
      %1530 = vmatprep.subr.mxu0 0.0
      %1531 = vmatpush1.msra.mxu0 0.0
      %1532 = vmatprep.subr.mxu0 0.0
      %1533 = vmatpush1.msra.mxu0 0.0
      %1534 = vmatprep.subr.mxu0 0.0
      %1535 = vmatpush1.msra.mxu0 0.0
      %1536 = vmatprep.subr.mxu0 0.0
      %1537 = vmatpush1.msra.mxu0 0.0
      %1538 = vmatprep.subr.mxu0 0.0
      %1539 = vmatpush1.msra.mxu0 0.0
      %1540 = vmatprep.subr.mxu0 0.0
      %1541 = vmatpush1.msra.mxu0 0.0
      %1542 = vmatprep.subr.mxu0 0.0
      %1543 = vmatpush1.msra.mxu0 0.0
      %1544 = vmatprep.subr.mxu0 0.0
      %1545 = vmatpush1.msra.mxu0 0.0
      %1546 = vmatprep.subr.mxu0 0.0
      %1547 = vmatpush1.msra.mxu0 0.0
      %1548 = vmatprep.subr.mxu0 0.0
      %1549 = vmatpush1.msra.mxu0 0.0
      %1550 = vmatprep.subr.mxu0 0.0
      %1551 = vmatpush1.msra.mxu0 0.0
      %1552 = vmatprep.subr.mxu0 0.0
      %1553 = vmatpush1.msra.mxu0 0.0
      %1554 = vmatprep.mubr.f32.mxu0 0.0
      %1555 = vmatmul.mubr.f32.gmra.mrb[0].mxu0 %v1464
      %v1556 = vpop.f32.mrb[0].mxu0
      %v1557 = vadd.f32 0.0, %v1556
      %v1558 = vpop.f32.mrb[0].mxu0
      %v1559 = vadd.f32 0.0, %v1558
      %1560 = vmatprep.mubr.f32.mxu0 0.0
      %1561 = vmatmul.mubr.f32.gmra.mrb[0].mxu0 %v1467
      %v1562 = vpop.f32.mrb[0].mxu0
      %v1563 = vadd.f32 0.0, %v1562
      %v1564 = vpop.f32.mrb[0].mxu0
      %v1565 = vadd.f32 0.0, %v1564
      %1566 = vmatprep.mubr.f32.mxu0 0.0
      %1567 = vmatmul.mubr.f32.gmra.mrb[0].mxu0 %v1470
      %v1568 = vpop.f32.mrb[0].mxu0
      %v1569 = vadd.f32 0.0, %v1568
      %v1570 = vpop.f32.mrb[0].mxu0
      %v1571 = vadd.f32 0.0, %v1570
      %1572 = vmatprep.mubr.f32.mxu0 0.0
      %1573 = vmatmul.mubr.f32.gmra.mrb[0].mxu0 %v1473
      %v1574 = vpop.f32.mrb[0].mxu0
      %v1575 = vadd.f32 0.0, %v1574
      %v1576 = vpop.f32.mrb[0].mxu0
      %v1577 = vadd.f32 0.0, %v1576
      %1578 = vmatprep.mubr.f32.mxu0 0.0
      %1579 = vmatmul.mubr.f32.gmra.mrb[0].mxu0 %v1476
      %v1580 = vpop.f32.mrb[0].mxu0
      %v1581 = vadd.f32 0.0, %v1580
      %v1582 = vpop.f32.mrb[0].mxu0
      %v1583 = vadd.f32 0.0, %v1582
      %1584 = vdwg.mxu0
      %1585 = vmatprep.subr.mxu0 %v1488
      %1586 = vmatpush1.msra.mxu0 %v1485
      %1587 = vmatprep.subr.mxu0 0.0
      %1588 = vmatpush1.msra.mxu0 0.0
      %1589 = vmatprep.subr.mxu0 0.0
      %1590 = vmatpush1.msra.mxu0 0.0
      %1591 = vmatprep.subr.mxu0 0.0
      %1592 = vmatpush1.msra.mxu0 0.0
      %1593 = vmatprep.subr.mxu0 0.0
      %1594 = vmatpush1.msra.mxu0 0.0
      %1595 = vmatprep.subr.mxu0 0.0
      %1596 = vmatpush1.msra.mxu0 0.0
      %1597 = vmatprep.subr.mxu0 0.0
      %1598 = vmatpush1.msra.mxu0 0.0
      %1599 = vmatprep.subr.mxu0 0.0
      %1600 = vmatpush1.msra.mxu0 0.0
      %1601 = vmatprep.subr.mxu0 0.0
      %1602 = vmatpush1.msra.mxu0 0.0
      %1603 = vmatprep.subr.mxu0 0.0
      %1604 = vmatpush1.msra.mxu0 0.0
      %1605 = vmatprep.subr.mxu0 0.0
      %1606 = vmatpush1.msra.mxu0 0.0
      %1607 = vmatprep.subr.mxu0 0.0
      %1608 = vmatpush1.msra.mxu0 0.0
      %1609 = vmatprep.subr.mxu0 0.0
      %1610 = vmatpush1.msra.mxu0 0.0
      %1611 = vmatprep.subr.mxu0 0.0
      %1612 = vmatpush1.msra.mxu0 0.0
      %1613 = vmatprep.subr.mxu0 0.0
      %1614 = vmatpush1.msra.mxu0 0.0
      %1615 = vmatprep.subr.mxu0 0.0
      %1616 = vmatpush1.msra.mxu0 0.0
      %1617 = vmatprep.subr.mxu0 0.0
      %1618 = vmatpush1.msra.mxu0 0.0
      %1619 = vmatprep.subr.mxu0 0.0
      %1620 = vmatpush1.msra.mxu0 0.0
      %1621 = vmatprep.subr.mxu0 0.0
      %1622 = vmatpush1.msra.mxu0 0.0
      %1623 = vmatprep.subr.mxu0 0.0
      %1624 = vmatpush1.msra.mxu0 0.0
      %1625 = vmatprep.subr.mxu0 0.0
      %1626 = vmatpush1.msra.mxu0 0.0
      %1627 = vmatprep.subr.mxu0 0.0
      %1628 = vmatpush1.msra.mxu0 0.0
      %1629 = vmatprep.subr.mxu0 0.0
      %1630 = vmatpush1.msra.mxu0 0.0
      %1631 = vmatprep.subr.mxu0 0.0
      %1632 = vmatpush1.msra.mxu0 0.0
      %1633 = vmatprep.subr.mxu0 0.0
      %1634 = vmatpush1.msra.mxu0 0.0
      %1635 = vmatprep.subr.mxu0 0.0
      %1636 = vmatpush1.msra.mxu0 0.0
      %1637 = vmatprep.subr.mxu0 0.0
      %1638 = vmatpush1.msra.mxu0 0.0
      %1639 = vmatprep.subr.mxu0 0.0
      %1640 = vmatpush1.msra.mxu0 0.0
      %1641 = vmatprep.subr.mxu0 0.0
      %1642 = vmatpush1.msra.mxu0 0.0
      %1643 = vmatprep.subr.mxu0 0.0
      %1644 = vmatpush1.msra.mxu0 0.0
      %1645 = vmatprep.subr.mxu0 0.0
      %1646 = vmatpush1.msra.mxu0 0.0
      %1647 = vmatprep.subr.mxu0 0.0
      %1648 = vmatpush1.msra.mxu0 0.0
      %1649 = vmatprep.mubr.f32.mxu0 0.0
      %1650 = vmatmul.mubr.f32.gmra.mrb[0].mxu0 %v1464
      %v1651 = vpop.f32.mrb[0].mxu0
      %v1652 = vadd.f32 0.0, %v1651
      %v1653 = vpop.f32.mrb[0].mxu0
      %v1654 = vadd.f32 0.0, %v1653
      %1655 = vmatprep.mubr.f32.mxu0 0.0
      %1656 = vmatmul.mubr.f32.gmra.mrb[0].mxu0 %v1467
      %v1657 = vpop.f32.mrb[0].mxu0
      %v1658 = vadd.f32 0.0, %v1657
      %v1659 = vpop.f32.mrb[0].mxu0
      %v1660 = vadd.f32 0.0, %v1659
      %1661 = vmatprep.mubr.f32.mxu0 0.0
      %1662 = vmatmul.mubr.f32.gmra.mrb[0].mxu0 %v1470
      %v1663 = vpop.f32.mrb[0].mxu0
      %v1664 = vadd.f32 0.0, %v1663
      %v1665 = vpop.f32.mrb[0].mxu0
      %v1666 = vadd.f32 0.0, %v1665
      %1667 = vmatprep.mubr.f32.mxu0 0.0
      %1668 = vmatmul.mubr.f32.gmra.mrb[0].mxu0 %v1473
      %v1669 = vpop.f32.mrb[0].mxu0
      %v1670 = vadd.f32 0.0, %v1669
      %v1671 = vpop.f32.mrb[0].mxu0
      %v1672 = vadd.f32 0.0, %v1671
      %1673 = vmatprep.mubr.f32.mxu0 0.0
      %1674 = vmatmul.mubr.f32.gmra.mrb[0].mxu0 %v1476
      %v1675 = vpop.f32.mrb[0].mxu0
      %v1676 = vadd.f32 0.0, %v1675
      %v1677 = vpop.f32.mrb[0].mxu0
      %v1678 = vadd.f32 0.0, %v1677
      %1679 = vdwg.mxu0
      %v1680 = vadd.f32 %v1294, %v1557
      %v1681 = vadd.f32 %v1296, %v1559
      %v1682 = vadd.f32 %v1389, %v1652
      %v1683 = vadd.f32 %v1391, %v1654
      %v1684 = vadd.f32 %v1300, %v1563
      %v1685 = vadd.f32 %v1302, %v1565
      %v1686 = vadd.f32 %v1395, %v1658
      %v1687 = vadd.f32 %v1397, %v1660
      %v1688 = vadd.f32 %v1306, %v1569
      %v1689 = vadd.f32 %v1308, %v1571
      %v1690 = vadd.f32 %v1401, %v1664
      %v1691 = vadd.f32 %v1403, %v1666
      %v1692 = vadd.f32 %v1312, %v1575
      %v1693 = vadd.f32 %v1314, %v1577
      %v1694 = vadd.f32 %v1407, %v1670
      %v1695 = vadd.f32 %v1409, %v1672
      %v1696 = vadd.f32 %v1318, %v1581
      %v1697 = vadd.f32 %v1320, %v1583
      %v1698 = vadd.f32 %v1413, %v1676
      %v1699 = vadd.f32 %v1415, %v1678
      %1700 = vrot.lane.b32.xlu0 %v882, 1
      %v1701 = vpop.permute.xlu0 %1700
      %1702 = vrot.lane.b32.xlu0 %v886, 1
      %v1703 = vpop.permute.xlu0 %1702
      %1704 = vrot.lane.b32.xlu0 %v883, 1
      %v1705 = vpop.permute.xlu0 %1704
      %1706 = vrot.lane.b32.xlu0 %v887, 1
      %v1707 = vpop.permute.xlu0 %1706
      %vm1708 = vcmp.lt.s32.totalorder %v899, 1
      %v1709 = vsel %vm1708, %v1705, %v1707
      %v1710 = vsel %vm1708, %v1703, %v1705
      %v1711 = vsel %vm1708, %v1701, %v1703
      %v1712 = vsel %vm1708, %v1707, %v1701
      %s1713 = scalar_lea.vmem %s1, 12
      %v1714 = vld [vmem:[%s1713] sm:$0xf]
      %v1716 = vlaneseq
      %v1717 = vshrl.u32 %v1716, 7
      %v1718 = vsub.s32 0, %v1717
      %v1719 = vrot.slane %v1714, %v1718
      %v1720 = vlaneseq
      %v1721 = vshrl.u32 %v1720, 7
      %v1722 = vsub.s32 1, %v1721
      %v1723 = vrot.slane %v1714, %v1722
      %v1724 = vlaneseq
      %v1725 = vshrl.u32 %v1724, 7
      %v1726 = vsub.s32 2, %v1725
      %v1727 = vrot.slane %v1714, %v1726
      %v1728 = vlaneseq
      %v1729 = vshrl.u32 %v1728, 7
      %v1730 = vsub.s32 3, %v1729
      %v1731 = vrot.slane %v1714, %v1730
      %v1736 = vmul.f32 %v1712, %v1719
      %v1737 = vmul.f32 %v1711, %v1723
      %v1738 = vmul.f32 %v1710, %v1727
      %v1739 = vmul.f32 %v1709, %v1731
      %s1740 = scalar_lea.vmem %s16, 120
      %v1741 = vld [vmem:[%s1740] sm:$0xff]
      %v1742 = vld [vmem:[%s1740 + $0x8] sm:$0xff]
      %v1743 = vld [vmem:[%s1740 + $0x10] sm:$0xff]
      %v1744 = vld [vmem:[%s1740 + $0x18] sm:$0xff]
      %v1745 = vld [vmem:[%s1740 + $0x20] sm:$0x3]
      %v1747 = vsel %vm982, %v1741, 0
      %v1750 = vsel %vm982, %v1742, 0
      %v1753 = vsel %vm982, %v1743, 0
      %v1756 = vsel %vm982, %v1744, 0
      %v1759 = vsel %vm982, %v1745, 0
      %v1762 = vsel %vm800, %v1736, 0
      %v1765 = vsel %vm800, %v1737, 0
      %v1768 = vsel %vm800, %v1738, 0
      %v1771 = vsel %vm800, %v1739, 0
      %1773 = vmatprep.subr.mxu0 %v1765
      %1774 = vmatpush1.msra.mxu0 %v1762
      %1775 = vmatprep.subr.mxu0 0.0
      %1776 = vmatpush1.msra.mxu0 0.0
      %1777 = vmatprep.subr.mxu0 0.0
      %1778 = vmatpush1.msra.mxu0 0.0
      %1779 = vmatprep.subr.mxu0 0.0
      %1780 = vmatpush1.msra.mxu0 0.0
      %1781 = vmatprep.subr.mxu0 0.0
      %1782 = vmatpush1.msra.mxu0 0.0
      %1783 = vmatprep.subr.mxu0 0.0
      %1784 = vmatpush1.msra.mxu0 0.0
      %1785 = vmatprep.subr.mxu0 0.0
      %1786 = vmatpush1.msra.mxu0 0.0
      %1787 = vmatprep.subr.mxu0 0.0
      %1788 = vmatpush1.msra.mxu0 0.0
      %1789 = vmatprep.subr.mxu0 0.0
      %1790 = vmatpush1.msra.mxu0 0.0
      %1791 = vmatprep.subr.mxu0 0.0
      %1792 = vmatpush1.msra.mxu0 0.0
      %1793 = vmatprep.subr.mxu0 0.0
      %1794 = vmatpush1.msra.mxu0 0.0
      %1795 = vmatprep.subr.mxu0 0.0
      %1796 = vmatpush1.msra.mxu0 0.0
      %1797 = vmatprep.subr.mxu0 0.0
      %1798 = vmatpush1.msra.mxu0 0.0
      %1799 = vmatprep.subr.mxu0 0.0
      %1800 = vmatpush1.msra.mxu0 0.0
      %1801 = vmatprep.subr.mxu0 0.0
      %1802 = vmatpush1.msra.mxu0 0.0
      %1803 = vmatprep.subr.mxu0 0.0
      %1804 = vmatpush1.msra.mxu0 0.0
      %1805 = vmatprep.subr.mxu0 0.0
      %1806 = vmatpush1.msra.mxu0 0.0
      %1807 = vmatprep.subr.mxu0 0.0
      %1808 = vmatpush1.msra.mxu0 0.0
      %1809 = vmatprep.subr.mxu0 0.0
      %1810 = vmatpush1.msra.mxu0 0.0
      %1811 = vmatprep.subr.mxu0 0.0
      %1812 = vmatpush1.msra.mxu0 0.0
      %1813 = vmatprep.subr.mxu0 0.0
      %1814 = vmatpush1.msra.mxu0 0.0
      %1815 = vmatprep.subr.mxu0 0.0
      %1816 = vmatpush1.msra.mxu0 0.0
      %1817 = vmatprep.subr.mxu0 0.0
      %1818 = vmatpush1.msra.mxu0 0.0
      %1819 = vmatprep.subr.mxu0 0.0
      %1820 = vmatpush1.msra.mxu0 0.0
      %1821 = vmatprep.subr.mxu0 0.0
      %1822 = vmatpush1.msra.mxu0 0.0
      %1823 = vmatprep.subr.mxu0 0.0
      %1824 = vmatpush1.msra.mxu0 0.0
      %1825 = vmatprep.subr.mxu0 0.0
      %1826 = vmatpush1.msra.mxu0 0.0
      %1827 = vmatprep.subr.mxu0 0.0
      %1828 = vmatpush1.msra.mxu0 0.0
      %1829 = vmatprep.subr.mxu0 0.0
      %1830 = vmatpush1.msra.mxu0 0.0
      %1831 = vmatprep.subr.mxu0 0.0
      %1832 = vmatpush1.msra.mxu0 0.0
      %1833 = vmatprep.subr.mxu0 0.0
      %1834 = vmatpush1.msra.mxu0 0.0
      %1835 = vmatprep.subr.mxu0 0.0
      %1836 = vmatpush1.msra.mxu0 0.0
      %1837 = vmatprep.mubr.f32.mxu0 0.0
      %1838 = vmatmul.mubr.f32.gmra.mrb[0].mxu0 %v1747
      %v1839 = vpop.f32.mrb[0].mxu0
      %v1840 = vadd.f32 0.0, %v1839
      %v1841 = vpop.f32.mrb[0].mxu0
      %v1842 = vadd.f32 0.0, %v1841
      %1843 = vmatprep.mubr.f32.mxu0 0.0
      %1844 = vmatmul.mubr.f32.gmra.mrb[0].mxu0 %v1750
      %v1845 = vpop.f32.mrb[0].mxu0
      %v1846 = vadd.f32 0.0, %v1845
      %v1847 = vpop.f32.mrb[0].mxu0
      %v1848 = vadd.f32 0.0, %v1847
      %1849 = vmatprep.mubr.f32.mxu0 0.0
      %1850 = vmatmul.mubr.f32.gmra.mrb[0].mxu0 %v1753
      %v1851 = vpop.f32.mrb[0].mxu0
      %v1852 = vadd.f32 0.0, %v1851
      %v1853 = vpop.f32.mrb[0].mxu0
      %v1854 = vadd.f32 0.0, %v1853
      %1855 = vmatprep.mubr.f32.mxu0 0.0
      %1856 = vmatmul.mubr.f32.gmra.mrb[0].mxu0 %v1756
      %v1857 = vpop.f32.mrb[0].mxu0
      %v1858 = vadd.f32 0.0, %v1857
      %v1859 = vpop.f32.mrb[0].mxu0
      %v1860 = vadd.f32 0.0, %v1859
      %1861 = vmatprep.mubr.f32.mxu0 0.0
      %1862 = vmatmul.mubr.f32.gmra.mrb[0].mxu0 %v1759
      %v1863 = vpop.f32.mrb[0].mxu0
      %v1864 = vadd.f32 0.0, %v1863
      %v1865 = vpop.f32.mrb[0].mxu0
      %v1866 = vadd.f32 0.0, %v1865
      %1867 = vdwg.mxu0
      %1868 = vmatprep.subr.mxu0 %v1771
      %1869 = vmatpush1.msra.mxu0 %v1768
      %1870 = vmatprep.subr.mxu0 0.0
      %1871 = vmatpush1.msra.mxu0 0.0
      %1872 = vmatprep.subr.mxu0 0.0
      %1873 = vmatpush1.msra.mxu0 0.0
      %1874 = vmatprep.subr.mxu0 0.0
      %1875 = vmatpush1.msra.mxu0 0.0
      %1876 = vmatprep.subr.mxu0 0.0
      %1877 = vmatpush1.msra.mxu0 0.0
      %1878 = vmatprep.subr.mxu0 0.0
      %1879 = vmatpush1.msra.mxu0 0.0
      %1880 = vmatprep.subr.mxu0 0.0
      %1881 = vmatpush1.msra.mxu0 0.0
      %1882 = vmatprep.subr.mxu0 0.0
      %1883 = vmatpush1.msra.mxu0 0.0
      %1884 = vmatprep.subr.mxu0 0.0
      %1885 = vmatpush1.msra.mxu0 0.0
      %1886 = vmatprep.subr.mxu0 0.0
      %1887 = vmatpush1.msra.mxu0 0.0
      %1888 = vmatprep.subr.mxu0 0.0
      %1889 = vmatpush1.msra.mxu0 0.0
      %1890 = vmatprep.subr.mxu0 0.0
      %1891 = vmatpush1.msra.mxu0 0.0
      %1892 = vmatprep.subr.mxu0 0.0
      %1893 = vmatpush1.msra.mxu0 0.0
      %1894 = vmatprep.subr.mxu0 0.0
      %1895 = vmatpush1.msra.mxu0 0.0
      %1896 = vmatprep.subr.mxu0 0.0
      %1897 = vmatpush1.msra.mxu0 0.0
      %1898 = vmatprep.subr.mxu0 0.0
      %1899 = vmatpush1.msra.mxu0 0.0
      %1900 = vmatprep.subr.mxu0 0.0
      %1901 = vmatpush1.msra.mxu0 0.0
      %1902 = vmatprep.subr.mxu0 0.0
      %1903 = vmatpush1.msra.mxu0 0.0
      %1904 = vmatprep.subr.mxu0 0.0
      %1905 = vmatpush1.msra.mxu0 0.0
      %1906 = vmatprep.subr.mxu0 0.0
      %1907 = vmatpush1.msra.mxu0 0.0
      %1908 = vmatprep.subr.mxu0 0.0
      %1909 = vmatpush1.msra.mxu0 0.0
      %1910 = vmatprep.subr.mxu0 0.0
      %1911 = vmatpush1.msra.mxu0 0.0
      %1912 = vmatprep.subr.mxu0 0.0
      %1913 = vmatpush1.msra.mxu0 0.0
      %1914 = vmatprep.subr.mxu0 0.0
      %1915 = vmatpush1.msra.mxu0 0.0
      %1916 = vmatprep.subr.mxu0 0.0
      %1917 = vmatpush1.msra.mxu0 0.0
      %1918 = vmatprep.subr.mxu0 0.0
      %1919 = vmatpush1.msra.mxu0 0.0
      %1920 = vmatprep.subr.mxu0 0.0
      %1921 = vmatpush1.msra.mxu0 0.0
      %1922 = vmatprep.subr.mxu0 0.0
      %1923 = vmatpush1.msra.mxu0 0.0
      %1924 = vmatprep.subr.mxu0 0.0
      %1925 = vmatpush1.msra.mxu0 0.0
      %1926 = vmatprep.subr.mxu0 0.0
      %1927 = vmatpush1.msra.mxu0 0.0
      %1928 = vmatprep.subr.mxu0 0.0
      %1929 = vmatpush1.msra.mxu0 0.0
      %1930 = vmatprep.subr.mxu0 0.0
      %1931 = vmatpush1.msra.mxu0 0.0
      %1932 = vmatprep.mubr.f32.mxu0 0.0
      %1933 = vmatmul.mubr.f32.gmra.mrb[0].mxu0 %v1747
      %v1934 = vpop.f32.mrb[0].mxu0
      %v1935 = vadd.f32 0.0, %v1934
      %v1936 = vpop.f32.mrb[0].mxu0
      %v1937 = vadd.f32 0.0, %v1936
      %1938 = vmatprep.mubr.f32.mxu0 0.0
      %1939 = vmatmul.mubr.f32.gmra.mrb[0].mxu0 %v1750
      %v1940 = vpop.f32.mrb[0].mxu0
      %v1941 = vadd.f32 0.0, %v1940
      %v1942 = vpop.f32.mrb[0].mxu0
      %v1943 = vadd.f32 0.0, %v1942
      %1944 = vmatprep.mubr.f32.mxu0 0.0
      %1945 = vmatmul.mubr.f32.gmra.mrb[0].mxu0 %v1753
      %v1946 = vpop.f32.mrb[0].mxu0
      %v1947 = vadd.f32 0.0, %v1946
      %v1948 = vpop.f32.mrb[0].mxu0
      %v1949 = vadd.f32 0.0, %v1948
      %1950 = vmatprep.mubr.f32.mxu0 0.0
      %1951 = vmatmul.mubr.f32.gmra.mrb[0].mxu0 %v1756
      %v1952 = vpop.f32.mrb[0].mxu0
      %v1953 = vadd.f32 0.0, %v1952
      %v1954 = vpop.f32.mrb[0].mxu0
      %v1955 = vadd.f32 0.0, %v1954
      %1956 = vmatprep.mubr.f32.mxu0 0.0
      %1957 = vmatmul.mubr.f32.gmra.mrb[0].mxu0 %v1759
      %v1958 = vpop.f32.mrb[0].mxu0
      %v1959 = vadd.f32 0.0, %v1958
      %v1960 = vpop.f32.mrb[0].mxu0
      %v1961 = vadd.f32 0.0, %v1960
      %1962 = vdwg.mxu0
      %v1963 = vadd.f32 %v1680, %v1840
      %v1964 = vadd.f32 %v1681, %v1842
      %v1965 = vadd.f32 %v1682, %v1935
      %v1966 = vadd.f32 %v1683, %v1937
      %v1967 = vadd.f32 %v1684, %v1846
      %v1968 = vadd.f32 %v1685, %v1848
      %v1969 = vadd.f32 %v1686, %v1941
      %v1970 = vadd.f32 %v1687, %v1943
      %v1971 = vadd.f32 %v1688, %v1852
      %v1972 = vadd.f32 %v1689, %v1854
      %v1973 = vadd.f32 %v1690, %v1947
      %v1974 = vadd.f32 %v1691, %v1949
      %v1975 = vadd.f32 %v1692, %v1858
      %v1976 = vadd.f32 %v1693, %v1860
      %v1977 = vadd.f32 %v1694, %v1953
      %v1978 = vadd.f32 %v1695, %v1955
      %v1979 = vadd.f32 %v1696, %v1864
      %v1980 = vadd.f32 %v1697, %v1866
      %v1981 = vadd.f32 %v1698, %v1959
      %v1982 = vadd.f32 %v1699, %v1961
      %s1983 = scalar_lea.vmem %s16, 160
      %v1984 = vld [vmem:[%s1983] sm:$0xff]
      %v1985 = vld [vmem:[%s1983 + $0x8] sm:$0xff]
      %v1986 = vld [vmem:[%s1983 + $0x10] sm:$0xff]
      %v1987 = vld [vmem:[%s1983 + $0x18] sm:$0xff]
      %v1988 = vld [vmem:[%s1983 + $0x20] sm:$0x3]
      %v1990 = vsel %vm982, %v1984, 0
      %v1993 = vsel %vm982, %v1985, 0
      %v1996 = vsel %vm982, %v1986, 0
      %v1999 = vsel %vm982, %v1987, 0
      %v2002 = vsel %vm982, %v1988, 0
      %v2004 = vsel %vm800, %v882, 0
      %v2006 = vsel %vm800, %v886, 0
      %v2008 = vsel %vm800, %v883, 0
      %v2010 = vsel %vm800, %v887, 0
      %2012 = vmatprep.subr.mxu0 %v2006
      %2013 = vmatpush1.msra.mxu0 %v2004
      %2014 = vmatprep.subr.mxu0 0.0
      %2015 = vmatpush1.msra.mxu0 0.0
      %2016 = vmatprep.subr.mxu0 0.0
      %2017 = vmatpush1.msra.mxu0 0.0
      %2018 = vmatprep.subr.mxu0 0.0
      %2019 = vmatpush1.msra.mxu0 0.0
      %2020 = vmatprep.subr.mxu0 0.0
      %2021 = vmatpush1.msra.mxu0 0.0
      %2022 = vmatprep.subr.mxu0 0.0
      %2023 = vmatpush1.msra.mxu0 0.0
      %2024 = vmatprep.subr.mxu0 0.0
      %2025 = vmatpush1.msra.mxu0 0.0
      %2026 = vmatprep.subr.mxu0 0.0
      %2027 = vmatpush1.msra.mxu0 0.0
      %2028 = vmatprep.subr.mxu0 0.0
      %2029 = vmatpush1.msra.mxu0 0.0
      %2030 = vmatprep.subr.mxu0 0.0
      %2031 = vmatpush1.msra.mxu0 0.0
      %2032 = vmatprep.subr.mxu0 0.0
      %2033 = vmatpush1.msra.mxu0 0.0
      %2034 = vmatprep.subr.mxu0 0.0
      %2035 = vmatpush1.msra.mxu0 0.0
      %2036 = vmatprep.subr.mxu0 0.0
      %2037 = vmatpush1.msra.mxu0 0.0
      %2038 = vmatprep.subr.mxu0 0.0
      %2039 = vmatpush1.msra.mxu0 0.0
      %2040 = vmatprep.subr.mxu0 0.0
      %2041 = vmatpush1.msra.mxu0 0.0
      %2042 = vmatprep.subr.mxu0 0.0
      %2043 = vmatpush1.msra.mxu0 0.0
      %2044 = vmatprep.subr.mxu0 0.0
      %2045 = vmatpush1.msra.mxu0 0.0
      %2046 = vmatprep.subr.mxu0 0.0
      %2047 = vmatpush1.msra.mxu0 0.0
      %2048 = vmatprep.subr.mxu0 0.0
      %2049 = vmatpush1.msra.mxu0 0.0
      %2050 = vmatprep.subr.mxu0 0.0
      %2051 = vmatpush1.msra.mxu0 0.0
      %2052 = vmatprep.subr.mxu0 0.0
      %2053 = vmatpush1.msra.mxu0 0.0
      %2054 = vmatprep.subr.mxu0 0.0
      %2055 = vmatpush1.msra.mxu0 0.0
      %2056 = vmatprep.subr.mxu0 0.0
      %2057 = vmatpush1.msra.mxu0 0.0
      %2058 = vmatprep.subr.mxu0 0.0
      %2059 = vmatpush1.msra.mxu0 0.0
      %2060 = vmatprep.subr.mxu0 0.0
      %2061 = vmatpush1.msra.mxu0 0.0
      %2062 = vmatprep.subr.mxu0 0.0
      %2063 = vmatpush1.msra.mxu0 0.0
      %2064 = vmatprep.subr.mxu0 0.0
      %2065 = vmatpush1.msra.mxu0 0.0
      %2066 = vmatprep.subr.mxu0 0.0
      %2067 = vmatpush1.msra.mxu0 0.0
      %2068 = vmatprep.subr.mxu0 0.0
      %2069 = vmatpush1.msra.mxu0 0.0
      %2070 = vmatprep.subr.mxu0 0.0
      %2071 = vmatpush1.msra.mxu0 0.0
      %2072 = vmatprep.subr.mxu0 0.0
      %2073 = vmatpush1.msra.mxu0 0.0
      %2074 = vmatprep.subr.mxu0 0.0
      %2075 = vmatpush1.msra.mxu0 0.0
      %2076 = vmatprep.mubr.f32.mxu0 0.0
      %2077 = vmatmul.mubr.f32.gmra.mrb[0].mxu0 %v1990
      %v2078 = vpop.f32.mrb[0].mxu0
      %v2079 = vadd.f32 0.0, %v2078
      %v2080 = vpop.f32.mrb[0].mxu0
      %v2081 = vadd.f32 0.0, %v2080
      %2082 = vmatprep.mubr.f32.mxu0 0.0
      %2083 = vmatmul.mubr.f32.gmra.mrb[0].mxu0 %v1993
      %v2084 = vpop.f32.mrb[0].mxu0
      %v2085 = vadd.f32 0.0, %v2084
      %v2086 = vpop.f32.mrb[0].mxu0
      %v2087 = vadd.f32 0.0, %v2086
      %2088 = vmatprep.mubr.f32.mxu0 0.0
      %2089 = vmatmul.mubr.f32.gmra.mrb[0].mxu0 %v1996
      %v2090 = vpop.f32.mrb[0].mxu0
      %v2091 = vadd.f32 0.0, %v2090
      %v2092 = vpop.f32.mrb[0].mxu0
      %v2093 = vadd.f32 0.0, %v2092
      %2094 = vmatprep.mubr.f32.mxu0 0.0
      %2095 = vmatmul.mubr.f32.gmra.mrb[0].mxu0 %v1999
      %v2096 = vpop.f32.mrb[0].mxu0
      %v2097 = vadd.f32 0.0, %v2096
      %v2098 = vpop.f32.mrb[0].mxu0
      %v2099 = vadd.f32 0.0, %v2098
      %2100 = vmatprep.mubr.f32.mxu0 0.0
      %2101 = vmatmul.mubr.f32.gmra.mrb[0].mxu0 %v2002
      %v2102 = vpop.f32.mrb[0].mxu0
      %v2103 = vadd.f32 0.0, %v2102
      %v2104 = vpop.f32.mrb[0].mxu0
      %v2105 = vadd.f32 0.0, %v2104
      %2106 = vdwg.mxu0
      %2107 = vmatprep.subr.mxu0 %v2010
      %2108 = vmatpush1.msra.mxu0 %v2008
      %2109 = vmatprep.subr.mxu0 0.0
      %2110 = vmatpush1.msra.mxu0 0.0
      %2111 = vmatprep.subr.mxu0 0.0
      %2112 = vmatpush1.msra.mxu0 0.0
      %2113 = vmatprep.subr.mxu0 0.0
      %2114 = vmatpush1.msra.mxu0 0.0
      %2115 = vmatprep.subr.mxu0 0.0
      %2116 = vmatpush1.msra.mxu0 0.0
      %2117 = vmatprep.subr.mxu0 0.0
      %2118 = vmatpush1.msra.mxu0 0.0
      %2119 = vmatprep.subr.mxu0 0.0
      %2120 = vmatpush1.msra.mxu0 0.0
      %2121 = vmatprep.subr.mxu0 0.0
      %2122 = vmatpush1.msra.mxu0 0.0
      %2123 = vmatprep.subr.mxu0 0.0
      %2124 = vmatpush1.msra.mxu0 0.0
      %2125 = vmatprep.subr.mxu0 0.0
      %2126 = vmatpush1.msra.mxu0 0.0
      %2127 = vmatprep.subr.mxu0 0.0
      %2128 = vmatpush1.msra.mxu0 0.0
      %2129 = vmatprep.subr.mxu0 0.0
      %2130 = vmatpush1.msra.mxu0 0.0
      %2131 = vmatprep.subr.mxu0 0.0
      %2132 = vmatpush1.msra.mxu0 0.0
      %2133 = vmatprep.subr.mxu0 0.0
      %2134 = vmatpush1.msra.mxu0 0.0
      %2135 = vmatprep.subr.mxu0 0.0
      %2136 = vmatpush1.msra.mxu0 0.0
      %2137 = vmatprep.subr.mxu0 0.0
      %2138 = vmatpush1.msra.mxu0 0.0
      %2139 = vmatprep.subr.mxu0 0.0
      %2140 = vmatpush1.msra.mxu0 0.0
      %2141 = vmatprep.subr.mxu0 0.0
      %2142 = vmatpush1.msra.mxu0 0.0
      %2143 = vmatprep.subr.mxu0 0.0
      %2144 = vmatpush1.msra.mxu0 0.0
      %2145 = vmatprep.subr.mxu0 0.0
      %2146 = vmatpush1.msra.mxu0 0.0
      %2147 = vmatprep.subr.mxu0 0.0
      %2148 = vmatpush1.msra.mxu0 0.0
      %2149 = vmatprep.subr.mxu0 0.0
      %2150 = vmatpush1.msra.mxu0 0.0
      %2151 = vmatprep.subr.mxu0 0.0
      %2152 = vmatpush1.msra.mxu0 0.0
      %2153 = vmatprep.subr.mxu0 0.0
      %2154 = vmatpush1.msra.mxu0 0.0
      %2155 = vmatprep.subr.mxu0 0.0
      %2156 = vmatpush1.msra.mxu0 0.0
      %2157 = vmatprep.subr.mxu0 0.0
      %2158 = vmatpush1.msra.mxu0 0.0
      %2159 = vmatprep.subr.mxu0 0.0
      %2160 = vmatpush1.msra.mxu0 0.0
      %2161 = vmatprep.subr.mxu0 0.0
      %2162 = vmatpush1.msra.mxu0 0.0
      %2163 = vmatprep.subr.mxu0 0.0
      %2164 = vmatpush1.msra.mxu0 0.0
      %2165 = vmatprep.subr.mxu0 0.0
      %2166 = vmatpush1.msra.mxu0 0.0
      %2167 = vmatprep.subr.mxu0 0.0
      %2168 = vmatpush1.msra.mxu0 0.0
      %2169 = vmatprep.subr.mxu0 0.0
      %2170 = vmatpush1.msra.mxu0 0.0
      %2171 = vmatprep.mubr.f32.mxu0 0.0
      %2172 = vmatmul.mubr.f32.gmra.mrb[0].mxu0 %v1990
      %v2173 = vpop.f32.mrb[0].mxu0
      %v2174 = vadd.f32 0.0, %v2173
      %v2175 = vpop.f32.mrb[0].mxu0
      %v2176 = vadd.f32 0.0, %v2175
      %2177 = vmatprep.mubr.f32.mxu0 0.0
      %2178 = vmatmul.mubr.f32.gmra.mrb[0].mxu0 %v1993
      %v2179 = vpop.f32.mrb[0].mxu0
      %v2180 = vadd.f32 0.0, %v2179
      %v2181 = vpop.f32.mrb[0].mxu0
      %v2182 = vadd.f32 0.0, %v2181
      %2183 = vmatprep.mubr.f32.mxu0 0.0
      %2184 = vmatmul.mubr.f32.gmra.mrb[0].mxu0 %v1996
      %v2185 = vpop.f32.mrb[0].mxu0
      %v2186 = vadd.f32 0.0, %v2185
      %v2187 = vpop.f32.mrb[0].mxu0
      %v2188 = vadd.f32 0.0, %v2187
      %2189 = vmatprep.mubr.f32.mxu0 0.0
      %2190 = vmatmul.mubr.f32.gmra.mrb[0].mxu0 %v1999
      %v2191 = vpop.f32.mrb[0].mxu0
      %v2192 = vadd.f32 0.0, %v2191
      %v2193 = vpop.f32.mrb[0].mxu0
      %v2194 = vadd.f32 0.0, %v2193
      %2195 = vmatprep.mubr.f32.mxu0 0.0
      %2196 = vmatmul.mubr.f32.gmra.mrb[0].mxu0 %v2002
      %v2197 = vpop.f32.mrb[0].mxu0
      %v2198 = vadd.f32 0.0, %v2197
      %v2199 = vpop.f32.mrb[0].mxu0
      %v2200 = vadd.f32 0.0, %v2199
      %2201 = vdwg.mxu0
      %v2202 = vadd.f32 %v1963, %v2079
      %v2203 = vadd.f32 %v1964, %v2081
      %v2204 = vadd.f32 %v1965, %v2174
      %v2205 = vadd.f32 %v1966, %v2176
      %v2206 = vadd.f32 %v1967, %v2085
      %v2207 = vadd.f32 %v1968, %v2087
      %v2208 = vadd.f32 %v1969, %v2180
      %v2209 = vadd.f32 %v1970, %v2182
      %v2210 = vadd.f32 %v1971, %v2091
      %v2211 = vadd.f32 %v1972, %v2093
      %v2212 = vadd.f32 %v1973, %v2186
      %v2213 = vadd.f32 %v1974, %v2188
      %v2214 = vadd.f32 %v1975, %v2097
      %v2215 = vadd.f32 %v1976, %v2099
      %v2216 = vadd.f32 %v1977, %v2192
      %v2217 = vadd.f32 %v1978, %v2194
      %v2218 = vadd.f32 %v1979, %v2103
      %v2219 = vadd.f32 %v1980, %v2105
      %v2220 = vadd.f32 %v1981, %v2198
      %v2221 = vadd.f32 %v1982, %v2200
      %2222 = vrot.lane.b32.xlu0 %v882, 127
      %v2223 = vpop.permute.xlu0 %2222
      %2224 = vrot.lane.b32.xlu0 %v886, 127
      %v2225 = vpop.permute.xlu0 %2224
      %2226 = vrot.lane.b32.xlu0 %v883, 127
      %v2227 = vpop.permute.xlu0 %2226
      %2228 = vrot.lane.b32.xlu0 %v887, 127
      %v2229 = vpop.permute.xlu0 %2228
      %vm2230 = vcmp.lt.s32.totalorder %v899, 127
      %v2231 = vsel %vm2230, %v2227, %v2229
      %v2232 = vsel %vm2230, %v2225, %v2227
      %v2233 = vsel %vm2230, %v2223, %v2225
      %v2234 = vsel %vm2230, %v2229, %v2223
      %s2235 = scalar_lea.vmem %s1, 20
      %v2236 = vld [vmem:[%s2235] sm:$0xf]
      %v2238 = vlaneseq
      %v2239 = vshrl.u32 %v2238, 7
      %v2240 = vsub.s32 0, %v2239
      %v2241 = vrot.slane %v2236, %v2240
      %v2242 = vlaneseq
      %v2243 = vshrl.u32 %v2242, 7
      %v2244 = vsub.s32 1, %v2243
      %v2245 = vrot.slane %v2236, %v2244
      %v2246 = vlaneseq
      %v2247 = vshrl.u32 %v2246, 7
      %v2248 = vsub.s32 2, %v2247
      %v2249 = vrot.slane %v2236, %v2248
      %v2250 = vlaneseq
      %v2251 = vshrl.u32 %v2250, 7
      %v2252 = vsub.s32 3, %v2251
      %v2253 = vrot.slane %v2236, %v2252
      %v2258 = vmul.f32 %v2233, %v2241
      %v2259 = vmul.f32 %v2232, %v2245
      %v2260 = vmul.f32 %v2231, %v2249
      %v2261 = vmul.f32 %v2234, %v2253
      %s2262 = scalar_lea.vmem %s16, 200
      %v2263 = vld [vmem:[%s2262] sm:$0xff]
      %v2264 = vld [vmem:[%s2262 + $0x8] sm:$0xff]
      %v2265 = vld [vmem:[%s2262 + $0x10] sm:$0xff]
      %v2266 = vld [vmem:[%s2262 + $0x18] sm:$0xff]
      %v2267 = vld [vmem:[%s2262 + $0x20] sm:$0x3]
      %v2269 = vsel %vm982, %v2263, 0
      %v2272 = vsel %vm982, %v2264, 0
      %v2275 = vsel %vm982, %v2265, 0
      %v2278 = vsel %vm982, %v2266, 0
      %v2281 = vsel %vm982, %v2267, 0
      %v2284 = vsel %vm800, %v2258, 0
      %v2287 = vsel %vm800, %v2259, 0
      %v2290 = vsel %vm800, %v2260, 0
      %v2293 = vsel %vm800, %v2261, 0
      %2295 = vmatprep.subr.mxu0 %v2287
      %2296 = vmatpush1.msra.mxu0 %v2284
      %2297 = vmatprep.subr.mxu0 0.0
      %2298 = vmatpush1.msra.mxu0 0.0
      %2299 = vmatprep.subr.mxu0 0.0
      %2300 = vmatpush1.msra.mxu0 0.0
      %2301 = vmatprep.subr.mxu0 0.0
      %2302 = vmatpush1.msra.mxu0 0.0
      %2303 = vmatprep.subr.mxu0 0.0
      %2304 = vmatpush1.msra.mxu0 0.0
      %2305 = vmatprep.subr.mxu0 0.0
      %2306 = vmatpush1.msra.mxu0 0.0
      %2307 = vmatprep.subr.mxu0 0.0
      %2308 = vmatpush1.msra.mxu0 0.0
      %2309 = vmatprep.subr.mxu0 0.0
      %2310 = vmatpush1.msra.mxu0 0.0
      %2311 = vmatprep.subr.mxu0 0.0
      %2312 = vmatpush1.msra.mxu0 0.0
      %2313 = vmatprep.subr.mxu0 0.0
      %2314 = vmatpush1.msra.mxu0 0.0
      %2315 = vmatprep.subr.mxu0 0.0
      %2316 = vmatpush1.msra.mxu0 0.0
      %2317 = vmatprep.subr.mxu0 0.0
      %2318 = vmatpush1.msra.mxu0 0.0
      %2319 = vmatprep.subr.mxu0 0.0
      %2320 = vmatpush1.msra.mxu0 0.0
      %2321 = vmatprep.subr.mxu0 0.0
      %2322 = vmatpush1.msra.mxu0 0.0
      %2323 = vmatprep.subr.mxu0 0.0
      %2324 = vmatpush1.msra.mxu0 0.0
      %2325 = vmatprep.subr.mxu0 0.0
      %2326 = vmatpush1.msra.mxu0 0.0
      %2327 = vmatprep.subr.mxu0 0.0
      %2328 = vmatpush1.msra.mxu0 0.0
      %2329 = vmatprep.subr.mxu0 0.0
      %2330 = vmatpush1.msra.mxu0 0.0
      %2331 = vmatprep.subr.mxu0 0.0
      %2332 = vmatpush1.msra.mxu0 0.0
      %2333 = vmatprep.subr.mxu0 0.0
      %2334 = vmatpush1.msra.mxu0 0.0
      %2335 = vmatprep.subr.mxu0 0.0
      %2336 = vmatpush1.msra.mxu0 0.0
      %2337 = vmatprep.subr.mxu0 0.0
      %2338 = vmatpush1.msra.mxu0 0.0
      %2339 = vmatprep.subr.mxu0 0.0
      %2340 = vmatpush1.msra.mxu0 0.0
      %2341 = vmatprep.subr.mxu0 0.0
      %2342 = vmatpush1.msra.mxu0 0.0
      %2343 = vmatprep.subr.mxu0 0.0
      %2344 = vmatpush1.msra.mxu0 0.0
      %2345 = vmatprep.subr.mxu0 0.0
      %2346 = vmatpush1.msra.mxu0 0.0
      %2347 = vmatprep.subr.mxu0 0.0
      %2348 = vmatpush1.msra.mxu0 0.0
      %2349 = vmatprep.subr.mxu0 0.0
      %2350 = vmatpush1.msra.mxu0 0.0
      %2351 = vmatprep.subr.mxu0 0.0
      %2352 = vmatpush1.msra.mxu0 0.0
      %2353 = vmatprep.subr.mxu0 0.0
      %2354 = vmatpush1.msra.mxu0 0.0
      %2355 = vmatprep.subr.mxu0 0.0
      %2356 = vmatpush1.msra.mxu0 0.0
      %2357 = vmatprep.subr.mxu0 0.0
      %2358 = vmatpush1.msra.mxu0 0.0
      %2359 = vmatprep.mubr.f32.mxu0 0.0
      %2360 = vmatmul.mubr.f32.gmra.mrb[0].mxu0 %v2269
      %v2361 = vpop.f32.mrb[0].mxu0
      %v2362 = vadd.f32 0.0, %v2361
      %v2363 = vpop.f32.mrb[0].mxu0
      %v2364 = vadd.f32 0.0, %v2363
      %2365 = vmatprep.mubr.f32.mxu0 0.0
      %2366 = vmatmul.mubr.f32.gmra.mrb[0].mxu0 %v2272
      %v2367 = vpop.f32.mrb[0].mxu0
      %v2368 = vadd.f32 0.0, %v2367
      %v2369 = vpop.f32.mrb[0].mxu0
      %v2370 = vadd.f32 0.0, %v2369
      %2371 = vmatprep.mubr.f32.mxu0 0.0
      %2372 = vmatmul.mubr.f32.gmra.mrb[0].mxu0 %v2275
      %v2373 = vpop.f32.mrb[0].mxu0
      %v2374 = vadd.f32 0.0, %v2373
      %v2375 = vpop.f32.mrb[0].mxu0
      %v2376 = vadd.f32 0.0, %v2375
      %2377 = vmatprep.mubr.f32.mxu0 0.0
      %2378 = vmatmul.mubr.f32.gmra.mrb[0].mxu0 %v2278
      %v2379 = vpop.f32.mrb[0].mxu0
      %v2380 = vadd.f32 0.0, %v2379
      %v2381 = vpop.f32.mrb[0].mxu0
      %v2382 = vadd.f32 0.0, %v2381
      %2383 = vmatprep.mubr.f32.mxu0 0.0
      %2384 = vmatmul.mubr.f32.gmra.mrb[0].mxu0 %v2281
      %v2385 = vpop.f32.mrb[0].mxu0
      %v2386 = vadd.f32 0.0, %v2385
      %v2387 = vpop.f32.mrb[0].mxu0
      %v2388 = vadd.f32 0.0, %v2387
      %2389 = vdwg.mxu0
      %2390 = vmatprep.subr.mxu0 %v2293
      %2391 = vmatpush1.msra.mxu0 %v2290
      %2392 = vmatprep.subr.mxu0 0.0
      %2393 = vmatpush1.msra.mxu0 0.0
      %2394 = vmatprep.subr.mxu0 0.0
      %2395 = vmatpush1.msra.mxu0 0.0
      %2396 = vmatprep.subr.mxu0 0.0
      %2397 = vmatpush1.msra.mxu0 0.0
      %2398 = vmatprep.subr.mxu0 0.0
      %2399 = vmatpush1.msra.mxu0 0.0
      %2400 = vmatprep.subr.mxu0 0.0
      %2401 = vmatpush1.msra.mxu0 0.0
      %2402 = vmatprep.subr.mxu0 0.0
      %2403 = vmatpush1.msra.mxu0 0.0
      %2404 = vmatprep.subr.mxu0 0.0
      %2405 = vmatpush1.msra.mxu0 0.0
      %2406 = vmatprep.subr.mxu0 0.0
      %2407 = vmatpush1.msra.mxu0 0.0
      %2408 = vmatprep.subr.mxu0 0.0
      %2409 = vmatpush1.msra.mxu0 0.0
      %2410 = vmatprep.subr.mxu0 0.0
      %2411 = vmatpush1.msra.mxu0 0.0
      %2412 = vmatprep.subr.mxu0 0.0
      %2413 = vmatpush1.msra.mxu0 0.0
      %2414 = vmatprep.subr.mxu0 0.0
      %2415 = vmatpush1.msra.mxu0 0.0
      %2416 = vmatprep.subr.mxu0 0.0
      %2417 = vmatpush1.msra.mxu0 0.0
      %2418 = vmatprep.subr.mxu0 0.0
      %2419 = vmatpush1.msra.mxu0 0.0
      %2420 = vmatprep.subr.mxu0 0.0
      %2421 = vmatpush1.msra.mxu0 0.0
      %2422 = vmatprep.subr.mxu0 0.0
      %2423 = vmatpush1.msra.mxu0 0.0
      %2424 = vmatprep.subr.mxu0 0.0
      %2425 = vmatpush1.msra.mxu0 0.0
      %2426 = vmatprep.subr.mxu0 0.0
      %2427 = vmatpush1.msra.mxu0 0.0
      %2428 = vmatprep.subr.mxu0 0.0
      %2429 = vmatpush1.msra.mxu0 0.0
      %2430 = vmatprep.subr.mxu0 0.0
      %2431 = vmatpush1.msra.mxu0 0.0
      %2432 = vmatprep.subr.mxu0 0.0
      %2433 = vmatpush1.msra.mxu0 0.0
      %2434 = vmatprep.subr.mxu0 0.0
      %2435 = vmatpush1.msra.mxu0 0.0
      %2436 = vmatprep.subr.mxu0 0.0
      %2437 = vmatpush1.msra.mxu0 0.0
      %2438 = vmatprep.subr.mxu0 0.0
      %2439 = vmatpush1.msra.mxu0 0.0
      %2440 = vmatprep.subr.mxu0 0.0
      %2441 = vmatpush1.msra.mxu0 0.0
      %2442 = vmatprep.subr.mxu0 0.0
      %2443 = vmatpush1.msra.mxu0 0.0
      %2444 = vmatprep.subr.mxu0 0.0
      %2445 = vmatpush1.msra.mxu0 0.0
      %2446 = vmatprep.subr.mxu0 0.0
      %2447 = vmatpush1.msra.mxu0 0.0
      %2448 = vmatprep.subr.mxu0 0.0
      %2449 = vmatpush1.msra.mxu0 0.0
      %2450 = vmatprep.subr.mxu0 0.0
      %2451 = vmatpush1.msra.mxu0 0.0
      %2452 = vmatprep.subr.mxu0 0.0
      %2453 = vmatpush1.msra.mxu0 0.0
      %2454 = vmatprep.mubr.f32.mxu0 0.0
      %2455 = vmatmul.mubr.f32.gmra.mrb[0].mxu0 %v2269
      %v2456 = vpop.f32.mrb[0].mxu0
      %v2457 = vadd.f32 0.0, %v2456
      %v2458 = vpop.f32.mrb[0].mxu0
      %v2459 = vadd.f32 0.0, %v2458
      %2460 = vmatprep.mubr.f32.mxu0 0.0
      %2461 = vmatmul.mubr.f32.gmra.mrb[0].mxu0 %v2272
      %v2462 = vpop.f32.mrb[0].mxu0
      %v2463 = vadd.f32 0.0, %v2462
      %v2464 = vpop.f32.mrb[0].mxu0
      %v2465 = vadd.f32 0.0, %v2464
      %2466 = vmatprep.mubr.f32.mxu0 0.0
      %2467 = vmatmul.mubr.f32.gmra.mrb[0].mxu0 %v2275
      %v2468 = vpop.f32.mrb[0].mxu0
      %v2469 = vadd.f32 0.0, %v2468
      %v2470 = vpop.f32.mrb[0].mxu0
      %v2471 = vadd.f32 0.0, %v2470
      %2472 = vmatprep.mubr.f32.mxu0 0.0
      %2473 = vmatmul.mubr.f32.gmra.mrb[0].mxu0 %v2278
      %v2474 = vpop.f32.mrb[0].mxu0
      %v2475 = vadd.f32 0.0, %v2474
      %v2476 = vpop.f32.mrb[0].mxu0
      %v2477 = vadd.f32 0.0, %v2476
      %2478 = vmatprep.mubr.f32.mxu0 0.0
      %2479 = vmatmul.mubr.f32.gmra.mrb[0].mxu0 %v2281
      %v2480 = vpop.f32.mrb[0].mxu0
      %v2481 = vadd.f32 0.0, %v2480
      %v2482 = vpop.f32.mrb[0].mxu0
      %v2483 = vadd.f32 0.0, %v2482
      %2484 = vdwg.mxu0
      %v2485 = vadd.f32 %v2202, %v2362
      %v2486 = vadd.f32 %v2203, %v2364
      %v2487 = vadd.f32 %v2204, %v2457
      %v2488 = vadd.f32 %v2205, %v2459
      %v2489 = vadd.f32 %v2206, %v2368
      %v2490 = vadd.f32 %v2207, %v2370
      %v2491 = vadd.f32 %v2208, %v2463
      %v2492 = vadd.f32 %v2209, %v2465
      %v2493 = vadd.f32 %v2210, %v2374
      %v2494 = vadd.f32 %v2211, %v2376
      %v2495 = vadd.f32 %v2212, %v2469
      %v2496 = vadd.f32 %v2213, %v2471
      %v2497 = vadd.f32 %v2214, %v2380
      %v2498 = vadd.f32 %v2215, %v2382
      %v2499 = vadd.f32 %v2216, %v2475
      %v2500 = vadd.f32 %v2217, %v2477
      %v2501 = vadd.f32 %v2218, %v2386
      %v2502 = vadd.f32 %v2219, %v2388
      %v2503 = vadd.f32 %v2220, %v2481
      %v2504 = vadd.f32 %v2221, %v2483
      %2505 = vrot.lane.b32.xlu0 %v882, 113
      %v2506 = vpop.permute.xlu0 %2505
      %2507 = vrot.lane.b32.xlu0 %v886, 113
      %v2508 = vpop.permute.xlu0 %2507
      %2509 = vrot.lane.b32.xlu0 %v883, 113
      %v2510 = vpop.permute.xlu0 %2509
      %2511 = vrot.lane.b32.xlu0 %v887, 113
      %v2512 = vpop.permute.xlu0 %2511
      %vm2513 = vcmp.lt.s32.totalorder %v899, 113
      %v2514 = vsel %vm2513, %v2510, %v2512
      %v2515 = vsel %vm2513, %v2508, %v2510
      %v2516 = vsel %vm2513, %v2506, %v2508
      %v2517 = vsel %vm2513, %v2512, %v2506
      %s2518 = scalar_lea.vmem %s1, 24
      %v2519 = vld [vmem:[%s2518] sm:$0xf]
      %v2521 = vlaneseq
      %v2522 = vshrl.u32 %v2521, 7
      %v2523 = vsub.s32 0, %v2522
      %v2524 = vrot.slane %v2519, %v2523
      %v2525 = vlaneseq
      %v2526 = vshrl.u32 %v2525, 7
      %v2527 = vsub.s32 1, %v2526
      %v2528 = vrot.slane %v2519, %v2527
      %v2529 = vlaneseq
      %v2530 = vshrl.u32 %v2529, 7
      %v2531 = vsub.s32 2, %v2530
      %v2532 = vrot.slane %v2519, %v2531
      %v2533 = vlaneseq
      %v2534 = vshrl.u32 %v2533, 7
      %v2535 = vsub.s32 3, %v2534
      %v2536 = vrot.slane %v2519, %v2535
      %v2541 = vmul.f32 %v2516, %v2524
      %v2542 = vmul.f32 %v2515, %v2528
      %v2543 = vmul.f32 %v2514, %v2532
      %v2544 = vmul.f32 %v2517, %v2536
      %s2545 = scalar_lea.vmem %s16, 240
      %v2546 = vld [vmem:[%s2545] sm:$0xff]
      %v2547 = vld [vmem:[%s2545 + $0x8] sm:$0xff]
      %v2548 = vld [vmem:[%s2545 + $0x10] sm:$0xff]
      %v2549 = vld [vmem:[%s2545 + $0x18] sm:$0xff]
      %v2550 = vld [vmem:[%s2545 + $0x20] sm:$0x3]
      %v2552 = vsel %vm982, %v2546, 0
      %v2555 = vsel %vm982, %v2547, 0
      %v2558 = vsel %vm982, %v2548, 0
      %v2561 = vsel %vm982, %v2549, 0
      %v2564 = vsel %vm982, %v2550, 0
      %v2567 = vsel %vm800, %v2541, 0
      %v2570 = vsel %vm800, %v2542, 0
      %v2573 = vsel %vm800, %v2543, 0
      %v2576 = vsel %vm800, %v2544, 0
      %2578 = vmatprep.subr.mxu0 %v2570
      %2579 = vmatpush1.msra.mxu0 %v2567
      %2580 = vmatprep.subr.mxu0 0.0
      %2581 = vmatpush1.msra.mxu0 0.0
      %2582 = vmatprep.subr.mxu0 0.0
      %2583 = vmatpush1.msra.mxu0 0.0
      %2584 = vmatprep.subr.mxu0 0.0
      %2585 = vmatpush1.msra.mxu0 0.0
      %2586 = vmatprep.subr.mxu0 0.0
      %2587 = vmatpush1.msra.mxu0 0.0
      %2588 = vmatprep.subr.mxu0 0.0
      %2589 = vmatpush1.msra.mxu0 0.0
      %2590 = vmatprep.subr.mxu0 0.0
      %2591 = vmatpush1.msra.mxu0 0.0
      %2592 = vmatprep.subr.mxu0 0.0
      %2593 = vmatpush1.msra.mxu0 0.0
      %2594 = vmatprep.subr.mxu0 0.0
      %2595 = vmatpush1.msra.mxu0 0.0
      %2596 = vmatprep.subr.mxu0 0.0
      %2597 = vmatpush1.msra.mxu0 0.0
      %2598 = vmatprep.subr.mxu0 0.0
      %2599 = vmatpush1.msra.mxu0 0.0
      %2600 = vmatprep.subr.mxu0 0.0
      %2601 = vmatpush1.msra.mxu0 0.0
      %2602 = vmatprep.subr.mxu0 0.0
      %2603 = vmatpush1.msra.mxu0 0.0
      %2604 = vmatprep.subr.mxu0 0.0
      %2605 = vmatpush1.msra.mxu0 0.0
      %2606 = vmatprep.subr.mxu0 0.0
      %2607 = vmatpush1.msra.mxu0 0.0
      %2608 = vmatprep.subr.mxu0 0.0
      %2609 = vmatpush1.msra.mxu0 0.0
      %2610 = vmatprep.subr.mxu0 0.0
      %2611 = vmatpush1.msra.mxu0 0.0
      %2612 = vmatprep.subr.mxu0 0.0
      %2613 = vmatpush1.msra.mxu0 0.0
      %2614 = vmatprep.subr.mxu0 0.0
      %2615 = vmatpush1.msra.mxu0 0.0
      %2616 = vmatprep.subr.mxu0 0.0
      %2617 = vmatpush1.msra.mxu0 0.0
      %2618 = vmatprep.subr.mxu0 0.0
      %2619 = vmatpush1.msra.mxu0 0.0
      %2620 = vmatprep.subr.mxu0 0.0
      %2621 = vmatpush1.msra.mxu0 0.0
      %2622 = vmatprep.subr.mxu0 0.0
      %2623 = vmatpush1.msra.mxu0 0.0
      %2624 = vmatprep.subr.mxu0 0.0
      %2625 = vmatpush1.msra.mxu0 0.0
      %2626 = vmatprep.subr.mxu0 0.0
      %2627 = vmatpush1.msra.mxu0 0.0
      %2628 = vmatprep.subr.mxu0 0.0
      %2629 = vmatpush1.msra.mxu0 0.0
      %2630 = vmatprep.subr.mxu0 0.0
      %2631 = vmatpush1.msra.mxu0 0.0
      %2632 = vmatprep.subr.mxu0 0.0
      %2633 = vmatpush1.msra.mxu0 0.0
      %2634 = vmatprep.subr.mxu0 0.0
      %2635 = vmatpush1.msra.mxu0 0.0
      %2636 = vmatprep.subr.mxu0 0.0
      %2637 = vmatpush1.msra.mxu0 0.0
      %2638 = vmatprep.subr.mxu0 0.0
      %2639 = vmatpush1.msra.mxu0 0.0
      %2640 = vmatprep.subr.mxu0 0.0
      %2641 = vmatpush1.msra.mxu0 0.0
      %2642 = vmatprep.mubr.f32.mxu0 0.0
      %2643 = vmatmul.mubr.f32.gmra.mrb[0].mxu0 %v2552
      %v2644 = vpop.f32.mrb[0].mxu0
      %v2645 = vadd.f32 0.0, %v2644
      %v2646 = vpop.f32.mrb[0].mxu0
      %v2647 = vadd.f32 0.0, %v2646
      %2648 = vmatprep.mubr.f32.mxu0 0.0
      %2649 = vmatmul.mubr.f32.gmra.mrb[0].mxu0 %v2555
      %v2650 = vpop.f32.mrb[0].mxu0
      %v2651 = vadd.f32 0.0, %v2650
      %v2652 = vpop.f32.mrb[0].mxu0
      %v2653 = vadd.f32 0.0, %v2652
      %2654 = vmatprep.mubr.f32.mxu0 0.0
      %2655 = vmatmul.mubr.f32.gmra.mrb[0].mxu0 %v2558
      %v2656 = vpop.f32.mrb[0].mxu0
      %v2657 = vadd.f32 0.0, %v2656
      %v2658 = vpop.f32.mrb[0].mxu0
      %v2659 = vadd.f32 0.0, %v2658
      %2660 = vmatprep.mubr.f32.mxu0 0.0
      %2661 = vmatmul.mubr.f32.gmra.mrb[0].mxu0 %v2561
      %v2662 = vpop.f32.mrb[0].mxu0
      %v2663 = vadd.f32 0.0, %v2662
      %v2664 = vpop.f32.mrb[0].mxu0
      %v2665 = vadd.f32 0.0, %v2664
      %2666 = vmatprep.mubr.f32.mxu0 0.0
      %2667 = vmatmul.mubr.f32.gmra.mrb[0].mxu0 %v2564
      %v2668 = vpop.f32.mrb[0].mxu0
      %v2669 = vadd.f32 0.0, %v2668
      %v2670 = vpop.f32.mrb[0].mxu0
      %v2671 = vadd.f32 0.0, %v2670
      %2672 = vdwg.mxu0
      %2673 = vmatprep.subr.mxu0 %v2576
      %2674 = vmatpush1.msra.mxu0 %v2573
      %2675 = vmatprep.subr.mxu0 0.0
      %2676 = vmatpush1.msra.mxu0 0.0
      %2677 = vmatprep.subr.mxu0 0.0
      %2678 = vmatpush1.msra.mxu0 0.0
      %2679 = vmatprep.subr.mxu0 0.0
      %2680 = vmatpush1.msra.mxu0 0.0
      %2681 = vmatprep.subr.mxu0 0.0
      %2682 = vmatpush1.msra.mxu0 0.0
      %2683 = vmatprep.subr.mxu0 0.0
      %2684 = vmatpush1.msra.mxu0 0.0
      %2685 = vmatprep.subr.mxu0 0.0
      %2686 = vmatpush1.msra.mxu0 0.0
      %2687 = vmatprep.subr.mxu0 0.0
      %2688 = vmatpush1.msra.mxu0 0.0
      %2689 = vmatprep.subr.mxu0 0.0
      %2690 = vmatpush1.msra.mxu0 0.0
      %2691 = vmatprep.subr.mxu0 0.0
      %2692 = vmatpush1.msra.mxu0 0.0
      %2693 = vmatprep.subr.mxu0 0.0
      %2694 = vmatpush1.msra.mxu0 0.0
      %2695 = vmatprep.subr.mxu0 0.0
      %2696 = vmatpush1.msra.mxu0 0.0
      %2697 = vmatprep.subr.mxu0 0.0
      %2698 = vmatpush1.msra.mxu0 0.0
      %2699 = vmatprep.subr.mxu0 0.0
      %2700 = vmatpush1.msra.mxu0 0.0
      %2701 = vmatprep.subr.mxu0 0.0
      %2702 = vmatpush1.msra.mxu0 0.0
      %2703 = vmatprep.subr.mxu0 0.0
      %2704 = vmatpush1.msra.mxu0 0.0
      %2705 = vmatprep.subr.mxu0 0.0
      %2706 = vmatpush1.msra.mxu0 0.0
      %2707 = vmatprep.subr.mxu0 0.0
      %2708 = vmatpush1.msra.mxu0 0.0
      %2709 = vmatprep.subr.mxu0 0.0
      %2710 = vmatpush1.msra.mxu0 0.0
      %2711 = vmatprep.subr.mxu0 0.0
      %2712 = vmatpush1.msra.mxu0 0.0
      %2713 = vmatprep.subr.mxu0 0.0
      %2714 = vmatpush1.msra.mxu0 0.0
      %2715 = vmatprep.subr.mxu0 0.0
      %2716 = vmatpush1.msra.mxu0 0.0
      %2717 = vmatprep.subr.mxu0 0.0
      %2718 = vmatpush1.msra.mxu0 0.0
      %2719 = vmatprep.subr.mxu0 0.0
      %2720 = vmatpush1.msra.mxu0 0.0
      %2721 = vmatprep.subr.mxu0 0.0
      %2722 = vmatpush1.msra.mxu0 0.0
      %2723 = vmatprep.subr.mxu0 0.0
      %2724 = vmatpush1.msra.mxu0 0.0
      %2725 = vmatprep.subr.mxu0 0.0
      %2726 = vmatpush1.msra.mxu0 0.0
      %2727 = vmatprep.subr.mxu0 0.0
      %2728 = vmatpush1.msra.mxu0 0.0
      %2729 = vmatprep.subr.mxu0 0.0
      %2730 = vmatpush1.msra.mxu0 0.0
      %2731 = vmatprep.subr.mxu0 0.0
      %2732 = vmatpush1.msra.mxu0 0.0
      %2733 = vmatprep.subr.mxu0 0.0
      %2734 = vmatpush1.msra.mxu0 0.0
      %2735 = vmatprep.subr.mxu0 0.0
      %2736 = vmatpush1.msra.mxu0 0.0
      %2737 = vmatprep.mubr.f32.mxu0 0.0
      %2738 = vmatmul.mubr.f32.gmra.mrb[0].mxu0 %v2552
      %v2739 = vpop.f32.mrb[0].mxu0
      %v2740 = vadd.f32 0.0, %v2739
      %v2741 = vpop.f32.mrb[0].mxu0
      %v2742 = vadd.f32 0.0, %v2741
      %2743 = vmatprep.mubr.f32.mxu0 0.0
      %2744 = vmatmul.mubr.f32.gmra.mrb[0].mxu0 %v2555
      %v2745 = vpop.f32.mrb[0].mxu0
      %v2746 = vadd.f32 0.0, %v2745
      %v2747 = vpop.f32.mrb[0].mxu0
      %v2748 = vadd.f32 0.0, %v2747
      %2749 = vmatprep.mubr.f32.mxu0 0.0
      %2750 = vmatmul.mubr.f32.gmra.mrb[0].mxu0 %v2558
      %v2751 = vpop.f32.mrb[0].mxu0
      %v2752 = vadd.f32 0.0, %v2751
      %v2753 = vpop.f32.mrb[0].mxu0
      %v2754 = vadd.f32 0.0, %v2753
      %2755 = vmatprep.mubr.f32.mxu0 0.0
      %2756 = vmatmul.mubr.f32.gmra.mrb[0].mxu0 %v2561
      %v2757 = vpop.f32.mrb[0].mxu0
      %v2758 = vadd.f32 0.0, %v2757
      %v2759 = vpop.f32.mrb[0].mxu0
      %v2760 = vadd.f32 0.0, %v2759
      %2761 = vmatprep.mubr.f32.mxu0 0.0
      %2762 = vmatmul.mubr.f32.gmra.mrb[0].mxu0 %v2564
      %v2763 = vpop.f32.mrb[0].mxu0
      %v2764 = vadd.f32 0.0, %v2763
      %v2765 = vpop.f32.mrb[0].mxu0
      %v2766 = vadd.f32 0.0, %v2765
      %2767 = vdwg.mxu0
      %v2768 = vadd.f32 %v2485, %v2645
      %v2769 = vadd.f32 %v2486, %v2647
      %v2770 = vadd.f32 %v2487, %v2740
      %v2771 = vadd.f32 %v2488, %v2742
      %v2772 = vadd.f32 %v2489, %v2651
      %v2773 = vadd.f32 %v2490, %v2653
      %v2774 = vadd.f32 %v2491, %v2746
      %v2775 = vadd.f32 %v2492, %v2748
      %v2776 = vadd.f32 %v2493, %v2657
      %v2777 = vadd.f32 %v2494, %v2659
      %v2778 = vadd.f32 %v2495, %v2752
      %v2779 = vadd.f32 %v2496, %v2754
      %v2780 = vadd.f32 %v2497, %v2663
      %v2781 = vadd.f32 %v2498, %v2665
      %v2782 = vadd.f32 %v2499, %v2758
      %v2783 = vadd.f32 %v2500, %v2760
      %v2784 = vadd.f32 %v2501, %v2669
      %v2785 = vadd.f32 %v2502, %v2671
      %v2786 = vadd.f32 %v2503, %v2764
      %v2787 = vadd.f32 %v2504, %v2766
      %2788 = vrot.lane.b32.xlu0 %v882, 112
      %v2789 = vpop.permute.xlu0 %2788
      %2790 = vrot.lane.b32.xlu0 %v886, 112
      %v2791 = vpop.permute.xlu0 %2790
      %2792 = vrot.lane.b32.xlu0 %v883, 112
      %v2793 = vpop.permute.xlu0 %2792
      %2794 = vrot.lane.b32.xlu0 %v887, 112
      %v2795 = vpop.permute.xlu0 %2794
      %vm2796 = vcmp.lt.s32.totalorder %v899, 112
      %v2797 = vsel %vm2796, %v2793, %v2795
      %v2798 = vsel %vm2796, %v2791, %v2793
      %v2799 = vsel %vm2796, %v2789, %v2791
      %v2800 = vsel %vm2796, %v2795, %v2789
      %s2801 = scalar_lea.vmem %s1, 28
      %v2802 = vld [vmem:[%s2801] sm:$0xf]
      %v2804 = vlaneseq
      %v2805 = vshrl.u32 %v2804, 7
      %v2806 = vsub.s32 0, %v2805
      %v2807 = vrot.slane %v2802, %v2806
      %v2808 = vlaneseq
      %v2809 = vshrl.u32 %v2808, 7
      %v2810 = vsub.s32 1, %v2809
      %v2811 = vrot.slane %v2802, %v2810
      %v2812 = vlaneseq
      %v2813 = vshrl.u32 %v2812, 7
      %v2814 = vsub.s32 2, %v2813
      %v2815 = vrot.slane %v2802, %v2814
      %v2816 = vlaneseq
      %v2817 = vshrl.u32 %v2816, 7
      %v2818 = vsub.s32 3, %v2817
      %v2819 = vrot.slane %v2802, %v2818
      %v2824 = vmul.f32 %v2799, %v2807
      %v2825 = vmul.f32 %v2798, %v2811
      %v2826 = vmul.f32 %v2797, %v2815
      %v2827 = vmul.f32 %v2800, %v2819
      %s2828 = scalar_lea.vmem %s16, 280
      %v2829 = vld [vmem:[%s2828] sm:$0xff]
      %v2830 = vld [vmem:[%s2828 + $0x8] sm:$0xff]
      %v2831 = vld [vmem:[%s2828 + $0x10] sm:$0xff]
      %v2832 = vld [vmem:[%s2828 + $0x18] sm:$0xff]
      %v2833 = vld [vmem:[%s2828 + $0x20] sm:$0x3]
      %v2835 = vsel %vm982, %v2829, 0
      %v2838 = vsel %vm982, %v2830, 0
      %v2841 = vsel %vm982, %v2831, 0
      %v2844 = vsel %vm982, %v2832, 0
      %v2847 = vsel %vm982, %v2833, 0
      %v2850 = vsel %vm800, %v2824, 0
      %v2853 = vsel %vm800, %v2825, 0
      %v2856 = vsel %vm800, %v2826, 0
      %v2859 = vsel %vm800, %v2827, 0
      %2861 = vmatprep.subr.mxu0 %v2853
      %2862 = vmatpush1.msra.mxu0 %v2850
      %2863 = vmatprep.subr.mxu0 0.0
      %2864 = vmatpush1.msra.mxu0 0.0
      %2865 = vmatprep.subr.mxu0 0.0
      %2866 = vmatpush1.msra.mxu0 0.0
      %2867 = vmatprep.subr.mxu0 0.0
      %2868 = vmatpush1.msra.mxu0 0.0
      %2869 = vmatprep.subr.mxu0 0.0
      %2870 = vmatpush1.msra.mxu0 0.0
      %2871 = vmatprep.subr.mxu0 0.0
      %2872 = vmatpush1.msra.mxu0 0.0
      %2873 = vmatprep.subr.mxu0 0.0
      %2874 = vmatpush1.msra.mxu0 0.0
      %2875 = vmatprep.subr.mxu0 0.0
      %2876 = vmatpush1.msra.mxu0 0.0
      %2877 = vmatprep.subr.mxu0 0.0
      %2878 = vmatpush1.msra.mxu0 0.0
      %2879 = vmatprep.subr.mxu0 0.0
      %2880 = vmatpush1.msra.mxu0 0.0
      %2881 = vmatprep.subr.mxu0 0.0
      %2882 = vmatpush1.msra.mxu0 0.0
      %2883 = vmatprep.subr.mxu0 0.0
      %2884 = vmatpush1.msra.mxu0 0.0
      %2885 = vmatprep.subr.mxu0 0.0
      %2886 = vmatpush1.msra.mxu0 0.0
      %2887 = vmatprep.subr.mxu0 0.0
      %2888 = vmatpush1.msra.mxu0 0.0
      %2889 = vmatprep.subr.mxu0 0.0
      %2890 = vmatpush1.msra.mxu0 0.0
      %2891 = vmatprep.subr.mxu0 0.0
      %2892 = vmatpush1.msra.mxu0 0.0
      %2893 = vmatprep.subr.mxu0 0.0
      %2894 = vmatpush1.msra.mxu0 0.0
      %2895 = vmatprep.subr.mxu0 0.0
      %2896 = vmatpush1.msra.mxu0 0.0
      %2897 = vmatprep.subr.mxu0 0.0
      %2898 = vmatpush1.msra.mxu0 0.0
      %2899 = vmatprep.subr.mxu0 0.0
      %2900 = vmatpush1.msra.mxu0 0.0
      %2901 = vmatprep.subr.mxu0 0.0
      %2902 = vmatpush1.msra.mxu0 0.0
      %2903 = vmatprep.subr.mxu0 0.0
      %2904 = vmatpush1.msra.mxu0 0.0
      %2905 = vmatprep.subr.mxu0 0.0
      %2906 = vmatpush1.msra.mxu0 0.0
      %2907 = vmatprep.subr.mxu0 0.0
      %2908 = vmatpush1.msra.mxu0 0.0
      %2909 = vmatprep.subr.mxu0 0.0
      %2910 = vmatpush1.msra.mxu0 0.0
      %2911 = vmatprep.subr.mxu0 0.0
      %2912 = vmatpush1.msra.mxu0 0.0
      %2913 = vmatprep.subr.mxu0 0.0
      %2914 = vmatpush1.msra.mxu0 0.0
      %2915 = vmatprep.subr.mxu0 0.0
      %2916 = vmatpush1.msra.mxu0 0.0
      %2917 = vmatprep.subr.mxu0 0.0
      %2918 = vmatpush1.msra.mxu0 0.0
      %2919 = vmatprep.subr.mxu0 0.0
      %2920 = vmatpush1.msra.mxu0 0.0
      %2921 = vmatprep.subr.mxu0 0.0
      %2922 = vmatpush1.msra.mxu0 0.0
      %2923 = vmatprep.subr.mxu0 0.0
      %2924 = vmatpush1.msra.mxu0 0.0
      %2925 = vmatprep.mubr.f32.mxu0 0.0
      %2926 = vmatmul.mubr.f32.gmra.mrb[0].mxu0 %v2835
      %v2927 = vpop.f32.mrb[0].mxu0
      %v2928 = vadd.f32 0.0, %v2927
      %v2929 = vpop.f32.mrb[0].mxu0
      %v2930 = vadd.f32 0.0, %v2929
      %2931 = vmatprep.mubr.f32.mxu0 0.0
      %2932 = vmatmul.mubr.f32.gmra.mrb[0].mxu0 %v2838
      %v2933 = vpop.f32.mrb[0].mxu0
      %v2934 = vadd.f32 0.0, %v2933
      %v2935 = vpop.f32.mrb[0].mxu0
      %v2936 = vadd.f32 0.0, %v2935
      %2937 = vmatprep.mubr.f32.mxu0 0.0
      %2938 = vmatmul.mubr.f32.gmra.mrb[0].mxu0 %v2841
      %v2939 = vpop.f32.mrb[0].mxu0
      %v2940 = vadd.f32 0.0, %v2939
      %v2941 = vpop.f32.mrb[0].mxu0
      %v2942 = vadd.f32 0.0, %v2941
      %2943 = vmatprep.mubr.f32.mxu0 0.0
      %2944 = vmatmul.mubr.f32.gmra.mrb[0].mxu0 %v2844
      %v2945 = vpop.f32.mrb[0].mxu0
      %v2946 = vadd.f32 0.0, %v2945
      %v2947 = vpop.f32.mrb[0].mxu0
      %v2948 = vadd.f32 0.0, %v2947
      %2949 = vmatprep.mubr.f32.mxu0 0.0
      %2950 = vmatmul.mubr.f32.gmra.mrb[0].mxu0 %v2847
      %v2951 = vpop.f32.mrb[0].mxu0
      %v2952 = vadd.f32 0.0, %v2951
      %v2953 = vpop.f32.mrb[0].mxu0
      %v2954 = vadd.f32 0.0, %v2953
      %2955 = vdwg.mxu0
      %2956 = vmatprep.subr.mxu0 %v2859
      %2957 = vmatpush1.msra.mxu0 %v2856
      %2958 = vmatprep.subr.mxu0 0.0
      %2959 = vmatpush1.msra.mxu0 0.0
      %2960 = vmatprep.subr.mxu0 0.0
      %2961 = vmatpush1.msra.mxu0 0.0
      %2962 = vmatprep.subr.mxu0 0.0
      %2963 = vmatpush1.msra.mxu0 0.0
      %2964 = vmatprep.subr.mxu0 0.0
      %2965 = vmatpush1.msra.mxu0 0.0
      %2966 = vmatprep.subr.mxu0 0.0
      %2967 = vmatpush1.msra.mxu0 0.0
      %2968 = vmatprep.subr.mxu0 0.0
      %2969 = vmatpush1.msra.mxu0 0.0
      %2970 = vmatprep.subr.mxu0 0.0
      %2971 = vmatpush1.msra.mxu0 0.0
      %2972 = vmatprep.subr.mxu0 0.0
      %2973 = vmatpush1.msra.mxu0 0.0
      %2974 = vmatprep.subr.mxu0 0.0
      %2975 = vmatpush1.msra.mxu0 0.0
      %2976 = vmatprep.subr.mxu0 0.0
      %2977 = vmatpush1.msra.mxu0 0.0
      %2978 = vmatprep.subr.mxu0 0.0
      %2979 = vmatpush1.msra.mxu0 0.0
      %2980 = vmatprep.subr.mxu0 0.0
      %2981 = vmatpush1.msra.mxu0 0.0
      %2982 = vmatprep.subr.mxu0 0.0
      %2983 = vmatpush1.msra.mxu0 0.0
      %2984 = vmatprep.subr.mxu0 0.0
      %2985 = vmatpush1.msra.mxu0 0.0
      %2986 = vmatprep.subr.mxu0 0.0
      %2987 = vmatpush1.msra.mxu0 0.0
      %2988 = vmatprep.subr.mxu0 0.0
      %2989 = vmatpush1.msra.mxu0 0.0
      %2990 = vmatprep.subr.mxu0 0.0
      %2991 = vmatpush1.msra.mxu0 0.0
      %2992 = vmatprep.subr.mxu0 0.0
      %2993 = vmatpush1.msra.mxu0 0.0
      %2994 = vmatprep.subr.mxu0 0.0
      %2995 = vmatpush1.msra.mxu0 0.0
      %2996 = vmatprep.subr.mxu0 0.0
      %2997 = vmatpush1.msra.mxu0 0.0
      %2998 = vmatprep.subr.mxu0 0.0
      %2999 = vmatpush1.msra.mxu0 0.0
      %3000 = vmatprep.subr.mxu0 0.0
      %3001 = vmatpush1.msra.mxu0 0.0
      %3002 = vmatprep.subr.mxu0 0.0
      %3003 = vmatpush1.msra.mxu0 0.0
      %3004 = vmatprep.subr.mxu0 0.0
      %3005 = vmatpush1.msra.mxu0 0.0
      %3006 = vmatprep.subr.mxu0 0.0
      %3007 = vmatpush1.msra.mxu0 0.0
      %3008 = vmatprep.subr.mxu0 0.0
      %3009 = vmatpush1.msra.mxu0 0.0
      %3010 = vmatprep.subr.mxu0 0.0
      %3011 = vmatpush1.msra.mxu0 0.0
      %3012 = vmatprep.subr.mxu0 0.0
      %3013 = vmatpush1.msra.mxu0 0.0
      %3014 = vmatprep.subr.mxu0 0.0
      %3015 = vmatpush1.msra.mxu0 0.0
      %3016 = vmatprep.subr.mxu0 0.0
      %3017 = vmatpush1.msra.mxu0 0.0
      %3018 = vmatprep.subr.mxu0 0.0
      %3019 = vmatpush1.msra.mxu0 0.0
      %3020 = vmatprep.mubr.f32.mxu0 0.0
      %3021 = vmatmul.mubr.f32.gmra.mrb[0].mxu0 %v2835
      %v3022 = vpop.f32.mrb[0].mxu0
      %v3023 = vadd.f32 0.0, %v3022
      %v3024 = vpop.f32.mrb[0].mxu0
      %v3025 = vadd.f32 0.0, %v3024
      %3026 = vmatprep.mubr.f32.mxu0 0.0
      %3027 = vmatmul.mubr.f32.gmra.mrb[0].mxu0 %v2838
      %v3028 = vpop.f32.mrb[0].mxu0
      %v3029 = vadd.f32 0.0, %v3028
      %v3030 = vpop.f32.mrb[0].mxu0
      %v3031 = vadd.f32 0.0, %v3030
      %3032 = vmatprep.mubr.f32.mxu0 0.0
      %3033 = vmatmul.mubr.f32.gmra.mrb[0].mxu0 %v2841
      %v3034 = vpop.f32.mrb[0].mxu0
      %v3035 = vadd.f32 0.0, %v3034
      %v3036 = vpop.f32.mrb[0].mxu0
      %v3037 = vadd.f32 0.0, %v3036
      %3038 = vmatprep.mubr.f32.mxu0 0.0
      %3039 = vmatmul.mubr.f32.gmra.mrb[0].mxu0 %v2844
      %v3040 = vpop.f32.mrb[0].mxu0
      %v3041 = vadd.f32 0.0, %v3040
      %v3042 = vpop.f32.mrb[0].mxu0
      %v3043 = vadd.f32 0.0, %v3042
      %3044 = vmatprep.mubr.f32.mxu0 0.0
      %3045 = vmatmul.mubr.f32.gmra.mrb[0].mxu0 %v2847
      %v3046 = vpop.f32.mrb[0].mxu0
      %v3047 = vadd.f32 0.0, %v3046
      %v3048 = vpop.f32.mrb[0].mxu0
      %v3049 = vadd.f32 0.0, %v3048
      %3050 = vdwg.mxu0
      %v3051 = vadd.f32 %v2768, %v2928
      %v3052 = vadd.f32 %v2769, %v2930
      %v3053 = vadd.f32 %v2770, %v3023
      %v3054 = vadd.f32 %v2771, %v3025
      %v3055 = vadd.f32 %v2772, %v2934
      %v3056 = vadd.f32 %v2773, %v2936
      %v3057 = vadd.f32 %v2774, %v3029
      %v3058 = vadd.f32 %v2775, %v3031
      %v3059 = vadd.f32 %v2776, %v2940
      %v3060 = vadd.f32 %v2777, %v2942
      %v3061 = vadd.f32 %v2778, %v3035
      %v3062 = vadd.f32 %v2779, %v3037
      %v3063 = vadd.f32 %v2780, %v2946
      %v3064 = vadd.f32 %v2781, %v2948
      %v3065 = vadd.f32 %v2782, %v3041
      %v3066 = vadd.f32 %v2783, %v3043
      %v3067 = vadd.f32 %v2784, %v2952
      %v3068 = vadd.f32 %v2785, %v2954
      %v3069 = vadd.f32 %v2786, %v3047
      %v3070 = vadd.f32 %v2787, %v3049
      %3071 = vrot.lane.b32.xlu0 %v882, 111
      %v3072 = vpop.permute.xlu0 %3071
      %3073 = vrot.lane.b32.xlu0 %v886, 111
      %v3074 = vpop.permute.xlu0 %3073
      %3075 = vrot.lane.b32.xlu0 %v883, 111
      %v3076 = vpop.permute.xlu0 %3075
      %3077 = vrot.lane.b32.xlu0 %v887, 111
      %v3078 = vpop.permute.xlu0 %3077
      %vm3079 = vcmp.lt.s32.totalorder %v899, 111
      %v3080 = vsel %vm3079, %v3076, %v3078
      %v3081 = vsel %vm3079, %v3074, %v3076
      %v3082 = vsel %vm3079, %v3072, %v3074
      %v3083 = vsel %vm3079, %v3078, %v3072
      %s3084 = scalar_lea.vmem %s1, 32
      %v3085 = vld [vmem:[%s3084] sm:$0xf]
      %v3087 = vlaneseq
      %v3088 = vshrl.u32 %v3087, 7
      %v3089 = vsub.s32 0, %v3088
      %v3090 = vrot.slane %v3085, %v3089
      %v3091 = vlaneseq
      %v3092 = vshrl.u32 %v3091, 7
      %v3093 = vsub.s32 1, %v3092
      %v3094 = vrot.slane %v3085, %v3093
      %v3095 = vlaneseq
      %v3096 = vshrl.u32 %v3095, 7
      %v3097 = vsub.s32 2, %v3096
      %v3098 = vrot.slane %v3085, %v3097
      %v3099 = vlaneseq
      %v3100 = vshrl.u32 %v3099, 7
      %v3101 = vsub.s32 3, %v3100
      %v3102 = vrot.slane %v3085, %v3101
      %v3107 = vmul.f32 %v3082, %v3090
      %v3108 = vmul.f32 %v3081, %v3094
      %v3109 = vmul.f32 %v3080, %v3098
      %v3110 = vmul.f32 %v3083, %v3102
      %s3111 = scalar_lea.vmem %s16, 320
      %v3112 = vld [vmem:[%s3111] sm:$0xff]
      %v3113 = vld [vmem:[%s3111 + $0x8] sm:$0xff]
      %v3114 = vld [vmem:[%s3111 + $0x10] sm:$0xff]
      %v3115 = vld [vmem:[%s3111 + $0x18] sm:$0xff]
      %v3116 = vld [vmem:[%s3111 + $0x20] sm:$0x3]
      %v3118 = vsel %vm982, %v3112, 0
      %v3121 = vsel %vm982, %v3113, 0
      %v3124 = vsel %vm982, %v3114, 0
      %v3127 = vsel %vm982, %v3115, 0
      %v3130 = vsel %vm982, %v3116, 0
      %v3133 = vsel %vm800, %v3107, 0
      %v3136 = vsel %vm800, %v3108, 0
      %v3139 = vsel %vm800, %v3109, 0
      %v3142 = vsel %vm800, %v3110, 0
      %3144 = vmatprep.subr.mxu0 %v3136
      %3145 = vmatpush1.msra.mxu0 %v3133
      %3146 = vmatprep.subr.mxu0 0.0
      %3147 = vmatpush1.msra.mxu0 0.0
      %3148 = vmatprep.subr.mxu0 0.0
      %3149 = vmatpush1.msra.mxu0 0.0
      %3150 = vmatprep.subr.mxu0 0.0
      %3151 = vmatpush1.msra.mxu0 0.0
      %3152 = vmatprep.subr.mxu0 0.0
      %3153 = vmatpush1.msra.mxu0 0.0
      %3154 = vmatprep.subr.mxu0 0.0
      %3155 = vmatpush1.msra.mxu0 0.0
      %3156 = vmatprep.subr.mxu0 0.0
      %3157 = vmatpush1.msra.mxu0 0.0
      %3158 = vmatprep.subr.mxu0 0.0
      %3159 = vmatpush1.msra.mxu0 0.0
      %3160 = vmatprep.subr.mxu0 0.0
      %3161 = vmatpush1.msra.mxu0 0.0
      %3162 = vmatprep.subr.mxu0 0.0
      %3163 = vmatpush1.msra.mxu0 0.0
      %3164 = vmatprep.subr.mxu0 0.0
      %3165 = vmatpush1.msra.mxu0 0.0
      %3166 = vmatprep.subr.mxu0 0.0
      %3167 = vmatpush1.msra.mxu0 0.0
      %3168 = vmatprep.subr.mxu0 0.0
      %3169 = vmatpush1.msra.mxu0 0.0
      %3170 = vmatprep.subr.mxu0 0.0
      %3171 = vmatpush1.msra.mxu0 0.0
      %3172 = vmatprep.subr.mxu0 0.0
      %3173 = vmatpush1.msra.mxu0 0.0
      %3174 = vmatprep.subr.mxu0 0.0
      %3175 = vmatpush1.msra.mxu0 0.0
      %3176 = vmatprep.subr.mxu0 0.0
      %3177 = vmatpush1.msra.mxu0 0.0
      %3178 = vmatprep.subr.mxu0 0.0
      %3179 = vmatpush1.msra.mxu0 0.0
      %3180 = vmatprep.subr.mxu0 0.0
      %3181 = vmatpush1.msra.mxu0 0.0
      %3182 = vmatprep.subr.mxu0 0.0
      %3183 = vmatpush1.msra.mxu0 0.0
      %3184 = vmatprep.subr.mxu0 0.0
      %3185 = vmatpush1.msra.mxu0 0.0
      %3186 = vmatprep.subr.mxu0 0.0
      %3187 = vmatpush1.msra.mxu0 0.0
      %3188 = vmatprep.subr.mxu0 0.0
      %3189 = vmatpush1.msra.mxu0 0.0
      %3190 = vmatprep.subr.mxu0 0.0
      %3191 = vmatpush1.msra.mxu0 0.0
      %3192 = vmatprep.subr.mxu0 0.0
      %3193 = vmatpush1.msra.mxu0 0.0
      %3194 = vmatprep.subr.mxu0 0.0
      %3195 = vmatpush1.msra.mxu0 0.0
      %3196 = vmatprep.subr.mxu0 0.0
      %3197 = vmatpush1.msra.mxu0 0.0
      %3198 = vmatprep.subr.mxu0 0.0
      %3199 = vmatpush1.msra.mxu0 0.0
      %3200 = vmatprep.subr.mxu0 0.0
      %3201 = vmatpush1.msra.mxu0 0.0
      %3202 = vmatprep.subr.mxu0 0.0
      %3203 = vmatpush1.msra.mxu0 0.0
      %3204 = vmatprep.subr.mxu0 0.0
      %3205 = vmatpush1.msra.mxu0 0.0
      %3206 = vmatprep.subr.mxu0 0.0
      %3207 = vmatpush1.msra.mxu0 0.0
      %3208 = vmatprep.mubr.f32.mxu0 0.0
      %3209 = vmatmul.mubr.f32.gmra.mrb[0].mxu0 %v3118
      %v3210 = vpop.f32.mrb[0].mxu0
      %v3211 = vadd.f32 0.0, %v3210
      %v3212 = vpop.f32.mrb[0].mxu0
      %v3213 = vadd.f32 0.0, %v3212
      %3214 = vmatprep.mubr.f32.mxu0 0.0
      %3215 = vmatmul.mubr.f32.gmra.mrb[0].mxu0 %v3121
      %v3216 = vpop.f32.mrb[0].mxu0
      %v3217 = vadd.f32 0.0, %v3216
      %v3218 = vpop.f32.mrb[0].mxu0
      %v3219 = vadd.f32 0.0, %v3218
      %3220 = vmatprep.mubr.f32.mxu0 0.0
      %3221 = vmatmul.mubr.f32.gmra.mrb[0].mxu0 %v3124
      %v3222 = vpop.f32.mrb[0].mxu0
      %v3223 = vadd.f32 0.0, %v3222
      %v3224 = vpop.f32.mrb[0].mxu0
      %v3225 = vadd.f32 0.0, %v3224
      %3226 = vmatprep.mubr.f32.mxu0 0.0
      %3227 = vmatmul.mubr.f32.gmra.mrb[0].mxu0 %v3127
      %v3228 = vpop.f32.mrb[0].mxu0
      %v3229 = vadd.f32 0.0, %v3228
      %v3230 = vpop.f32.mrb[0].mxu0
      %v3231 = vadd.f32 0.0, %v3230
      %3232 = vmatprep.mubr.f32.mxu0 0.0
      %3233 = vmatmul.mubr.f32.gmra.mrb[0].mxu0 %v3130
      %v3234 = vpop.f32.mrb[0].mxu0
      %v3235 = vadd.f32 0.0, %v3234
      %v3236 = vpop.f32.mrb[0].mxu0
      %v3237 = vadd.f32 0.0, %v3236
      %3238 = vdwg.mxu0
      %3239 = vmatprep.subr.mxu0 %v3142
      %3240 = vmatpush1.msra.mxu0 %v3139
      %3241 = vmatprep.subr.mxu0 0.0
      %3242 = vmatpush1.msra.mxu0 0.0
      %3243 = vmatprep.subr.mxu0 0.0
      %3244 = vmatpush1.msra.mxu0 0.0
      %3245 = vmatprep.subr.mxu0 0.0
      %3246 = vmatpush1.msra.mxu0 0.0
      %3247 = vmatprep.subr.mxu0 0.0
      %3248 = vmatpush1.msra.mxu0 0.0
      %3249 = vmatprep.subr.mxu0 0.0
      %3250 = vmatpush1.msra.mxu0 0.0
      %3251 = vmatprep.subr.mxu0 0.0
      %3252 = vmatpush1.msra.mxu0 0.0
      %3253 = vmatprep.subr.mxu0 0.0
      %3254 = vmatpush1.msra.mxu0 0.0
      %3255 = vmatprep.subr.mxu0 0.0
      %3256 = vmatpush1.msra.mxu0 0.0
      %3257 = vmatprep.subr.mxu0 0.0
      %3258 = vmatpush1.msra.mxu0 0.0
      %3259 = vmatprep.subr.mxu0 0.0
      %3260 = vmatpush1.msra.mxu0 0.0
      %3261 = vmatprep.subr.mxu0 0.0
      %3262 = vmatpush1.msra.mxu0 0.0
      %3263 = vmatprep.subr.mxu0 0.0
      %3264 = vmatpush1.msra.mxu0 0.0
      %3265 = vmatprep.subr.mxu0 0.0
      %3266 = vmatpush1.msra.mxu0 0.0
      %3267 = vmatprep.subr.mxu0 0.0
      %3268 = vmatpush1.msra.mxu0 0.0
      %3269 = vmatprep.subr.mxu0 0.0
      %3270 = vmatpush1.msra.mxu0 0.0
      %3271 = vmatprep.subr.mxu0 0.0
      %3272 = vmatpush1.msra.mxu0 0.0
      %3273 = vmatprep.subr.mxu0 0.0
      %3274 = vmatpush1.msra.mxu0 0.0
      %3275 = vmatprep.subr.mxu0 0.0
      %3276 = vmatpush1.msra.mxu0 0.0
      %3277 = vmatprep.subr.mxu0 0.0
      %3278 = vmatpush1.msra.mxu0 0.0
      %3279 = vmatprep.subr.mxu0 0.0
      %3280 = vmatpush1.msra.mxu0 0.0
      %3281 = vmatprep.subr.mxu0 0.0
      %3282 = vmatpush1.msra.mxu0 0.0
      %3283 = vmatprep.subr.mxu0 0.0
      %3284 = vmatpush1.msra.mxu0 0.0
      %3285 = vmatprep.subr.mxu0 0.0
      %3286 = vmatpush1.msra.mxu0 0.0
      %3287 = vmatprep.subr.mxu0 0.0
      %3288 = vmatpush1.msra.mxu0 0.0
      %3289 = vmatprep.subr.mxu0 0.0
      %3290 = vmatpush1.msra.mxu0 0.0
      %3291 = vmatprep.subr.mxu0 0.0
      %3292 = vmatpush1.msra.mxu0 0.0
      %3293 = vmatprep.subr.mxu0 0.0
      %3294 = vmatpush1.msra.mxu0 0.0
      %3295 = vmatprep.subr.mxu0 0.0
      %3296 = vmatpush1.msra.mxu0 0.0
      %3297 = vmatprep.subr.mxu0 0.0
      %3298 = vmatpush1.msra.mxu0 0.0
      %3299 = vmatprep.subr.mxu0 0.0
      %3300 = vmatpush1.msra.mxu0 0.0
      %3301 = vmatprep.subr.mxu0 0.0
      %3302 = vmatpush1.msra.mxu0 0.0
      %3303 = vmatprep.mubr.f32.mxu0 0.0
      %3304 = vmatmul.mubr.f32.gmra.mrb[0].mxu0 %v3118
      %v3305 = vpop.f32.mrb[0].mxu0
      %v3306 = vadd.f32 0.0, %v3305
      %v3307 = vpop.f32.mrb[0].mxu0
      %v3308 = vadd.f32 0.0, %v3307
      %3309 = vmatprep.mubr.f32.mxu0 0.0
      %3310 = vmatmul.mubr.f32.gmra.mrb[0].mxu0 %v3121
      %v3311 = vpop.f32.mrb[0].mxu0
      %v3312 = vadd.f32 0.0, %v3311
      %v3313 = vpop.f32.mrb[0].mxu0
      %v3314 = vadd.f32 0.0, %v3313
      %3315 = vmatprep.mubr.f32.mxu0 0.0
      %3316 = vmatmul.mubr.f32.gmra.mrb[0].mxu0 %v3124
      %v3317 = vpop.f32.mrb[0].mxu0
      %v3318 = vadd.f32 0.0, %v3317
      %v3319 = vpop.f32.mrb[0].mxu0
      %v3320 = vadd.f32 0.0, %v3319
      %3321 = vmatprep.mubr.f32.mxu0 0.0
      %3322 = vmatmul.mubr.f32.gmra.mrb[0].mxu0 %v3127
      %v3323 = vpop.f32.mrb[0].mxu0
      %v3324 = vadd.f32 0.0, %v3323
      %v3325 = vpop.f32.mrb[0].mxu0
      %v3326 = vadd.f32 0.0, %v3325
      %3327 = vmatprep.mubr.f32.mxu0 0.0
      %3328 = vmatmul.mubr.f32.gmra.mrb[0].mxu0 %v3130
      %v3329 = vpop.f32.mrb[0].mxu0
      %v3330 = vadd.f32 0.0, %v3329
      %v3331 = vpop.f32.mrb[0].mxu0
      %v3332 = vadd.f32 0.0, %v3331
      %3333 = vdwg.mxu0
      %v3334 = vadd.f32 %v3051, %v3211
      %v3335 = vadd.f32 %v3052, %v3213
      %v3336 = vadd.f32 %v3053, %v3306
      %v3337 = vadd.f32 %v3054, %v3308
      %v3338 = vadd.f32 %v3055, %v3217
      %v3339 = vadd.f32 %v3056, %v3219
      %v3340 = vadd.f32 %v3057, %v3312
      %v3341 = vadd.f32 %v3058, %v3314
      %v3342 = vadd.f32 %v3059, %v3223
      %v3343 = vadd.f32 %v3060, %v3225
      %v3344 = vadd.f32 %v3061, %v3318
      %v3345 = vadd.f32 %v3062, %v3320
      %v3346 = vadd.f32 %v3063, %v3229
      %v3347 = vadd.f32 %v3064, %v3231
      %v3348 = vadd.f32 %v3065, %v3324
      %v3349 = vadd.f32 %v3066, %v3326
      %v3350 = vadd.f32 %v3067, %v3235
      %v3351 = vadd.f32 %v3068, %v3237
      %v3352 = vadd.f32 %v3069, %v3330
      %v3353 = vadd.f32 %v3070, %v3332
      %v3354 = vld [vmem:[%s17] sm:$0xff]
      %v3355 = vld [vmem:[%s17 + $0x8] sm:$0xff]
      %v3356 = vld [vmem:[%s17 + $0x10] sm:$0xff]
      %v3357 = vld [vmem:[%s17 + $0x18] sm:$0xff]
      %v3358 = vld [vmem:[%s17 + $0x20] sm:$0x3]
      %3360 = vset.pattern.permute.xlu0 0
      %3361 = vperm.xlu0 %3360, %v3354
      %v3362 = vpop.permute.xlu0 %3361
      %3365 = vset.pattern.permute.xlu0 0
      %3366 = vperm.xlu0 %3365, %v3355
      %v3367 = vpop.permute.xlu0 %3366
      %3370 = vset.pattern.permute.xlu0 0
      %3371 = vperm.xlu0 %3370, %v3356
      %v3372 = vpop.permute.xlu0 %3371
      %3375 = vset.pattern.permute.xlu0 0
      %3376 = vperm.xlu0 %3375, %v3357
      %v3377 = vpop.permute.xlu0 %3376
      %3380 = vset.pattern.permute.xlu0 0
      %3381 = vperm.xlu0 %3380, %v3358
      %v3382 = vpop.permute.xlu0 %3381
      %v3384 = vadd.f32 %v3334, %v3362
      %v3385 = vadd.f32 %v3335, %v3362
      %v3386 = vadd.f32 %v3336, %v3362
      %v3387 = vadd.f32 %v3337, %v3362
      %v3388 = vadd.f32 %v3338, %v3367
      %v3389 = vadd.f32 %v3339, %v3367
      %v3390 = vadd.f32 %v3340, %v3367
      %v3391 = vadd.f32 %v3341, %v3367
      %v3392 = vadd.f32 %v3342, %v3372
      %v3393 = vadd.f32 %v3343, %v3372
      %v3394 = vadd.f32 %v3344, %v3372
      %v3395 = vadd.f32 %v3345, %v3372
      %v3396 = vadd.f32 %v3346, %v3377
      %v3397 = vadd.f32 %v3347, %v3377
      %v3398 = vadd.f32 %v3348, %v3377
      %v3399 = vadd.f32 %v3349, %v3377
      %v3400 = vadd.f32 %v3350, %v3382
      %v3401 = vadd.f32 %v3351, %v3382
      %v3402 = vadd.f32 %v3352, %v3382
      %v3403 = vadd.f32 %v3353, %v3382
      %v3404 = vmax.f32 %v3384, 0.0
      %v3405 = vmax.f32 %v3385, 0.0
      %v3406 = vmax.f32 %v3386, 0.0
      %v3407 = vmax.f32 %v3387, 0.0
      %v3408 = vmax.f32 %v3388, 0.0
      %v3409 = vmax.f32 %v3389, 0.0
      %v3410 = vmax.f32 %v3390, 0.0
      %v3411 = vmax.f32 %v3391, 0.0
      %v3412 = vmax.f32 %v3392, 0.0
      %v3413 = vmax.f32 %v3393, 0.0
      %v3414 = vmax.f32 %v3394, 0.0
      %v3415 = vmax.f32 %v3395, 0.0
      %v3416 = vmax.f32 %v3396, 0.0
      %v3417 = vmax.f32 %v3397, 0.0
      %v3418 = vmax.f32 %v3398, 0.0
      %v3419 = vmax.f32 %v3399, 0.0
      %v3420 = vmax.f32 %v3400, 0.0
      %v3421 = vmax.f32 %v3401, 0.0
      %v3422 = vmax.f32 %v3402, 0.0
      %v3423 = vmax.f32 %v3403, 0.0
      %3424 = vrot.lane.b32.xlu0 %v3404, 127
      %v3425 = vpop.permute.xlu0 %3424
      %3426 = vrot.lane.b32.xlu0 %v3408, 127
      %v3427 = vpop.permute.xlu0 %3426
      %3428 = vrot.lane.b32.xlu0 %v3412, 127
      %v3429 = vpop.permute.xlu0 %3428
      %3430 = vrot.lane.b32.xlu0 %v3416, 127
      %v3431 = vpop.permute.xlu0 %3430
      %3432 = vrot.lane.b32.xlu0 %v3420, 127
      %v3433 = vpop.permute.xlu0 %3432
      %3434 = vrot.lane.b32.xlu0 %v3405, 127
      %v3435 = vpop.permute.xlu0 %3434
      %3436 = vrot.lane.b32.xlu0 %v3409, 127
      %v3437 = vpop.permute.xlu0 %3436
      %3438 = vrot.lane.b32.xlu0 %v3413, 127
      %v3439 = vpop.permute.xlu0 %3438
      %3440 = vrot.lane.b32.xlu0 %v3417, 127
      %v3441 = vpop.permute.xlu0 %3440
      %3442 = vrot.lane.b32.xlu0 %v3421, 127
      %v3443 = vpop.permute.xlu0 %3442
      %3444 = vrot.lane.b32.xlu0 %v3406, 127
      %v3445 = vpop.permute.xlu0 %3444
      %3446 = vrot.lane.b32.xlu0 %v3410, 127
      %v3447 = vpop.permute.xlu0 %3446
      %3448 = vrot.lane.b32.xlu0 %v3414, 127
      %v3449 = vpop.permute.xlu0 %3448
      %3450 = vrot.lane.b32.xlu0 %v3418, 127
      %v3451 = vpop.permute.xlu0 %3450
      %3452 = vrot.lane.b32.xlu0 %v3422, 127
      %v3453 = vpop.permute.xlu0 %3452
      %3454 = vrot.lane.b32.xlu0 %v3407, 127
      %v3455 = vpop.permute.xlu0 %3454
      %3456 = vrot.lane.b32.xlu0 %v3411, 127
      %v3457 = vpop.permute.xlu0 %3456
      %3458 = vrot.lane.b32.xlu0 %v3415, 127
      %v3459 = vpop.permute.xlu0 %3458
      %3460 = vrot.lane.b32.xlu0 %v3419, 127
      %v3461 = vpop.permute.xlu0 %3460
      %3462 = vrot.lane.b32.xlu0 %v3423, 127
      %v3463 = vpop.permute.xlu0 %3462
      %v3464 = vsel %vm2230, %v3445, %v3455
      %v3465 = vsel %vm2230, %v3447, %v3457
      %v3466 = vsel %vm2230, %v3449, %v3459
      %v3467 = vsel %vm2230, %v3451, %v3461
      %v3468 = vsel %vm2230, %v3453, %v3463
      %v3469 = vsel %vm2230, %v3435, %v3445
      %v3470 = vsel %vm2230, %v3437, %v3447
      %v3471 = vsel %vm2230, %v3439, %v3449
      %v3472 = vsel %vm2230, %v3441, %v3451
      %v3473 = vsel %vm2230, %v3443, %v3453
      %v3474 = vsel %vm2230, %v3425, %v3435
      %v3475 = vsel %vm2230, %v3427, %v3437
      %v3476 = vsel %vm2230, %v3429, %v3439
      %v3477 = vsel %vm2230, %v3431, %v3441
      %v3478 = vsel %vm2230, %v3433, %v3443
      %v3479 = vsel %vm2230, %v3455, %v3425
      %v3480 = vsel %vm2230, %v3457, %v3427
      %v3481 = vsel %vm2230, %v3459, %v3429
      %v3482 = vsel %vm2230, %v3461, %v3431
      %v3483 = vsel %vm2230, %v3463, %v3433
      %v3484 = vmax.f32 %v3404, %v3474
      %v3485 = vmax.f32 %v3405, %v3469
      %v3486 = vmax.f32 %v3406, %v3464
      %v3487 = vmax.f32 %v3407, %v3479
      %v3488 = vmax.f32 %v3408, %v3475
      %v3489 = vmax.f32 %v3409, %v3470
      %v3490 = vmax.f32 %v3410, %v3465
      %v3491 = vmax.f32 %v3411, %v3480
      %v3492 = vmax.f32 %v3412, %v3476
      %v3493 = vmax.f32 %v3413, %v3471
      %v3494 = vmax.f32 %v3414, %v3466
      %v3495 = vmax.f32 %v3415, %v3481
      %v3496 = vmax.f32 %v3416, %v3477
      %v3497 = vmax.f32 %v3417, %v3472
      %v3498 = vmax.f32 %v3418, %v3467
      %v3499 = vmax.f32 %v3419, %v3482
      %v3500 = vmax.f32 %v3420, %v3478
      %v3501 = vmax.f32 %v3421, %v3473
      %v3502 = vmax.f32 %v3422, %v3468
      %v3503 = vmax.f32 %v3423, %v3483
      %3504 = vrot.lane.b32.xlu0 %v3484, 112
      %v3505 = vpop.permute.xlu0 %3504
      %3506 = vrot.lane.b32.xlu0 %v3488, 112
      %v3507 = vpop.permute.xlu0 %3506
      %3508 = vrot.lane.b32.xlu0 %v3492, 112
      %v3509 = vpop.permute.xlu0 %3508
      %3510 = vrot.lane.b32.xlu0 %v3496, 112
      %v3511 = vpop.permute.xlu0 %3510
      %3512 = vrot.lane.b32.xlu0 %v3500, 112
      %v3513 = vpop.permute.xlu0 %3512
      %3514 = vrot.lane.b32.xlu0 %v3485, 112
      %v3515 = vpop.permute.xlu0 %3514
      %3516 = vrot.lane.b32.xlu0 %v3489, 112
      %v3517 = vpop.permute.xlu0 %3516
      %3518 = vrot.lane.b32.xlu0 %v3493, 112
      %v3519 = vpop.permute.xlu0 %3518
      %3520 = vrot.lane.b32.xlu0 %v3497, 112
      %v3521 = vpop.permute.xlu0 %3520
      %3522 = vrot.lane.b32.xlu0 %v3501, 112
      %v3523 = vpop.permute.xlu0 %3522
      %3524 = vrot.lane.b32.xlu0 %v3486, 112
      %v3525 = vpop.permute.xlu0 %3524
      %3526 = vrot.lane.b32.xlu0 %v3490, 112
      %v3527 = vpop.permute.xlu0 %3526
      %3528 = vrot.lane.b32.xlu0 %v3494, 112
      %v3529 = vpop.permute.xlu0 %3528
      %3530 = vrot.lane.b32.xlu0 %v3498, 112
      %v3531 = vpop.permute.xlu0 %3530
      %3532 = vrot.lane.b32.xlu0 %v3502, 112
      %v3533 = vpop.permute.xlu0 %3532
      %3534 = vrot.lane.b32.xlu0 %v3487, 112
      %v3535 = vpop.permute.xlu0 %3534
      %3536 = vrot.lane.b32.xlu0 %v3491, 112
      %v3537 = vpop.permute.xlu0 %3536
      %3538 = vrot.lane.b32.xlu0 %v3495, 112
      %v3539 = vpop.permute.xlu0 %3538
      %3540 = vrot.lane.b32.xlu0 %v3499, 112
      %v3541 = vpop.permute.xlu0 %3540
      %3542 = vrot.lane.b32.xlu0 %v3503, 112
      %v3543 = vpop.permute.xlu0 %3542
      %v3544 = vsel %vm2796, %v3525, %v3535
      %v3545 = vsel %vm2796, %v3527, %v3537
      %v3546 = vsel %vm2796, %v3529, %v3539
      %v3547 = vsel %vm2796, %v3531, %v3541
      %v3548 = vsel %vm2796, %v3533, %v3543
      %v3549 = vsel %vm2796, %v3515, %v3525
      %v3550 = vsel %vm2796, %v3517, %v3527
      %v3551 = vsel %vm2796, %v3519, %v3529
      %v3552 = vsel %vm2796, %v3521, %v3531
      %v3553 = vsel %vm2796, %v3523, %v3533
      %v3554 = vsel %vm2796, %v3505, %v3515
      %v3555 = vsel %vm2796, %v3507, %v3517
      %v3556 = vsel %vm2796, %v3509, %v3519
      %v3557 = vsel %vm2796, %v3511, %v3521
      %v3558 = vsel %vm2796, %v3513, %v3523
      %v3559 = vsel %vm2796, %v3535, %v3505
      %v3560 = vsel %vm2796, %v3537, %v3507
      %v3561 = vsel %vm2796, %v3539, %v3509
      %v3562 = vsel %vm2796, %v3541, %v3511
      %v3563 = vsel %vm2796, %v3543, %v3513
      %v3564 = vmax.f32 %v3484, %v3554
      %v3565 = vmax.f32 %v3485, %v3549
      %v3566 = vmax.f32 %v3486, %v3544
      %v3567 = vmax.f32 %v3487, %v3559
      %v3568 = vmax.f32 %v3488, %v3555
      %v3569 = vmax.f32 %v3489, %v3550
      %v3570 = vmax.f32 %v3490, %v3545
      %v3571 = vmax.f32 %v3491, %v3560
      %v3572 = vmax.f32 %v3492, %v3556
      %v3573 = vmax.f32 %v3493, %v3551
      %v3574 = vmax.f32 %v3494, %v3546
      %v3575 = vmax.f32 %v3495, %v3561
      %v3576 = vmax.f32 %v3496, %v3557
      %v3577 = vmax.f32 %v3497, %v3552
      %v3578 = vmax.f32 %v3498, %v3547
      %v3579 = vmax.f32 %v3499, %v3562
      %v3580 = vmax.f32 %v3500, %v3558
      %v3581 = vmax.f32 %v3501, %v3553
      %v3582 = vmax.f32 %v3502, %v3548
      %v3583 = vmax.f32 %v3503, %v3563
      %v3584 = vld [vmem:[%s4] sm:$0xff]
      %v3585 = vld [vmem:[%s4 + $0x8] sm:$0xff]
      %v3586 = vld [vmem:[%s4 + $0x10] sm:$0xff]
      %v3587 = vld [vmem:[%s4 + $0x18] sm:$0xff]
      %v3588 = vld [vmem:[%s4 + $0x20] sm:$0xff]
      %v3589 = vld [vmem:[%s4 + $0x28] sm:$0xff]
      %v3590 = vld [vmem:[%s4 + $0x30] sm:$0xff]
      %v3591 = vld [vmem:[%s4 + $0x38] sm:$0xff]
      %v3592 = vld [vmem:[%s4 + $0x40] sm:$0xff]
      %v3593 = vld [vmem:[%s4 + $0x48] sm:$0xff]
      %v3594 = vld [vmem:[%s4 + $0x50] sm:$0xff]
      %v3595 = vld [vmem:[%s4 + $0x58] sm:$0xff]
      %v3596 = vld [vmem:[%s4 + $0x60] sm:$0xff]
      %v3597 = vld [vmem:[%s4 + $0x68] sm:$0xff]
      %v3598 = vld [vmem:[%s4 + $0x70] sm:$0xff]
      %v3599 = vld [vmem:[%s4 + $0x78] sm:$0xff]
      %v3600 = vld [vmem:[%s4 + $0x80] sm:$0xff]
      %v3601 = vld [vmem:[%s4 + $0x88] sm:$0xff]
      %v3602 = vld [vmem:[%s4 + $0x90] sm:$0xff]
      %v3603 = vld [vmem:[%s4 + $0x98] sm:$0xff]
      %v3604 = vld [vmem:[%s4 + $0xa0] sm:$0xff]
      %v3605 = vld [vmem:[%s4 + $0xa8] sm:$0xff]
      %v3606 = vld [vmem:[%s4 + $0xb0] sm:$0xff]
      %v3607 = vld [vmem:[%s4 + $0xb8] sm:$0xff]
      %v3608 = vld [vmem:[%s4 + $0xc0] sm:$0xff]
      %v3609 = vld [vmem:[%s4 + $0xc8] sm:$0xff]
      %v3610 = vld [vmem:[%s4 + $0xd0] sm:$0xff]
      %v3611 = vld [vmem:[%s4 + $0xd8] sm:$0xff]
      %v3612 = vld [vmem:[%s4 + $0xe0] sm:$0xff]
      %v3613 = vld [vmem:[%s4 + $0xe8] sm:$0xff]
      %v3614 = vld [vmem:[%s4 + $0xf0] sm:$0xff]
      %v3615 = vld [vmem:[%s4 + $0xf8] sm:$0xff]
      %v3616 = vld [vmem:[%s4 + $0x100] sm:$0xff]
      %v3617 = vld [vmem:[%s4 + $0x108] sm:$0xff]
      %v3618 = vld [vmem:[%s4 + $0x110] sm:$0xff]
      %v3619 = vld [vmem:[%s4 + $0x118] sm:$0xff]
      %v3620 = vld [vmem:[%s4 + $0x120] sm:$0xff]
      %v3621 = vld [vmem:[%s4 + $0x128] sm:$0xff]
      %v3622 = vld [vmem:[%s4 + $0x130] sm:$0xff]
      %v3623 = vld [vmem:[%s4 + $0x138] sm:$0xff]
      %v3624 = vld [vmem:[%s4 + $0x140] sm:$0xff]
      %v3625 = vld [vmem:[%s4 + $0x148] sm:$0xff]
      %v3626 = vld [vmem:[%s4 + $0x150] sm:$0xff]
      %v3627 = vld [vmem:[%s4 + $0x158] sm:$0xff]
      %v3628 = vld [vmem:[%s4 + $0x160] sm:$0xff]
      %v3629 = vld [vmem:[%s4 + $0x168] sm:$0xff]
      %v3630 = vld [vmem:[%s4 + $0x170] sm:$0xff]
      %v3631 = vld [vmem:[%s4 + $0x178] sm:$0xff]
      %v3632 = vld [vmem:[%s4 + $0x180] sm:$0xff]
      %v3633 = vld [vmem:[%s4 + $0x188] sm:$0xff]
      %v3634 = vld [vmem:[%s4 + $0x190] sm:$0xff]
      %v3635 = vld [vmem:[%s4 + $0x198] sm:$0xff]
      %v3636 = vld [vmem:[%s4 + $0x1a0] sm:$0xff]
      %v3637 = vld [vmem:[%s4 + $0x1a8] sm:$0xff]
      %v3638 = vld [vmem:[%s4 + $0x1b0] sm:$0xff]
      %v3639 = vld [vmem:[%s4 + $0x1b8] sm:$0xff]
      %v3640 = vld [vmem:[%s4 + $0x1c0] sm:$0xff]
      %v3641 = vld [vmem:[%s4 + $0x1c8] sm:$0xff]
      %v3642 = vld [vmem:[%s4 + $0x1d0] sm:$0xff]
      %v3643 = vld [vmem:[%s4 + $0x1d8] sm:$0xff]
      %v3644 = vld [vmem:[%s4 + $0x1e0] sm:$0xff]
      %v3645 = vld [vmem:[%s4 + $0x1e8] sm:$0xff]
      %v3646 = vld [vmem:[%s4 + $0x1f0] sm:$0xff]
      %v3647 = vld [vmem:[%s4 + $0x1f8] sm:$0xff]
      %3648 = vmatprep.subr.mxu0 0.0
      %3649 = vmatpush1.msra.mxu0 %v3584
      %3650 = vmatprep.subr.mxu0 0.0
      %3651 = vmatpush1.msra.mxu0 %v3585
      %3652 = vmatprep.subr.mxu0 0.0
      %3653 = vmatpush1.msra.mxu0 %v3586
      %3654 = vmatprep.subr.mxu0 0.0
      %3655 = vmatpush1.msra.mxu0 %v3587
      %3656 = vmatprep.subr.mxu0 0.0
      %3657 = vmatpush1.msra.mxu0 %v3588
      %3658 = vmatprep.subr.mxu0 0.0
      %3659 = vmatpush1.msra.mxu0 %v3589
      %3660 = vmatprep.subr.mxu0 0.0
      %3661 = vmatpush1.msra.mxu0 %v3590
      %3662 = vmatprep.subr.mxu0 0.0
      %3663 = vmatpush1.msra.mxu0 %v3591
      %3664 = vmatprep.subr.mxu0 0.0
      %3665 = vmatpush1.msra.mxu0 %v3592
      %3666 = vmatprep.subr.mxu0 0.0
      %3667 = vmatpush1.msra.mxu0 %v3593
      %3668 = vmatprep.subr.mxu0 0.0
      %3669 = vmatpush1.msra.mxu0 %v3594
      %3670 = vmatprep.subr.mxu0 0.0
      %3671 = vmatpush1.msra.mxu0 %v3595
      %3672 = vmatprep.subr.mxu0 0.0
      %3673 = vmatpush1.msra.mxu0 %v3596
      %3674 = vmatprep.subr.mxu0 0.0
      %3675 = vmatpush1.msra.mxu0 %v3597
      %3676 = vmatprep.subr.mxu0 0.0
      %3677 = vmatpush1.msra.mxu0 %v3598
      %3678 = vmatprep.subr.mxu0 0.0
      %3679 = vmatpush1.msra.mxu0 %v3599
      %3680 = vmatprep.subr.mxu0 0.0
      %3681 = vmatpush1.msra.mxu0 %v3600
      %3682 = vmatprep.subr.mxu0 0.0
      %3683 = vmatpush1.msra.mxu0 %v3601
      %3684 = vmatprep.subr.mxu0 0.0
      %3685 = vmatpush1.msra.mxu0 %v3602
      %3686 = vmatprep.subr.mxu0 0.0
      %3687 = vmatpush1.msra.mxu0 %v3603
      %3688 = vmatprep.subr.mxu0 0.0
      %3689 = vmatpush1.msra.mxu0 %v3604
      %3690 = vmatprep.subr.mxu0 0.0
      %3691 = vmatpush1.msra.mxu0 %v3605
      %3692 = vmatprep.subr.mxu0 0.0
      %3693 = vmatpush1.msra.mxu0 %v3606
      %3694 = vmatprep.subr.mxu0 0.0
      %3695 = vmatpush1.msra.mxu0 %v3607
      %3696 = vmatprep.subr.mxu0 0.0
      %3697 = vmatpush1.msra.mxu0 %v3608
      %3698 = vmatprep.subr.mxu0 0.0
      %3699 = vmatpush1.msra.mxu0 %v3609
      %3700 = vmatprep.subr.mxu0 0.0
      %3701 = vmatpush1.msra.mxu0 %v3610
      %3702 = vmatprep.subr.mxu0 0.0
      %3703 = vmatpush1.msra.mxu0 %v3611
      %3704 = vmatprep.subr.mxu0 0.0
      %3705 = vmatpush1.msra.mxu0 %v3612
      %3706 = vmatprep.subr.mxu0 0.0
      %3707 = vmatpush1.msra.mxu0 %v3613
      %3708 = vmatprep.subr.mxu0 0.0
      %3709 = vmatpush1.msra.mxu0 %v3614
      %3710 = vmatprep.subr.mxu0 0.0
      %3711 = vmatpush1.msra.mxu0 %v3615
      %3712 = vmatprep.mubr.f32.mxu0 %v3565
      %3713 = vmatmul.mubr.f32.gmra.mrb[0].mxu0 %v3564
      %v3714 = vpop.f32.mrb[0].mxu0
      %v3715 = vadd.f32 0.0, %v3714
      %v3716 = vpop.f32.mrb[0].mxu0
      %3717 = vmatprep.mubr.f32.mxu0 %v3569
      %3718 = vmatmul.mubr.f32.gmra.mrb[0].mxu0 %v3568
      %v3719 = vpop.f32.mrb[0].mxu0
      %v3720 = vadd.f32 0.0, %v3719
      %v3721 = vpop.f32.mrb[0].mxu0
      %3722 = vmatprep.mubr.f32.mxu0 %v3573
      %3723 = vmatmul.mubr.f32.gmra.mrb[0].mxu0 %v3572
      %v3724 = vpop.f32.mrb[0].mxu0
      %v3725 = vadd.f32 0.0, %v3724
      %v3726 = vpop.f32.mrb[0].mxu0
      %3727 = vmatprep.mubr.f32.mxu0 %v3577
      %3728 = vmatmul.mubr.f32.gmra.mrb[0].mxu0 %v3576
      %v3729 = vpop.f32.mrb[0].mxu0
      %v3730 = vadd.f32 0.0, %v3729
      %v3731 = vpop.f32.mrb[0].mxu0
      %3732 = vmatprep.mubr.f32.mxu0 %v3581
      %3733 = vmatmul.mubr.f32.gmra.mrb[0].mxu0 %v3580
      %v3734 = vpop.f32.mrb[0].mxu0
      %v3735 = vadd.f32 0.0, %v3734
      %v3736 = vpop.f32.mrb[0].mxu0
      %3737 = vdwg.mxu0
      %3738 = vmatprep.subr.mxu0 0.0
      %3739 = vmatpush1.msra.mxu0 %v3616
      %3740 = vmatprep.subr.mxu0 0.0
      %3741 = vmatpush1.msra.mxu0 %v3617
      %3742 = vmatprep.subr.mxu0 0.0
      %3743 = vmatpush1.msra.mxu0 %v3618
      %3744 = vmatprep.subr.mxu0 0.0
      %3745 = vmatpush1.msra.mxu0 %v3619
      %3746 = vmatprep.subr.mxu0 0.0
      %3747 = vmatpush1.msra.mxu0 %v3620
      %3748 = vmatprep.subr.mxu0 0.0
      %3749 = vmatpush1.msra.mxu0 %v3621
      %3750 = vmatprep.subr.mxu0 0.0
      %3751 = vmatpush1.msra.mxu0 %v3622
      %3752 = vmatprep.subr.mxu0 0.0
      %3753 = vmatpush1.msra.mxu0 %v3623
      %3754 = vmatprep.subr.mxu0 0.0
      %3755 = vmatpush1.msra.mxu0 %v3624
      %3756 = vmatprep.subr.mxu0 0.0
      %3757 = vmatpush1.msra.mxu0 %v3625
      %3758 = vmatprep.subr.mxu0 0.0
      %3759 = vmatpush1.msra.mxu0 %v3626
      %3760 = vmatprep.subr.mxu0 0.0
      %3761 = vmatpush1.msra.mxu0 %v3627
      %3762 = vmatprep.subr.mxu0 0.0
      %3763 = vmatpush1.msra.mxu0 %v3628
      %3764 = vmatprep.subr.mxu0 0.0
      %3765 = vmatpush1.msra.mxu0 %v3629
      %3766 = vmatprep.subr.mxu0 0.0
      %3767 = vmatpush1.msra.mxu0 %v3630
      %3768 = vmatprep.subr.mxu0 0.0
      %3769 = vmatpush1.msra.mxu0 %v3631
      %3770 = vmatprep.subr.mxu0 0.0
      %3771 = vmatpush1.msra.mxu0 %v3632
      %3772 = vmatprep.subr.mxu0 0.0
      %3773 = vmatpush1.msra.mxu0 %v3633
      %3774 = vmatprep.subr.mxu0 0.0
      %3775 = vmatpush1.msra.mxu0 %v3634
      %3776 = vmatprep.subr.mxu0 0.0
      %3777 = vmatpush1.msra.mxu0 %v3635
      %3778 = vmatprep.subr.mxu0 0.0
      %3779 = vmatpush1.msra.mxu0 %v3636
      %3780 = vmatprep.subr.mxu0 0.0
      %3781 = vmatpush1.msra.mxu0 %v3637
      %3782 = vmatprep.subr.mxu0 0.0
      %3783 = vmatpush1.msra.mxu0 %v3638
      %3784 = vmatprep.subr.mxu0 0.0
      %3785 = vmatpush1.msra.mxu0 %v3639
      %3786 = vmatprep.subr.mxu0 0.0
      %3787 = vmatpush1.msra.mxu0 %v3640
      %3788 = vmatprep.subr.mxu0 0.0
      %3789 = vmatpush1.msra.mxu0 %v3641
      %3790 = vmatprep.subr.mxu0 0.0
      %3791 = vmatpush1.msra.mxu0 %v3642
      %3792 = vmatprep.subr.mxu0 0.0
      %3793 = vmatpush1.msra.mxu0 %v3643
      %3794 = vmatprep.subr.mxu0 0.0
      %3795 = vmatpush1.msra.mxu0 %v3644
      %3796 = vmatprep.subr.mxu0 0.0
      %3797 = vmatpush1.msra.mxu0 %v3645
      %3798 = vmatprep.subr.mxu0 0.0
      %3799 = vmatpush1.msra.mxu0 %v3646
      %3800 = vmatprep.subr.mxu0 0.0
      %3801 = vmatpush1.msra.mxu0 %v3647
      %3802 = vmatprep.mubr.f32.mxu0 %v3567
      %3803 = vmatmul.mubr.f32.gmra.mrb[0].mxu0 %v3566
      %v3804 = vpop.f32.mrb[0].mxu0
      %v3805 = vadd.f32 %v3715, %v3804
      %v3806 = vpop.f32.mrb[0].mxu0
      %3807 = vmatprep.mubr.f32.mxu0 %v3571
      %3808 = vmatmul.mubr.f32.gmra.mrb[0].mxu0 %v3570
      %v3809 = vpop.f32.mrb[0].mxu0
      %v3810 = vadd.f32 %v3720, %v3809
      %v3811 = vpop.f32.mrb[0].mxu0
      %3812 = vmatprep.mubr.f32.mxu0 %v3575
      %3813 = vmatmul.mubr.f32.gmra.mrb[0].mxu0 %v3574
      %v3814 = vpop.f32.mrb[0].mxu0
      %v3815 = vadd.f32 %v3725, %v3814
      %v3816 = vpop.f32.mrb[0].mxu0
      %3817 = vmatprep.mubr.f32.mxu0 %v3579
      %3818 = vmatmul.mubr.f32.gmra.mrb[0].mxu0 %v3578
      %v3819 = vpop.f32.mrb[0].mxu0
      %v3820 = vadd.f32 %v3730, %v3819
      %v3821 = vpop.f32.mrb[0].mxu0
      %3822 = vmatprep.mubr.f32.mxu0 %v3583
      %3823 = vmatmul.mubr.f32.gmra.mrb[0].mxu0 %v3582
      %v3824 = vpop.f32.mrb[0].mxu0
      %v3825 = vadd.f32 %v3735, %v3824
      %v3826 = vpop.f32.mrb[0].mxu0
      %3827 = vdwg.mxu0
      %3828 = vadd.xlane.f32.xlu0 %v3805
      %v3829 = vpop.xlane.xlu0 %3828
      %3830 = vadd.xlane.f32.xlu0 %v3810
      %v3831 = vpop.xlane.xlu0 %3830
      %3832 = vadd.xlane.f32.xlu0 %v3815
      %v3833 = vpop.xlane.xlu0 %3832
      %3834 = vadd.xlane.f32.xlu0 %v3820
      %v3835 = vpop.xlane.xlu0 %3834
      %vm3836 = vcmask 1041408
      %v3837 = vsel %vm3836, %v3825, 0.0
      %3838 = vadd.xlane.f32.xlu0 %v3837
      %v3839 = vpop.xlane.xlu0 %3838
      %v3840 = vrcp.pop 128.0
      %v3841 = vmul.f32 %v3829, %v3840
      %v3842 = vmul.f32 %v3831, %v3840
      %v3843 = vmul.f32 %v3833, %v3840
      %v3844 = vmul.f32 %v3835, %v3840
      %v3845 = vmul.f32 %v3839, %v3840
      %v3846 = vsub.f32 %v3805, %v3841
      %v3847 = vsub.f32 %v3810, %v3842
      %v3848 = vsub.f32 %v3815, %v3843
      %v3849 = vsub.f32 %v3820, %v3844
      %v3850 = vsub.f32 %v3825, %v3845
      %v3851 = vmul.f32 %v3846, %v3846
      %v3852 = vmul.f32 %v3847, %v3847
      %v3853 = vmul.f32 %v3848, %v3848
      %v3854 = vmul.f32 %v3849, %v3849
      %v3855 = vmul.f32 %v3850, %v3850
      %3856 = vadd.xlane.f32.xlu0 %v3851
      %v3857 = vpop.xlane.xlu0 %3856
      %3858 = vadd.xlane.f32.xlu0 %v3852
      %v3859 = vpop.xlane.xlu0 %3858
      %3860 = vadd.xlane.f32.xlu0 %v3853
      %v3861 = vpop.xlane.xlu0 %3860
      %3862 = vadd.xlane.f32.xlu0 %v3854
      %v3863 = vpop.xlane.xlu0 %3862
      %v3864 = vsel %vm3836, %v3855, 0.0
      %3865 = vadd.xlane.f32.xlu0 %v3864
      %v3866 = vpop.xlane.xlu0 %3865
      %v3867 = vmul.f32 %v3857, %v3840
      %v3868 = vmul.f32 %v3859, %v3840
      %v3869 = vmul.f32 %v3861, %v3840
      %v3870 = vmul.f32 %v3863, %v3840
      %v3871 = vmul.f32 %v3866, %v3840
      %v3872 = vadd.f32 %v3867, 1e-05
      %v3873 = vadd.f32 %v3868, 1e-05
      %v3874 = vadd.f32 %v3869, 1e-05
      %v3875 = vadd.f32 %v3870, 1e-05
      %v3876 = vadd.f32 %v3871, 1e-05
      %v3877 = vrsqrt.pop %v3872
      %v3878 = vrsqrt.pop %v3873
      %v3879 = vrsqrt.pop %v3874
      %v3880 = vrsqrt.pop %v3875
      %v3881 = vrsqrt.pop %v3876
      %v3882 = vmul.f32 %v3846, %v3877
      %v3883 = vmul.f32 %v3847, %v3878
      %v3884 = vmul.f32 %v3848, %v3879
      %v3885 = vmul.f32 %v3849, %v3880
      %v3886 = vmul.f32 %v3850, %v3881
      %v3887 = vld [vmem:[%s10] sm:$0xff]
      %v3888 = vld [vmem:[%s10 + $0x8] sm:$0xff]
      %v3889 = vld [vmem:[%s10 + $0x10] sm:$0xff]
      %v3890 = vld [vmem:[%s10 + $0x18] sm:$0xff]
      %v3891 = vld [vmem:[%s10 + $0x20] sm:$0x3]
      %3893 = vset.pattern.permute.xlu0 0
      %3894 = vperm.xlu0 %3893, %v3887
      %v3895 = vpop.permute.xlu0 %3894
      %3898 = vset.pattern.permute.xlu0 0
      %3899 = vperm.xlu0 %3898, %v3888
      %v3900 = vpop.permute.xlu0 %3899
      %3903 = vset.pattern.permute.xlu0 0
      %3904 = vperm.xlu0 %3903, %v3889
      %v3905 = vpop.permute.xlu0 %3904
      %3908 = vset.pattern.permute.xlu0 0
      %3909 = vperm.xlu0 %3908, %v3890
      %v3910 = vpop.permute.xlu0 %3909
      %3913 = vset.pattern.permute.xlu0 0
      %3914 = vperm.xlu0 %3913, %v3891
      %v3915 = vpop.permute.xlu0 %3914
      %v3917 = vmul.f32 %v3882, %v3895
      %v3918 = vmul.f32 %v3883, %v3900
      %v3919 = vmul.f32 %v3884, %v3905
      %v3920 = vmul.f32 %v3885, %v3910
      %v3921 = vmul.f32 %v3886, %v3915
      %v3922 = vld [vmem:[%s11] sm:$0xff]
      %v3923 = vld [vmem:[%s11 + $0x8] sm:$0xff]
      %v3924 = vld [vmem:[%s11 + $0x10] sm:$0xff]
      %v3925 = vld [vmem:[%s11 + $0x18] sm:$0xff]
      %v3926 = vld [vmem:[%s11 + $0x20] sm:$0x3]
      %3928 = vset.pattern.permute.xlu0 0
      %3929 = vperm.xlu0 %3928, %v3922
      %v3930 = vpop.permute.xlu0 %3929
      %3933 = vset.pattern.permute.xlu0 0
      %3934 = vperm.xlu0 %3933, %v3923
      %v3935 = vpop.permute.xlu0 %3934
      %3938 = vset.pattern.permute.xlu0 0
      %3939 = vperm.xlu0 %3938, %v3924
      %v3940 = vpop.permute.xlu0 %3939
      %3943 = vset.pattern.permute.xlu0 0
      %3944 = vperm.xlu0 %3943, %v3925
      %v3945 = vpop.permute.xlu0 %3944
      %3948 = vset.pattern.permute.xlu0 0
      %3949 = vperm.xlu0 %3948, %v3926
      %v3950 = vpop.permute.xlu0 %3949
      %v3952 = vadd.f32 %v3917, %v3930
      %v3953 = vadd.f32 %v3918, %v3935
      %v3954 = vadd.f32 %v3919, %v3940
      %v3955 = vadd.f32 %v3920, %v3945
      %v3956 = vadd.f32 %v3921, %v3950
      %3957 = vrot.lane.b32.xlu0 %v3952, 9
      %v3958 = vpop.permute.xlu0 %3957
      %3959 = vrot.lane.b32.xlu0 %v3953, 9
      %v3960 = vpop.permute.xlu0 %3959
      %3961 = vrot.lane.b32.xlu0 %v3954, 9
      %v3962 = vpop.permute.xlu0 %3961
      %3963 = vrot.lane.b32.xlu0 %v3955, 9
      %v3964 = vpop.permute.xlu0 %3963
      %3965 = vrot.lane.b32.xlu0 %v3956, 9
      %v3966 = vpop.permute.xlu0 %3965
      %v3967 = vld [vmem:[%s2] sm:$0x1]
      %v3969 = vlaneseq
      %v3970 = vshrl.u32 %v3969, 7
      %v3971 = vsub.s32 0, %v3970
      %v3972 = vrot.slane %v3967, %v3971
      %v3974 = vmul.f32 %v3958, %v3972
      %v3975 = vmul.f32 %v3960, %v3972
      %v3976 = vmul.f32 %v3962, %v3972
      %v3977 = vmul.f32 %v3964, %v3972
      %v3978 = vmul.f32 %v3966, %v3972
      %v3979 = vld [vmem:[%s18] sm:$0xff]
      %v3980 = vld [vmem:[%s18 + $0x8] sm:$0x7f]
      %3981 = vrot.lane.b32.xlu0 %v3952, 8
      %v3982 = vpop.permute.xlu0 %3981
      %3983 = vrot.lane.b32.xlu0 %v3953, 8
      %v3984 = vpop.permute.xlu0 %3983
      %3985 = vrot.lane.b32.xlu0 %v3954, 8
      %v3986 = vpop.permute.xlu0 %3985
      %3987 = vrot.lane.b32.xlu0 %v3955, 8
      %v3988 = vpop.permute.xlu0 %3987
      %3989 = vrot.lane.b32.xlu0 %v3956, 8
      %v3990 = vpop.permute.xlu0 %3989
      %s3991 = scalar_lea.vmem %s2, 1
      %v3992 = vld [vmem:[%s3991] sm:$0x1]
      %v3994 = vlaneseq
      %v3995 = vshrl.u32 %v3994, 7
      %v3996 = vsub.s32 0, %v3995
      %v3997 = vrot.slane %v3992, %v3996
      %v3999 = vmul.f32 %v3982, %v3997
      %v4000 = vmul.f32 %v3984, %v3997
      %v4001 = vmul.f32 %v3986, %v3997
      %v4002 = vmul.f32 %v3988, %v3997
      %v4003 = vmul.f32 %v3990, %v3997
      %s4004 = scalar_lea.vmem %s18, 16
      %v4005 = vld [vmem:[%s4004] sm:$0xff]
      %v4006 = vld [vmem:[%s4004 + $0x8] sm:$0x7f]
      %vm4007 = vcmask 277504
      %v4009 = vsel %vm4007, %v4005, 0
      %v4012 = vsel %vm4007, %v4006, 0
      %v4015 = vsel %vm3836, %v4003, 0
      %4017 = vmatprep.subr.mxu0 0.0
      %4018 = vmatpush1.msra.mxu0 %v3999
      %4019 = vmatprep.subr.mxu0 0.0
      %4020 = vmatpush1.msra.mxu0 %v4000
      %4021 = vmatprep.subr.mxu0 0.0
      %4022 = vmatpush1.msra.mxu0 %v4001
      %4023 = vmatprep.subr.mxu0 0.0
      %4024 = vmatpush1.msra.mxu0 %v4002
      %4025 = vmatprep.subr.mxu0 0.0
      %4026 = vmatpush1.msra.mxu0 %v4015
      %4027 = vmatprep.subr.mxu0 0.0
      %4028 = vmatpush1.msra.mxu0 0.0
      %4029 = vmatprep.subr.mxu0 0.0
      %4030 = vmatpush1.msra.mxu0 0.0
      %4031 = vmatprep.subr.mxu0 0.0
      %4032 = vmatpush1.msra.mxu0 0.0
      %4033 = vmatprep.subr.mxu0 0.0
      %4034 = vmatpush1.msra.mxu0 0.0
      %4035 = vmatprep.subr.mxu0 0.0
      %4036 = vmatpush1.msra.mxu0 0.0
      %4037 = vmatprep.subr.mxu0 0.0
      %4038 = vmatpush1.msra.mxu0 0.0
      %4039 = vmatprep.subr.mxu0 0.0
      %4040 = vmatpush1.msra.mxu0 0.0
      %4041 = vmatprep.subr.mxu0 0.0
      %4042 = vmatpush1.msra.mxu0 0.0
      %4043 = vmatprep.subr.mxu0 0.0
      %4044 = vmatpush1.msra.mxu0 0.0
      %4045 = vmatprep.subr.mxu0 0.0
      %4046 = vmatpush1.msra.mxu0 0.0
      %4047 = vmatprep.subr.mxu0 0.0
      %4048 = vmatpush1.msra.mxu0 0.0
      %4049 = vmatprep.subr.mxu0 0.0
      %4050 = vmatpush1.msra.mxu0 0.0
      %4051 = vmatprep.subr.mxu0 0.0
      %4052 = vmatpush1.msra.mxu0 0.0
      %4053 = vmatprep.subr.mxu0 0.0
      %4054 = vmatpush1.msra.mxu0 0.0
      %4055 = vmatprep.subr.mxu0 0.0
      %4056 = vmatpush1.msra.mxu0 0.0
      %4057 = vmatprep.subr.mxu0 0.0
      %4058 = vmatpush1.msra.mxu0 0.0
      %4059 = vmatprep.subr.mxu0 0.0
      %4060 = vmatpush1.msra.mxu0 0.0
      %4061 = vmatprep.subr.mxu0 0.0
      %4062 = vmatpush1.msra.mxu0 0.0
      %4063 = vmatprep.subr.mxu0 0.0
      %4064 = vmatpush1.msra.mxu0 0.0
      %4065 = vmatprep.subr.mxu0 0.0
      %4066 = vmatpush1.msra.mxu0 0.0
      %4067 = vmatprep.subr.mxu0 0.0
      %4068 = vmatpush1.msra.mxu0 0.0
      %4069 = vmatprep.subr.mxu0 0.0
      %4070 = vmatpush1.msra.mxu0 0.0
      %4071 = vmatprep.subr.mxu0 0.0
      %4072 = vmatpush1.msra.mxu0 0.0
      %4073 = vmatprep.subr.mxu0 0.0
      %4074 = vmatpush1.msra.mxu0 0.0
      %4075 = vmatprep.subr.mxu0 0.0
      %4076 = vmatpush1.msra.mxu0 0.0
      %4077 = vmatprep.subr.mxu0 0.0
      %4078 = vmatpush1.msra.mxu0 0.0
      %4079 = vmatprep.subr.mxu0 0.0
      %4080 = vmatpush1.msra.mxu0 0.0
      %4081 = vmatprep.mubr.f32.mxu0 0.0
      %4082 = vmatmul.mubr.f32.gmra.mrb[0].mxu0 %v4009
      %v4083 = vpop.f32.mrb[0].mxu0
      %v4084 = vadd.f32 0.0, %v4083
      %v4085 = vpop.f32.mrb[0].mxu0
      %4086 = vmatprep.mubr.f32.mxu0 0.0
      %4087 = vmatmul.mubr.f32.gmra.mrb[0].mxu0 %v4012
      %v4088 = vpop.f32.mrb[0].mxu0
      %v4089 = vadd.f32 0.0, %v4088
      %v4090 = vpop.f32.mrb[0].mxu0
      %4091 = vdwg.mxu0
      %v4093 = vsel %vm4007, %v3979, 0
      %v4096 = vsel %vm4007, %v3980, 0
      %v4099 = vsel %vm3836, %v3978, 0
      %4101 = vmatprep.subr.mxu0 0.0
      %4102 = vmatpush1.msra.mxu0 %v3974
      %4103 = vmatprep.subr.mxu0 0.0
      %4104 = vmatpush1.msra.mxu0 %v3975
      %4105 = vmatprep.subr.mxu0 0.0
      %4106 = vmatpush1.msra.mxu0 %v3976
      %4107 = vmatprep.subr.mxu0 0.0
      %4108 = vmatpush1.msra.mxu0 %v3977
      %4109 = vmatprep.subr.mxu0 0.0
      %4110 = vmatpush1.msra.mxu0 %v4099
      %4111 = vmatprep.subr.mxu0 0.0
      %4112 = vmatpush1.msra.mxu0 0.0
      %4113 = vmatprep.subr.mxu0 0.0
      %4114 = vmatpush1.msra.mxu0 0.0
      %4115 = vmatprep.subr.mxu0 0.0
      %4116 = vmatpush1.msra.mxu0 0.0
      %4117 = vmatprep.subr.mxu0 0.0
      %4118 = vmatpush1.msra.mxu0 0.0
      %4119 = vmatprep.subr.mxu0 0.0
      %4120 = vmatpush1.msra.mxu0 0.0
      %4121 = vmatprep.subr.mxu0 0.0
      %4122 = vmatpush1.msra.mxu0 0.0
      %4123 = vmatprep.subr.mxu0 0.0
      %4124 = vmatpush1.msra.mxu0 0.0
      %4125 = vmatprep.subr.mxu0 0.0
      %4126 = vmatpush1.msra.mxu0 0.0
      %4127 = vmatprep.subr.mxu0 0.0
      %4128 = vmatpush1.msra.mxu0 0.0
      %4129 = vmatprep.subr.mxu0 0.0
      %4130 = vmatpush1.msra.mxu0 0.0
      %4131 = vmatprep.subr.mxu0 0.0
      %4132 = vmatpush1.msra.mxu0 0.0
      %4133 = vmatprep.subr.mxu0 0.0
      %4134 = vmatpush1.msra.mxu0 0.0
      %4135 = vmatprep.subr.mxu0 0.0
      %4136 = vmatpush1.msra.mxu0 0.0
      %4137 = vmatprep.subr.mxu0 0.0
      %4138 = vmatpush1.msra.mxu0 0.0
      %4139 = vmatprep.subr.mxu0 0.0
      %4140 = vmatpush1.msra.mxu0 0.0
      %4141 = vmatprep.subr.mxu0 0.0
      %4142 = vmatpush1.msra.mxu0 0.0
      %4143 = vmatprep.subr.mxu0 0.0
      %4144 = vmatpush1.msra.mxu0 0.0
      %4145 = vmatprep.subr.mxu0 0.0
      %4146 = vmatpush1.msra.mxu0 0.0
      %4147 = vmatprep.subr.mxu0 0.0
      %4148 = vmatpush1.msra.mxu0 0.0
      %4149 = vmatprep.subr.mxu0 0.0
      %4150 = vmatpush1.msra.mxu0 0.0
      %4151 = vmatprep.subr.mxu0 0.0
      %4152 = vmatpush1.msra.mxu0 0.0
      %4153 = vmatprep.subr.mxu0 0.0
      %4154 = vmatpush1.msra.mxu0 0.0
      %4155 = vmatprep.subr.mxu0 0.0
      %4156 = vmatpush1.msra.mxu0 0.0
      %4157 = vmatprep.subr.mxu0 0.0
      %4158 = vmatpush1.msra.mxu0 0.0
      %4159 = vmatprep.subr.mxu0 0.0
      %4160 = vmatpush1.msra.mxu0 0.0
      %4161 = vmatprep.subr.mxu0 0.0
      %4162 = vmatpush1.msra.mxu0 0.0
      %4163 = vmatprep.subr.mxu0 0.0
      %4164 = vmatpush1.msra.mxu0 0.0
      %4165 = vmatprep.mubr.f32.mxu0 0.0
      %4166 = vmatmul.mubr.f32.gmra.mrb[0].mxu0 %v4093
      %v4167 = vpop.f32.mrb[0].mxu0
      %v4168 = vadd.f32 %v4084, %v4167
      %v4169 = vpop.f32.mrb[0].mxu0
      %4170 = vmatprep.mubr.f32.mxu0 0.0
      %4171 = vmatmul.mubr.f32.gmra.mrb[0].mxu0 %v4096
      %v4172 = vpop.f32.mrb[0].mxu0
      %v4173 = vadd.f32 %v4089, %v4172
      %v4174 = vpop.f32.mrb[0].mxu0
      %4175 = vdwg.mxu0
      %4176 = vrot.lane.b32.xlu0 %v3952, 7
      %v4177 = vpop.permute.xlu0 %4176
      %4178 = vrot.lane.b32.xlu0 %v3953, 7
      %v4179 = vpop.permute.xlu0 %4178
      %4180 = vrot.lane.b32.xlu0 %v3954, 7
      %v4181 = vpop.permute.xlu0 %4180
      %4182 = vrot.lane.b32.xlu0 %v3955, 7
      %v4183 = vpop.permute.xlu0 %4182
      %4184 = vrot.lane.b32.xlu0 %v3956, 7
      %v4185 = vpop.permute.xlu0 %4184
      %s4186 = scalar_lea.vmem %s2, 2
      %v4187 = vld [vmem:[%s4186] sm:$0x1]
      %v4189 = vlaneseq
      %v4190 = vshrl.u32 %v4189, 7
      %v4191 = vsub.s32 0, %v4190
      %v4192 = vrot.slane %v4187, %v4191
      %v4194 = vmul.f32 %v4177, %v4192
      %v4195 = vmul.f32 %v4179, %v4192
      %v4196 = vmul.f32 %v4181, %v4192
      %v4197 = vmul.f32 %v4183, %v4192
      %v4198 = vmul.f32 %v4185, %v4192
      %s4199 = scalar_lea.vmem %s18, 32
      %v4200 = vld [vmem:[%s4199] sm:$0xff]
      %v4201 = vld [vmem:[%s4199 + $0x8] sm:$0x7f]
      %v4203 = vsel %vm4007, %v4200, 0
      %v4206 = vsel %vm4007, %v4201, 0
      %v4209 = vsel %vm3836, %v4198, 0
      %4211 = vmatprep.subr.mxu0 0.0
      %4212 = vmatpush1.msra.mxu0 %v4194
      %4213 = vmatprep.subr.mxu0 0.0
      %4214 = vmatpush1.msra.mxu0 %v4195
      %4215 = vmatprep.subr.mxu0 0.0
      %4216 = vmatpush1.msra.mxu0 %v4196
      %4217 = vmatprep.subr.mxu0 0.0
      %4218 = vmatpush1.msra.mxu0 %v4197
      %4219 = vmatprep.subr.mxu0 0.0
      %4220 = vmatpush1.msra.mxu0 %v4209
      %4221 = vmatprep.subr.mxu0 0.0
      %4222 = vmatpush1.msra.mxu0 0.0
      %4223 = vmatprep.subr.mxu0 0.0
      %4224 = vmatpush1.msra.mxu0 0.0
      %4225 = vmatprep.subr.mxu0 0.0
      %4226 = vmatpush1.msra.mxu0 0.0
      %4227 = vmatprep.subr.mxu0 0.0
      %4228 = vmatpush1.msra.mxu0 0.0
      %4229 = vmatprep.subr.mxu0 0.0
      %4230 = vmatpush1.msra.mxu0 0.0
      %4231 = vmatprep.subr.mxu0 0.0
      %4232 = vmatpush1.msra.mxu0 0.0
      %4233 = vmatprep.subr.mxu0 0.0
      %4234 = vmatpush1.msra.mxu0 0.0
      %4235 = vmatprep.subr.mxu0 0.0
      %4236 = vmatpush1.msra.mxu0 0.0
      %4237 = vmatprep.subr.mxu0 0.0
      %4238 = vmatpush1.msra.mxu0 0.0
      %4239 = vmatprep.subr.mxu0 0.0
      %4240 = vmatpush1.msra.mxu0 0.0
      %4241 = vmatprep.subr.mxu0 0.0
      %4242 = vmatpush1.msra.mxu0 0.0
      %4243 = vmatprep.subr.mxu0 0.0
      %4244 = vmatpush1.msra.mxu0 0.0
      %4245 = vmatprep.subr.mxu0 0.0
      %4246 = vmatpush1.msra.mxu0 0.0
      %4247 = vmatprep.subr.mxu0 0.0
      %4248 = vmatpush1.msra.mxu0 0.0
      %4249 = vmatprep.subr.mxu0 0.0
      %4250 = vmatpush1.msra.mxu0 0.0
      %4251 = vmatprep.subr.mxu0 0.0
      %4252 = vmatpush1.msra.mxu0 0.0
      %4253 = vmatprep.subr.mxu0 0.0
      %4254 = vmatpush1.msra.mxu0 0.0
      %4255 = vmatprep.subr.mxu0 0.0
      %4256 = vmatpush1.msra.mxu0 0.0
      %4257 = vmatprep.subr.mxu0 0.0
      %4258 = vmatpush1.msra.mxu0 0.0
      %4259 = vmatprep.subr.mxu0 0.0
      %4260 = vmatpush1.msra.mxu0 0.0
      %4261 = vmatprep.subr.mxu0 0.0
      %4262 = vmatpush1.msra.mxu0 0.0
      %4263 = vmatprep.subr.mxu0 0.0
      %4264 = vmatpush1.msra.mxu0 0.0
      %4265 = vmatprep.subr.mxu0 0.0
      %4266 = vmatpush1.msra.mxu0 0.0
      %4267 = vmatprep.subr.mxu0 0.0
      %4268 = vmatpush1.msra.mxu0 0.0
      %4269 = vmatprep.subr.mxu0 0.0
      %4270 = vmatpush1.msra.mxu0 0.0
      %4271 = vmatprep.subr.mxu0 0.0
      %4272 = vmatpush1.msra.mxu0 0.0
      %4273 = vmatprep.subr.mxu0 0.0
      %4274 = vmatpush1.msra.mxu0 0.0
      %4275 = vmatprep.mubr.f32.mxu0 0.0
      %4276 = vmatmul.mubr.f32.gmra.mrb[0].mxu0 %v4203
      %v4277 = vpop.f32.mrb[0].mxu0
      %v4278 = vadd.f32 0.0, %v4277
      %v4279 = vpop.f32.mrb[0].mxu0
      %4280 = vmatprep.mubr.f32.mxu0 0.0
      %4281 = vmatmul.mubr.f32.gmra.mrb[0].mxu0 %v4206
      %v4282 = vpop.f32.mrb[0].mxu0
      %v4283 = vadd.f32 0.0, %v4282
      %v4284 = vpop.f32.mrb[0].mxu0
      %4285 = vdwg.mxu0
      %v4286 = vadd.f32 %v4168, %v4278
      %v4287 = vadd.f32 %v4173, %v4283
      %4288 = vrot.lane.b32.xlu0 %v3952, 1
      %v4289 = vpop.permute.xlu0 %4288
      %4290 = vrot.lane.b32.xlu0 %v3953, 1
      %v4291 = vpop.permute.xlu0 %4290
      %4292 = vrot.lane.b32.xlu0 %v3954, 1
      %v4293 = vpop.permute.xlu0 %4292
      %4294 = vrot.lane.b32.xlu0 %v3955, 1
      %v4295 = vpop.permute.xlu0 %4294
      %4296 = vrot.lane.b32.xlu0 %v3956, 1
      %v4297 = vpop.permute.xlu0 %4296
      %s4298 = scalar_lea.vmem %s2, 3
      %v4299 = vld [vmem:[%s4298] sm:$0x1]
      %v4301 = vlaneseq
      %v4302 = vshrl.u32 %v4301, 7
      %v4303 = vsub.s32 0, %v4302
      %v4304 = vrot.slane %v4299, %v4303
      %v4306 = vmul.f32 %v4289, %v4304
      %v4307 = vmul.f32 %v4291, %v4304
      %v4308 = vmul.f32 %v4293, %v4304
      %v4309 = vmul.f32 %v4295, %v4304
      %v4310 = vmul.f32 %v4297, %v4304
      %s4311 = scalar_lea.vmem %s18, 48
      %v4312 = vld [vmem:[%s4311] sm:$0xff]
      %v4313 = vld [vmem:[%s4311 + $0x8] sm:$0x7f]
      %v4315 = vsel %vm4007, %v4312, 0
      %v4318 = vsel %vm4007, %v4313, 0
      %v4321 = vsel %vm3836, %v4310, 0
      %4323 = vmatprep.subr.mxu0 0.0
      %4324 = vmatpush1.msra.mxu0 %v4306
      %4325 = vmatprep.subr.mxu0 0.0
      %4326 = vmatpush1.msra.mxu0 %v4307
      %4327 = vmatprep.subr.mxu0 0.0
      %4328 = vmatpush1.msra.mxu0 %v4308
      %4329 = vmatprep.subr.mxu0 0.0
      %4330 = vmatpush1.msra.mxu0 %v4309
      %4331 = vmatprep.subr.mxu0 0.0
      %4332 = vmatpush1.msra.mxu0 %v4321
      %4333 = vmatprep.subr.mxu0 0.0
      %4334 = vmatpush1.msra.mxu0 0.0
      %4335 = vmatprep.subr.mxu0 0.0
      %4336 = vmatpush1.msra.mxu0 0.0
      %4337 = vmatprep.subr.mxu0 0.0
      %4338 = vmatpush1.msra.mxu0 0.0
      %4339 = vmatprep.subr.mxu0 0.0
      %4340 = vmatpush1.msra.mxu0 0.0
      %4341 = vmatprep.subr.mxu0 0.0
      %4342 = vmatpush1.msra.mxu0 0.0
      %4343 = vmatprep.subr.mxu0 0.0
      %4344 = vmatpush1.msra.mxu0 0.0
      %4345 = vmatprep.subr.mxu0 0.0
      %4346 = vmatpush1.msra.mxu0 0.0
      %4347 = vmatprep.subr.mxu0 0.0
      %4348 = vmatpush1.msra.mxu0 0.0
      %4349 = vmatprep.subr.mxu0 0.0
      %4350 = vmatpush1.msra.mxu0 0.0
      %4351 = vmatprep.subr.mxu0 0.0
      %4352 = vmatpush1.msra.mxu0 0.0
      %4353 = vmatprep.subr.mxu0 0.0
      %4354 = vmatpush1.msra.mxu0 0.0
      %4355 = vmatprep.subr.mxu0 0.0
      %4356 = vmatpush1.msra.mxu0 0.0
      %4357 = vmatprep.subr.mxu0 0.0
      %4358 = vmatpush1.msra.mxu0 0.0
      %4359 = vmatprep.subr.mxu0 0.0
      %4360 = vmatpush1.msra.mxu0 0.0
      %4361 = vmatprep.subr.mxu0 0.0
      %4362 = vmatpush1.msra.mxu0 0.0
      %4363 = vmatprep.subr.mxu0 0.0
      %4364 = vmatpush1.msra.mxu0 0.0
      %4365 = vmatprep.subr.mxu0 0.0
      %4366 = vmatpush1.msra.mxu0 0.0
      %4367 = vmatprep.subr.mxu0 0.0
      %4368 = vmatpush1.msra.mxu0 0.0
      %4369 = vmatprep.subr.mxu0 0.0
      %4370 = vmatpush1.msra.mxu0 0.0
      %4371 = vmatprep.subr.mxu0 0.0
      %4372 = vmatpush1.msra.mxu0 0.0
      %4373 = vmatprep.subr.mxu0 0.0
      %4374 = vmatpush1.msra.mxu0 0.0
      %4375 = vmatprep.subr.mxu0 0.0
      %4376 = vmatpush1.msra.mxu0 0.0
      %4377 = vmatprep.subr.mxu0 0.0
      %4378 = vmatpush1.msra.mxu0 0.0
      %4379 = vmatprep.subr.mxu0 0.0
      %4380 = vmatpush1.msra.mxu0 0.0
      %4381 = vmatprep.subr.mxu0 0.0
      %4382 = vmatpush1.msra.mxu0 0.0
      %4383 = vmatprep.subr.mxu0 0.0
      %4384 = vmatpush1.msra.mxu0 0.0
      %4385 = vmatprep.subr.mxu0 0.0
      %4386 = vmatpush1.msra.mxu0 0.0
      %4387 = vmatprep.mubr.f32.mxu0 0.0
      %4388 = vmatmul.mubr.f32.gmra.mrb[0].mxu0 %v4315
      %v4389 = vpop.f32.mrb[0].mxu0
      %v4390 = vadd.f32 0.0, %v4389
      %v4391 = vpop.f32.mrb[0].mxu0
      %4392 = vmatprep.mubr.f32.mxu0 0.0
      %4393 = vmatmul.mubr.f32.gmra.mrb[0].mxu0 %v4318
      %v4394 = vpop.f32.mrb[0].mxu0
      %v4395 = vadd.f32 0.0, %v4394
      %v4396 = vpop.f32.mrb[0].mxu0
      %4397 = vdwg.mxu0
      %v4398 = vadd.f32 %v4286, %v4390
      %v4399 = vadd.f32 %v4287, %v4395
      %s4400 = scalar_lea.vmem %s18, 64
      %v4401 = vld [vmem:[%s4400] sm:$0xff]
      %v4402 = vld [vmem:[%s4400 + $0x8] sm:$0x7f]
      %v4404 = vsel %vm4007, %v4401, 0
      %v4407 = vsel %vm4007, %v4402, 0
      %v4410 = vsel %vm3836, %v3956, 0
      %4412 = vmatprep.subr.mxu0 0.0
      %4413 = vmatpush1.msra.mxu0 %v3952
      %4414 = vmatprep.subr.mxu0 0.0
      %4415 = vmatpush1.msra.mxu0 %v3953
      %4416 = vmatprep.subr.mxu0 0.0
      %4417 = vmatpush1.msra.mxu0 %v3954
      %4418 = vmatprep.subr.mxu0 0.0
      %4419 = vmatpush1.msra.mxu0 %v3955
      %4420 = vmatprep.subr.mxu0 0.0
      %4421 = vmatpush1.msra.mxu0 %v4410
      %4422 = vmatprep.subr.mxu0 0.0
      %4423 = vmatpush1.msra.mxu0 0.0
      %4424 = vmatprep.subr.mxu0 0.0
      %4425 = vmatpush1.msra.mxu0 0.0
      %4426 = vmatprep.subr.mxu0 0.0
      %4427 = vmatpush1.msra.mxu0 0.0
      %4428 = vmatprep.subr.mxu0 0.0
      %4429 = vmatpush1.msra.mxu0 0.0
      %4430 = vmatprep.subr.mxu0 0.0
      %4431 = vmatpush1.msra.mxu0 0.0
      %4432 = vmatprep.subr.mxu0 0.0
      %4433 = vmatpush1.msra.mxu0 0.0
      %4434 = vmatprep.subr.mxu0 0.0
      %4435 = vmatpush1.msra.mxu0 0.0
      %4436 = vmatprep.subr.mxu0 0.0
      %4437 = vmatpush1.msra.mxu0 0.0
      %4438 = vmatprep.subr.mxu0 0.0
      %4439 = vmatpush1.msra.mxu0 0.0
      %4440 = vmatprep.subr.mxu0 0.0
      %4441 = vmatpush1.msra.mxu0 0.0
      %4442 = vmatprep.subr.mxu0 0.0
      %4443 = vmatpush1.msra.mxu0 0.0
      %4444 = vmatprep.subr.mxu0 0.0
      %4445 = vmatpush1.msra.mxu0 0.0
      %4446 = vmatprep.subr.mxu0 0.0
      %4447 = vmatpush1.msra.mxu0 0.0
      %4448 = vmatprep.subr.mxu0 0.0
      %4449 = vmatpush1.msra.mxu0 0.0
      %4450 = vmatprep.subr.mxu0 0.0
      %4451 = vmatpush1.msra.mxu0 0.0
      %4452 = vmatprep.subr.mxu0 0.0
      %4453 = vmatpush1.msra.mxu0 0.0
      %4454 = vmatprep.subr.mxu0 0.0
      %4455 = vmatpush1.msra.mxu0 0.0
      %4456 = vmatprep.subr.mxu0 0.0
      %4457 = vmatpush1.msra.mxu0 0.0
      %4458 = vmatprep.subr.mxu0 0.0
      %4459 = vmatpush1.msra.mxu0 0.0
      %4460 = vmatprep.subr.mxu0 0.0
      %4461 = vmatpush1.msra.mxu0 0.0
      %4462 = vmatprep.subr.mxu0 0.0
      %4463 = vmatpush1.msra.mxu0 0.0
      %4464 = vmatprep.subr.mxu0 0.0
      %4465 = vmatpush1.msra.mxu0 0.0
      %4466 = vmatprep.subr.mxu0 0.0
      %4467 = vmatpush1.msra.mxu0 0.0
      %4468 = vmatprep.subr.mxu0 0.0
      %4469 = vmatpush1.msra.mxu0 0.0
      %4470 = vmatprep.subr.mxu0 0.0
      %4471 = vmatpush1.msra.mxu0 0.0
      %4472 = vmatprep.subr.mxu0 0.0
      %4473 = vmatpush1.msra.mxu0 0.0
      %4474 = vmatprep.subr.mxu0 0.0
      %4475 = vmatpush1.msra.mxu0 0.0
      %4476 = vmatprep.mubr.f32.mxu0 0.0
      %4477 = vmatmul.mubr.f32.gmra.mrb[0].mxu0 %v4404
      %v4478 = vpop.f32.mrb[0].mxu0
      %v4479 = vadd.f32 0.0, %v4478
      %v4480 = vpop.f32.mrb[0].mxu0
      %4481 = vmatprep.mubr.f32.mxu0 0.0
      %4482 = vmatmul.mubr.f32.gmra.mrb[0].mxu0 %v4407
      %v4483 = vpop.f32.mrb[0].mxu0
      %v4484 = vadd.f32 0.0, %v4483
      %v4485 = vpop.f32.mrb[0].mxu0
      %4486 = vdwg.mxu0
      %v4487 = vadd.f32 %v4398, %v4479
      %v4488 = vadd.f32 %v4399, %v4484
      %4489 = vrot.lane.b32.xlu0 %v3952, 127
      %v4490 = vpop.permute.xlu0 %4489
      %4491 = vrot.lane.b32.xlu0 %v3953, 127
      %v4492 = vpop.permute.xlu0 %4491
      %4493 = vrot.lane.b32.xlu0 %v3954, 127
      %v4494 = vpop.permute.xlu0 %4493
      %4495 = vrot.lane.b32.xlu0 %v3955, 127
      %v4496 = vpop.permute.xlu0 %4495
      %4497 = vrot.lane.b32.xlu0 %v3956, 127
      %v4498 = vpop.permute.xlu0 %4497
      %s4499 = scalar_lea.vmem %s2, 5
      %v4500 = vld [vmem:[%s4499] sm:$0x1]
      %v4502 = vlaneseq
      %v4503 = vshrl.u32 %v4502, 7
      %v4504 = vsub.s32 0, %v4503
      %v4505 = vrot.slane %v4500, %v4504
      %v4507 = vmul.f32 %v4490, %v4505
      %v4508 = vmul.f32 %v4492, %v4505
      %v4509 = vmul.f32 %v4494, %v4505
      %v4510 = vmul.f32 %v4496, %v4505
      %v4511 = vmul.f32 %v4498, %v4505
      %s4512 = scalar_lea.vmem %s18, 80
      %v4513 = vld [vmem:[%s4512] sm:$0xff]
      %v4514 = vld [vmem:[%s4512 + $0x8] sm:$0x7f]
      %v4516 = vsel %vm4007, %v4513, 0
      %v4519 = vsel %vm4007, %v4514, 0
      %v4522 = vsel %vm3836, %v4511, 0
      %4524 = vmatprep.subr.mxu0 0.0
      %4525 = vmatpush1.msra.mxu0 %v4507
      %4526 = vmatprep.subr.mxu0 0.0
      %4527 = vmatpush1.msra.mxu0 %v4508
      %4528 = vmatprep.subr.mxu0 0.0
      %4529 = vmatpush1.msra.mxu0 %v4509
      %4530 = vmatprep.subr.mxu0 0.0
      %4531 = vmatpush1.msra.mxu0 %v4510
      %4532 = vmatprep.subr.mxu0 0.0
      %4533 = vmatpush1.msra.mxu0 %v4522
      %4534 = vmatprep.subr.mxu0 0.0
      %4535 = vmatpush1.msra.mxu0 0.0
      %4536 = vmatprep.subr.mxu0 0.0
      %4537 = vmatpush1.msra.mxu0 0.0
      %4538 = vmatprep.subr.mxu0 0.0
      %4539 = vmatpush1.msra.mxu0 0.0
      %4540 = vmatprep.subr.mxu0 0.0
      %4541 = vmatpush1.msra.mxu0 0.0
      %4542 = vmatprep.subr.mxu0 0.0
      %4543 = vmatpush1.msra.mxu0 0.0
      %4544 = vmatprep.subr.mxu0 0.0
      %4545 = vmatpush1.msra.mxu0 0.0
      %4546 = vmatprep.subr.mxu0 0.0
      %4547 = vmatpush1.msra.mxu0 0.0
      %4548 = vmatprep.subr.mxu0 0.0
      %4549 = vmatpush1.msra.mxu0 0.0
      %4550 = vmatprep.subr.mxu0 0.0
      %4551 = vmatpush1.msra.mxu0 0.0
      %4552 = vmatprep.subr.mxu0 0.0
      %4553 = vmatpush1.msra.mxu0 0.0
      %4554 = vmatprep.subr.mxu0 0.0
      %4555 = vmatpush1.msra.mxu0 0.0
      %4556 = vmatprep.subr.mxu0 0.0
      %4557 = vmatpush1.msra.mxu0 0.0
      %4558 = vmatprep.subr.mxu0 0.0
      %4559 = vmatpush1.msra.mxu0 0.0
      %4560 = vmatprep.subr.mxu0 0.0
      %4561 = vmatpush1.msra.mxu0 0.0
      %4562 = vmatprep.subr.mxu0 0.0
      %4563 = vmatpush1.msra.mxu0 0.0
      %4564 = vmatprep.subr.mxu0 0.0
      %4565 = vmatpush1.msra.mxu0 0.0
      %4566 = vmatprep.subr.mxu0 0.0
      %4567 = vmatpush1.msra.mxu0 0.0
      %4568 = vmatprep.subr.mxu0 0.0
      %4569 = vmatpush1.msra.mxu0 0.0
      %4570 = vmatprep.subr.mxu0 0.0
      %4571 = vmatpush1.msra.mxu0 0.0
      %4572 = vmatprep.subr.mxu0 0.0
      %4573 = vmatpush1.msra.mxu0 0.0
      %4574 = vmatprep.subr.mxu0 0.0
      %4575 = vmatpush1.msra.mxu0 0.0
      %4576 = vmatprep.subr.mxu0 0.0
      %4577 = vmatpush1.msra.mxu0 0.0
      %4578 = vmatprep.subr.mxu0 0.0
      %4579 = vmatpush1.msra.mxu0 0.0
      %4580 = vmatprep.subr.mxu0 0.0
      %4581 = vmatpush1.msra.mxu0 0.0
      %4582 = vmatprep.subr.mxu0 0.0
      %4583 = vmatpush1.msra.mxu0 0.0
      %4584 = vmatprep.subr.mxu0 0.0
      %4585 = vmatpush1.msra.mxu0 0.0
      %4586 = vmatprep.subr.mxu0 0.0
      %4587 = vmatpush1.msra.mxu0 0.0
      %4588 = vmatprep.mubr.f32.mxu0 0.0
      %4589 = vmatmul.mubr.f32.gmra.mrb[0].mxu0 %v4516
      %v4590 = vpop.f32.mrb[0].mxu0
      %v4591 = vadd.f32 0.0, %v4590
      %v4592 = vpop.f32.mrb[0].mxu0
      %4593 = vmatprep.mubr.f32.mxu0 0.0
      %4594 = vmatmul.mubr.f32.gmra.mrb[0].mxu0 %v4519
      %v4595 = vpop.f32.mrb[0].mxu0
      %v4596 = vadd.f32 0.0, %v4595
      %v4597 = vpop.f32.mrb[0].mxu0
      %4598 = vdwg.mxu0
      %v4599 = vadd.f32 %v4487, %v4591
      %v4600 = vadd.f32 %v4488, %v4596
      %4601 = vrot.lane.b32.xlu0 %v3952, 121
      %v4602 = vpop.permute.xlu0 %4601
      %4603 = vrot.lane.b32.xlu0 %v3953, 121
      %v4604 = vpop.permute.xlu0 %4603
      %4605 = vrot.lane.b32.xlu0 %v3954, 121
      %v4606 = vpop.permute.xlu0 %4605
      %4607 = vrot.lane.b32.xlu0 %v3955, 121
      %v4608 = vpop.permute.xlu0 %4607
      %4609 = vrot.lane.b32.xlu0 %v3956, 121
      %v4610 = vpop.permute.xlu0 %4609
      %s4611 = scalar_lea.vmem %s2, 6
      %v4612 = vld [vmem:[%s4611] sm:$0x1]
      %v4614 = vlaneseq
      %v4615 = vshrl.u32 %v4614, 7
      %v4616 = vsub.s32 0, %v4615
      %v4617 = vrot.slane %v4612, %v4616
      %v4619 = vmul.f32 %v4602, %v4617
      %v4620 = vmul.f32 %v4604, %v4617
      %v4621 = vmul.f32 %v4606, %v4617
      %v4622 = vmul.f32 %v4608, %v4617
      %v4623 = vmul.f32 %v4610, %v4617
      %s4624 = scalar_lea.vmem %s18, 96
      %v4625 = vld [vmem:[%s4624] sm:$0xff]
      %v4626 = vld [vmem:[%s4624 + $0x8] sm:$0x7f]
      %v4628 = vsel %vm4007, %v4625, 0
      %v4631 = vsel %vm4007, %v4626, 0
      %v4634 = vsel %vm3836, %v4623, 0
      %4636 = vmatprep.subr.mxu0 0.0
      %4637 = vmatpush1.msra.mxu0 %v4619
      %4638 = vmatprep.subr.mxu0 0.0
      %4639 = vmatpush1.msra.mxu0 %v4620
      %4640 = vmatprep.subr.mxu0 0.0
      %4641 = vmatpush1.msra.mxu0 %v4621
      %4642 = vmatprep.subr.mxu0 0.0
      %4643 = vmatpush1.msra.mxu0 %v4622
      %4644 = vmatprep.subr.mxu0 0.0
      %4645 = vmatpush1.msra.mxu0 %v4634
      %4646 = vmatprep.subr.mxu0 0.0
      %4647 = vmatpush1.msra.mxu0 0.0
      %4648 = vmatprep.subr.mxu0 0.0
      %4649 = vmatpush1.msra.mxu0 0.0
      %4650 = vmatprep.subr.mxu0 0.0
      %4651 = vmatpush1.msra.mxu0 0.0
      %4652 = vmatprep.subr.mxu0 0.0
      %4653 = vmatpush1.msra.mxu0 0.0
      %4654 = vmatprep.subr.mxu0 0.0
      %4655 = vmatpush1.msra.mxu0 0.0
      %4656 = vmatprep.subr.mxu0 0.0
      %4657 = vmatpush1.msra.mxu0 0.0
      %4658 = vmatprep.subr.mxu0 0.0
      %4659 = vmatpush1.msra.mxu0 0.0
      %4660 = vmatprep.subr.mxu0 0.0
      %4661 = vmatpush1.msra.mxu0 0.0
      %4662 = vmatprep.subr.mxu0 0.0
      %4663 = vmatpush1.msra.mxu0 0.0
      %4664 = vmatprep.subr.mxu0 0.0
      %4665 = vmatpush1.msra.mxu0 0.0
      %4666 = vmatprep.subr.mxu0 0.0
      %4667 = vmatpush1.msra.mxu0 0.0
      %4668 = vmatprep.subr.mxu0 0.0
      %4669 = vmatpush1.msra.mxu0 0.0
      %4670 = vmatprep.subr.mxu0 0.0
      %4671 = vmatpush1.msra.mxu0 0.0
      %4672 = vmatprep.subr.mxu0 0.0
      %4673 = vmatpush1.msra.mxu0 0.0
      %4674 = vmatprep.subr.mxu0 0.0
      %4675 = vmatpush1.msra.mxu0 0.0
      %4676 = vmatprep.subr.mxu0 0.0
      %4677 = vmatpush1.msra.mxu0 0.0
      %4678 = vmatprep.subr.mxu0 0.0
      %4679 = vmatpush1.msra.mxu0 0.0
      %4680 = vmatprep.subr.mxu0 0.0
      %4681 = vmatpush1.msra.mxu0 0.0
      %4682 = vmatprep.subr.mxu0 0.0
      %4683 = vmatpush1.msra.mxu0 0.0
      %4684 = vmatprep.subr.mxu0 0.0
      %4685 = vmatpush1.msra.mxu0 0.0
      %4686 = vmatprep.subr.mxu0 0.0
      %4687 = vmatpush1.msra.mxu0 0.0
      %4688 = vmatprep.subr.mxu0 0.0
      %4689 = vmatpush1.msra.mxu0 0.0
      %4690 = vmatprep.subr.mxu0 0.0
      %4691 = vmatpush1.msra.mxu0 0.0
      %4692 = vmatprep.subr.mxu0 0.0
      %4693 = vmatpush1.msra.mxu0 0.0
      %4694 = vmatprep.subr.mxu0 0.0
      %4695 = vmatpush1.msra.mxu0 0.0
      %4696 = vmatprep.subr.mxu0 0.0
      %4697 = vmatpush1.msra.mxu0 0.0
      %4698 = vmatprep.subr.mxu0 0.0
      %4699 = vmatpush1.msra.mxu0 0.0
      %4700 = vmatprep.mubr.f32.mxu0 0.0
      %4701 = vmatmul.mubr.f32.gmra.mrb[0].mxu0 %v4628
      %v4702 = vpop.f32.mrb[0].mxu0
      %v4703 = vadd.f32 0.0, %v4702
      %v4704 = vpop.f32.mrb[0].mxu0
      %4705 = vmatprep.mubr.f32.mxu0 0.0
      %4706 = vmatmul.mubr.f32.gmra.mrb[0].mxu0 %v4631
      %v4707 = vpop.f32.mrb[0].mxu0
      %v4708 = vadd.f32 0.0, %v4707
      %v4709 = vpop.f32.mrb[0].mxu0
      %4710 = vdwg.mxu0
      %v4711 = vadd.f32 %v4599, %v4703
      %v4712 = vadd.f32 %v4600, %v4708
      %4713 = vrot.lane.b32.xlu0 %v3952, 120
      %v4714 = vpop.permute.xlu0 %4713
      %4715 = vrot.lane.b32.xlu0 %v3953, 120
      %v4716 = vpop.permute.xlu0 %4715
      %4717 = vrot.lane.b32.xlu0 %v3954, 120
      %v4718 = vpop.permute.xlu0 %4717
      %4719 = vrot.lane.b32.xlu0 %v3955, 120
      %v4720 = vpop.permute.xlu0 %4719
      %4721 = vrot.lane.b32.xlu0 %v3956, 120
      %v4722 = vpop.permute.xlu0 %4721
      %s4723 = scalar_lea.vmem %s2, 7
      %v4724 = vld [vmem:[%s4723] sm:$0x1]
      %v4726 = vlaneseq
      %v4727 = vshrl.u32 %v4726, 7
      %v4728 = vsub.s32 0, %v4727
      %v4729 = vrot.slane %v4724, %v4728
      %v4731 = vmul.f32 %v4714, %v4729
      %v4732 = vmul.f32 %v4716, %v4729
      %v4733 = vmul.f32 %v4718, %v4729
      %v4734 = vmul.f32 %v4720, %v4729
      %v4735 = vmul.f32 %v4722, %v4729
      %s4736 = scalar_lea.vmem %s18, 112
      %v4737 = vld [vmem:[%s4736] sm:$0xff]
      %v4738 = vld [vmem:[%s4736 + $0x8] sm:$0x7f]
      %v4740 = vsel %vm4007, %v4737, 0
      %v4743 = vsel %vm4007, %v4738, 0
      %v4746 = vsel %vm3836, %v4735, 0
      %4748 = vmatprep.subr.mxu0 0.0
      %4749 = vmatpush1.msra.mxu0 %v4731
      %4750 = vmatprep.subr.mxu0 0.0
      %4751 = vmatpush1.msra.mxu0 %v4732
      %4752 = vmatprep.subr.mxu0 0.0
      %4753 = vmatpush1.msra.mxu0 %v4733
      %4754 = vmatprep.subr.mxu0 0.0
      %4755 = vmatpush1.msra.mxu0 %v4734
      %4756 = vmatprep.subr.mxu0 0.0
      %4757 = vmatpush1.msra.mxu0 %v4746
      %4758 = vmatprep.subr.mxu0 0.0
      %4759 = vmatpush1.msra.mxu0 0.0
      %4760 = vmatprep.subr.mxu0 0.0
      %4761 = vmatpush1.msra.mxu0 0.0
      %4762 = vmatprep.subr.mxu0 0.0
      %4763 = vmatpush1.msra.mxu0 0.0
      %4764 = vmatprep.subr.mxu0 0.0
      %4765 = vmatpush1.msra.mxu0 0.0
      %4766 = vmatprep.subr.mxu0 0.0
      %4767 = vmatpush1.msra.mxu0 0.0
      %4768 = vmatprep.subr.mxu0 0.0
      %4769 = vmatpush1.msra.mxu0 0.0
      %4770 = vmatprep.subr.mxu0 0.0
      %4771 = vmatpush1.msra.mxu0 0.0
      %4772 = vmatprep.subr.mxu0 0.0
      %4773 = vmatpush1.msra.mxu0 0.0
      %4774 = vmatprep.subr.mxu0 0.0
      %4775 = vmatpush1.msra.mxu0 0.0
      %4776 = vmatprep.subr.mxu0 0.0
      %4777 = vmatpush1.msra.mxu0 0.0
      %4778 = vmatprep.subr.mxu0 0.0
      %4779 = vmatpush1.msra.mxu0 0.0
      %4780 = vmatprep.subr.mxu0 0.0
      %4781 = vmatpush1.msra.mxu0 0.0
      %4782 = vmatprep.subr.mxu0 0.0
      %4783 = vmatpush1.msra.mxu0 0.0
      %4784 = vmatprep.subr.mxu0 0.0
      %4785 = vmatpush1.msra.mxu0 0.0
      %4786 = vmatprep.subr.mxu0 0.0
      %4787 = vmatpush1.msra.mxu0 0.0
      %4788 = vmatprep.subr.mxu0 0.0
      %4789 = vmatpush1.msra.mxu0 0.0
      %4790 = vmatprep.subr.mxu0 0.0
      %4791 = vmatpush1.msra.mxu0 0.0
      %4792 = vmatprep.subr.mxu0 0.0
      %4793 = vmatpush1.msra.mxu0 0.0
      %4794 = vmatprep.subr.mxu0 0.0
      %4795 = vmatpush1.msra.mxu0 0.0
      %4796 = vmatprep.subr.mxu0 0.0
      %4797 = vmatpush1.msra.mxu0 0.0
      %4798 = vmatprep.subr.mxu0 0.0
      %4799 = vmatpush1.msra.mxu0 0.0
      %4800 = vmatprep.subr.mxu0 0.0
      %4801 = vmatpush1.msra.mxu0 0.0
      %4802 = vmatprep.subr.mxu0 0.0
      %4803 = vmatpush1.msra.mxu0 0.0
      %4804 = vmatprep.subr.mxu0 0.0
      %4805 = vmatpush1.msra.mxu0 0.0
      %4806 = vmatprep.subr.mxu0 0.0
      %4807 = vmatpush1.msra.mxu0 0.0
      %4808 = vmatprep.subr.mxu0 0.0
      %4809 = vmatpush1.msra.mxu0 0.0
      %4810 = vmatprep.subr.mxu0 0.0
      %4811 = vmatpush1.msra.mxu0 0.0
      %4812 = vmatprep.mubr.f32.mxu0 0.0
      %4813 = vmatmul.mubr.f32.gmra.mrb[0].mxu0 %v4740
      %v4814 = vpop.f32.mrb[0].mxu0
      %v4815 = vadd.f32 0.0, %v4814
      %v4816 = vpop.f32.mrb[0].mxu0
      %4817 = vmatprep.mubr.f32.mxu0 0.0
      %4818 = vmatmul.mubr.f32.gmra.mrb[0].mxu0 %v4743
      %v4819 = vpop.f32.mrb[0].mxu0
      %v4820 = vadd.f32 0.0, %v4819
      %v4821 = vpop.f32.mrb[0].mxu0
      %4822 = vdwg.mxu0
      %v4823 = vadd.f32 %v4711, %v4815
      %v4824 = vadd.f32 %v4712, %v4820
      %4825 = vrot.lane.b32.xlu0 %v3952, 119
      %v4826 = vpop.permute.xlu0 %4825
      %4827 = vrot.lane.b32.xlu0 %v3953, 119
      %v4828 = vpop.permute.xlu0 %4827
      %4829 = vrot.lane.b32.xlu0 %v3954, 119
      %v4830 = vpop.permute.xlu0 %4829
      %4831 = vrot.lane.b32.xlu0 %v3955, 119
      %v4832 = vpop.permute.xlu0 %4831
      %4833 = vrot.lane.b32.xlu0 %v3956, 119
      %v4834 = vpop.permute.xlu0 %4833
      %s4835 = scalar_lea.vmem %s2, 8
      %v4836 = vld [vmem:[%s4835] sm:$0x1]
      %v4838 = vlaneseq
      %v4839 = vshrl.u32 %v4838, 7
      %v4840 = vsub.s32 0, %v4839
      %v4841 = vrot.slane %v4836, %v4840
      %v4843 = vmul.f32 %v4826, %v4841
      %v4844 = vmul.f32 %v4828, %v4841
      %v4845 = vmul.f32 %v4830, %v4841
      %v4846 = vmul.f32 %v4832, %v4841
      %v4847 = vmul.f32 %v4834, %v4841
      %s4848 = scalar_lea.vmem %s18, 128
      %v4849 = vld [vmem:[%s4848] sm:$0xff]
      %v4850 = vld [vmem:[%s4848 + $0x8] sm:$0x7f]
      %v4852 = vsel %vm4007, %v4849, 0
      %v4855 = vsel %vm4007, %v4850, 0
      %v4858 = vsel %vm3836, %v4847, 0
      %4860 = vmatprep.subr.mxu0 0.0
      %4861 = vmatpush1.msra.mxu0 %v4843
      %4862 = vmatprep.subr.mxu0 0.0
      %4863 = vmatpush1.msra.mxu0 %v4844
      %4864 = vmatprep.subr.mxu0 0.0
      %4865 = vmatpush1.msra.mxu0 %v4845
      %4866 = vmatprep.subr.mxu0 0.0
      %4867 = vmatpush1.msra.mxu0 %v4846
      %4868 = vmatprep.subr.mxu0 0.0
      %4869 = vmatpush1.msra.mxu0 %v4858
      %4870 = vmatprep.subr.mxu0 0.0
      %4871 = vmatpush1.msra.mxu0 0.0
      %4872 = vmatprep.subr.mxu0 0.0
      %4873 = vmatpush1.msra.mxu0 0.0
      %4874 = vmatprep.subr.mxu0 0.0
      %4875 = vmatpush1.msra.mxu0 0.0
      %4876 = vmatprep.subr.mxu0 0.0
      %4877 = vmatpush1.msra.mxu0 0.0
      %4878 = vmatprep.subr.mxu0 0.0
      %4879 = vmatpush1.msra.mxu0 0.0
      %4880 = vmatprep.subr.mxu0 0.0
      %4881 = vmatpush1.msra.mxu0 0.0
      %4882 = vmatprep.subr.mxu0 0.0
      %4883 = vmatpush1.msra.mxu0 0.0
      %4884 = vmatprep.subr.mxu0 0.0
      %4885 = vmatpush1.msra.mxu0 0.0
      %4886 = vmatprep.subr.mxu0 0.0
      %4887 = vmatpush1.msra.mxu0 0.0
      %4888 = vmatprep.subr.mxu0 0.0
      %4889 = vmatpush1.msra.mxu0 0.0
      %4890 = vmatprep.subr.mxu0 0.0
      %4891 = vmatpush1.msra.mxu0 0.0
      %4892 = vmatprep.subr.mxu0 0.0
      %4893 = vmatpush1.msra.mxu0 0.0
      %4894 = vmatprep.subr.mxu0 0.0
      %4895 = vmatpush1.msra.mxu0 0.0
      %4896 = vmatprep.subr.mxu0 0.0
      %4897 = vmatpush1.msra.mxu0 0.0
      %4898 = vmatprep.subr.mxu0 0.0
      %4899 = vmatpush1.msra.mxu0 0.0
      %4900 = vmatprep.subr.mxu0 0.0
      %4901 = vmatpush1.msra.mxu0 0.0
      %4902 = vmatprep.subr.mxu0 0.0
      %4903 = vmatpush1.msra.mxu0 0.0
      %4904 = vmatprep.subr.mxu0 0.0
      %4905 = vmatpush1.msra.mxu0 0.0
      %4906 = vmatprep.subr.mxu0 0.0
      %4907 = vmatpush1.msra.mxu0 0.0
      %4908 = vmatprep.subr.mxu0 0.0
      %4909 = vmatpush1.msra.mxu0 0.0
      %4910 = vmatprep.subr.mxu0 0.0
      %4911 = vmatpush1.msra.mxu0 0.0
      %4912 = vmatprep.subr.mxu0 0.0
      %4913 = vmatpush1.msra.mxu0 0.0
      %4914 = vmatprep.subr.mxu0 0.0
      %4915 = vmatpush1.msra.mxu0 0.0
      %4916 = vmatprep.subr.mxu0 0.0
      %4917 = vmatpush1.msra.mxu0 0.0
      %4918 = vmatprep.subr.mxu0 0.0
      %4919 = vmatpush1.msra.mxu0 0.0
      %4920 = vmatprep.subr.mxu0 0.0
      %4921 = vmatpush1.msra.mxu0 0.0
      %4922 = vmatprep.subr.mxu0 0.0
      %4923 = vmatpush1.msra.mxu0 0.0
      %4924 = vmatprep.mubr.f32.mxu0 0.0
      %4925 = vmatmul.mubr.f32.gmra.mrb[0].mxu0 %v4852
      %v4926 = vpop.f32.mrb[0].mxu0
      %v4927 = vadd.f32 0.0, %v4926
      %v4928 = vpop.f32.mrb[0].mxu0
      %4929 = vmatprep.mubr.f32.mxu0 0.0
      %4930 = vmatmul.mubr.f32.gmra.mrb[0].mxu0 %v4855
      %v4931 = vpop.f32.mrb[0].mxu0
      %v4932 = vadd.f32 0.0, %v4931
      %v4933 = vpop.f32.mrb[0].mxu0
      %4934 = vdwg.mxu0
      %v4935 = vadd.f32 %v4823, %v4927
      %v4936 = vadd.f32 %v4824, %v4932
      %v4937 = vld [vmem:[%s19] sm:$0xff]
      %v4938 = vld [vmem:[%s19 + $0x8] sm:$0x7f]
      %4940 = vset.pattern.permute.xlu0 0
      %4941 = vperm.xlu0 %4940, %v4937
      %v4942 = vpop.permute.xlu0 %4941
      %4945 = vset.pattern.permute.xlu0 0
      %4946 = vperm.xlu0 %4945, %v4938
      %v4947 = vpop.permute.xlu0 %4946
      %v4949 = vadd.f32 %v4935, %v4942
      %v4950 = vadd.f32 %v4936, %v4947
      %v4951 = vmax.f32 %v4949, 0.0
      %v4952 = vmax.f32 %v4950, 0.0
      %4953 = vrot.lane.b32.xlu0 %v4951, 127
      %v4954 = vpop.permute.xlu0 %4953
      %4955 = vrot.lane.b32.xlu0 %v4952, 127
      %v4956 = vpop.permute.xlu0 %4955
      %v4957 = vmax.f32 %v4951, %v4954
      %v4958 = vmax.f32 %v4952, %v4956
      %4959 = vrot.lane.b32.xlu0 %v4957, 120
      %v4960 = vpop.permute.xlu0 %4959
      %4961 = vrot.lane.b32.xlu0 %v4958, 120
      %v4962 = vpop.permute.xlu0 %4961
      %v4963 = vmax.f32 %v4957, %v4960
      %v4964 = vmax.f32 %v4958, %v4962
      %v4965 = vld [vmem:[%s5] sm:$0xff]
      %v4966 = vld [vmem:[%s5 + $0x8] sm:$0xff]
      %v4967 = vld [vmem:[%s5 + $0x10] sm:$0xff]
      %v4968 = vld [vmem:[%s5 + $0x18] sm:$0xff]
      %v4969 = vld [vmem:[%s5 + $0x20] sm:$0xff]
      %v4970 = vld [vmem:[%s5 + $0x28] sm:$0xff]
      %v4971 = vld [vmem:[%s5 + $0x30] sm:$0xff]
      %v4972 = vld [vmem:[%s5 + $0x38] sm:$0xff]
      %v4973 = vld [vmem:[%s5 + $0x40] sm:$0xff]
      %v4974 = vld [vmem:[%s5 + $0x48] sm:$0xff]
      %v4975 = vld [vmem:[%s5 + $0x50] sm:$0xff]
      %v4976 = vld [vmem:[%s5 + $0x58] sm:$0xff]
      %v4977 = vld [vmem:[%s5 + $0x60] sm:$0xff]
      %v4978 = vld [vmem:[%s5 + $0x68] sm:$0xff]
      %v4979 = vld [vmem:[%s5 + $0x70] sm:$0xff]
      %v4980 = vld [vmem:[%s5 + $0x78] sm:$0xff]
      %4981 = vmatprep.subr.mxu0 0.0
      %4982 = vmatpush1.msra.mxu0 %v4965
      %4983 = vmatprep.subr.mxu0 0.0
      %4984 = vmatpush1.msra.mxu0 %v4966
      %4985 = vmatprep.subr.mxu0 0.0
      %4986 = vmatpush1.msra.mxu0 %v4967
      %4987 = vmatprep.subr.mxu0 0.0
      %4988 = vmatpush1.msra.mxu0 %v4968
      %4989 = vmatprep.subr.mxu0 0.0
      %4990 = vmatpush1.msra.mxu0 %v4969
      %4991 = vmatprep.subr.mxu0 0.0
      %4992 = vmatpush1.msra.mxu0 %v4970
      %4993 = vmatprep.subr.mxu0 0.0
      %4994 = vmatpush1.msra.mxu0 %v4971
      %4995 = vmatprep.subr.mxu0 0.0
      %4996 = vmatpush1.msra.mxu0 %v4972
      %4997 = vmatprep.subr.mxu0 0.0
      %4998 = vmatpush1.msra.mxu0 %v4973
      %4999 = vmatprep.subr.mxu0 0.0
      %5000 = vmatpush1.msra.mxu0 %v4974
      %5001 = vmatprep.subr.mxu0 0.0
      %5002 = vmatpush1.msra.mxu0 %v4975
      %5003 = vmatprep.subr.mxu0 0.0
      %5004 = vmatpush1.msra.mxu0 %v4976
      %5005 = vmatprep.subr.mxu0 0.0
      %5006 = vmatpush1.msra.mxu0 %v4977
      %5007 = vmatprep.subr.mxu0 0.0
      %5008 = vmatpush1.msra.mxu0 %v4978
      %5009 = vmatprep.subr.mxu0 0.0
      %5010 = vmatpush1.msra.mxu0 %v4979
      %5011 = vmatprep.subr.mxu0 0.0
      %5012 = vmatpush1.msra.mxu0 %v4980
      %5013 = vmatprep.subr.mxu0 0.0
      %5014 = vmatpush1.msra.mxu0 0.0
      %5015 = vmatprep.subr.mxu0 0.0
      %5016 = vmatpush1.msra.mxu0 0.0
      %5017 = vmatprep.subr.mxu0 0.0
      %5018 = vmatpush1.msra.mxu0 0.0
      %5019 = vmatprep.subr.mxu0 0.0
      %5020 = vmatpush1.msra.mxu0 0.0
      %5021 = vmatprep.subr.mxu0 0.0
      %5022 = vmatpush1.msra.mxu0 0.0
      %5023 = vmatprep.subr.mxu0 0.0
      %5024 = vmatpush1.msra.mxu0 0.0
      %5025 = vmatprep.subr.mxu0 0.0
      %5026 = vmatpush1.msra.mxu0 0.0
      %5027 = vmatprep.subr.mxu0 0.0
      %5028 = vmatpush1.msra.mxu0 0.0
      %5029 = vmatprep.subr.mxu0 0.0
      %5030 = vmatpush1.msra.mxu0 0.0
      %5031 = vmatprep.subr.mxu0 0.0
      %5032 = vmatpush1.msra.mxu0 0.0
      %5033 = vmatprep.subr.mxu0 0.0
      %5034 = vmatpush1.msra.mxu0 0.0
      %5035 = vmatprep.subr.mxu0 0.0
      %5036 = vmatpush1.msra.mxu0 0.0
      %5037 = vmatprep.subr.mxu0 0.0
      %5038 = vmatpush1.msra.mxu0 0.0
      %5039 = vmatprep.subr.mxu0 0.0
      %5040 = vmatpush1.msra.mxu0 0.0
      %5041 = vmatprep.subr.mxu0 0.0
      %5042 = vmatpush1.msra.mxu0 0.0
      %5043 = vmatprep.subr.mxu0 0.0
      %5044 = vmatpush1.msra.mxu0 0.0
      %5045 = vmatprep.mubr.f32.mxu0 0.0
      %5046 = vmatmul.mubr.f32.gmra.mrb[0].mxu0 %v4963
      %v5047 = vpop.f32.mrb[0].mxu0
      %v5048 = vadd.f32 0.0, %v5047
      %v5049 = vpop.f32.mrb[0].mxu0
      %5050 = vmatprep.mubr.f32.mxu0 0.0
      %5051 = vmatmul.mubr.f32.gmra.mrb[0].mxu0 %v4964
      %v5052 = vpop.f32.mrb[0].mxu0
      %v5053 = vadd.f32 0.0, %v5052
      %v5054 = vpop.f32.mrb[0].mxu0
      %5055 = vdwg.mxu0
      %vm5056 = vcmask 261120
      %v5057 = vsel %vm5056, %v5048, 0.0
      %5058 = vadd.xlane.f32.xlu0 %v5057
      %v5059 = vpop.xlane.xlu0 %5058
      %vm5060 = vcmask 260096
      %v5061 = vsel %vm5060, %v5053, 0.0
      %5062 = vadd.xlane.f32.xlu0 %v5061
      %v5063 = vpop.xlane.xlu0 %5062
      %v5064 = vrcp.pop 32.0
      %v5065 = vmul.f32 %v5059, %v5064
      %v5066 = vmul.f32 %v5063, %v5064
      %v5067 = vsub.f32 %v5048, %v5065
      %v5068 = vsub.f32 %v5053, %v5066
      %v5069 = vmul.f32 %v5067, %v5067
      %v5070 = vmul.f32 %v5068, %v5068
      %v5071 = vsel %vm5056, %v5069, 0.0
      %5072 = vadd.xlane.f32.xlu0 %v5071
      %v5073 = vpop.xlane.xlu0 %5072
      %v5074 = vsel %vm5060, %v5070, 0.0
      %5075 = vadd.xlane.f32.xlu0 %v5074
      %v5076 = vpop.xlane.xlu0 %5075
      %v5077 = vmul.f32 %v5073, %v5064
      %v5078 = vmul.f32 %v5076, %v5064
      %v5079 = vadd.f32 %v5077, 1e-05
      %v5080 = vadd.f32 %v5078, 1e-05
      %v5081 = vrsqrt.pop %v5079
      %v5082 = vrsqrt.pop %v5080
      %v5083 = vmul.f32 %v5067, %v5081
      %v5084 = vmul.f32 %v5068, %v5082
      %v5085 = vld [vmem:[%s12] sm:$0xff]
      %v5086 = vld [vmem:[%s12 + $0x8] sm:$0x7f]
      %5088 = vset.pattern.permute.xlu0 0
      %5089 = vperm.xlu0 %5088, %v5085
      %v5090 = vpop.permute.xlu0 %5089
      %5093 = vset.pattern.permute.xlu0 0
      %5094 = vperm.xlu0 %5093, %v5086
      %v5095 = vpop.permute.xlu0 %5094
      %v5097 = vmul.f32 %v5083, %v5090
      %v5098 = vmul.f32 %v5084, %v5095
      %v5099 = vld [vmem:[%s13] sm:$0xff]
      %v5100 = vld [vmem:[%s13 + $0x8] sm:$0x7f]
      %5102 = vset.pattern.permute.xlu0 0
      %5103 = vperm.xlu0 %5102, %v5099
      %v5104 = vpop.permute.xlu0 %5103
      %5107 = vset.pattern.permute.xlu0 0
      %5108 = vperm.xlu0 %5107, %v5100
      %v5109 = vpop.permute.xlu0 %5108
      %v5111 = vadd.f32 %v5097, %v5104
      %v5112 = vadd.f32 %v5098, %v5109
      %v5113 = vld [vmem:[%s20] sm:$0x3]
      %vm5114 = vcmask 121856
      %v5116 = vsel %vm5114, %v5113, 0
      %vm5118 = vcmask 1046528
      %v5120 = vsel %vm5118, %v5112, 0
      %5122 = vmatprep.subr.mxu0 0.0
      %5123 = vmatpush1.msra.mxu0 %v5111
      %5124 = vmatprep.subr.mxu0 0.0
      %5125 = vmatpush1.msra.mxu0 %v5120
      %5126 = vmatprep.subr.mxu0 0.0
      %5127 = vmatpush1.msra.mxu0 0.0
      %5128 = vmatprep.subr.mxu0 0.0
      %5129 = vmatpush1.msra.mxu0 0.0
      %5130 = vmatprep.subr.mxu0 0.0
      %5131 = vmatpush1.msra.mxu0 0.0
      %5132 = vmatprep.subr.mxu0 0.0
      %5133 = vmatpush1.msra.mxu0 0.0
      %5134 = vmatprep.subr.mxu0 0.0
      %5135 = vmatpush1.msra.mxu0 0.0
      %5136 = vmatprep.subr.mxu0 0.0
      %5137 = vmatpush1.msra.mxu0 0.0
      %5138 = vmatprep.subr.mxu0 0.0
      %5139 = vmatpush1.msra.mxu0 0.0
      %5140 = vmatprep.subr.mxu0 0.0
      %5141 = vmatpush1.msra.mxu0 0.0
      %5142 = vmatprep.subr.mxu0 0.0
      %5143 = vmatpush1.msra.mxu0 0.0
      %5144 = vmatprep.subr.mxu0 0.0
      %5145 = vmatpush1.msra.mxu0 0.0
      %5146 = vmatprep.subr.mxu0 0.0
      %5147 = vmatpush1.msra.mxu0 0.0
      %5148 = vmatprep.subr.mxu0 0.0
      %5149 = vmatpush1.msra.mxu0 0.0
      %5150 = vmatprep.subr.mxu0 0.0
      %5151 = vmatpush1.msra.mxu0 0.0
      %5152 = vmatprep.subr.mxu0 0.0
      %5153 = vmatpush1.msra.mxu0 0.0
      %5154 = vmatprep.subr.mxu0 0.0
      %5155 = vmatpush1.msra.mxu0 0.0
      %5156 = vmatprep.subr.mxu0 0.0
      %5157 = vmatpush1.msra.mxu0 0.0
      %5158 = vmatprep.subr.mxu0 0.0
      %5159 = vmatpush1.msra.mxu0 0.0
      %5160 = vmatprep.subr.mxu0 0.0
      %5161 = vmatpush1.msra.mxu0 0.0
      %5162 = vmatprep.subr.mxu0 0.0
      %5163 = vmatpush1.msra.mxu0 0.0
      %5164 = vmatprep.subr.mxu0 0.0
      %5165 = vmatpush1.msra.mxu0 0.0
      %5166 = vmatprep.subr.mxu0 0.0
      %5167 = vmatpush1.msra.mxu0 0.0
      %5168 = vmatprep.subr.mxu0 0.0
      %5169 = vmatpush1.msra.mxu0 0.0
      %5170 = vmatprep.subr.mxu0 0.0
      %5171 = vmatpush1.msra.mxu0 0.0
      %5172 = vmatprep.subr.mxu0 0.0
      %5173 = vmatpush1.msra.mxu0 0.0
      %5174 = vmatprep.subr.mxu0 0.0
      %5175 = vmatpush1.msra.mxu0 0.0
      %5176 = vmatprep.subr.mxu0 0.0
      %5177 = vmatpush1.msra.mxu0 0.0
      %5178 = vmatprep.subr.mxu0 0.0
      %5179 = vmatpush1.msra.mxu0 0.0
      %5180 = vmatprep.subr.mxu0 0.0
      %5181 = vmatpush1.msra.mxu0 0.0
      %5182 = vmatprep.subr.mxu0 0.0
      %5183 = vmatpush1.msra.mxu0 0.0
      %5184 = vmatprep.subr.mxu0 0.0
      %5185 = vmatpush1.msra.mxu0 0.0
      %5186 = vmatprep.mubr.f32.mxu0 0.0
      %5187 = vmatmul.mubr.f32.gmra.mrb[0].mxu0 %v5116
      %v5188 = vpop.f32.mrb[0].mxu0
      %v5189 = vadd.f32 0.0, %v5188
      %v5190 = vpop.f32.mrb[0].mxu0
      %5191 = vdwg.mxu0
      %v5192 = vld [vmem:[%s3] sm:$0xff]
      %v5193 = vld [vmem:[%s3 + $0x8] sm:$0xff]
      %v5194 = vld [vmem:[%s3 + $0x10] sm:$0xff]
      %v5195 = vld [vmem:[%s3 + $0x18] sm:$0xff]
      %s5196 = scalar_lea.vmem %s20, 2
      %v5197 = vld [vmem:[%s5196] sm:$0x3]
      %v5199 = vsel %vm5114, %v5197, 0
      %5201 = vmatprep.subr.mxu0 0.0
      %5202 = vmatpush1.msra.mxu0 %v5111
      %5203 = vmatprep.subr.mxu0 0.0
      %5204 = vmatpush1.msra.mxu0 %v5120
      %5205 = vmatprep.subr.mxu0 0.0
      %5206 = vmatpush1.msra.mxu0 0.0
      %5207 = vmatprep.subr.mxu0 0.0
      %5208 = vmatpush1.msra.mxu0 0.0
      %5209 = vmatprep.subr.mxu0 0.0
      %5210 = vmatpush1.msra.mxu0 0.0
      %5211 = vmatprep.subr.mxu0 0.0
      %5212 = vmatpush1.msra.mxu0 0.0
      %5213 = vmatprep.subr.mxu0 0.0
      %5214 = vmatpush1.msra.mxu0 0.0
      %5215 = vmatprep.subr.mxu0 0.0
      %5216 = vmatpush1.msra.mxu0 0.0
      %5217 = vmatprep.subr.mxu0 0.0
      %5218 = vmatpush1.msra.mxu0 0.0
      %5219 = vmatprep.subr.mxu0 0.0
      %5220 = vmatpush1.msra.mxu0 0.0
      %5221 = vmatprep.subr.mxu0 0.0
      %5222 = vmatpush1.msra.mxu0 0.0
      %5223 = vmatprep.subr.mxu0 0.0
      %5224 = vmatpush1.msra.mxu0 0.0
      %5225 = vmatprep.subr.mxu0 0.0
      %5226 = vmatpush1.msra.mxu0 0.0
      %5227 = vmatprep.subr.mxu0 0.0
      %5228 = vmatpush1.msra.mxu0 0.0
      %5229 = vmatprep.subr.mxu0 0.0
      %5230 = vmatpush1.msra.mxu0 0.0
      %5231 = vmatprep.subr.mxu0 0.0
      %5232 = vmatpush1.msra.mxu0 0.0
      %5233 = vmatprep.subr.mxu0 0.0
      %5234 = vmatpush1.msra.mxu0 0.0
      %5235 = vmatprep.subr.mxu0 0.0
      %5236 = vmatpush1.msra.mxu0 0.0
      %5237 = vmatprep.subr.mxu0 0.0
      %5238 = vmatpush1.msra.mxu0 0.0
      %5239 = vmatprep.subr.mxu0 0.0
      %5240 = vmatpush1.msra.mxu0 0.0
      %5241 = vmatprep.subr.mxu0 0.0
      %5242 = vmatpush1.msra.mxu0 0.0
      %5243 = vmatprep.subr.mxu0 0.0
      %5244 = vmatpush1.msra.mxu0 0.0
      %5245 = vmatprep.subr.mxu0 0.0
      %5246 = vmatpush1.msra.mxu0 0.0
      %5247 = vmatprep.subr.mxu0 0.0
      %5248 = vmatpush1.msra.mxu0 0.0
      %5249 = vmatprep.subr.mxu0 0.0
      %5250 = vmatpush1.msra.mxu0 0.0
      %5251 = vmatprep.subr.mxu0 0.0
      %5252 = vmatpush1.msra.mxu0 0.0
      %5253 = vmatprep.subr.mxu0 0.0
      %5254 = vmatpush1.msra.mxu0 0.0
      %5255 = vmatprep.subr.mxu0 0.0
      %5256 = vmatpush1.msra.mxu0 0.0
      %5257 = vmatprep.subr.mxu0 0.0
      %5258 = vmatpush1.msra.mxu0 0.0
      %5259 = vmatprep.subr.mxu0 0.0
      %5260 = vmatpush1.msra.mxu0 0.0
      %5261 = vmatprep.subr.mxu0 0.0
      %5262 = vmatpush1.msra.mxu0 0.0
      %5263 = vmatprep.subr.mxu0 0.0
      %5264 = vmatpush1.msra.mxu0 0.0
      %5265 = vmatprep.mubr.f32.mxu0 0.0
      %5266 = vmatmul.mubr.f32.gmra.mrb[0].mxu0 %v5199
      %v5267 = vpop.f32.mrb[0].mxu0
      %v5268 = vadd.f32 0.0, %v5267
      %v5269 = vpop.f32.mrb[0].mxu0
      %5270 = vdwg.mxu0
      %s5271 = scalar_lea.vmem %s3, 32
      %v5272 = vld [vmem:[%s5271] sm:$0xff]
      %v5273 = vld [vmem:[%s5271 + $0x8] sm:$0xff]
      %v5274 = vld [vmem:[%s5271 + $0x10] sm:$0xff]
      %v5275 = vld [vmem:[%s5271 + $0x18] sm:$0xff]
      %v5277 = vsel %vm5056, %v5268, 0
      %5279 = vmatprep.subr.mxu0 0.0
      %5280 = vmatpush1.msra.mxu0 %v5272
      %5281 = vmatprep.subr.mxu0 0.0
      %5282 = vmatpush1.msra.mxu0 %v5273
      %5283 = vmatprep.subr.mxu0 0.0
      %5284 = vmatpush1.msra.mxu0 %v5274
      %5285 = vmatprep.subr.mxu0 0.0
      %5286 = vmatpush1.msra.mxu0 %v5275
      %5287 = vmatprep.subr.mxu0 0.0
      %5288 = vmatpush1.msra.mxu0 0.0
      %5289 = vmatprep.subr.mxu0 0.0
      %5290 = vmatpush1.msra.mxu0 0.0
      %5291 = vmatprep.subr.mxu0 0.0
      %5292 = vmatpush1.msra.mxu0 0.0
      %5293 = vmatprep.subr.mxu0 0.0
      %5294 = vmatpush1.msra.mxu0 0.0
      %5295 = vmatprep.subr.mxu0 0.0
      %5296 = vmatpush1.msra.mxu0 0.0
      %5297 = vmatprep.subr.mxu0 0.0
      %5298 = vmatpush1.msra.mxu0 0.0
      %5299 = vmatprep.subr.mxu0 0.0
      %5300 = vmatpush1.msra.mxu0 0.0
      %5301 = vmatprep.subr.mxu0 0.0
      %5302 = vmatpush1.msra.mxu0 0.0
      %5303 = vmatprep.subr.mxu0 0.0
      %5304 = vmatpush1.msra.mxu0 0.0
      %5305 = vmatprep.subr.mxu0 0.0
      %5306 = vmatpush1.msra.mxu0 0.0
      %5307 = vmatprep.subr.mxu0 0.0
      %5308 = vmatpush1.msra.mxu0 0.0
      %5309 = vmatprep.subr.mxu0 0.0
      %5310 = vmatpush1.msra.mxu0 0.0
      %5311 = vmatprep.subr.mxu0 0.0
      %5312 = vmatpush1.msra.mxu0 0.0
      %5313 = vmatprep.subr.mxu0 0.0
      %5314 = vmatpush1.msra.mxu0 0.0
      %5315 = vmatprep.subr.mxu0 0.0
      %5316 = vmatpush1.msra.mxu0 0.0
      %5317 = vmatprep.subr.mxu0 0.0
      %5318 = vmatpush1.msra.mxu0 0.0
      %5319 = vmatprep.subr.mxu0 0.0
      %5320 = vmatpush1.msra.mxu0 0.0
      %5321 = vmatprep.subr.mxu0 0.0
      %5322 = vmatpush1.msra.mxu0 0.0
      %5323 = vmatprep.subr.mxu0 0.0
      %5324 = vmatpush1.msra.mxu0 0.0
      %5325 = vmatprep.subr.mxu0 0.0
      %5326 = vmatpush1.msra.mxu0 0.0
      %5327 = vmatprep.subr.mxu0 0.0
      %5328 = vmatpush1.msra.mxu0 0.0
      %5329 = vmatprep.subr.mxu0 0.0
      %5330 = vmatpush1.msra.mxu0 0.0
      %5331 = vmatprep.subr.mxu0 0.0
      %5332 = vmatpush1.msra.mxu0 0.0
      %5333 = vmatprep.subr.mxu0 0.0
      %5334 = vmatpush1.msra.mxu0 0.0
      %5335 = vmatprep.subr.mxu0 0.0
      %5336 = vmatpush1.msra.mxu0 0.0
      %5337 = vmatprep.subr.mxu0 0.0
      %5338 = vmatpush1.msra.mxu0 0.0
      %5339 = vmatprep.subr.mxu0 0.0
      %5340 = vmatpush1.msra.mxu0 0.0
      %5341 = vmatprep.subr.mxu0 0.0
      %5342 = vmatpush1.msra.mxu0 0.0
      %5343 = vmatprep.mubr.f32.mxu0 0.0
      %5344 = vmatmul.mubr.f32.gmra.mrb[0].mxu0 %v5277
      %v5345 = vpop.f32.mrb[0].mxu0
      %v5346 = vadd.f32 0.0, %v5345
      %v5347 = vpop.f32.mrb[0].mxu0
      %5348 = vdwg.mxu0
      %v5350 = vsel %vm5056, %v5189, 0
      %5352 = vmatprep.subr.mxu0 0.0
      %5353 = vmatpush1.msra.mxu0 %v5192
      %5354 = vmatprep.subr.mxu0 0.0
      %5355 = vmatpush1.msra.mxu0 %v5193
      %5356 = vmatprep.subr.mxu0 0.0
      %5357 = vmatpush1.msra.mxu0 %v5194
      %5358 = vmatprep.subr.mxu0 0.0
      %5359 = vmatpush1.msra.mxu0 %v5195
      %5360 = vmatprep.subr.mxu0 0.0
      %5361 = vmatpush1.msra.mxu0 0.0
      %5362 = vmatprep.subr.mxu0 0.0
      %5363 = vmatpush1.msra.mxu0 0.0
      %5364 = vmatprep.subr.mxu0 0.0
      %5365 = vmatpush1.msra.mxu0 0.0
      %5366 = vmatprep.subr.mxu0 0.0
      %5367 = vmatpush1.msra.mxu0 0.0
      %5368 = vmatprep.subr.mxu0 0.0
      %5369 = vmatpush1.msra.mxu0 0.0
      %5370 = vmatprep.subr.mxu0 0.0
      %5371 = vmatpush1.msra.mxu0 0.0
      %5372 = vmatprep.subr.mxu0 0.0
      %5373 = vmatpush1.msra.mxu0 0.0
      %5374 = vmatprep.subr.mxu0 0.0
      %5375 = vmatpush1.msra.mxu0 0.0
      %5376 = vmatprep.subr.mxu0 0.0
      %5377 = vmatpush1.msra.mxu0 0.0
      %5378 = vmatprep.subr.mxu0 0.0
      %5379 = vmatpush1.msra.mxu0 0.0
      %5380 = vmatprep.subr.mxu0 0.0
      %5381 = vmatpush1.msra.mxu0 0.0
      %5382 = vmatprep.subr.mxu0 0.0
      %5383 = vmatpush1.msra.mxu0 0.0
      %5384 = vmatprep.subr.mxu0 0.0
      %5385 = vmatpush1.msra.mxu0 0.0
      %5386 = vmatprep.subr.mxu0 0.0
      %5387 = vmatpush1.msra.mxu0 0.0
      %5388 = vmatprep.subr.mxu0 0.0
      %5389 = vmatpush1.msra.mxu0 0.0
      %5390 = vmatprep.subr.mxu0 0.0
      %5391 = vmatpush1.msra.mxu0 0.0
      %5392 = vmatprep.subr.mxu0 0.0
      %5393 = vmatpush1.msra.mxu0 0.0
      %5394 = vmatprep.subr.mxu0 0.0
      %5395 = vmatpush1.msra.mxu0 0.0
      %5396 = vmatprep.subr.mxu0 0.0
      %5397 = vmatpush1.msra.mxu0 0.0
      %5398 = vmatprep.subr.mxu0 0.0
      %5399 = vmatpush1.msra.mxu0 0.0
      %5400 = vmatprep.subr.mxu0 0.0
      %5401 = vmatpush1.msra.mxu0 0.0
      %5402 = vmatprep.subr.mxu0 0.0
      %5403 = vmatpush1.msra.mxu0 0.0
      %5404 = vmatprep.subr.mxu0 0.0
      %5405 = vmatpush1.msra.mxu0 0.0
      %5406 = vmatprep.subr.mxu0 0.0
      %5407 = vmatpush1.msra.mxu0 0.0
      %5408 = vmatprep.subr.mxu0 0.0
      %5409 = vmatpush1.msra.mxu0 0.0
      %5410 = vmatprep.subr.mxu0 0.0
      %5411 = vmatpush1.msra.mxu0 0.0
      %5412 = vmatprep.subr.mxu0 0.0
      %5413 = vmatpush1.msra.mxu0 0.0
      %5414 = vmatprep.subr.mxu0 0.0
      %5415 = vmatpush1.msra.mxu0 0.0
      %5416 = vmatprep.mubr.f32.mxu0 0.0
      %5417 = vmatmul.mubr.f32.gmra.mrb[0].mxu0 %v5350
      %v5418 = vpop.f32.mrb[0].mxu0
      %v5419 = vadd.f32 %v5346, %v5418
      %v5420 = vpop.f32.mrb[0].mxu0
      %5421 = vdwg.mxu0
      %s5422 = scalar_lea.vmem %s20, 4
      %v5423 = vld [vmem:[%s5422] sm:$0x3]
      %v5425 = vsel %vm5114, %v5423, 0
      %5427 = vmatprep.subr.mxu0 0.0
      %5428 = vmatpush1.msra.mxu0 %v5111
      %5429 = vmatprep.subr.mxu0 0.0
      %5430 = vmatpush1.msra.mxu0 %v5120
      %5431 = vmatprep.subr.mxu0 0.0
      %5432 = vmatpush1.msra.mxu0 0.0
      %5433 = vmatprep.subr.mxu0 0.0
      %5434 = vmatpush1.msra.mxu0 0.0
      %5435 = vmatprep.subr.mxu0 0.0
      %5436 = vmatpush1.msra.mxu0 0.0
      %5437 = vmatprep.subr.mxu0 0.0
      %5438 = vmatpush1.msra.mxu0 0.0
      %5439 = vmatprep.subr.mxu0 0.0
      %5440 = vmatpush1.msra.mxu0 0.0
      %5441 = vmatprep.subr.mxu0 0.0
      %5442 = vmatpush1.msra.mxu0 0.0
      %5443 = vmatprep.subr.mxu0 0.0
      %5444 = vmatpush1.msra.mxu0 0.0
      %5445 = vmatprep.subr.mxu0 0.0
      %5446 = vmatpush1.msra.mxu0 0.0
      %5447 = vmatprep.subr.mxu0 0.0
      %5448 = vmatpush1.msra.mxu0 0.0
      %5449 = vmatprep.subr.mxu0 0.0
      %5450 = vmatpush1.msra.mxu0 0.0
      %5451 = vmatprep.subr.mxu0 0.0
      %5452 = vmatpush1.msra.mxu0 0.0
      %5453 = vmatprep.subr.mxu0 0.0
      %5454 = vmatpush1.msra.mxu0 0.0
      %5455 = vmatprep.subr.mxu0 0.0
      %5456 = vmatpush1.msra.mxu0 0.0
      %5457 = vmatprep.subr.mxu0 0.0
      %5458 = vmatpush1.msra.mxu0 0.0
      %5459 = vmatprep.subr.mxu0 0.0
      %5460 = vmatpush1.msra.mxu0 0.0
      %5461 = vmatprep.subr.mxu0 0.0
      %5462 = vmatpush1.msra.mxu0 0.0
      %5463 = vmatprep.subr.mxu0 0.0
      %5464 = vmatpush1.msra.mxu0 0.0
      %5465 = vmatprep.subr.mxu0 0.0
      %5466 = vmatpush1.msra.mxu0 0.0
      %5467 = vmatprep.subr.mxu0 0.0
      %5468 = vmatpush1.msra.mxu0 0.0
      %5469 = vmatprep.subr.mxu0 0.0
      %5470 = vmatpush1.msra.mxu0 0.0
      %5471 = vmatprep.subr.mxu0 0.0
      %5472 = vmatpush1.msra.mxu0 0.0
      %5473 = vmatprep.subr.mxu0 0.0
      %5474 = vmatpush1.msra.mxu0 0.0
      %5475 = vmatprep.subr.mxu0 0.0
      %5476 = vmatpush1.msra.mxu0 0.0
      %5477 = vmatprep.subr.mxu0 0.0
      %5478 = vmatpush1.msra.mxu0 0.0
      %5479 = vmatprep.subr.mxu0 0.0
      %5480 = vmatpush1.msra.mxu0 0.0
      %5481 = vmatprep.subr.mxu0 0.0
      %5482 = vmatpush1.msra.mxu0 0.0
      %5483 = vmatprep.subr.mxu0 0.0
      %5484 = vmatpush1.msra.mxu0 0.0
      %5485 = vmatprep.subr.mxu0 0.0
      %5486 = vmatpush1.msra.mxu0 0.0
      %5487 = vmatprep.subr.mxu0 0.0
      %5488 = vmatpush1.msra.mxu0 0.0
      %5489 = vmatprep.subr.mxu0 0.0
      %5490 = vmatpush1.msra.mxu0 0.0
      %5491 = vmatprep.mubr.f32.mxu0 0.0
      %5492 = vmatmul.mubr.f32.gmra.mrb[0].mxu0 %v5425
      %v5493 = vpop.f32.mrb[0].mxu0
      %v5494 = vadd.f32 0.0, %v5493
      %v5495 = vpop.f32.mrb[0].mxu0
      %5496 = vdwg.mxu0
      %s5497 = scalar_lea.vmem %s3, 64
      %v5498 = vld [vmem:[%s5497] sm:$0xff]
      %v5499 = vld [vmem:[%s5497 + $0x8] sm:$0xff]
      %v5500 = vld [vmem:[%s5497 + $0x10] sm:$0xff]
      %v5501 = vld [vmem:[%s5497 + $0x18] sm:$0xff]
      %v5503 = vsel %vm5056, %v5494, 0
      %5505 = vmatprep.subr.mxu0 0.0
      %5506 = vmatpush1.msra.mxu0 %v5498
      %5507 = vmatprep.subr.mxu0 0.0
      %5508 = vmatpush1.msra.mxu0 %v5499
      %5509 = vmatprep.subr.mxu0 0.0
      %5510 = vmatpush1.msra.mxu0 %v5500
      %5511 = vmatprep.subr.mxu0 0.0
      %5512 = vmatpush1.msra.mxu0 %v5501
      %5513 = vmatprep.subr.mxu0 0.0
      %5514 = vmatpush1.msra.mxu0 0.0
      %5515 = vmatprep.subr.mxu0 0.0
      %5516 = vmatpush1.msra.mxu0 0.0
      %5517 = vmatprep.subr.mxu0 0.0
      %5518 = vmatpush1.msra.mxu0 0.0
      %5519 = vmatprep.subr.mxu0 0.0
      %5520 = vmatpush1.msra.mxu0 0.0
      %5521 = vmatprep.subr.mxu0 0.0
      %5522 = vmatpush1.msra.mxu0 0.0
      %5523 = vmatprep.subr.mxu0 0.0
      %5524 = vmatpush1.msra.mxu0 0.0
      %5525 = vmatprep.subr.mxu0 0.0
      %5526 = vmatpush1.msra.mxu0 0.0
      %5527 = vmatprep.subr.mxu0 0.0
      %5528 = vmatpush1.msra.mxu0 0.0
      %5529 = vmatprep.subr.mxu0 0.0
      %5530 = vmatpush1.msra.mxu0 0.0
      %5531 = vmatprep.subr.mxu0 0.0
      %5532 = vmatpush1.msra.mxu0 0.0
      %5533 = vmatprep.subr.mxu0 0.0
      %5534 = vmatpush1.msra.mxu0 0.0
      %5535 = vmatprep.subr.mxu0 0.0
      %5536 = vmatpush1.msra.mxu0 0.0
      %5537 = vmatprep.subr.mxu0 0.0
      %5538 = vmatpush1.msra.mxu0 0.0
      %5539 = vmatprep.subr.mxu0 0.0
      %5540 = vmatpush1.msra.mxu0 0.0
      %5541 = vmatprep.subr.mxu0 0.0
      %5542 = vmatpush1.msra.mxu0 0.0
      %5543 = vmatprep.subr.mxu0 0.0
      %5544 = vmatpush1.msra.mxu0 0.0
      %5545 = vmatprep.subr.mxu0 0.0
      %5546 = vmatpush1.msra.mxu0 0.0
      %5547 = vmatprep.subr.mxu0 0.0
      %5548 = vmatpush1.msra.mxu0 0.0
      %5549 = vmatprep.subr.mxu0 0.0
      %5550 = vmatpush1.msra.mxu0 0.0
      %5551 = vmatprep.subr.mxu0 0.0
      %5552 = vmatpush1.msra.mxu0 0.0
      %5553 = vmatprep.subr.mxu0 0.0
      %5554 = vmatpush1.msra.mxu0 0.0
      %5555 = vmatprep.subr.mxu0 0.0
      %5556 = vmatpush1.msra.mxu0 0.0
      %5557 = vmatprep.subr.mxu0 0.0
      %5558 = vmatpush1.msra.mxu0 0.0
      %5559 = vmatprep.subr.mxu0 0.0
      %5560 = vmatpush1.msra.mxu0 0.0
      %5561 = vmatprep.subr.mxu0 0.0
      %5562 = vmatpush1.msra.mxu0 0.0
      %5563 = vmatprep.subr.mxu0 0.0
      %5564 = vmatpush1.msra.mxu0 0.0
      %5565 = vmatprep.subr.mxu0 0.0
      %5566 = vmatpush1.msra.mxu0 0.0
      %5567 = vmatprep.subr.mxu0 0.0
      %5568 = vmatpush1.msra.mxu0 0.0
      %5569 = vmatprep.mubr.f32.mxu0 0.0
      %5570 = vmatmul.mubr.f32.gmra.mrb[0].mxu0 %v5503
      %v5571 = vpop.f32.mrb[0].mxu0
      %v5572 = vadd.f32 0.0, %v5571
      %v5573 = vpop.f32.mrb[0].mxu0
      %5574 = vdwg.mxu0
      %v5575 = vadd.f32 %v5419, %v5572
      %s5576 = scalar_lea.vmem %s20, 6
      %v5577 = vld [vmem:[%s5576] sm:$0x3]
      %v5579 = vsel %vm5114, %v5577, 0
      %5581 = vmatprep.subr.mxu0 0.0
      %5582 = vmatpush1.msra.mxu0 %v5111
      %5583 = vmatprep.subr.mxu0 0.0
      %5584 = vmatpush1.msra.mxu0 %v5120
      %5585 = vmatprep.subr.mxu0 0.0
      %5586 = vmatpush1.msra.mxu0 0.0
      %5587 = vmatprep.subr.mxu0 0.0
      %5588 = vmatpush1.msra.mxu0 0.0
      %5589 = vmatprep.subr.mxu0 0.0
      %5590 = vmatpush1.msra.mxu0 0.0
      %5591 = vmatprep.subr.mxu0 0.0
      %5592 = vmatpush1.msra.mxu0 0.0
      %5593 = vmatprep.subr.mxu0 0.0
      %5594 = vmatpush1.msra.mxu0 0.0
      %5595 = vmatprep.subr.mxu0 0.0
      %5596 = vmatpush1.msra.mxu0 0.0
      %5597 = vmatprep.subr.mxu0 0.0
      %5598 = vmatpush1.msra.mxu0 0.0
      %5599 = vmatprep.subr.mxu0 0.0
      %5600 = vmatpush1.msra.mxu0 0.0
      %5601 = vmatprep.subr.mxu0 0.0
      %5602 = vmatpush1.msra.mxu0 0.0
      %5603 = vmatprep.subr.mxu0 0.0
      %5604 = vmatpush1.msra.mxu0 0.0
      %5605 = vmatprep.subr.mxu0 0.0
      %5606 = vmatpush1.msra.mxu0 0.0
      %5607 = vmatprep.subr.mxu0 0.0
      %5608 = vmatpush1.msra.mxu0 0.0
      %5609 = vmatprep.subr.mxu0 0.0
      %5610 = vmatpush1.msra.mxu0 0.0
      %5611 = vmatprep.subr.mxu0 0.0
      %5612 = vmatpush1.msra.mxu0 0.0
      %5613 = vmatprep.subr.mxu0 0.0
      %5614 = vmatpush1.msra.mxu0 0.0
      %5615 = vmatprep.subr.mxu0 0.0
      %5616 = vmatpush1.msra.mxu0 0.0
      %5617 = vmatprep.subr.mxu0 0.0
      %5618 = vmatpush1.msra.mxu0 0.0
      %5619 = vmatprep.subr.mxu0 0.0
      %5620 = vmatpush1.msra.mxu0 0.0
      %5621 = vmatprep.subr.mxu0 0.0
      %5622 = vmatpush1.msra.mxu0 0.0
      %5623 = vmatprep.subr.mxu0 0.0
      %5624 = vmatpush1.msra.mxu0 0.0
      %5625 = vmatprep.subr.mxu0 0.0
      %5626 = vmatpush1.msra.mxu0 0.0
      %5627 = vmatprep.subr.mxu0 0.0
      %5628 = vmatpush1.msra.mxu0 0.0
      %5629 = vmatprep.subr.mxu0 0.0
      %5630 = vmatpush1.msra.mxu0 0.0
      %5631 = vmatprep.subr.mxu0 0.0
      %5632 = vmatpush1.msra.mxu0 0.0
      %5633 = vmatprep.subr.mxu0 0.0
      %5634 = vmatpush1.msra.mxu0 0.0
      %5635 = vmatprep.subr.mxu0 0.0
      %5636 = vmatpush1.msra.mxu0 0.0
      %5637 = vmatprep.subr.mxu0 0.0
      %5638 = vmatpush1.msra.mxu0 0.0
      %5639 = vmatprep.subr.mxu0 0.0
      %5640 = vmatpush1.msra.mxu0 0.0
      %5641 = vmatprep.subr.mxu0 0.0
      %5642 = vmatpush1.msra.mxu0 0.0
      %5643 = vmatprep.subr.mxu0 0.0
      %5644 = vmatpush1.msra.mxu0 0.0
      %5645 = vmatprep.mubr.f32.mxu0 0.0
      %5646 = vmatmul.mubr.f32.gmra.mrb[0].mxu0 %v5579
      %v5647 = vpop.f32.mrb[0].mxu0
      %v5648 = vadd.f32 0.0, %v5647
      %v5649 = vpop.f32.mrb[0].mxu0
      %5650 = vdwg.mxu0
      %s5651 = scalar_lea.vmem %s3, 96
      %v5652 = vld [vmem:[%s5651] sm:$0xff]
      %v5653 = vld [vmem:[%s5651 + $0x8] sm:$0xff]
      %v5654 = vld [vmem:[%s5651 + $0x10] sm:$0xff]
      %v5655 = vld [vmem:[%s5651 + $0x18] sm:$0xff]
      %v5657 = vsel %vm5056, %v5648, 0
      %5659 = vmatprep.subr.mxu0 0.0
      %5660 = vmatpush1.msra.mxu0 %v5652
      %5661 = vmatprep.subr.mxu0 0.0
      %5662 = vmatpush1.msra.mxu0 %v5653
      %5663 = vmatprep.subr.mxu0 0.0
      %5664 = vmatpush1.msra.mxu0 %v5654
      %5665 = vmatprep.subr.mxu0 0.0
      %5666 = vmatpush1.msra.mxu0 %v5655
      %5667 = vmatprep.subr.mxu0 0.0
      %5668 = vmatpush1.msra.mxu0 0.0
      %5669 = vmatprep.subr.mxu0 0.0
      %5670 = vmatpush1.msra.mxu0 0.0
      %5671 = vmatprep.subr.mxu0 0.0
      %5672 = vmatpush1.msra.mxu0 0.0
      %5673 = vmatprep.subr.mxu0 0.0
      %5674 = vmatpush1.msra.mxu0 0.0
      %5675 = vmatprep.subr.mxu0 0.0
      %5676 = vmatpush1.msra.mxu0 0.0
      %5677 = vmatprep.subr.mxu0 0.0
      %5678 = vmatpush1.msra.mxu0 0.0
      %5679 = vmatprep.subr.mxu0 0.0
      %5680 = vmatpush1.msra.mxu0 0.0
      %5681 = vmatprep.subr.mxu0 0.0
      %5682 = vmatpush1.msra.mxu0 0.0
      %5683 = vmatprep.subr.mxu0 0.0
      %5684 = vmatpush1.msra.mxu0 0.0
      %5685 = vmatprep.subr.mxu0 0.0
      %5686 = vmatpush1.msra.mxu0 0.0
      %5687 = vmatprep.subr.mxu0 0.0
      %5688 = vmatpush1.msra.mxu0 0.0
      %5689 = vmatprep.subr.mxu0 0.0
      %5690 = vmatpush1.msra.mxu0 0.0
      %5691 = vmatprep.subr.mxu0 0.0
      %5692 = vmatpush1.msra.mxu0 0.0
      %5693 = vmatprep.subr.mxu0 0.0
      %5694 = vmatpush1.msra.mxu0 0.0
      %5695 = vmatprep.subr.mxu0 0.0
      %5696 = vmatpush1.msra.mxu0 0.0
      %5697 = vmatprep.subr.mxu0 0.0
      %5698 = vmatpush1.msra.mxu0 0.0
      %5699 = vmatprep.subr.mxu0 0.0
      %5700 = vmatpush1.msra.mxu0 0.0
      %5701 = vmatprep.subr.mxu0 0.0
      %5702 = vmatpush1.msra.mxu0 0.0
      %5703 = vmatprep.subr.mxu0 0.0
      %5704 = vmatpush1.msra.mxu0 0.0
      %5705 = vmatprep.subr.mxu0 0.0
      %5706 = vmatpush1.msra.mxu0 0.0
      %5707 = vmatprep.subr.mxu0 0.0
      %5708 = vmatpush1.msra.mxu0 0.0
      %5709 = vmatprep.subr.mxu0 0.0
      %5710 = vmatpush1.msra.mxu0 0.0
      %5711 = vmatprep.subr.mxu0 0.0
      %5712 = vmatpush1.msra.mxu0 0.0
      %5713 = vmatprep.subr.mxu0 0.0
      %5714 = vmatpush1.msra.mxu0 0.0
      %5715 = vmatprep.subr.mxu0 0.0
      %5716 = vmatpush1.msra.mxu0 0.0
      %5717 = vmatprep.subr.mxu0 0.0
      %5718 = vmatpush1.msra.mxu0 0.0
      %5719 = vmatprep.subr.mxu0 0.0
      %5720 = vmatpush1.msra.mxu0 0.0
      %5721 = vmatprep.subr.mxu0 0.0
      %5722 = vmatpush1.msra.mxu0 0.0
      %5723 = vmatprep.mubr.f32.mxu0 0.0
      %5724 = vmatmul.mubr.f32.gmra.mrb[0].mxu0 %v5657
      %v5725 = vpop.f32.mrb[0].mxu0
      %v5726 = vadd.f32 0.0, %v5725
      %v5727 = vpop.f32.mrb[0].mxu0
      %5728 = vdwg.mxu0
      %v5729 = vadd.f32 %v5575, %v5726
      %s5730 = scalar_lea.vmem %s20, 8
      %v5731 = vld [vmem:[%s5730] sm:$0x3]
      %v5733 = vsel %vm5114, %v5731, 0
      %5735 = vmatprep.subr.mxu0 0.0
      %5736 = vmatpush1.msra.mxu0 %v5111
      %5737 = vmatprep.subr.mxu0 0.0
      %5738 = vmatpush1.msra.mxu0 %v5120
      %5739 = vmatprep.subr.mxu0 0.0
      %5740 = vmatpush1.msra.mxu0 0.0
      %5741 = vmatprep.subr.mxu0 0.0
      %5742 = vmatpush1.msra.mxu0 0.0
      %5743 = vmatprep.subr.mxu0 0.0
      %5744 = vmatpush1.msra.mxu0 0.0
      %5745 = vmatprep.subr.mxu0 0.0
      %5746 = vmatpush1.msra.mxu0 0.0
      %5747 = vmatprep.subr.mxu0 0.0
      %5748 = vmatpush1.msra.mxu0 0.0
      %5749 = vmatprep.subr.mxu0 0.0
      %5750 = vmatpush1.msra.mxu0 0.0
      %5751 = vmatprep.subr.mxu0 0.0
      %5752 = vmatpush1.msra.mxu0 0.0
      %5753 = vmatprep.subr.mxu0 0.0
      %5754 = vmatpush1.msra.mxu0 0.0
      %5755 = vmatprep.subr.mxu0 0.0
      %5756 = vmatpush1.msra.mxu0 0.0
      %5757 = vmatprep.subr.mxu0 0.0
      %5758 = vmatpush1.msra.mxu0 0.0
      %5759 = vmatprep.subr.mxu0 0.0
      %5760 = vmatpush1.msra.mxu0 0.0
      %5761 = vmatprep.subr.mxu0 0.0
      %5762 = vmatpush1.msra.mxu0 0.0
      %5763 = vmatprep.subr.mxu0 0.0
      %5764 = vmatpush1.msra.mxu0 0.0
      %5765 = vmatprep.subr.mxu0 0.0
      %5766 = vmatpush1.msra.mxu0 0.0
      %5767 = vmatprep.subr.mxu0 0.0
      %5768 = vmatpush1.msra.mxu0 0.0
      %5769 = vmatprep.subr.mxu0 0.0
      %5770 = vmatpush1.msra.mxu0 0.0
      %5771 = vmatprep.subr.mxu0 0.0
      %5772 = vmatpush1.msra.mxu0 0.0
      %5773 = vmatprep.subr.mxu0 0.0
      %5774 = vmatpush1.msra.mxu0 0.0
      %5775 = vmatprep.subr.mxu0 0.0
      %5776 = vmatpush1.msra.mxu0 0.0
      %5777 = vmatprep.subr.mxu0 0.0
      %5778 = vmatpush1.msra.mxu0 0.0
      %5779 = vmatprep.subr.mxu0 0.0
      %5780 = vmatpush1.msra.mxu0 0.0
      %5781 = vmatprep.subr.mxu0 0.0
      %5782 = vmatpush1.msra.mxu0 0.0
      %5783 = vmatprep.subr.mxu0 0.0
      %5784 = vmatpush1.msra.mxu0 0.0
      %5785 = vmatprep.subr.mxu0 0.0
      %5786 = vmatpush1.msra.mxu0 0.0
      %5787 = vmatprep.subr.mxu0 0.0
      %5788 = vmatpush1.msra.mxu0 0.0
      %5789 = vmatprep.subr.mxu0 0.0
      %5790 = vmatpush1.msra.mxu0 0.0
      %5791 = vmatprep.subr.mxu0 0.0
      %5792 = vmatpush1.msra.mxu0 0.0
      %5793 = vmatprep.subr.mxu0 0.0
      %5794 = vmatpush1.msra.mxu0 0.0
      %5795 = vmatprep.subr.mxu0 0.0
      %5796 = vmatpush1.msra.mxu0 0.0
      %5797 = vmatprep.subr.mxu0 0.0
      %5798 = vmatpush1.msra.mxu0 0.0
      %5799 = vmatprep.mubr.f32.mxu0 0.0
      %5800 = vmatmul.mubr.f32.gmra.mrb[0].mxu0 %v5733
      %v5801 = vpop.f32.mrb[0].mxu0
      %v5802 = vadd.f32 0.0, %v5801
      %v5803 = vpop.f32.mrb[0].mxu0
      %5804 = vdwg.mxu0
      %s5805 = scalar_lea.vmem %s3, 128
      %v5806 = vld [vmem:[%s5805] sm:$0xff]
      %v5807 = vld [vmem:[%s5805 + $0x8] sm:$0xff]
      %v5808 = vld [vmem:[%s5805 + $0x10] sm:$0xff]
      %v5809 = vld [vmem:[%s5805 + $0x18] sm:$0xff]
      %v5811 = vsel %vm5056, %v5802, 0
      %5813 = vmatprep.subr.mxu0 0.0
      %5814 = vmatpush1.msra.mxu0 %v5806
      %5815 = vmatprep.subr.mxu0 0.0
      %5816 = vmatpush1.msra.mxu0 %v5807
      %5817 = vmatprep.subr.mxu0 0.0
      %5818 = vmatpush1.msra.mxu0 %v5808
      %5819 = vmatprep.subr.mxu0 0.0
      %5820 = vmatpush1.msra.mxu0 %v5809
      %5821 = vmatprep.subr.mxu0 0.0
      %5822 = vmatpush1.msra.mxu0 0.0
      %5823 = vmatprep.subr.mxu0 0.0
      %5824 = vmatpush1.msra.mxu0 0.0
      %5825 = vmatprep.subr.mxu0 0.0
      %5826 = vmatpush1.msra.mxu0 0.0
      %5827 = vmatprep.subr.mxu0 0.0
      %5828 = vmatpush1.msra.mxu0 0.0
      %5829 = vmatprep.subr.mxu0 0.0
      %5830 = vmatpush1.msra.mxu0 0.0
      %5831 = vmatprep.subr.mxu0 0.0
      %5832 = vmatpush1.msra.mxu0 0.0
      %5833 = vmatprep.subr.mxu0 0.0
      %5834 = vmatpush1.msra.mxu0 0.0
      %5835 = vmatprep.subr.mxu0 0.0
      %5836 = vmatpush1.msra.mxu0 0.0
      %5837 = vmatprep.subr.mxu0 0.0
      %5838 = vmatpush1.msra.mxu0 0.0
      %5839 = vmatprep.subr.mxu0 0.0
      %5840 = vmatpush1.msra.mxu0 0.0
      %5841 = vmatprep.subr.mxu0 0.0
      %5842 = vmatpush1.msra.mxu0 0.0
      %5843 = vmatprep.subr.mxu0 0.0
      %5844 = vmatpush1.msra.mxu0 0.0
      %5845 = vmatprep.subr.mxu0 0.0
      %5846 = vmatpush1.msra.mxu0 0.0
      %5847 = vmatprep.subr.mxu0 0.0
      %5848 = vmatpush1.msra.mxu0 0.0
      %5849 = vmatprep.subr.mxu0 0.0
      %5850 = vmatpush1.msra.mxu0 0.0
      %5851 = vmatprep.subr.mxu0 0.0
      %5852 = vmatpush1.msra.mxu0 0.0
      %5853 = vmatprep.subr.mxu0 0.0
      %5854 = vmatpush1.msra.mxu0 0.0
      %5855 = vmatprep.subr.mxu0 0.0
      %5856 = vmatpush1.msra.mxu0 0.0
      %5857 = vmatprep.subr.mxu0 0.0
      %5858 = vmatpush1.msra.mxu0 0.0
      %5859 = vmatprep.subr.mxu0 0.0
      %5860 = vmatpush1.msra.mxu0 0.0
      %5861 = vmatprep.subr.mxu0 0.0
      %5862 = vmatpush1.msra.mxu0 0.0
      %5863 = vmatprep.subr.mxu0 0.0
      %5864 = vmatpush1.msra.mxu0 0.0
      %5865 = vmatprep.subr.mxu0 0.0
      %5866 = vmatpush1.msra.mxu0 0.0
      %5867 = vmatprep.subr.mxu0 0.0
      %5868 = vmatpush1.msra.mxu0 0.0
      %5869 = vmatprep.subr.mxu0 0.0
      %5870 = vmatpush1.msra.mxu0 0.0
      %5871 = vmatprep.subr.mxu0 0.0
      %5872 = vmatpush1.msra.mxu0 0.0
      %5873 = vmatprep.subr.mxu0 0.0
      %5874 = vmatpush1.msra.mxu0 0.0
      %5875 = vmatprep.subr.mxu0 0.0
      %5876 = vmatpush1.msra.mxu0 0.0
      %5877 = vmatprep.mubr.f32.mxu0 0.0
      %5878 = vmatmul.mubr.f32.gmra.mrb[0].mxu0 %v5811
      %v5879 = vpop.f32.mrb[0].mxu0
      %v5880 = vadd.f32 0.0, %v5879
      %v5881 = vpop.f32.mrb[0].mxu0
      %5882 = vdwg.mxu0
      %v5883 = vadd.f32 %v5729, %v5880
      %s5884 = scalar_lea.vmem %s20, 10
      %v5885 = vld [vmem:[%s5884] sm:$0x3]
      %v5887 = vsel %vm5114, %v5885, 0
      %5889 = vmatprep.subr.mxu0 0.0
      %5890 = vmatpush1.msra.mxu0 %v5111
      %5891 = vmatprep.subr.mxu0 0.0
      %5892 = vmatpush1.msra.mxu0 %v5120
      %5893 = vmatprep.subr.mxu0 0.0
      %5894 = vmatpush1.msra.mxu0 0.0
      %5895 = vmatprep.subr.mxu0 0.0
      %5896 = vmatpush1.msra.mxu0 0.0
      %5897 = vmatprep.subr.mxu0 0.0
      %5898 = vmatpush1.msra.mxu0 0.0
      %5899 = vmatprep.subr.mxu0 0.0
      %5900 = vmatpush1.msra.mxu0 0.0
      %5901 = vmatprep.subr.mxu0 0.0
      %5902 = vmatpush1.msra.mxu0 0.0
      %5903 = vmatprep.subr.mxu0 0.0
      %5904 = vmatpush1.msra.mxu0 0.0
      %5905 = vmatprep.subr.mxu0 0.0
      %5906 = vmatpush1.msra.mxu0 0.0
      %5907 = vmatprep.subr.mxu0 0.0
      %5908 = vmatpush1.msra.mxu0 0.0
      %5909 = vmatprep.subr.mxu0 0.0
      %5910 = vmatpush1.msra.mxu0 0.0
      %5911 = vmatprep.subr.mxu0 0.0
      %5912 = vmatpush1.msra.mxu0 0.0
      %5913 = vmatprep.subr.mxu0 0.0
      %5914 = vmatpush1.msra.mxu0 0.0
      %5915 = vmatprep.subr.mxu0 0.0
      %5916 = vmatpush1.msra.mxu0 0.0
      %5917 = vmatprep.subr.mxu0 0.0
      %5918 = vmatpush1.msra.mxu0 0.0
      %5919 = vmatprep.subr.mxu0 0.0
      %5920 = vmatpush1.msra.mxu0 0.0
      %5921 = vmatprep.subr.mxu0 0.0
      %5922 = vmatpush1.msra.mxu0 0.0
      %5923 = vmatprep.subr.mxu0 0.0
      %5924 = vmatpush1.msra.mxu0 0.0
      %5925 = vmatprep.subr.mxu0 0.0
      %5926 = vmatpush1.msra.mxu0 0.0
      %5927 = vmatprep.subr.mxu0 0.0
      %5928 = vmatpush1.msra.mxu0 0.0
      %5929 = vmatprep.subr.mxu0 0.0
      %5930 = vmatpush1.msra.mxu0 0.0
      %5931 = vmatprep.subr.mxu0 0.0
      %5932 = vmatpush1.msra.mxu0 0.0
      %5933 = vmatprep.subr.mxu0 0.0
      %5934 = vmatpush1.msra.mxu0 0.0
      %5935 = vmatprep.subr.mxu0 0.0
      %5936 = vmatpush1.msra.mxu0 0.0
      %5937 = vmatprep.subr.mxu0 0.0
      %5938 = vmatpush1.msra.mxu0 0.0
      %5939 = vmatprep.subr.mxu0 0.0
      %5940 = vmatpush1.msra.mxu0 0.0
      %5941 = vmatprep.subr.mxu0 0.0
      %5942 = vmatpush1.msra.mxu0 0.0
      %5943 = vmatprep.subr.mxu0 0.0
      %5944 = vmatpush1.msra.mxu0 0.0
      %5945 = vmatprep.subr.mxu0 0.0
      %5946 = vmatpush1.msra.mxu0 0.0
      %5947 = vmatprep.subr.mxu0 0.0
      %5948 = vmatpush1.msra.mxu0 0.0
      %5949 = vmatprep.subr.mxu0 0.0
      %5950 = vmatpush1.msra.mxu0 0.0
      %5951 = vmatprep.subr.mxu0 0.0
      %5952 = vmatpush1.msra.mxu0 0.0
      %5953 = vmatprep.mubr.f32.mxu0 0.0
      %5954 = vmatmul.mubr.f32.gmra.mrb[0].mxu0 %v5887
      %v5955 = vpop.f32.mrb[0].mxu0
      %v5956 = vadd.f32 0.0, %v5955
      %v5957 = vpop.f32.mrb[0].mxu0
      %5958 = vdwg.mxu0
      %s5959 = scalar_lea.vmem %s3, 160
      %v5960 = vld [vmem:[%s5959] sm:$0xff]
      %v5961 = vld [vmem:[%s5959 + $0x8] sm:$0xff]
      %v5962 = vld [vmem:[%s5959 + $0x10] sm:$0xff]
      %v5963 = vld [vmem:[%s5959 + $0x18] sm:$0xff]
      %v5965 = vsel %vm5056, %v5956, 0
      %5967 = vmatprep.subr.mxu0 0.0
      %5968 = vmatpush1.msra.mxu0 %v5960
      %5969 = vmatprep.subr.mxu0 0.0
      %5970 = vmatpush1.msra.mxu0 %v5961
      %5971 = vmatprep.subr.mxu0 0.0
      %5972 = vmatpush1.msra.mxu0 %v5962
      %5973 = vmatprep.subr.mxu0 0.0
      %5974 = vmatpush1.msra.mxu0 %v5963
      %5975 = vmatprep.subr.mxu0 0.0
      %5976 = vmatpush1.msra.mxu0 0.0
      %5977 = vmatprep.subr.mxu0 0.0
      %5978 = vmatpush1.msra.mxu0 0.0
      %5979 = vmatprep.subr.mxu0 0.0
      %5980 = vmatpush1.msra.mxu0 0.0
      %5981 = vmatprep.subr.mxu0 0.0
      %5982 = vmatpush1.msra.mxu0 0.0
      %5983 = vmatprep.subr.mxu0 0.0
      %5984 = vmatpush1.msra.mxu0 0.0
      %5985 = vmatprep.subr.mxu0 0.0
      %5986 = vmatpush1.msra.mxu0 0.0
      %5987 = vmatprep.subr.mxu0 0.0
      %5988 = vmatpush1.msra.mxu0 0.0
      %5989 = vmatprep.subr.mxu0 0.0
      %5990 = vmatpush1.msra.mxu0 0.0
      %5991 = vmatprep.subr.mxu0 0.0
      %5992 = vmatpush1.msra.mxu0 0.0
      %5993 = vmatprep.subr.mxu0 0.0
      %5994 = vmatpush1.msra.mxu0 0.0
      %5995 = vmatprep.subr.mxu0 0.0
      %5996 = vmatpush1.msra.mxu0 0.0
      %5997 = vmatprep.subr.mxu0 0.0
      %5998 = vmatpush1.msra.mxu0 0.0
      %5999 = vmatprep.subr.mxu0 0.0
      %6000 = vmatpush1.msra.mxu0 0.0
      %6001 = vmatprep.subr.mxu0 0.0
      %6002 = vmatpush1.msra.mxu0 0.0
      %6003 = vmatprep.subr.mxu0 0.0
      %6004 = vmatpush1.msra.mxu0 0.0
      %6005 = vmatprep.subr.mxu0 0.0
      %6006 = vmatpush1.msra.mxu0 0.0
      %6007 = vmatprep.subr.mxu0 0.0
      %6008 = vmatpush1.msra.mxu0 0.0
      %6009 = vmatprep.subr.mxu0 0.0
      %6010 = vmatpush1.msra.mxu0 0.0
      %6011 = vmatprep.subr.mxu0 0.0
      %6012 = vmatpush1.msra.mxu0 0.0
      %6013 = vmatprep.subr.mxu0 0.0
      %6014 = vmatpush1.msra.mxu0 0.0
      %6015 = vmatprep.subr.mxu0 0.0
      %6016 = vmatpush1.msra.mxu0 0.0
      %6017 = vmatprep.subr.mxu0 0.0
      %6018 = vmatpush1.msra.mxu0 0.0
      %6019 = vmatprep.subr.mxu0 0.0
      %6020 = vmatpush1.msra.mxu0 0.0
      %6021 = vmatprep.subr.mxu0 0.0
      %6022 = vmatpush1.msra.mxu0 0.0
      %6023 = vmatprep.subr.mxu0 0.0
      %6024 = vmatpush1.msra.mxu0 0.0
      %6025 = vmatprep.subr.mxu0 0.0
      %6026 = vmatpush1.msra.mxu0 0.0
      %6027 = vmatprep.subr.mxu0 0.0
      %6028 = vmatpush1.msra.mxu0 0.0
      %6029 = vmatprep.subr.mxu0 0.0
      %6030 = vmatpush1.msra.mxu0 0.0
      %6031 = vmatprep.mubr.f32.mxu0 0.0
      %6032 = vmatmul.mubr.f32.gmra.mrb[0].mxu0 %v5965
      %v6033 = vpop.f32.mrb[0].mxu0
      %v6034 = vadd.f32 0.0, %v6033
      %v6035 = vpop.f32.mrb[0].mxu0
      %6036 = vdwg.mxu0
      %v6037 = vadd.f32 %v5883, %v6034
      %s6038 = scalar_lea.vmem %s20, 12
      %v6039 = vld [vmem:[%s6038] sm:$0x3]
      %v6041 = vsel %vm5114, %v6039, 0
      %6043 = vmatprep.subr.mxu0 0.0
      %6044 = vmatpush1.msra.mxu0 %v5111
      %6045 = vmatprep.subr.mxu0 0.0
      %6046 = vmatpush1.msra.mxu0 %v5120
      %6047 = vmatprep.subr.mxu0 0.0
      %6048 = vmatpush1.msra.mxu0 0.0
      %6049 = vmatprep.subr.mxu0 0.0
      %6050 = vmatpush1.msra.mxu0 0.0
      %6051 = vmatprep.subr.mxu0 0.0
      %6052 = vmatpush1.msra.mxu0 0.0
      %6053 = vmatprep.subr.mxu0 0.0
      %6054 = vmatpush1.msra.mxu0 0.0
      %6055 = vmatprep.subr.mxu0 0.0
      %6056 = vmatpush1.msra.mxu0 0.0
      %6057 = vmatprep.subr.mxu0 0.0
      %6058 = vmatpush1.msra.mxu0 0.0
      %6059 = vmatprep.subr.mxu0 0.0
      %6060 = vmatpush1.msra.mxu0 0.0
      %6061 = vmatprep.subr.mxu0 0.0
      %6062 = vmatpush1.msra.mxu0 0.0
      %6063 = vmatprep.subr.mxu0 0.0
      %6064 = vmatpush1.msra.mxu0 0.0
      %6065 = vmatprep.subr.mxu0 0.0
      %6066 = vmatpush1.msra.mxu0 0.0
      %6067 = vmatprep.subr.mxu0 0.0
      %6068 = vmatpush1.msra.mxu0 0.0
      %6069 = vmatprep.subr.mxu0 0.0
      %6070 = vmatpush1.msra.mxu0 0.0
      %6071 = vmatprep.subr.mxu0 0.0
      %6072 = vmatpush1.msra.mxu0 0.0
      %6073 = vmatprep.subr.mxu0 0.0
      %6074 = vmatpush1.msra.mxu0 0.0
      %6075 = vmatprep.subr.mxu0 0.0
      %6076 = vmatpush1.msra.mxu0 0.0
      %6077 = vmatprep.subr.mxu0 0.0
      %6078 = vmatpush1.msra.mxu0 0.0
      %6079 = vmatprep.subr.mxu0 0.0
      %6080 = vmatpush1.msra.mxu0 0.0
      %6081 = vmatprep.subr.mxu0 0.0
      %6082 = vmatpush1.msra.mxu0 0.0
      %6083 = vmatprep.subr.mxu0 0.0
      %6084 = vmatpush1.msra.mxu0 0.0
      %6085 = vmatprep.subr.mxu0 0.0
      %6086 = vmatpush1.msra.mxu0 0.0
      %6087 = vmatprep.subr.mxu0 0.0
      %6088 = vmatpush1.msra.mxu0 0.0
      %6089 = vmatprep.subr.mxu0 0.0
      %6090 = vmatpush1.msra.mxu0 0.0
      %6091 = vmatprep.subr.mxu0 0.0
      %6092 = vmatpush1.msra.mxu0 0.0
      %6093 = vmatprep.subr.mxu0 0.0
      %6094 = vmatpush1.msra.mxu0 0.0
      %6095 = vmatprep.subr.mxu0 0.0
      %6096 = vmatpush1.msra.mxu0 0.0
      %6097 = vmatprep.subr.mxu0 0.0
      %6098 = vmatpush1.msra.mxu0 0.0
      %6099 = vmatprep.subr.mxu0 0.0
      %6100 = vmatpush1.msra.mxu0 0.0
      %6101 = vmatprep.subr.mxu0 0.0
      %6102 = vmatpush1.msra.mxu0 0.0
      %6103 = vmatprep.subr.mxu0 0.0
      %6104 = vmatpush1.msra.mxu0 0.0
      %6105 = vmatprep.subr.mxu0 0.0
      %6106 = vmatpush1.msra.mxu0 0.0
      %6107 = vmatprep.mubr.f32.mxu0 0.0
      %6108 = vmatmul.mubr.f32.gmra.mrb[0].mxu0 %v6041
      %v6109 = vpop.f32.mrb[0].mxu0
      %v6110 = vadd.f32 0.0, %v6109
      %v6111 = vpop.f32.mrb[0].mxu0
      %6112 = vdwg.mxu0
      %s6113 = scalar_lea.vmem %s3, 192
      %v6114 = vld [vmem:[%s6113] sm:$0xff]
      %v6115 = vld [vmem:[%s6113 + $0x8] sm:$0xff]
      %v6116 = vld [vmem:[%s6113 + $0x10] sm:$0xff]
      %v6117 = vld [vmem:[%s6113 + $0x18] sm:$0xff]
      %v6119 = vsel %vm5056, %v6110, 0
      %6121 = vmatprep.subr.mxu0 0.0
      %6122 = vmatpush1.msra.mxu0 %v6114
      %6123 = vmatprep.subr.mxu0 0.0
      %6124 = vmatpush1.msra.mxu0 %v6115
      %6125 = vmatprep.subr.mxu0 0.0
      %6126 = vmatpush1.msra.mxu0 %v6116
      %6127 = vmatprep.subr.mxu0 0.0
      %6128 = vmatpush1.msra.mxu0 %v6117
      %6129 = vmatprep.subr.mxu0 0.0
      %6130 = vmatpush1.msra.mxu0 0.0
      %6131 = vmatprep.subr.mxu0 0.0
      %6132 = vmatpush1.msra.mxu0 0.0
      %6133 = vmatprep.subr.mxu0 0.0
      %6134 = vmatpush1.msra.mxu0 0.0
      %6135 = vmatprep.subr.mxu0 0.0
      %6136 = vmatpush1.msra.mxu0 0.0
      %6137 = vmatprep.subr.mxu0 0.0
      %6138 = vmatpush1.msra.mxu0 0.0
      %6139 = vmatprep.subr.mxu0 0.0
      %6140 = vmatpush1.msra.mxu0 0.0
      %6141 = vmatprep.subr.mxu0 0.0
      %6142 = vmatpush1.msra.mxu0 0.0
      %6143 = vmatprep.subr.mxu0 0.0
      %6144 = vmatpush1.msra.mxu0 0.0
      %6145 = vmatprep.subr.mxu0 0.0
      %6146 = vmatpush1.msra.mxu0 0.0
      %6147 = vmatprep.subr.mxu0 0.0
      %6148 = vmatpush1.msra.mxu0 0.0
      %6149 = vmatprep.subr.mxu0 0.0
      %6150 = vmatpush1.msra.mxu0 0.0
      %6151 = vmatprep.subr.mxu0 0.0
      %6152 = vmatpush1.msra.mxu0 0.0
      %6153 = vmatprep.subr.mxu0 0.0
      %6154 = vmatpush1.msra.mxu0 0.0
      %6155 = vmatprep.subr.mxu0 0.0
      %6156 = vmatpush1.msra.mxu0 0.0
      %6157 = vmatprep.subr.mxu0 0.0
      %6158 = vmatpush1.msra.mxu0 0.0
      %6159 = vmatprep.subr.mxu0 0.0
      %6160 = vmatpush1.msra.mxu0 0.0
      %6161 = vmatprep.subr.mxu0 0.0
      %6162 = vmatpush1.msra.mxu0 0.0
      %6163 = vmatprep.subr.mxu0 0.0
      %6164 = vmatpush1.msra.mxu0 0.0
      %6165 = vmatprep.subr.mxu0 0.0
      %6166 = vmatpush1.msra.mxu0 0.0
      %6167 = vmatprep.subr.mxu0 0.0
      %6168 = vmatpush1.msra.mxu0 0.0
      %6169 = vmatprep.subr.mxu0 0.0
      %6170 = vmatpush1.msra.mxu0 0.0
      %6171 = vmatprep.subr.mxu0 0.0
      %6172 = vmatpush1.msra.mxu0 0.0
      %6173 = vmatprep.subr.mxu0 0.0
      %6174 = vmatpush1.msra.mxu0 0.0
      %6175 = vmatprep.subr.mxu0 0.0
      %6176 = vmatpush1.msra.mxu0 0.0
      %6177 = vmatprep.subr.mxu0 0.0
      %6178 = vmatpush1.msra.mxu0 0.0
      %6179 = vmatprep.subr.mxu0 0.0
      %6180 = vmatpush1.msra.mxu0 0.0
      %6181 = vmatprep.subr.mxu0 0.0
      %6182 = vmatpush1.msra.mxu0 0.0
      %6183 = vmatprep.subr.mxu0 0.0
      %6184 = vmatpush1.msra.mxu0 0.0
      %6185 = vmatprep.mubr.f32.mxu0 0.0
      %6186 = vmatmul.mubr.f32.gmra.mrb[0].mxu0 %v6119
      %v6187 = vpop.f32.mrb[0].mxu0
      %v6188 = vadd.f32 0.0, %v6187
      %v6189 = vpop.f32.mrb[0].mxu0
      %6190 = vdwg.mxu0
      %v6191 = vadd.f32 %v6037, %v6188
      %s6192 = scalar_lea.vmem %s20, 14
      %v6193 = vld [vmem:[%s6192] sm:$0x3]
      %v6195 = vsel %vm5114, %v6193, 0
      %6197 = vmatprep.subr.mxu0 0.0
      %6198 = vmatpush1.msra.mxu0 %v5111
      %6199 = vmatprep.subr.mxu0 0.0
      %6200 = vmatpush1.msra.mxu0 %v5120
      %6201 = vmatprep.subr.mxu0 0.0
      %6202 = vmatpush1.msra.mxu0 0.0
      %6203 = vmatprep.subr.mxu0 0.0
      %6204 = vmatpush1.msra.mxu0 0.0
      %6205 = vmatprep.subr.mxu0 0.0
      %6206 = vmatpush1.msra.mxu0 0.0
      %6207 = vmatprep.subr.mxu0 0.0
      %6208 = vmatpush1.msra.mxu0 0.0
      %6209 = vmatprep.subr.mxu0 0.0
      %6210 = vmatpush1.msra.mxu0 0.0
      %6211 = vmatprep.subr.mxu0 0.0
      %6212 = vmatpush1.msra.mxu0 0.0
      %6213 = vmatprep.subr.mxu0 0.0
      %6214 = vmatpush1.msra.mxu0 0.0
      %6215 = vmatprep.subr.mxu0 0.0
      %6216 = vmatpush1.msra.mxu0 0.0
      %6217 = vmatprep.subr.mxu0 0.0
      %6218 = vmatpush1.msra.mxu0 0.0
      %6219 = vmatprep.subr.mxu0 0.0
      %6220 = vmatpush1.msra.mxu0 0.0
      %6221 = vmatprep.subr.mxu0 0.0
      %6222 = vmatpush1.msra.mxu0 0.0
      %6223 = vmatprep.subr.mxu0 0.0
      %6224 = vmatpush1.msra.mxu0 0.0
      %6225 = vmatprep.subr.mxu0 0.0
      %6226 = vmatpush1.msra.mxu0 0.0
      %6227 = vmatprep.subr.mxu0 0.0
      %6228 = vmatpush1.msra.mxu0 0.0
      %6229 = vmatprep.subr.mxu0 0.0
      %6230 = vmatpush1.msra.mxu0 0.0
      %6231 = vmatprep.subr.mxu0 0.0
      %6232 = vmatpush1.msra.mxu0 0.0
      %6233 = vmatprep.subr.mxu0 0.0
      %6234 = vmatpush1.msra.mxu0 0.0
      %6235 = vmatprep.subr.mxu0 0.0
      %6236 = vmatpush1.msra.mxu0 0.0
      %6237 = vmatprep.subr.mxu0 0.0
      %6238 = vmatpush1.msra.mxu0 0.0
      %6239 = vmatprep.subr.mxu0 0.0
      %6240 = vmatpush1.msra.mxu0 0.0
      %6241 = vmatprep.subr.mxu0 0.0
      %6242 = vmatpush1.msra.mxu0 0.0
      %6243 = vmatprep.subr.mxu0 0.0
      %6244 = vmatpush1.msra.mxu0 0.0
      %6245 = vmatprep.subr.mxu0 0.0
      %6246 = vmatpush1.msra.mxu0 0.0
      %6247 = vmatprep.subr.mxu0 0.0
      %6248 = vmatpush1.msra.mxu0 0.0
      %6249 = vmatprep.subr.mxu0 0.0
      %6250 = vmatpush1.msra.mxu0 0.0
      %6251 = vmatprep.subr.mxu0 0.0
      %6252 = vmatpush1.msra.mxu0 0.0
      %6253 = vmatprep.subr.mxu0 0.0
      %6254 = vmatpush1.msra.mxu0 0.0
      %6255 = vmatprep.subr.mxu0 0.0
      %6256 = vmatpush1.msra.mxu0 0.0
      %6257 = vmatprep.subr.mxu0 0.0
      %6258 = vmatpush1.msra.mxu0 0.0
      %6259 = vmatprep.subr.mxu0 0.0
      %6260 = vmatpush1.msra.mxu0 0.0
      %6261 = vmatprep.mubr.f32.mxu0 0.0
      %6262 = vmatmul.mubr.f32.gmra.mrb[0].mxu0 %v6195
      %v6263 = vpop.f32.mrb[0].mxu0
      %v6264 = vadd.f32 0.0, %v6263
      %v6265 = vpop.f32.mrb[0].mxu0
      %6266 = vdwg.mxu0
      %s6267 = scalar_lea.vmem %s3, 224
      %v6268 = vld [vmem:[%s6267] sm:$0xff]
      %v6269 = vld [vmem:[%s6267 + $0x8] sm:$0xff]
      %v6270 = vld [vmem:[%s6267 + $0x10] sm:$0xff]
      %v6271 = vld [vmem:[%s6267 + $0x18] sm:$0xff]
      %v6273 = vsel %vm5056, %v6264, 0
      %6275 = vmatprep.subr.mxu0 0.0
      %6276 = vmatpush1.msra.mxu0 %v6268
      %6277 = vmatprep.subr.mxu0 0.0
      %6278 = vmatpush1.msra.mxu0 %v6269
      %6279 = vmatprep.subr.mxu0 0.0
      %6280 = vmatpush1.msra.mxu0 %v6270
      %6281 = vmatprep.subr.mxu0 0.0
      %6282 = vmatpush1.msra.mxu0 %v6271
      %6283 = vmatprep.subr.mxu0 0.0
      %6284 = vmatpush1.msra.mxu0 0.0
      %6285 = vmatprep.subr.mxu0 0.0
      %6286 = vmatpush1.msra.mxu0 0.0
      %6287 = vmatprep.subr.mxu0 0.0
      %6288 = vmatpush1.msra.mxu0 0.0
      %6289 = vmatprep.subr.mxu0 0.0
      %6290 = vmatpush1.msra.mxu0 0.0
      %6291 = vmatprep.subr.mxu0 0.0
      %6292 = vmatpush1.msra.mxu0 0.0
      %6293 = vmatprep.subr.mxu0 0.0
      %6294 = vmatpush1.msra.mxu0 0.0
      %6295 = vmatprep.subr.mxu0 0.0
      %6296 = vmatpush1.msra.mxu0 0.0
      %6297 = vmatprep.subr.mxu0 0.0
      %6298 = vmatpush1.msra.mxu0 0.0
      %6299 = vmatprep.subr.mxu0 0.0
      %6300 = vmatpush1.msra.mxu0 0.0
      %6301 = vmatprep.subr.mxu0 0.0
      %6302 = vmatpush1.msra.mxu0 0.0
      %6303 = vmatprep.subr.mxu0 0.0
      %6304 = vmatpush1.msra.mxu0 0.0
      %6305 = vmatprep.subr.mxu0 0.0
      %6306 = vmatpush1.msra.mxu0 0.0
      %6307 = vmatprep.subr.mxu0 0.0
      %6308 = vmatpush1.msra.mxu0 0.0
      %6309 = vmatprep.subr.mxu0 0.0
      %6310 = vmatpush1.msra.mxu0 0.0
      %6311 = vmatprep.subr.mxu0 0.0
      %6312 = vmatpush1.msra.mxu0 0.0
      %6313 = vmatprep.subr.mxu0 0.0
      %6314 = vmatpush1.msra.mxu0 0.0
      %6315 = vmatprep.subr.mxu0 0.0
      %6316 = vmatpush1.msra.mxu0 0.0
      %6317 = vmatprep.subr.mxu0 0.0
      %6318 = vmatpush1.msra.mxu0 0.0
      %6319 = vmatprep.subr.mxu0 0.0
      %6320 = vmatpush1.msra.mxu0 0.0
      %6321 = vmatprep.subr.mxu0 0.0
      %6322 = vmatpush1.msra.mxu0 0.0
      %6323 = vmatprep.subr.mxu0 0.0
      %6324 = vmatpush1.msra.mxu0 0.0
      %6325 = vmatprep.subr.mxu0 0.0
      %6326 = vmatpush1.msra.mxu0 0.0
      %6327 = vmatprep.subr.mxu0 0.0
      %6328 = vmatpush1.msra.mxu0 0.0
      %6329 = vmatprep.subr.mxu0 0.0
      %6330 = vmatpush1.msra.mxu0 0.0
      %6331 = vmatprep.subr.mxu0 0.0
      %6332 = vmatpush1.msra.mxu0 0.0
      %6333 = vmatprep.subr.mxu0 0.0
      %6334 = vmatpush1.msra.mxu0 0.0
      %6335 = vmatprep.subr.mxu0 0.0
      %6336 = vmatpush1.msra.mxu0 0.0
      %6337 = vmatprep.subr.mxu0 0.0
      %6338 = vmatpush1.msra.mxu0 0.0
      %6339 = vmatprep.mubr.f32.mxu0 0.0
      %6340 = vmatmul.mubr.f32.gmra.mrb[0].mxu0 %v6273
      %v6341 = vpop.f32.mrb[0].mxu0
      %v6342 = vadd.f32 0.0, %v6341
      %v6343 = vpop.f32.mrb[0].mxu0
      %6344 = vdwg.mxu0
      %v6345 = vadd.f32 %v6191, %v6342
      %s6346 = scalar_lea.vmem %s20, 16
      %v6347 = vld [vmem:[%s6346] sm:$0x3]
      %v6349 = vsel %vm5114, %v6347, 0
      %6351 = vmatprep.subr.mxu0 0.0
      %6352 = vmatpush1.msra.mxu0 %v5111
      %6353 = vmatprep.subr.mxu0 0.0
      %6354 = vmatpush1.msra.mxu0 %v5120
      %6355 = vmatprep.subr.mxu0 0.0
      %6356 = vmatpush1.msra.mxu0 0.0
      %6357 = vmatprep.subr.mxu0 0.0
      %6358 = vmatpush1.msra.mxu0 0.0
      %6359 = vmatprep.subr.mxu0 0.0
      %6360 = vmatpush1.msra.mxu0 0.0
      %6361 = vmatprep.subr.mxu0 0.0
      %6362 = vmatpush1.msra.mxu0 0.0
      %6363 = vmatprep.subr.mxu0 0.0
      %6364 = vmatpush1.msra.mxu0 0.0
      %6365 = vmatprep.subr.mxu0 0.0
      %6366 = vmatpush1.msra.mxu0 0.0
      %6367 = vmatprep.subr.mxu0 0.0
      %6368 = vmatpush1.msra.mxu0 0.0
      %6369 = vmatprep.subr.mxu0 0.0
      %6370 = vmatpush1.msra.mxu0 0.0
      %6371 = vmatprep.subr.mxu0 0.0
      %6372 = vmatpush1.msra.mxu0 0.0
      %6373 = vmatprep.subr.mxu0 0.0
      %6374 = vmatpush1.msra.mxu0 0.0
      %6375 = vmatprep.subr.mxu0 0.0
      %6376 = vmatpush1.msra.mxu0 0.0
      %6377 = vmatprep.subr.mxu0 0.0
      %6378 = vmatpush1.msra.mxu0 0.0
      %6379 = vmatprep.subr.mxu0 0.0
      %6380 = vmatpush1.msra.mxu0 0.0
      %6381 = vmatprep.subr.mxu0 0.0
      %6382 = vmatpush1.msra.mxu0 0.0
      %6383 = vmatprep.subr.mxu0 0.0
      %6384 = vmatpush1.msra.mxu0 0.0
      %6385 = vmatprep.subr.mxu0 0.0
      %6386 = vmatpush1.msra.mxu0 0.0
      %6387 = vmatprep.subr.mxu0 0.0
      %6388 = vmatpush1.msra.mxu0 0.0
      %6389 = vmatprep.subr.mxu0 0.0
      %6390 = vmatpush1.msra.mxu0 0.0
      %6391 = vmatprep.subr.mxu0 0.0
      %6392 = vmatpush1.msra.mxu0 0.0
      %6393 = vmatprep.subr.mxu0 0.0
      %6394 = vmatpush1.msra.mxu0 0.0
      %6395 = vmatprep.subr.mxu0 0.0
      %6396 = vmatpush1.msra.mxu0 0.0
      %6397 = vmatprep.subr.mxu0 0.0
      %6398 = vmatpush1.msra.mxu0 0.0
      %6399 = vmatprep.subr.mxu0 0.0
      %6400 = vmatpush1.msra.mxu0 0.0
      %6401 = vmatprep.subr.mxu0 0.0
      %6402 = vmatpush1.msra.mxu0 0.0
      %6403 = vmatprep.subr.mxu0 0.0
      %6404 = vmatpush1.msra.mxu0 0.0
      %6405 = vmatprep.subr.mxu0 0.0
      %6406 = vmatpush1.msra.mxu0 0.0
      %6407 = vmatprep.subr.mxu0 0.0
      %6408 = vmatpush1.msra.mxu0 0.0
      %6409 = vmatprep.subr.mxu0 0.0
      %6410 = vmatpush1.msra.mxu0 0.0
      %6411 = vmatprep.subr.mxu0 0.0
      %6412 = vmatpush1.msra.mxu0 0.0
      %6413 = vmatprep.subr.mxu0 0.0
      %6414 = vmatpush1.msra.mxu0 0.0
      %6415 = vmatprep.mubr.f32.mxu0 0.0
      %6416 = vmatmul.mubr.f32.gmra.mrb[0].mxu0 %v6349
      %v6417 = vpop.f32.mrb[0].mxu0
      %v6418 = vadd.f32 0.0, %v6417
      %v6419 = vpop.f32.mrb[0].mxu0
      %6420 = vdwg.mxu0
      %s6421 = scalar_lea.vmem %s3, 256
      %v6422 = vld [vmem:[%s6421] sm:$0xff]
      %v6423 = vld [vmem:[%s6421 + $0x8] sm:$0xff]
      %v6424 = vld [vmem:[%s6421 + $0x10] sm:$0xff]
      %v6425 = vld [vmem:[%s6421 + $0x18] sm:$0xff]
      %v6427 = vsel %vm5056, %v6418, 0
      %6429 = vmatprep.subr.mxu0 0.0
      %6430 = vmatpush1.msra.mxu0 %v6422
      %6431 = vmatprep.subr.mxu0 0.0
      %6432 = vmatpush1.msra.mxu0 %v6423
      %6433 = vmatprep.subr.mxu0 0.0
      %6434 = vmatpush1.msra.mxu0 %v6424
      %6435 = vmatprep.subr.mxu0 0.0
      %6436 = vmatpush1.msra.mxu0 %v6425
      %6437 = vmatprep.subr.mxu0 0.0
      %6438 = vmatpush1.msra.mxu0 0.0
      %6439 = vmatprep.subr.mxu0 0.0
      %6440 = vmatpush1.msra.mxu0 0.0
      %6441 = vmatprep.subr.mxu0 0.0
      %6442 = vmatpush1.msra.mxu0 0.0
      %6443 = vmatprep.subr.mxu0 0.0
      %6444 = vmatpush1.msra.mxu0 0.0
      %6445 = vmatprep.subr.mxu0 0.0
      %6446 = vmatpush1.msra.mxu0 0.0
      %6447 = vmatprep.subr.mxu0 0.0
      %6448 = vmatpush1.msra.mxu0 0.0
      %6449 = vmatprep.subr.mxu0 0.0
      %6450 = vmatpush1.msra.mxu0 0.0
      %6451 = vmatprep.subr.mxu0 0.0
      %6452 = vmatpush1.msra.mxu0 0.0
      %6453 = vmatprep.subr.mxu0 0.0
      %6454 = vmatpush1.msra.mxu0 0.0
      %6455 = vmatprep.subr.mxu0 0.0
      %6456 = vmatpush1.msra.mxu0 0.0
      %6457 = vmatprep.subr.mxu0 0.0
      %6458 = vmatpush1.msra.mxu0 0.0
      %6459 = vmatprep.subr.mxu0 0.0
      %6460 = vmatpush1.msra.mxu0 0.0
      %6461 = vmatprep.subr.mxu0 0.0
      %6462 = vmatpush1.msra.mxu0 0.0
      %6463 = vmatprep.subr.mxu0 0.0
      %6464 = vmatpush1.msra.mxu0 0.0
      %6465 = vmatprep.subr.mxu0 0.0
      %6466 = vmatpush1.msra.mxu0 0.0
      %6467 = vmatprep.subr.mxu0 0.0
      %6468 = vmatpush1.msra.mxu0 0.0
      %6469 = vmatprep.subr.mxu0 0.0
      %6470 = vmatpush1.msra.mxu0 0.0
      %6471 = vmatprep.subr.mxu0 0.0
      %6472 = vmatpush1.msra.mxu0 0.0
      %6473 = vmatprep.subr.mxu0 0.0
      %6474 = vmatpush1.msra.mxu0 0.0
      %6475 = vmatprep.subr.mxu0 0.0
      %6476 = vmatpush1.msra.mxu0 0.0
      %6477 = vmatprep.subr.mxu0 0.0
      %6478 = vmatpush1.msra.mxu0 0.0
      %6479 = vmatprep.subr.mxu0 0.0
      %6480 = vmatpush1.msra.mxu0 0.0
      %6481 = vmatprep.subr.mxu0 0.0
      %6482 = vmatpush1.msra.mxu0 0.0
      %6483 = vmatprep.subr.mxu0 0.0
      %6484 = vmatpush1.msra.mxu0 0.0
      %6485 = vmatprep.subr.mxu0 0.0
      %6486 = vmatpush1.msra.mxu0 0.0
      %6487 = vmatprep.subr.mxu0 0.0
      %6488 = vmatpush1.msra.mxu0 0.0
      %6489 = vmatprep.subr.mxu0 0.0
      %6490 = vmatpush1.msra.mxu0 0.0
      %6491 = vmatprep.subr.mxu0 0.0
      %6492 = vmatpush1.msra.mxu0 0.0
      %6493 = vmatprep.mubr.f32.mxu0 0.0
      %6494 = vmatmul.mubr.f32.gmra.mrb[0].mxu0 %v6427
      %v6495 = vpop.f32.mrb[0].mxu0
      %v6496 = vadd.f32 0.0, %v6495
      %v6497 = vpop.f32.mrb[0].mxu0
      %6498 = vdwg.mxu0
      %v6499 = vadd.f32 %v6345, %v6496
      %v6500 = vld [vmem:[%s21] sm:$0x3]
      %6502 = vset.pattern.permute.xlu0 0
      %6503 = vperm.xlu0 %6502, %v6500
      %v6504 = vpop.permute.xlu0 %6503
      %v6506 = vadd.f32 %v6499, %v6504
      %v6507 = vmax.f32 %v6506, 0.0
      %vm6508 = vcmask 254976
      %v6509 = vsel %vm6508, %v6507, 0.0
      %6510 = vadd.xlane.f32.xlu0 %v6509
      %v6511 = vpop.xlane.xlu0 %6510
      %v6512 = vmul.f32 %v6511, %v5064
      %v6513 = vsub.f32 %v6507, %v6512
      %v6514 = vmul.f32 %v6513, %v6513
      %v6515 = vsel %vm6508, %v6514, 0.0
      %6516 = vadd.xlane.f32.xlu0 %v6515
      %v6517 = vpop.xlane.xlu0 %6516
      %v6518 = vmul.f32 %v6517, %v5064
      %v6519 = vadd.f32 %v6518, 1e-05
      %v6520 = vrsqrt.pop %v6519
      %v6521 = vmul.f32 %v6513, %v6520
      %v6522 = vld [vmem:[%s14] sm:$0x3]
      %6524 = vset.pattern.permute.xlu0 0
      %6525 = vperm.xlu0 %6524, %v6522
      %v6526 = vpop.permute.xlu0 %6525
      %v6528 = vmul.f32 %v6521, %v6526
      %v6529 = vld [vmem:[%s15] sm:$0x3]
      %6531 = vset.pattern.permute.xlu0 0
      %6532 = vperm.xlu0 %6531, %v6529
      %v6533 = vpop.permute.xlu0 %6532
      %v6535 = vadd.f32 %v6528, %v6533
      %v6536 = vld [vmem:[%s6] sm:$0xff]
      %v6537 = vld [vmem:[%s6 + $0x8] sm:$0xff]
      %v6538 = vld [vmem:[%s6 + $0x10] sm:$0xff]
      %v6539 = vld [vmem:[%s6 + $0x18] sm:$0xff]
      %v6541 = vsel %vm5056, %v6535, 0
      %6543 = vmatprep.subr.mxu0 0.0
      %6544 = vmatpush1.msra.mxu0 %v6536
      %6545 = vmatprep.subr.mxu0 0.0
      %6546 = vmatpush1.msra.mxu0 %v6537
      %6547 = vmatprep.subr.mxu0 0.0
      %6548 = vmatpush1.msra.mxu0 %v6538
      %6549 = vmatprep.subr.mxu0 0.0
      %6550 = vmatpush1.msra.mxu0 %v6539
      %6551 = vmatprep.subr.mxu0 0.0
      %6552 = vmatpush1.msra.mxu0 0.0
      %6553 = vmatprep.subr.mxu0 0.0
      %6554 = vmatpush1.msra.mxu0 0.0
      %6555 = vmatprep.subr.mxu0 0.0
      %6556 = vmatpush1.msra.mxu0 0.0
      %6557 = vmatprep.subr.mxu0 0.0
      %6558 = vmatpush1.msra.mxu0 0.0
      %6559 = vmatprep.subr.mxu0 0.0
      %6560 = vmatpush1.msra.mxu0 0.0
      %6561 = vmatprep.subr.mxu0 0.0
      %6562 = vmatpush1.msra.mxu0 0.0
      %6563 = vmatprep.subr.mxu0 0.0
      %6564 = vmatpush1.msra.mxu0 0.0
      %6565 = vmatprep.subr.mxu0 0.0
      %6566 = vmatpush1.msra.mxu0 0.0
      %6567 = vmatprep.subr.mxu0 0.0
      %6568 = vmatpush1.msra.mxu0 0.0
      %6569 = vmatprep.subr.mxu0 0.0
      %6570 = vmatpush1.msra.mxu0 0.0
      %6571 = vmatprep.subr.mxu0 0.0
      %6572 = vmatpush1.msra.mxu0 0.0
      %6573 = vmatprep.subr.mxu0 0.0
      %6574 = vmatpush1.msra.mxu0 0.0
      %6575 = vmatprep.subr.mxu0 0.0
      %6576 = vmatpush1.msra.mxu0 0.0
      %6577 = vmatprep.subr.mxu0 0.0
      %6578 = vmatpush1.msra.mxu0 0.0
      %6579 = vmatprep.subr.mxu0 0.0
      %6580 = vmatpush1.msra.mxu0 0.0
      %6581 = vmatprep.subr.mxu0 0.0
      %6582 = vmatpush1.msra.mxu0 0.0
      %6583 = vmatprep.subr.mxu0 0.0
      %6584 = vmatpush1.msra.mxu0 0.0
      %6585 = vmatprep.subr.mxu0 0.0
      %6586 = vmatpush1.msra.mxu0 0.0
      %6587 = vmatprep.subr.mxu0 0.0
      %6588 = vmatpush1.msra.mxu0 0.0
      %6589 = vmatprep.subr.mxu0 0.0
      %6590 = vmatpush1.msra.mxu0 0.0
      %6591 = vmatprep.subr.mxu0 0.0
      %6592 = vmatpush1.msra.mxu0 0.0
      %6593 = vmatprep.subr.mxu0 0.0
      %6594 = vmatpush1.msra.mxu0 0.0
      %6595 = vmatprep.subr.mxu0 0.0
      %6596 = vmatpush1.msra.mxu0 0.0
      %6597 = vmatprep.subr.mxu0 0.0
      %6598 = vmatpush1.msra.mxu0 0.0
      %6599 = vmatprep.subr.mxu0 0.0
      %6600 = vmatpush1.msra.mxu0 0.0
      %6601 = vmatprep.subr.mxu0 0.0
      %6602 = vmatpush1.msra.mxu0 0.0
      %6603 = vmatprep.subr.mxu0 0.0
      %6604 = vmatpush1.msra.mxu0 0.0
      %6605 = vmatprep.subr.mxu0 0.0
      %6606 = vmatpush1.msra.mxu0 0.0
      %6607 = vmatprep.mubr.f32.mxu0 0.0
      %6608 = vmatmul.mubr.f32.gmra.mrb[0].mxu0 %v6541
      %v6609 = vpop.f32.mrb[0].mxu0
      %v6610 = vadd.f32 0.0, %v6609
      %v6611 = vpop.f32.mrb[0].mxu0
      %6612 = vdwg.mxu0
      %6613 = vrot.lane.b32.xlu0 %v6610, 9
      %v6614 = vpop.permute.xlu0 %6613
      %v6615 = vmul.f32 %v6614, %v3972
      %v6616 = vld [vmem:[%s22] sm:$0x3]
      %6617 = vrot.lane.b32.xlu0 %v6610, 8
      %v6618 = vpop.permute.xlu0 %6617
      %v6619 = vmul.f32 %v6618, %v3997
      %s6620 = scalar_lea.vmem %s22, 2
      %v6621 = vld [vmem:[%s6620] sm:$0x3]
      %vm6622 = vcmask 15360
      %v6624 = vsel %vm6622, %v6621, 0
      %v6627 = vsel %vm3836, %v6619, 0
      %6629 = vmatprep.subr.mxu0 0.0
      %6630 = vmatpush1.msra.mxu0 %v6627
      %6631 = vmatprep.subr.mxu0 0.0
      %6632 = vmatpush1.msra.mxu0 0.0
      %6633 = vmatprep.subr.mxu0 0.0
      %6634 = vmatpush1.msra.mxu0 0.0
      %6635 = vmatprep.subr.mxu0 0.0
      %6636 = vmatpush1.msra.mxu0 0.0
      %6637 = vmatprep.subr.mxu0 0.0
      %6638 = vmatpush1.msra.mxu0 0.0
      %6639 = vmatprep.subr.mxu0 0.0
      %6640 = vmatpush1.msra.mxu0 0.0
      %6641 = vmatprep.subr.mxu0 0.0
      %6642 = vmatpush1.msra.mxu0 0.0
      %6643 = vmatprep.subr.mxu0 0.0
      %6644 = vmatpush1.msra.mxu0 0.0
      %6645 = vmatprep.subr.mxu0 0.0
      %6646 = vmatpush1.msra.mxu0 0.0
      %6647 = vmatprep.subr.mxu0 0.0
      %6648 = vmatpush1.msra.mxu0 0.0
      %6649 = vmatprep.subr.mxu0 0.0
      %6650 = vmatpush1.msra.mxu0 0.0
      %6651 = vmatprep.subr.mxu0 0.0
      %6652 = vmatpush1.msra.mxu0 0.0
      %6653 = vmatprep.subr.mxu0 0.0
      %6654 = vmatpush1.msra.mxu0 0.0
      %6655 = vmatprep.subr.mxu0 0.0
      %6656 = vmatpush1.msra.mxu0 0.0
      %6657 = vmatprep.subr.mxu0 0.0
      %6658 = vmatpush1.msra.mxu0 0.0
      %6659 = vmatprep.subr.mxu0 0.0
      %6660 = vmatpush1.msra.mxu0 0.0
      %6661 = vmatprep.subr.mxu0 0.0
      %6662 = vmatpush1.msra.mxu0 0.0
      %6663 = vmatprep.subr.mxu0 0.0
      %6664 = vmatpush1.msra.mxu0 0.0
      %6665 = vmatprep.subr.mxu0 0.0
      %6666 = vmatpush1.msra.mxu0 0.0
      %6667 = vmatprep.subr.mxu0 0.0
      %6668 = vmatpush1.msra.mxu0 0.0
      %6669 = vmatprep.subr.mxu0 0.0
      %6670 = vmatpush1.msra.mxu0 0.0
      %6671 = vmatprep.subr.mxu0 0.0
      %6672 = vmatpush1.msra.mxu0 0.0
      %6673 = vmatprep.subr.mxu0 0.0
      %6674 = vmatpush1.msra.mxu0 0.0
      %6675 = vmatprep.subr.mxu0 0.0
      %6676 = vmatpush1.msra.mxu0 0.0
      %6677 = vmatprep.subr.mxu0 0.0
      %6678 = vmatpush1.msra.mxu0 0.0
      %6679 = vmatprep.subr.mxu0 0.0
      %6680 = vmatpush1.msra.mxu0 0.0
      %6681 = vmatprep.subr.mxu0 0.0
      %6682 = vmatpush1.msra.mxu0 0.0
      %6683 = vmatprep.subr.mxu0 0.0
      %6684 = vmatpush1.msra.mxu0 0.0
      %6685 = vmatprep.subr.mxu0 0.0
      %6686 = vmatpush1.msra.mxu0 0.0
      %6687 = vmatprep.subr.mxu0 0.0
      %6688 = vmatpush1.msra.mxu0 0.0
      %6689 = vmatprep.subr.mxu0 0.0
      %6690 = vmatpush1.msra.mxu0 0.0
      %6691 = vmatprep.subr.mxu0 0.0
      %6692 = vmatpush1.msra.mxu0 0.0
      %6693 = vmatprep.mubr.f32.mxu0 0.0
      %6694 = vmatmul.mubr.f32.gmra.mrb[0].mxu0 %v6624
      %v6695 = vpop.f32.mrb[0].mxu0
      %v6696 = vadd.f32 0.0, %v6695
      %v6697 = vpop.f32.mrb[0].mxu0
      %6698 = vdwg.mxu0
      %v6700 = vsel %vm6622, %v6616, 0
      %v6703 = vsel %vm3836, %v6615, 0
      %6705 = vmatprep.subr.mxu0 0.0
      %6706 = vmatpush1.msra.mxu0 %v6703
      %6707 = vmatprep.subr.mxu0 0.0
      %6708 = vmatpush1.msra.mxu0 0.0
      %6709 = vmatprep.subr.mxu0 0.0
      %6710 = vmatpush1.msra.mxu0 0.0
      %6711 = vmatprep.subr.mxu0 0.0
      %6712 = vmatpush1.msra.mxu0 0.0
      %6713 = vmatprep.subr.mxu0 0.0
      %6714 = vmatpush1.msra.mxu0 0.0
      %6715 = vmatprep.subr.mxu0 0.0
      %6716 = vmatpush1.msra.mxu0 0.0
      %6717 = vmatprep.subr.mxu0 0.0
      %6718 = vmatpush1.msra.mxu0 0.0
      %6719 = vmatprep.subr.mxu0 0.0
      %6720 = vmatpush1.msra.mxu0 0.0
      %6721 = vmatprep.subr.mxu0 0.0
      %6722 = vmatpush1.msra.mxu0 0.0
      %6723 = vmatprep.subr.mxu0 0.0
      %6724 = vmatpush1.msra.mxu0 0.0
      %6725 = vmatprep.subr.mxu0 0.0
      %6726 = vmatpush1.msra.mxu0 0.0
      %6727 = vmatprep.subr.mxu0 0.0
      %6728 = vmatpush1.msra.mxu0 0.0
      %6729 = vmatprep.subr.mxu0 0.0
      %6730 = vmatpush1.msra.mxu0 0.0
      %6731 = vmatprep.subr.mxu0 0.0
      %6732 = vmatpush1.msra.mxu0 0.0
      %6733 = vmatprep.subr.mxu0 0.0
      %6734 = vmatpush1.msra.mxu0 0.0
      %6735 = vmatprep.subr.mxu0 0.0
      %6736 = vmatpush1.msra.mxu0 0.0
      %6737 = vmatprep.subr.mxu0 0.0
      %6738 = vmatpush1.msra.mxu0 0.0
      %6739 = vmatprep.subr.mxu0 0.0
      %6740 = vmatpush1.msra.mxu0 0.0
      %6741 = vmatprep.subr.mxu0 0.0
      %6742 = vmatpush1.msra.mxu0 0.0
      %6743 = vmatprep.subr.mxu0 0.0
      %6744 = vmatpush1.msra.mxu0 0.0
      %6745 = vmatprep.subr.mxu0 0.0
      %6746 = vmatpush1.msra.mxu0 0.0
      %6747 = vmatprep.subr.mxu0 0.0
      %6748 = vmatpush1.msra.mxu0 0.0
      %6749 = vmatprep.subr.mxu0 0.0
      %6750 = vmatpush1.msra.mxu0 0.0
      %6751 = vmatprep.subr.mxu0 0.0
      %6752 = vmatpush1.msra.mxu0 0.0
      %6753 = vmatprep.subr.mxu0 0.0
      %6754 = vmatpush1.msra.mxu0 0.0
      %6755 = vmatprep.subr.mxu0 0.0
      %6756 = vmatpush1.msra.mxu0 0.0
      %6757 = vmatprep.subr.mxu0 0.0
      %6758 = vmatpush1.msra.mxu0 0.0
      %6759 = vmatprep.subr.mxu0 0.0
      %6760 = vmatpush1.msra.mxu0 0.0
      %6761 = vmatprep.subr.mxu0 0.0
      %6762 = vmatpush1.msra.mxu0 0.0
      %6763 = vmatprep.subr.mxu0 0.0
      %6764 = vmatpush1.msra.mxu0 0.0
      %6765 = vmatprep.subr.mxu0 0.0
      %6766 = vmatpush1.msra.mxu0 0.0
      %6767 = vmatprep.subr.mxu0 0.0
      %6768 = vmatpush1.msra.mxu0 0.0
      %6769 = vmatprep.mubr.f32.mxu0 0.0
      %6770 = vmatmul.mubr.f32.gmra.mrb[0].mxu0 %v6700
      %v6771 = vpop.f32.mrb[0].mxu0
      %v6772 = vadd.f32 %v6696, %v6771
      %v6773 = vpop.f32.mrb[0].mxu0
      %6774 = vdwg.mxu0
      %6775 = vrot.lane.b32.xlu0 %v6610, 7
      %v6776 = vpop.permute.xlu0 %6775
      %v6777 = vmul.f32 %v6776, %v4192
      %s6778 = scalar_lea.vmem %s22, 4
      %v6779 = vld [vmem:[%s6778] sm:$0x3]
      %v6781 = vsel %vm6622, %v6779, 0
      %v6784 = vsel %vm3836, %v6777, 0
      %6786 = vmatprep.subr.mxu0 0.0
      %6787 = vmatpush1.msra.mxu0 %v6784
      %6788 = vmatprep.subr.mxu0 0.0
      %6789 = vmatpush1.msra.mxu0 0.0
      %6790 = vmatprep.subr.mxu0 0.0
      %6791 = vmatpush1.msra.mxu0 0.0
      %6792 = vmatprep.subr.mxu0 0.0
      %6793 = vmatpush1.msra.mxu0 0.0
      %6794 = vmatprep.subr.mxu0 0.0
      %6795 = vmatpush1.msra.mxu0 0.0
      %6796 = vmatprep.subr.mxu0 0.0
      %6797 = vmatpush1.msra.mxu0 0.0
      %6798 = vmatprep.subr.mxu0 0.0
      %6799 = vmatpush1.msra.mxu0 0.0
      %6800 = vmatprep.subr.mxu0 0.0
      %6801 = vmatpush1.msra.mxu0 0.0
      %6802 = vmatprep.subr.mxu0 0.0
      %6803 = vmatpush1.msra.mxu0 0.0
      %6804 = vmatprep.subr.mxu0 0.0
      %6805 = vmatpush1.msra.mxu0 0.0
      %6806 = vmatprep.subr.mxu0 0.0
      %6807 = vmatpush1.msra.mxu0 0.0
      %6808 = vmatprep.subr.mxu0 0.0
      %6809 = vmatpush1.msra.mxu0 0.0
      %6810 = vmatprep.subr.mxu0 0.0
      %6811 = vmatpush1.msra.mxu0 0.0
      %6812 = vmatprep.subr.mxu0 0.0
      %6813 = vmatpush1.msra.mxu0 0.0
      %6814 = vmatprep.subr.mxu0 0.0
      %6815 = vmatpush1.msra.mxu0 0.0
      %6816 = vmatprep.subr.mxu0 0.0
      %6817 = vmatpush1.msra.mxu0 0.0
      %6818 = vmatprep.subr.mxu0 0.0
      %6819 = vmatpush1.msra.mxu0 0.0
      %6820 = vmatprep.subr.mxu0 0.0
      %6821 = vmatpush1.msra.mxu0 0.0
      %6822 = vmatprep.subr.mxu0 0.0
      %6823 = vmatpush1.msra.mxu0 0.0
      %6824 = vmatprep.subr.mxu0 0.0
      %6825 = vmatpush1.msra.mxu0 0.0
      %6826 = vmatprep.subr.mxu0 0.0
      %6827 = vmatpush1.msra.mxu0 0.0
      %6828 = vmatprep.subr.mxu0 0.0
      %6829 = vmatpush1.msra.mxu0 0.0
      %6830 = vmatprep.subr.mxu0 0.0
      %6831 = vmatpush1.msra.mxu0 0.0
      %6832 = vmatprep.subr.mxu0 0.0
      %6833 = vmatpush1.msra.mxu0 0.0
      %6834 = vmatprep.subr.mxu0 0.0
      %6835 = vmatpush1.msra.mxu0 0.0
      %6836 = vmatprep.subr.mxu0 0.0
      %6837 = vmatpush1.msra.mxu0 0.0
      %6838 = vmatprep.subr.mxu0 0.0
      %6839 = vmatpush1.msra.mxu0 0.0
      %6840 = vmatprep.subr.mxu0 0.0
      %6841 = vmatpush1.msra.mxu0 0.0
      %6842 = vmatprep.subr.mxu0 0.0
      %6843 = vmatpush1.msra.mxu0 0.0
      %6844 = vmatprep.subr.mxu0 0.0
      %6845 = vmatpush1.msra.mxu0 0.0
      %6846 = vmatprep.subr.mxu0 0.0
      %6847 = vmatpush1.msra.mxu0 0.0
      %6848 = vmatprep.subr.mxu0 0.0
      %6849 = vmatpush1.msra.mxu0 0.0
      %6850 = vmatprep.mubr.f32.mxu0 0.0
      %6851 = vmatmul.mubr.f32.gmra.mrb[0].mxu0 %v6781
      %v6852 = vpop.f32.mrb[0].mxu0
      %v6853 = vadd.f32 0.0, %v6852
      %v6854 = vpop.f32.mrb[0].mxu0
      %6855 = vdwg.mxu0
      %v6856 = vadd.f32 %v6772, %v6853
      %6857 = vrot.lane.b32.xlu0 %v6610, 1
      %v6858 = vpop.permute.xlu0 %6857
      %v6859 = vmul.f32 %v6858, %v4304
      %s6860 = scalar_lea.vmem %s22, 6
      %v6861 = vld [vmem:[%s6860] sm:$0x3]
      %v6863 = vsel %vm6622, %v6861, 0
      %v6866 = vsel %vm3836, %v6859, 0
      %6868 = vmatprep.subr.mxu0 0.0
      %6869 = vmatpush1.msra.mxu0 %v6866
      %6870 = vmatprep.subr.mxu0 0.0
      %6871 = vmatpush1.msra.mxu0 0.0
      %6872 = vmatprep.subr.mxu0 0.0
      %6873 = vmatpush1.msra.mxu0 0.0
      %6874 = vmatprep.subr.mxu0 0.0
      %6875 = vmatpush1.msra.mxu0 0.0
      %6876 = vmatprep.subr.mxu0 0.0
      %6877 = vmatpush1.msra.mxu0 0.0
      %6878 = vmatprep.subr.mxu0 0.0
      %6879 = vmatpush1.msra.mxu0 0.0
      %6880 = vmatprep.subr.mxu0 0.0
      %6881 = vmatpush1.msra.mxu0 0.0
      %6882 = vmatprep.subr.mxu0 0.0
      %6883 = vmatpush1.msra.mxu0 0.0
      %6884 = vmatprep.subr.mxu0 0.0
      %6885 = vmatpush1.msra.mxu0 0.0
      %6886 = vmatprep.subr.mxu0 0.0
      %6887 = vmatpush1.msra.mxu0 0.0
      %6888 = vmatprep.subr.mxu0 0.0
      %6889 = vmatpush1.msra.mxu0 0.0
      %6890 = vmatprep.subr.mxu0 0.0
      %6891 = vmatpush1.msra.mxu0 0.0
      %6892 = vmatprep.subr.mxu0 0.0
      %6893 = vmatpush1.msra.mxu0 0.0
      %6894 = vmatprep.subr.mxu0 0.0
      %6895 = vmatpush1.msra.mxu0 0.0
      %6896 = vmatprep.subr.mxu0 0.0
      %6897 = vmatpush1.msra.mxu0 0.0
      %6898 = vmatprep.subr.mxu0 0.0
      %6899 = vmatpush1.msra.mxu0 0.0
      %6900 = vmatprep.subr.mxu0 0.0
      %6901 = vmatpush1.msra.mxu0 0.0
      %6902 = vmatprep.subr.mxu0 0.0
      %6903 = vmatpush1.msra.mxu0 0.0
      %6904 = vmatprep.subr.mxu0 0.0
      %6905 = vmatpush1.msra.mxu0 0.0
      %6906 = vmatprep.subr.mxu0 0.0
      %6907 = vmatpush1.msra.mxu0 0.0
      %6908 = vmatprep.subr.mxu0 0.0
      %6909 = vmatpush1.msra.mxu0 0.0
      %6910 = vmatprep.subr.mxu0 0.0
      %6911 = vmatpush1.msra.mxu0 0.0
      %6912 = vmatprep.subr.mxu0 0.0
      %6913 = vmatpush1.msra.mxu0 0.0
      %6914 = vmatprep.subr.mxu0 0.0
      %6915 = vmatpush1.msra.mxu0 0.0
      %6916 = vmatprep.subr.mxu0 0.0
      %6917 = vmatpush1.msra.mxu0 0.0
      %6918 = vmatprep.subr.mxu0 0.0
      %6919 = vmatpush1.msra.mxu0 0.0
      %6920 = vmatprep.subr.mxu0 0.0
      %6921 = vmatpush1.msra.mxu0 0.0
      %6922 = vmatprep.subr.mxu0 0.0
      %6923 = vmatpush1.msra.mxu0 0.0
      %6924 = vmatprep.subr.mxu0 0.0
      %6925 = vmatpush1.msra.mxu0 0.0
      %6926 = vmatprep.subr.mxu0 0.0
      %6927 = vmatpush1.msra.mxu0 0.0
      %6928 = vmatprep.subr.mxu0 0.0
      %6929 = vmatpush1.msra.mxu0 0.0
      %6930 = vmatprep.subr.mxu0 0.0
      %6931 = vmatpush1.msra.mxu0 0.0
      %6932 = vmatprep.mubr.f32.mxu0 0.0
      %6933 = vmatmul.mubr.f32.gmra.mrb[0].mxu0 %v6863
      %v6934 = vpop.f32.mrb[0].mxu0
      %v6935 = vadd.f32 0.0, %v6934
      %v6936 = vpop.f32.mrb[0].mxu0
      %6937 = vdwg.mxu0
      %v6938 = vadd.f32 %v6856, %v6935
      %s6939 = scalar_lea.vmem %s22, 8
      %v6940 = vld [vmem:[%s6939] sm:$0x3]
      %v6942 = vsel %vm6622, %v6940, 0
      %v6945 = vsel %vm3836, %v6610, 0
      %6947 = vmatprep.subr.mxu0 0.0
      %6948 = vmatpush1.msra.mxu0 %v6945
      %6949 = vmatprep.subr.mxu0 0.0
      %6950 = vmatpush1.msra.mxu0 0.0
      %6951 = vmatprep.subr.mxu0 0.0
      %6952 = vmatpush1.msra.mxu0 0.0
      %6953 = vmatprep.subr.mxu0 0.0
      %6954 = vmatpush1.msra.mxu0 0.0
      %6955 = vmatprep.subr.mxu0 0.0
      %6956 = vmatpush1.msra.mxu0 0.0
      %6957 = vmatprep.subr.mxu0 0.0
      %6958 = vmatpush1.msra.mxu0 0.0
      %6959 = vmatprep.subr.mxu0 0.0
      %6960 = vmatpush1.msra.mxu0 0.0
      %6961 = vmatprep.subr.mxu0 0.0
      %6962 = vmatpush1.msra.mxu0 0.0
      %6963 = vmatprep.subr.mxu0 0.0
      %6964 = vmatpush1.msra.mxu0 0.0
      %6965 = vmatprep.subr.mxu0 0.0
      %6966 = vmatpush1.msra.mxu0 0.0
      %6967 = vmatprep.subr.mxu0 0.0
      %6968 = vmatpush1.msra.mxu0 0.0
      %6969 = vmatprep.subr.mxu0 0.0
      %6970 = vmatpush1.msra.mxu0 0.0
      %6971 = vmatprep.subr.mxu0 0.0
      %6972 = vmatpush1.msra.mxu0 0.0
      %6973 = vmatprep.subr.mxu0 0.0
      %6974 = vmatpush1.msra.mxu0 0.0
      %6975 = vmatprep.subr.mxu0 0.0
      %6976 = vmatpush1.msra.mxu0 0.0
      %6977 = vmatprep.subr.mxu0 0.0
      %6978 = vmatpush1.msra.mxu0 0.0
      %6979 = vmatprep.subr.mxu0 0.0
      %6980 = vmatpush1.msra.mxu0 0.0
      %6981 = vmatprep.subr.mxu0 0.0
      %6982 = vmatpush1.msra.mxu0 0.0
      %6983 = vmatprep.subr.mxu0 0.0
      %6984 = vmatpush1.msra.mxu0 0.0
      %6985 = vmatprep.subr.mxu0 0.0
      %6986 = vmatpush1.msra.mxu0 0.0
      %6987 = vmatprep.subr.mxu0 0.0
      %6988 = vmatpush1.msra.mxu0 0.0
      %6989 = vmatprep.subr.mxu0 0.0
      %6990 = vmatpush1.msra.mxu0 0.0
      %6991 = vmatprep.subr.mxu0 0.0
      %6992 = vmatpush1.msra.mxu0 0.0
      %6993 = vmatprep.subr.mxu0 0.0
      %6994 = vmatpush1.msra.mxu0 0.0
      %6995 = vmatprep.subr.mxu0 0.0
      %6996 = vmatpush1.msra.mxu0 0.0
      %6997 = vmatprep.subr.mxu0 0.0
      %6998 = vmatpush1.msra.mxu0 0.0
      %6999 = vmatprep.subr.mxu0 0.0
      %7000 = vmatpush1.msra.mxu0 0.0
      %7001 = vmatprep.subr.mxu0 0.0
      %7002 = vmatpush1.msra.mxu0 0.0
      %7003 = vmatprep.subr.mxu0 0.0
      %7004 = vmatpush1.msra.mxu0 0.0
      %7005 = vmatprep.subr.mxu0 0.0
      %7006 = vmatpush1.msra.mxu0 0.0
      %7007 = vmatprep.subr.mxu0 0.0
      %7008 = vmatpush1.msra.mxu0 0.0
      %7009 = vmatprep.subr.mxu0 0.0
      %7010 = vmatpush1.msra.mxu0 0.0
      %7011 = vmatprep.mubr.f32.mxu0 0.0
      %7012 = vmatmul.mubr.f32.gmra.mrb[0].mxu0 %v6942
      %v7013 = vpop.f32.mrb[0].mxu0
      %v7014 = vadd.f32 0.0, %v7013
      %v7015 = vpop.f32.mrb[0].mxu0
      %7016 = vdwg.mxu0
      %v7017 = vadd.f32 %v6938, %v7014
      %7018 = vrot.lane.b32.xlu0 %v6610, 127
      %v7019 = vpop.permute.xlu0 %7018
      %v7020 = vmul.f32 %v7019, %v4505
      %s7021 = scalar_lea.vmem %s22, 10
      %v7022 = vld [vmem:[%s7021] sm:$0x3]
      %v7024 = vsel %vm6622, %v7022, 0
      %v7027 = vsel %vm3836, %v7020, 0
      %7029 = vmatprep.subr.mxu0 0.0
      %7030 = vmatpush1.msra.mxu0 %v7027
      %7031 = vmatprep.subr.mxu0 0.0
      %7032 = vmatpush1.msra.mxu0 0.0
      %7033 = vmatprep.subr.mxu0 0.0
      %7034 = vmatpush1.msra.mxu0 0.0
      %7035 = vmatprep.subr.mxu0 0.0
      %7036 = vmatpush1.msra.mxu0 0.0
      %7037 = vmatprep.subr.mxu0 0.0
      %7038 = vmatpush1.msra.mxu0 0.0
      %7039 = vmatprep.subr.mxu0 0.0
      %7040 = vmatpush1.msra.mxu0 0.0
      %7041 = vmatprep.subr.mxu0 0.0
      %7042 = vmatpush1.msra.mxu0 0.0
      %7043 = vmatprep.subr.mxu0 0.0
      %7044 = vmatpush1.msra.mxu0 0.0
      %7045 = vmatprep.subr.mxu0 0.0
      %7046 = vmatpush1.msra.mxu0 0.0
      %7047 = vmatprep.subr.mxu0 0.0
      %7048 = vmatpush1.msra.mxu0 0.0
      %7049 = vmatprep.subr.mxu0 0.0
      %7050 = vmatpush1.msra.mxu0 0.0
      %7051 = vmatprep.subr.mxu0 0.0
      %7052 = vmatpush1.msra.mxu0 0.0
      %7053 = vmatprep.subr.mxu0 0.0
      %7054 = vmatpush1.msra.mxu0 0.0
      %7055 = vmatprep.subr.mxu0 0.0
      %7056 = vmatpush1.msra.mxu0 0.0
      %7057 = vmatprep.subr.mxu0 0.0
      %7058 = vmatpush1.msra.mxu0 0.0
      %7059 = vmatprep.subr.mxu0 0.0
      %7060 = vmatpush1.msra.mxu0 0.0
      %7061 = vmatprep.subr.mxu0 0.0
      %7062 = vmatpush1.msra.mxu0 0.0
      %7063 = vmatprep.subr.mxu0 0.0
      %7064 = vmatpush1.msra.mxu0 0.0
      %7065 = vmatprep.subr.mxu0 0.0
      %7066 = vmatpush1.msra.mxu0 0.0
      %7067 = vmatprep.subr.mxu0 0.0
      %7068 = vmatpush1.msra.mxu0 0.0
      %7069 = vmatprep.subr.mxu0 0.0
      %7070 = vmatpush1.msra.mxu0 0.0
      %7071 = vmatprep.subr.mxu0 0.0
      %7072 = vmatpush1.msra.mxu0 0.0
      %7073 = vmatprep.subr.mxu0 0.0
      %7074 = vmatpush1.msra.mxu0 0.0
      %7075 = vmatprep.subr.mxu0 0.0
      %7076 = vmatpush1.msra.mxu0 0.0
      %7077 = vmatprep.subr.mxu0 0.0
      %7078 = vmatpush1.msra.mxu0 0.0
      %7079 = vmatprep.subr.mxu0 0.0
      %7080 = vmatpush1.msra.mxu0 0.0
      %7081 = vmatprep.subr.mxu0 0.0
      %7082 = vmatpush1.msra.mxu0 0.0
      %7083 = vmatprep.subr.mxu0 0.0
      %7084 = vmatpush1.msra.mxu0 0.0
      %7085 = vmatprep.subr.mxu0 0.0
      %7086 = vmatpush1.msra.mxu0 0.0
      %7087 = vmatprep.subr.mxu0 0.0
      %7088 = vmatpush1.msra.mxu0 0.0
      %7089 = vmatprep.subr.mxu0 0.0
      %7090 = vmatpush1.msra.mxu0 0.0
      %7091 = vmatprep.subr.mxu0 0.0
      %7092 = vmatpush1.msra.mxu0 0.0
      %7093 = vmatprep.mubr.f32.mxu0 0.0
      %7094 = vmatmul.mubr.f32.gmra.mrb[0].mxu0 %v7024
      %v7095 = vpop.f32.mrb[0].mxu0
      %v7096 = vadd.f32 0.0, %v7095
      %v7097 = vpop.f32.mrb[0].mxu0
      %7098 = vdwg.mxu0
      %v7099 = vadd.f32 %v7017, %v7096
      %7100 = vrot.lane.b32.xlu0 %v6610, 121
      %v7101 = vpop.permute.xlu0 %7100
      %v7102 = vmul.f32 %v7101, %v4617
      %s7103 = scalar_lea.vmem %s22, 12
      %v7104 = vld [vmem:[%s7103] sm:$0x3]
      %v7106 = vsel %vm6622, %v7104, 0
      %v7109 = vsel %vm3836, %v7102, 0
      %7111 = vmatprep.subr.mxu0 0.0
      %7112 = vmatpush1.msra.mxu0 %v7109
      %7113 = vmatprep.subr.mxu0 0.0
      %7114 = vmatpush1.msra.mxu0 0.0
      %7115 = vmatprep.subr.mxu0 0.0
      %7116 = vmatpush1.msra.mxu0 0.0
      %7117 = vmatprep.subr.mxu0 0.0
      %7118 = vmatpush1.msra.mxu0 0.0
      %7119 = vmatprep.subr.mxu0 0.0
      %7120 = vmatpush1.msra.mxu0 0.0
      %7121 = vmatprep.subr.mxu0 0.0
      %7122 = vmatpush1.msra.mxu0 0.0
      %7123 = vmatprep.subr.mxu0 0.0
      %7124 = vmatpush1.msra.mxu0 0.0
      %7125 = vmatprep.subr.mxu0 0.0
      %7126 = vmatpush1.msra.mxu0 0.0
      %7127 = vmatprep.subr.mxu0 0.0
      %7128 = vmatpush1.msra.mxu0 0.0
      %7129 = vmatprep.subr.mxu0 0.0
      %7130 = vmatpush1.msra.mxu0 0.0
      %7131 = vmatprep.subr.mxu0 0.0
      %7132 = vmatpush1.msra.mxu0 0.0
      %7133 = vmatprep.subr.mxu0 0.0
      %7134 = vmatpush1.msra.mxu0 0.0
      %7135 = vmatprep.subr.mxu0 0.0
      %7136 = vmatpush1.msra.mxu0 0.0
      %7137 = vmatprep.subr.mxu0 0.0
      %7138 = vmatpush1.msra.mxu0 0.0
      %7139 = vmatprep.subr.mxu0 0.0
      %7140 = vmatpush1.msra.mxu0 0.0
      %7141 = vmatprep.subr.mxu0 0.0
      %7142 = vmatpush1.msra.mxu0 0.0
      %7143 = vmatprep.subr.mxu0 0.0
      %7144 = vmatpush1.msra.mxu0 0.0
      %7145 = vmatprep.subr.mxu0 0.0
      %7146 = vmatpush1.msra.mxu0 0.0
      %7147 = vmatprep.subr.mxu0 0.0
      %7148 = vmatpush1.msra.mxu0 0.0
      %7149 = vmatprep.subr.mxu0 0.0
      %7150 = vmatpush1.msra.mxu0 0.0
      %7151 = vmatprep.subr.mxu0 0.0
      %7152 = vmatpush1.msra.mxu0 0.0
      %7153 = vmatprep.subr.mxu0 0.0
      %7154 = vmatpush1.msra.mxu0 0.0
      %7155 = vmatprep.subr.mxu0 0.0
      %7156 = vmatpush1.msra.mxu0 0.0
      %7157 = vmatprep.subr.mxu0 0.0
      %7158 = vmatpush1.msra.mxu0 0.0
      %7159 = vmatprep.subr.mxu0 0.0
      %7160 = vmatpush1.msra.mxu0 0.0
      %7161 = vmatprep.subr.mxu0 0.0
      %7162 = vmatpush1.msra.mxu0 0.0
      %7163 = vmatprep.subr.mxu0 0.0
      %7164 = vmatpush1.msra.mxu0 0.0
      %7165 = vmatprep.subr.mxu0 0.0
      %7166 = vmatpush1.msra.mxu0 0.0
      %7167 = vmatprep.subr.mxu0 0.0
      %7168 = vmatpush1.msra.mxu0 0.0
      %7169 = vmatprep.subr.mxu0 0.0
      %7170 = vmatpush1.msra.mxu0 0.0
      %7171 = vmatprep.subr.mxu0 0.0
      %7172 = vmatpush1.msra.mxu0 0.0
      %7173 = vmatprep.subr.mxu0 0.0
      %7174 = vmatpush1.msra.mxu0 0.0
      %7175 = vmatprep.mubr.f32.mxu0 0.0
      %7176 = vmatmul.mubr.f32.gmra.mrb[0].mxu0 %v7106
      %v7177 = vpop.f32.mrb[0].mxu0
      %v7178 = vadd.f32 0.0, %v7177
      %v7179 = vpop.f32.mrb[0].mxu0
      %7180 = vdwg.mxu0
      %v7181 = vadd.f32 %v7099, %v7178
      %7182 = vrot.lane.b32.xlu0 %v6610, 120
      %v7183 = vpop.permute.xlu0 %7182
      %v7184 = vmul.f32 %v7183, %v4729
      %s7185 = scalar_lea.vmem %s22, 14
      %v7186 = vld [vmem:[%s7185] sm:$0x3]
      %v7188 = vsel %vm6622, %v7186, 0
      %v7191 = vsel %vm3836, %v7184, 0
      %7193 = vmatprep.subr.mxu0 0.0
      %7194 = vmatpush1.msra.mxu0 %v7191
      %7195 = vmatprep.subr.mxu0 0.0
      %7196 = vmatpush1.msra.mxu0 0.0
      %7197 = vmatprep.subr.mxu0 0.0
      %7198 = vmatpush1.msra.mxu0 0.0
      %7199 = vmatprep.subr.mxu0 0.0
      %7200 = vmatpush1.msra.mxu0 0.0
      %7201 = vmatprep.subr.mxu0 0.0
      %7202 = vmatpush1.msra.mxu0 0.0
      %7203 = vmatprep.subr.mxu0 0.0
      %7204 = vmatpush1.msra.mxu0 0.0
      %7205 = vmatprep.subr.mxu0 0.0
      %7206 = vmatpush1.msra.mxu0 0.0
      %7207 = vmatprep.subr.mxu0 0.0
      %7208 = vmatpush1.msra.mxu0 0.0
      %7209 = vmatprep.subr.mxu0 0.0
      %7210 = vmatpush1.msra.mxu0 0.0
      %7211 = vmatprep.subr.mxu0 0.0
      %7212 = vmatpush1.msra.mxu0 0.0
      %7213 = vmatprep.subr.mxu0 0.0
      %7214 = vmatpush1.msra.mxu0 0.0
      %7215 = vmatprep.subr.mxu0 0.0
      %7216 = vmatpush1.msra.mxu0 0.0
      %7217 = vmatprep.subr.mxu0 0.0
      %7218 = vmatpush1.msra.mxu0 0.0
      %7219 = vmatprep.subr.mxu0 0.0
      %7220 = vmatpush1.msra.mxu0 0.0
      %7221 = vmatprep.subr.mxu0 0.0
      %7222 = vmatpush1.msra.mxu0 0.0
      %7223 = vmatprep.subr.mxu0 0.0
      %7224 = vmatpush1.msra.mxu0 0.0
      %7225 = vmatprep.subr.mxu0 0.0
      %7226 = vmatpush1.msra.mxu0 0.0
      %7227 = vmatprep.subr.mxu0 0.0
      %7228 = vmatpush1.msra.mxu0 0.0
      %7229 = vmatprep.subr.mxu0 0.0
      %7230 = vmatpush1.msra.mxu0 0.0
      %7231 = vmatprep.subr.mxu0 0.0
      %7232 = vmatpush1.msra.mxu0 0.0
      %7233 = vmatprep.subr.mxu0 0.0
      %7234 = vmatpush1.msra.mxu0 0.0
      %7235 = vmatprep.subr.mxu0 0.0
      %7236 = vmatpush1.msra.mxu0 0.0
      %7237 = vmatprep.subr.mxu0 0.0
      %7238 = vmatpush1.msra.mxu0 0.0
      %7239 = vmatprep.subr.mxu0 0.0
      %7240 = vmatpush1.msra.mxu0 0.0
      %7241 = vmatprep.subr.mxu0 0.0
      %7242 = vmatpush1.msra.mxu0 0.0
      %7243 = vmatprep.subr.mxu0 0.0
      %7244 = vmatpush1.msra.mxu0 0.0
      %7245 = vmatprep.subr.mxu0 0.0
      %7246 = vmatpush1.msra.mxu0 0.0
      %7247 = vmatprep.subr.mxu0 0.0
      %7248 = vmatpush1.msra.mxu0 0.0
      %7249 = vmatprep.subr.mxu0 0.0
      %7250 = vmatpush1.msra.mxu0 0.0
      %7251 = vmatprep.subr.mxu0 0.0
      %7252 = vmatpush1.msra.mxu0 0.0
      %7253 = vmatprep.subr.mxu0 0.0
      %7254 = vmatpush1.msra.mxu0 0.0
      %7255 = vmatprep.subr.mxu0 0.0
      %7256 = vmatpush1.msra.mxu0 0.0
      %7257 = vmatprep.mubr.f32.mxu0 0.0
      %7258 = vmatmul.mubr.f32.gmra.mrb[0].mxu0 %v7188
      %v7259 = vpop.f32.mrb[0].mxu0
      %v7260 = vadd.f32 0.0, %v7259
      %v7261 = vpop.f32.mrb[0].mxu0
      %7262 = vdwg.mxu0
      %v7263 = vadd.f32 %v7181, %v7260
      %7264 = vrot.lane.b32.xlu0 %v6610, 119
      %v7265 = vpop.permute.xlu0 %7264
      %v7266 = vmul.f32 %v7265, %v4841
      %s7267 = scalar_lea.vmem %s22, 16
      %v7268 = vld [vmem:[%s7267] sm:$0x3]
      %v7270 = vsel %vm6622, %v7268, 0
      %v7273 = vsel %vm3836, %v7266, 0
      %7275 = vmatprep.subr.mxu0 0.0
      %7276 = vmatpush1.msra.mxu0 %v7273
      %7277 = vmatprep.subr.mxu0 0.0
      %7278 = vmatpush1.msra.mxu0 0.0
      %7279 = vmatprep.subr.mxu0 0.0
      %7280 = vmatpush1.msra.mxu0 0.0
      %7281 = vmatprep.subr.mxu0 0.0
      %7282 = vmatpush1.msra.mxu0 0.0
      %7283 = vmatprep.subr.mxu0 0.0
      %7284 = vmatpush1.msra.mxu0 0.0
      %7285 = vmatprep.subr.mxu0 0.0
      %7286 = vmatpush1.msra.mxu0 0.0
      %7287 = vmatprep.subr.mxu0 0.0
      %7288 = vmatpush1.msra.mxu0 0.0
      %7289 = vmatprep.subr.mxu0 0.0
      %7290 = vmatpush1.msra.mxu0 0.0
      %7291 = vmatprep.subr.mxu0 0.0
      %7292 = vmatpush1.msra.mxu0 0.0
      %7293 = vmatprep.subr.mxu0 0.0
      %7294 = vmatpush1.msra.mxu0 0.0
      %7295 = vmatprep.subr.mxu0 0.0
      %7296 = vmatpush1.msra.mxu0 0.0
      %7297 = vmatprep.subr.mxu0 0.0
      %7298 = vmatpush1.msra.mxu0 0.0
      %7299 = vmatprep.subr.mxu0 0.0
      %7300 = vmatpush1.msra.mxu0 0.0
      %7301 = vmatprep.subr.mxu0 0.0
      %7302 = vmatpush1.msra.mxu0 0.0
      %7303 = vmatprep.subr.mxu0 0.0
      %7304 = vmatpush1.msra.mxu0 0.0
      %7305 = vmatprep.subr.mxu0 0.0
      %7306 = vmatpush1.msra.mxu0 0.0
      %7307 = vmatprep.subr.mxu0 0.0
      %7308 = vmatpush1.msra.mxu0 0.0
      %7309 = vmatprep.subr.mxu0 0.0
      %7310 = vmatpush1.msra.mxu0 0.0
      %7311 = vmatprep.subr.mxu0 0.0
      %7312 = vmatpush1.msra.mxu0 0.0
      %7313 = vmatprep.subr.mxu0 0.0
      %7314 = vmatpush1.msra.mxu0 0.0
      %7315 = vmatprep.subr.mxu0 0.0
      %7316 = vmatpush1.msra.mxu0 0.0
      %7317 = vmatprep.subr.mxu0 0.0
      %7318 = vmatpush1.msra.mxu0 0.0
      %7319 = vmatprep.subr.mxu0 0.0
      %7320 = vmatpush1.msra.mxu0 0.0
      %7321 = vmatprep.subr.mxu0 0.0
      %7322 = vmatpush1.msra.mxu0 0.0
      %7323 = vmatprep.subr.mxu0 0.0
      %7324 = vmatpush1.msra.mxu0 0.0
      %7325 = vmatprep.subr.mxu0 0.0
      %7326 = vmatpush1.msra.mxu0 0.0
      %7327 = vmatprep.subr.mxu0 0.0
      %7328 = vmatpush1.msra.mxu0 0.0
      %7329 = vmatprep.subr.mxu0 0.0
      %7330 = vmatpush1.msra.mxu0 0.0
      %7331 = vmatprep.subr.mxu0 0.0
      %7332 = vmatpush1.msra.mxu0 0.0
      %7333 = vmatprep.subr.mxu0 0.0
      %7334 = vmatpush1.msra.mxu0 0.0
      %7335 = vmatprep.subr.mxu0 0.0
      %7336 = vmatpush1.msra.mxu0 0.0
      %7337 = vmatprep.subr.mxu0 0.0
      %7338 = vmatpush1.msra.mxu0 0.0
      %7339 = vmatprep.mubr.f32.mxu0 0.0
      %7340 = vmatmul.mubr.f32.gmra.mrb[0].mxu0 %v7270
      %v7341 = vpop.f32.mrb[0].mxu0
      %v7342 = vadd.f32 0.0, %v7341
      %v7343 = vpop.f32.mrb[0].mxu0
      %7344 = vdwg.mxu0
      %v7345 = vadd.f32 %v7263, %v7342
      %v7346 = vld [vmem:[%s23] sm:$0x3]
      %7348 = vset.pattern.permute.xlu0 0
      %7349 = vperm.xlu0 %7348, %v7346
      %v7350 = vpop.permute.xlu0 %7349
      %v7352 = vadd.f32 %v7345, %v7350
      %v7353 = vmax.f32 %v7352, 0.0
      %v7354 = vsel %vm3836, %v7353, 0.0
      %7355 = vadd.xlane.f32.xlu0 %v7354
      %v7356 = vpop.xlane.xlu0 %7355
      %v7357 = vmul.f32 %v7356, %v3840
      %v7358 = vsub.f32 %v7353, %v7357
      %v7359 = vmul.f32 %v7358, %v7358
      %v7360 = vsel %vm3836, %v7359, 0.0
      %7361 = vadd.xlane.f32.xlu0 %v7360
      %v7362 = vpop.xlane.xlu0 %7361
      %v7363 = vmul.f32 %v7362, %v3840
      %v7364 = vadd.f32 %v7363, 1e-05
      %v7365 = vrsqrt.pop %v7364
      %v7366 = vmul.f32 %v7358, %v7365
      %v7367 = vmul.f32 %v7366, %v6526
      %v7368 = vadd.f32 %v7367, %v6533
      %v7369 = vld [vmem:[%s7] sm:$0xff]
      %v7370 = vld [vmem:[%s7 + $0x8] sm:$0xff]
      %v7371 = vld [vmem:[%s7 + $0x10] sm:$0xff]
      %v7372 = vld [vmem:[%s7 + $0x18] sm:$0xff]
      %v7373 = vld [vmem:[%s7 + $0x20] sm:$0xff]
      %v7374 = vld [vmem:[%s7 + $0x28] sm:$0xff]
      %v7375 = vld [vmem:[%s7 + $0x30] sm:$0xff]
      %v7376 = vld [vmem:[%s7 + $0x38] sm:$0xff]
      %v7377 = vld [vmem:[%s7 + $0x40] sm:$0xff]
      %v7378 = vld [vmem:[%s7 + $0x48] sm:$0xff]
      %v7379 = vld [vmem:[%s7 + $0x50] sm:$0xff]
      %v7380 = vld [vmem:[%s7 + $0x58] sm:$0xff]
      %v7381 = vld [vmem:[%s7 + $0x60] sm:$0xff]
      %v7382 = vld [vmem:[%s7 + $0x68] sm:$0xff]
      %v7383 = vld [vmem:[%s7 + $0x70] sm:$0xff]
      %v7384 = vld [vmem:[%s7 + $0x78] sm:$0xff]
      %v7385 = vld [vmem:[%s7 + $0x80] sm:$0xff]
      %v7386 = vld [vmem:[%s7 + $0x88] sm:$0xff]
      %v7387 = vld [vmem:[%s7 + $0x90] sm:$0xff]
      %v7388 = vld [vmem:[%s7 + $0x98] sm:$0xff]
      %v7389 = vld [vmem:[%s7 + $0xa0] sm:$0xff]
      %v7390 = vld [vmem:[%s7 + $0xa8] sm:$0xff]
      %v7391 = vld [vmem:[%s7 + $0xb0] sm:$0xff]
      %v7392 = vld [vmem:[%s7 + $0xb8] sm:$0xff]
      %v7393 = vld [vmem:[%s7 + $0xc0] sm:$0xff]
      %v7394 = vld [vmem:[%s7 + $0xc8] sm:$0xff]
      %v7395 = vld [vmem:[%s7 + $0xd0] sm:$0xff]
      %v7396 = vld [vmem:[%s7 + $0xd8] sm:$0xff]
      %v7397 = vld [vmem:[%s7 + $0xe0] sm:$0xff]
      %v7398 = vld [vmem:[%s7 + $0xe8] sm:$0xff]
      %v7399 = vld [vmem:[%s7 + $0xf0] sm:$0xff]
      %v7400 = vld [vmem:[%s7 + $0xf8] sm:$0xff]
      %v7401 = vld [vmem:[%s7 + $0x100] sm:$0xff]
      %v7402 = vld [vmem:[%s7 + $0x108] sm:$0xff]
      %v7403 = vld [vmem:[%s7 + $0x110] sm:$0xff]
      %v7404 = vld [vmem:[%s7 + $0x118] sm:$0xff]
      %v7405 = vld [vmem:[%s7 + $0x120] sm:$0xff]
      %v7406 = vld [vmem:[%s7 + $0x128] sm:$0xff]
      %v7407 = vld [vmem:[%s7 + $0x130] sm:$0xff]
      %v7408 = vld [vmem:[%s7 + $0x138] sm:$0xff]
      %v7409 = vld [vmem:[%s7 + $0x140] sm:$0xff]
      %v7410 = vld [vmem:[%s7 + $0x148] sm:$0xff]
      %v7411 = vld [vmem:[%s7 + $0x150] sm:$0xff]
      %v7412 = vld [vmem:[%s7 + $0x158] sm:$0xff]
      %v7413 = vld [vmem:[%s7 + $0x160] sm:$0xff]
      %v7414 = vld [vmem:[%s7 + $0x168] sm:$0xff]
      %v7415 = vld [vmem:[%s7 + $0x170] sm:$0xff]
      %v7416 = vld [vmem:[%s7 + $0x178] sm:$0xff]
      %v7417 = vld [vmem:[%s7 + $0x180] sm:$0xff]
      %v7418 = vld [vmem:[%s7 + $0x188] sm:$0xff]
      %v7419 = vld [vmem:[%s7 + $0x190] sm:$0xff]
      %v7420 = vld [vmem:[%s7 + $0x198] sm:$0xff]
      %v7421 = vld [vmem:[%s7 + $0x1a0] sm:$0xff]
      %v7422 = vld [vmem:[%s7 + $0x1a8] sm:$0xff]
      %v7423 = vld [vmem:[%s7 + $0x1b0] sm:$0xff]
      %v7424 = vld [vmem:[%s7 + $0x1b8] sm:$0xff]
      %v7425 = vld [vmem:[%s7 + $0x1c0] sm:$0xff]
      %v7426 = vld [vmem:[%s7 + $0x1c8] sm:$0xff]
      %v7427 = vld [vmem:[%s7 + $0x1d0] sm:$0xff]
      %v7428 = vld [vmem:[%s7 + $0x1d8] sm:$0xff]
      %v7429 = vld [vmem:[%s7 + $0x1e0] sm:$0xff]
      %v7430 = vld [vmem:[%s7 + $0x1e8] sm:$0xff]
      %v7431 = vld [vmem:[%s7 + $0x1f0] sm:$0xff]
      %v7432 = vld [vmem:[%s7 + $0x1f8] sm:$0xff]
      %7433 = vmatprep.subr.mxu0 %v7370
      %7434 = vmatpush1.msra.mxu0 %v7369
      %7435 = vmatprep.subr.mxu0 %v7374
      %7436 = vmatpush1.msra.mxu0 %v7373
      %7437 = vmatprep.subr.mxu0 %v7378
      %7438 = vmatpush1.msra.mxu0 %v7377
      %7439 = vmatprep.subr.mxu0 %v7382
      %7440 = vmatpush1.msra.mxu0 %v7381
      %7441 = vmatprep.subr.mxu0 %v7386
      %7442 = vmatpush1.msra.mxu0 %v7385
      %7443 = vmatprep.subr.mxu0 %v7390
      %7444 = vmatpush1.msra.mxu0 %v7389
      %7445 = vmatprep.subr.mxu0 %v7394
      %7446 = vmatpush1.msra.mxu0 %v7393
      %7447 = vmatprep.subr.mxu0 %v7398
      %7448 = vmatpush1.msra.mxu0 %v7397
      %7449 = vmatprep.subr.mxu0 %v7402
      %7450 = vmatpush1.msra.mxu0 %v7401
      %7451 = vmatprep.subr.mxu0 %v7406
      %7452 = vmatpush1.msra.mxu0 %v7405
      %7453 = vmatprep.subr.mxu0 %v7410
      %7454 = vmatpush1.msra.mxu0 %v7409
      %7455 = vmatprep.subr.mxu0 %v7414
      %7456 = vmatpush1.msra.mxu0 %v7413
      %7457 = vmatprep.subr.mxu0 %v7418
      %7458 = vmatpush1.msra.mxu0 %v7417
      %7459 = vmatprep.subr.mxu0 %v7422
      %7460 = vmatpush1.msra.mxu0 %v7421
      %7461 = vmatprep.subr.mxu0 %v7426
      %7462 = vmatpush1.msra.mxu0 %v7425
      %7463 = vmatprep.subr.mxu0 %v7430
      %7464 = vmatpush1.msra.mxu0 %v7429
      %7465 = vmatprep.subr.mxu0 0.0
      %7466 = vmatpush1.msra.mxu0 0.0
      %7467 = vmatprep.subr.mxu0 0.0
      %7468 = vmatpush1.msra.mxu0 0.0
      %7469 = vmatprep.subr.mxu0 0.0
      %7470 = vmatpush1.msra.mxu0 0.0
      %7471 = vmatprep.subr.mxu0 0.0
      %7472 = vmatpush1.msra.mxu0 0.0
      %7473 = vmatprep.subr.mxu0 0.0
      %7474 = vmatpush1.msra.mxu0 0.0
      %7475 = vmatprep.subr.mxu0 0.0
      %7476 = vmatpush1.msra.mxu0 0.0
      %7477 = vmatprep.subr.mxu0 0.0
      %7478 = vmatpush1.msra.mxu0 0.0
      %7479 = vmatprep.subr.mxu0 0.0
      %7480 = vmatpush1.msra.mxu0 0.0
      %7481 = vmatprep.subr.mxu0 0.0
      %7482 = vmatpush1.msra.mxu0 0.0
      %7483 = vmatprep.subr.mxu0 0.0
      %7484 = vmatpush1.msra.mxu0 0.0
      %7485 = vmatprep.subr.mxu0 0.0
      %7486 = vmatpush1.msra.mxu0 0.0
      %7487 = vmatprep.subr.mxu0 0.0
      %7488 = vmatpush1.msra.mxu0 0.0
      %7489 = vmatprep.subr.mxu0 0.0
      %7490 = vmatpush1.msra.mxu0 0.0
      %7491 = vmatprep.subr.mxu0 0.0
      %7492 = vmatpush1.msra.mxu0 0.0
      %7493 = vmatprep.subr.mxu0 0.0
      %7494 = vmatpush1.msra.mxu0 0.0
      %7495 = vmatprep.subr.mxu0 0.0
      %7496 = vmatpush1.msra.mxu0 0.0
      %7497 = vmatprep.mubr.f32.mxu0 0.0
      %7498 = vmatmul.mubr.f32.gmra.mrb[0].mxu0 %v7368
      %v7499 = vpop.f32.mrb[0].mxu0
      %v7500 = vadd.f32 0.0, %v7499
      %v7501 = vpop.f32.mrb[0].mxu0
      %v7502 = vadd.f32 0.0, %v7501
      %7503 = vdwg.mxu0
      %7504 = vmatprep.subr.mxu0 %v7372
      %7505 = vmatpush1.msra.mxu0 %v7371
      %7506 = vmatprep.subr.mxu0 %v7376
      %7507 = vmatpush1.msra.mxu0 %v7375
      %7508 = vmatprep.subr.mxu0 %v7380
      %7509 = vmatpush1.msra.mxu0 %v7379
      %7510 = vmatprep.subr.mxu0 %v7384
      %7511 = vmatpush1.msra.mxu0 %v7383
      %7512 = vmatprep.subr.mxu0 %v7388
      %7513 = vmatpush1.msra.mxu0 %v7387
      %7514 = vmatprep.subr.mxu0 %v7392
      %7515 = vmatpush1.msra.mxu0 %v7391
      %7516 = vmatprep.subr.mxu0 %v7396
      %7517 = vmatpush1.msra.mxu0 %v7395
      %7518 = vmatprep.subr.mxu0 %v7400
      %7519 = vmatpush1.msra.mxu0 %v7399
      %7520 = vmatprep.subr.mxu0 %v7404
      %7521 = vmatpush1.msra.mxu0 %v7403
      %7522 = vmatprep.subr.mxu0 %v7408
      %7523 = vmatpush1.msra.mxu0 %v7407
      %7524 = vmatprep.subr.mxu0 %v7412
      %7525 = vmatpush1.msra.mxu0 %v7411
      %7526 = vmatprep.subr.mxu0 %v7416
      %7527 = vmatpush1.msra.mxu0 %v7415
      %7528 = vmatprep.subr.mxu0 %v7420
      %7529 = vmatpush1.msra.mxu0 %v7419
      %7530 = vmatprep.subr.mxu0 %v7424
      %7531 = vmatpush1.msra.mxu0 %v7423
      %7532 = vmatprep.subr.mxu0 %v7428
      %7533 = vmatpush1.msra.mxu0 %v7427
      %7534 = vmatprep.subr.mxu0 %v7432
      %7535 = vmatpush1.msra.mxu0 %v7431
      %7536 = vmatprep.subr.mxu0 0.0
      %7537 = vmatpush1.msra.mxu0 0.0
      %7538 = vmatprep.subr.mxu0 0.0
      %7539 = vmatpush1.msra.mxu0 0.0
      %7540 = vmatprep.subr.mxu0 0.0
      %7541 = vmatpush1.msra.mxu0 0.0
      %7542 = vmatprep.subr.mxu0 0.0
      %7543 = vmatpush1.msra.mxu0 0.0
      %7544 = vmatprep.subr.mxu0 0.0
      %7545 = vmatpush1.msra.mxu0 0.0
      %7546 = vmatprep.subr.mxu0 0.0
      %7547 = vmatpush1.msra.mxu0 0.0
      %7548 = vmatprep.subr.mxu0 0.0
      %7549 = vmatpush1.msra.mxu0 0.0
      %7550 = vmatprep.subr.mxu0 0.0
      %7551 = vmatpush1.msra.mxu0 0.0
      %7552 = vmatprep.subr.mxu0 0.0
      %7553 = vmatpush1.msra.mxu0 0.0
      %7554 = vmatprep.subr.mxu0 0.0
      %7555 = vmatpush1.msra.mxu0 0.0
      %7556 = vmatprep.subr.mxu0 0.0
      %7557 = vmatpush1.msra.mxu0 0.0
      %7558 = vmatprep.subr.mxu0 0.0
      %7559 = vmatpush1.msra.mxu0 0.0
      %7560 = vmatprep.subr.mxu0 0.0
      %7561 = vmatpush1.msra.mxu0 0.0
      %7562 = vmatprep.subr.mxu0 0.0
      %7563 = vmatpush1.msra.mxu0 0.0
      %7564 = vmatprep.subr.mxu0 0.0
      %7565 = vmatpush1.msra.mxu0 0.0
      %7566 = vmatprep.subr.mxu0 0.0
      %7567 = vmatpush1.msra.mxu0 0.0
      %7568 = vmatprep.mubr.f32.mxu0 0.0
      %7569 = vmatmul.mubr.f32.gmra.mrb[0].mxu0 %v7368
      %v7570 = vpop.f32.mrb[0].mxu0
      %v7571 = vadd.f32 0.0, %v7570
      %v7572 = vpop.f32.mrb[0].mxu0
      %v7573 = vadd.f32 0.0, %v7572
      %7574 = vdwg.mxu0
      %v7575 = vld [vmem:[%s24] sm:$0x3]
      %v7576 = vld [vmem:[%s25] sm:$0x3]
      %7578 = vset.pattern.permute.xlu0 0
      %7579 = vperm.xlu0 %7578, %v7576
      %v7580 = vpop.permute.xlu0 %7579
      %v7583 = vsel %vm6622, %v7575, 0
      %v7586 = vsel %vm3836, %v7500, 0
      %v7589 = vsel %vm3836, %v7502, 0
      %v7592 = vsel %vm3836, %v7571, 0
      %v7595 = vsel %vm3836, %v7573, 0
      %7597 = vmatprep.subr.mxu0 %v7589
      %7598 = vmatpush1.msra.mxu0 %v7586
      %7599 = vmatprep.subr.mxu0 0.0
      %7600 = vmatpush1.msra.mxu0 0.0
      %7601 = vmatprep.subr.mxu0 0.0
      %7602 = vmatpush1.msra.mxu0 0.0
      %7603 = vmatprep.subr.mxu0 0.0
      %7604 = vmatpush1.msra.mxu0 0.0
      %7605 = vmatprep.subr.mxu0 0.0
      %7606 = vmatpush1.msra.mxu0 0.0
      %7607 = vmatprep.subr.mxu0 0.0
      %7608 = vmatpush1.msra.mxu0 0.0
      %7609 = vmatprep.subr.mxu0 0.0
      %7610 = vmatpush1.msra.mxu0 0.0
      %7611 = vmatprep.subr.mxu0 0.0
      %7612 = vmatpush1.msra.mxu0 0.0
      %7613 = vmatprep.subr.mxu0 0.0
      %7614 = vmatpush1.msra.mxu0 0.0
      %7615 = vmatprep.subr.mxu0 0.0
      %7616 = vmatpush1.msra.mxu0 0.0
      %7617 = vmatprep.subr.mxu0 0.0
      %7618 = vmatpush1.msra.mxu0 0.0
      %7619 = vmatprep.subr.mxu0 0.0
      %7620 = vmatpush1.msra.mxu0 0.0
      %7621 = vmatprep.subr.mxu0 0.0
      %7622 = vmatpush1.msra.mxu0 0.0
      %7623 = vmatprep.subr.mxu0 0.0
      %7624 = vmatpush1.msra.mxu0 0.0
      %7625 = vmatprep.subr.mxu0 0.0
      %7626 = vmatpush1.msra.mxu0 0.0
      %7627 = vmatprep.subr.mxu0 0.0
      %7628 = vmatpush1.msra.mxu0 0.0
      %7629 = vmatprep.subr.mxu0 0.0
      %7630 = vmatpush1.msra.mxu0 0.0
      %7631 = vmatprep.subr.mxu0 0.0
      %7632 = vmatpush1.msra.mxu0 0.0
      %7633 = vmatprep.subr.mxu0 0.0
      %7634 = vmatpush1.msra.mxu0 0.0
      %7635 = vmatprep.subr.mxu0 0.0
      %7636 = vmatpush1.msra.mxu0 0.0
      %7637 = vmatprep.subr.mxu0 0.0
      %7638 = vmatpush1.msra.mxu0 0.0
      %7639 = vmatprep.subr.mxu0 0.0
      %7640 = vmatpush1.msra.mxu0 0.0
      %7641 = vmatprep.subr.mxu0 0.0
      %7642 = vmatpush1.msra.mxu0 0.0
      %7643 = vmatprep.subr.mxu0 0.0
      %7644 = vmatpush1.msra.mxu0 0.0
      %7645 = vmatprep.subr.mxu0 0.0
      %7646 = vmatpush1.msra.mxu0 0.0
      %7647 = vmatprep.subr.mxu0 0.0
      %7648 = vmatpush1.msra.mxu0 0.0
      %7649 = vmatprep.subr.mxu0 0.0
      %7650 = vmatpush1.msra.mxu0 0.0
      %7651 = vmatprep.subr.mxu0 0.0
      %7652 = vmatpush1.msra.mxu0 0.0
      %7653 = vmatprep.subr.mxu0 0.0
      %7654 = vmatpush1.msra.mxu0 0.0
      %7655 = vmatprep.subr.mxu0 0.0
      %7656 = vmatpush1.msra.mxu0 0.0
      %7657 = vmatprep.subr.mxu0 0.0
      %7658 = vmatpush1.msra.mxu0 0.0
      %7659 = vmatprep.subr.mxu0 0.0
      %7660 = vmatpush1.msra.mxu0 0.0
      %7661 = vmatprep.mubr.f32.mxu0 0.0
      %7662 = vmatmul.mubr.f32.gmra.mrb[0].mxu0 %v7583
      %v7663 = vpop.f32.mrb[0].mxu0
      %v7664 = vadd.f32 %v7580, %v7663
      %v7665 = vpop.f32.mrb[0].mxu0
      %v7666 = vadd.f32 %v7580, %v7665
      %7667 = vdwg.mxu0
      %7668 = vmatprep.subr.mxu0 %v7595
      %7669 = vmatpush1.msra.mxu0 %v7592
      %7670 = vmatprep.subr.mxu0 0.0
      %7671 = vmatpush1.msra.mxu0 0.0
      %7672 = vmatprep.subr.mxu0 0.0
      %7673 = vmatpush1.msra.mxu0 0.0
      %7674 = vmatprep.subr.mxu0 0.0
      %7675 = vmatpush1.msra.mxu0 0.0
      %7676 = vmatprep.subr.mxu0 0.0
      %7677 = vmatpush1.msra.mxu0 0.0
      %7678 = vmatprep.subr.mxu0 0.0
      %7679 = vmatpush1.msra.mxu0 0.0
      %7680 = vmatprep.subr.mxu0 0.0
      %7681 = vmatpush1.msra.mxu0 0.0
      %7682 = vmatprep.subr.mxu0 0.0
      %7683 = vmatpush1.msra.mxu0 0.0
      %7684 = vmatprep.subr.mxu0 0.0
      %7685 = vmatpush1.msra.mxu0 0.0
      %7686 = vmatprep.subr.mxu0 0.0
      %7687 = vmatpush1.msra.mxu0 0.0
      %7688 = vmatprep.subr.mxu0 0.0
      %7689 = vmatpush1.msra.mxu0 0.0
      %7690 = vmatprep.subr.mxu0 0.0
      %7691 = vmatpush1.msra.mxu0 0.0
      %7692 = vmatprep.subr.mxu0 0.0
      %7693 = vmatpush1.msra.mxu0 0.0
      %7694 = vmatprep.subr.mxu0 0.0
      %7695 = vmatpush1.msra.mxu0 0.0
      %7696 = vmatprep.subr.mxu0 0.0
      %7697 = vmatpush1.msra.mxu0 0.0
      %7698 = vmatprep.subr.mxu0 0.0
      %7699 = vmatpush1.msra.mxu0 0.0
      %7700 = vmatprep.subr.mxu0 0.0
      %7701 = vmatpush1.msra.mxu0 0.0
      %7702 = vmatprep.subr.mxu0 0.0
      %7703 = vmatpush1.msra.mxu0 0.0
      %7704 = vmatprep.subr.mxu0 0.0
      %7705 = vmatpush1.msra.mxu0 0.0
      %7706 = vmatprep.subr.mxu0 0.0
      %7707 = vmatpush1.msra.mxu0 0.0
      %7708 = vmatprep.subr.mxu0 0.0
      %7709 = vmatpush1.msra.mxu0 0.0
      %7710 = vmatprep.subr.mxu0 0.0
      %7711 = vmatpush1.msra.mxu0 0.0
      %7712 = vmatprep.subr.mxu0 0.0
      %7713 = vmatpush1.msra.mxu0 0.0
      %7714 = vmatprep.subr.mxu0 0.0
      %7715 = vmatpush1.msra.mxu0 0.0
      %7716 = vmatprep.subr.mxu0 0.0
      %7717 = vmatpush1.msra.mxu0 0.0
      %7718 = vmatprep.subr.mxu0 0.0
      %7719 = vmatpush1.msra.mxu0 0.0
      %7720 = vmatprep.subr.mxu0 0.0
      %7721 = vmatpush1.msra.mxu0 0.0
      %7722 = vmatprep.subr.mxu0 0.0
      %7723 = vmatpush1.msra.mxu0 0.0
      %7724 = vmatprep.subr.mxu0 0.0
      %7725 = vmatpush1.msra.mxu0 0.0
      %7726 = vmatprep.subr.mxu0 0.0
      %7727 = vmatpush1.msra.mxu0 0.0
      %7728 = vmatprep.subr.mxu0 0.0
      %7729 = vmatpush1.msra.mxu0 0.0
      %7730 = vmatprep.subr.mxu0 0.0
      %7731 = vmatpush1.msra.mxu0 0.0
      %7732 = vmatprep.mubr.f32.mxu0 0.0
      %7733 = vmatmul.mubr.f32.gmra.mrb[0].mxu0 %v7583
      %v7734 = vpop.f32.mrb[0].mxu0
      %v7735 = vadd.f32 %v7580, %v7734
      %v7736 = vpop.f32.mrb[0].mxu0
      %v7737 = vadd.f32 %v7580, %v7736
      %7738 = vdwg.mxu0
      %v7739 = vmax.f32 %v7664, 0.0
      %v7740 = vmax.f32 %v7666, 0.0
      %v7741 = vmax.f32 %v7735, 0.0
      %v7742 = vmax.f32 %v7737, 0.0
      %v7743 = vsel %vm3836, %v7739, -inf
      %v7744 = vrot.slane %v7743, 4
      %v7745 = vmax.f32 %v7743, %v7744
      %v7746 = vrot.slane %v7745, 2
      %v7747 = vmax.f32 %v7745, %v7746
      %v7748 = vrot.slane %v7747, 1
      %v7749 = vmax.f32 %v7747, %v7748
      %v7750 = vsel %vm3836, %v7740, -inf
      %v7751 = vrot.slane %v7750, 4
      %v7752 = vmax.f32 %v7750, %v7751
      %v7753 = vrot.slane %v7752, 2
      %v7754 = vmax.f32 %v7752, %v7753
      %v7755 = vrot.slane %v7754, 1
      %v7756 = vmax.f32 %v7754, %v7755
      %v7757 = vsel %vm3836, %v7741, -inf
      %v7758 = vrot.slane %v7757, 4
      %v7759 = vmax.f32 %v7757, %v7758
      %v7760 = vrot.slane %v7759, 2
      %v7761 = vmax.f32 %v7759, %v7760
      %v7762 = vrot.slane %v7761, 1
      %v7763 = vmax.f32 %v7761, %v7762
      %v7764 = vsel %vm3836, %v7742, -inf
      %v7765 = vrot.slane %v7764, 4
      %v7766 = vmax.f32 %v7764, %v7765
      %v7767 = vrot.slane %v7766, 2
      %v7768 = vmax.f32 %v7766, %v7767
      %v7769 = vrot.slane %v7768, 1
      %v7770 = vmax.f32 %v7768, %v7769
      %v7771 = vsub.f32 %v7739, %v7749
      %v7772 = vsub.f32 %v7740, %v7756
      %v7773 = vsub.f32 %v7741, %v7763
      %v7774 = vsub.f32 %v7742, %v7770
      %v7775 = vmul.f32 %v7771, 1.442695
      %v7776 = vpow.pop %v7775
      %v7777 = vmul.f32 %v7772, 1.442695
      %v7778 = vpow.pop %v7777
      %v7779 = vmul.f32 %v7773, 1.442695
      %v7780 = vpow.pop %v7779
      %v7781 = vmul.f32 %v7774, 1.442695
      %v7782 = vpow.pop %v7781
      %v7783 = vsel %vm3836, %v7776, 0.0
      %v7784 = vrot.slane %v7783, 4
      %v7785 = vadd.f32 %v7783, %v7784
      %v7786 = vrot.slane %v7785, 2
      %v7787 = vadd.f32 %v7785, %v7786
      %v7788 = vrot.slane %v7787, 1
      %v7789 = vadd.f32 %v7787, %v7788
      %v7790 = vsel %vm3836, %v7778, 0.0
      %v7791 = vrot.slane %v7790, 4
      %v7792 = vadd.f32 %v7790, %v7791
      %v7793 = vrot.slane %v7792, 2
      %v7794 = vadd.f32 %v7792, %v7793
      %v7795 = vrot.slane %v7794, 1
      %v7796 = vadd.f32 %v7794, %v7795
      %v7797 = vsel %vm3836, %v7780, 0.0
      %v7798 = vrot.slane %v7797, 4
      %v7799 = vadd.f32 %v7797, %v7798
      %v7800 = vrot.slane %v7799, 2
      %v7801 = vadd.f32 %v7799, %v7800
      %v7802 = vrot.slane %v7801, 1
      %v7803 = vadd.f32 %v7801, %v7802
      %v7804 = vsel %vm3836, %v7782, 0.0
      %v7805 = vrot.slane %v7804, 4
      %v7806 = vadd.f32 %v7804, %v7805
      %v7807 = vrot.slane %v7806, 2
      %v7808 = vadd.f32 %v7806, %v7807
      %v7809 = vrot.slane %v7808, 1
      %v7810 = vadd.f32 %v7808, %v7809
      %v7811 = vrcp.pop %v7789
      %v7812 = vmul.f32 %v7776, %v7811
      %v7813 = vrcp.pop %v7796
      %v7814 = vmul.f32 %v7778, %v7813
      %v7815 = vrcp.pop %v7803
      %v7816 = vmul.f32 %v7780, %v7815
      %v7817 = vrcp.pop %v7810
      %v7818 = vmul.f32 %v7782, %v7817
      %v7823 = vcombine.low %v7812, %v7814
      %v7824 = vcombine.low %v7816, %v7818
      %v7826 = vunpack.c.l.s4 1983009808
      %v7827 = vunpack.c.0.s8 %v7826
      %v7828 = vlaneseq
      %v7829 = vshrl.u32 %v7828, 7
      %v7830 = vsub.s32 %v7827, %v7829
      %v7831 = vrot.slane %v7823, %v7830
      %v7833 = vunpack.c.l.s4 1983009808
      %v7834 = vunpack.c.0.s8 %v7833
      %v7835 = vlaneseq
      %v7836 = vshrl.u32 %v7835, 7
      %v7837 = vsub.s32 %v7834, %v7836
      %v7838 = vrot.slane %v7824, %v7837
      %v7839 = vcombine.low %v7831, %v7838
      %7841 = vst [vmem:[%s791] sm:$0xff] %v7839
      %p7842 = scmp.lt.s32.totalorder %s37, 1
      %s7843 = scalar_select %p7842, %s37, 1
      %s7844 = smul.addr %s7843, 4
      %s7845 = smul.addr %s7844, 2
      %s7846 = scalar_lea.vmem %s26, %s7845
      // Predicated region
      $region125: #{_lambda_.1} parent=123 // pred_check
        %p7847 = pneg %p606
      $region126: #{_lambda_.1} parent=123 // pred_check_branch
        %7849 = sbr.rel (%p7847) target = $region128
      $region127: #{_lambda_.1} parent=123 // pred_region
        _
      $region128: #{_lambda_.1} parent=123 // pred_fallthru
        _
    $region124: #{_lambda_.1} parent=5 // pred_fallthru
      _
    %p7850 = scmp.le.s32.totalorder 2, %s32
    // Predicated region
    $region129: #{_lambda_.1} parent=5 // pred_check
      %p7851 = pneg %p7850
    $region130: #{_lambda_.1} parent=5 // pred_check_branch
      %7853 = sbr.rel (%p7851) target = $region132
    $region131: #{_lambda_.1} parent=5 // pred_region
      %s7854 = ssub.s32 %s32, 2
      // Predicated region
      $region133: #{_lambda_.1} parent=131 // pred_check
        %p7855 = pneg %p612
      $region134: #{_lambda_.1} parent=131 // pred_check_branch
        %7857 = sbr.rel (%p7855) target = $region136
      $region135: #{_lambda_.1} parent=131 // pred_region
        %p7858 = scmp.lt.s32.totalorder %s38, 1
        %s7859 = scalar_select %p7858, %s38, 1
        %s7860 = smul.addr %s7859, 4
        %s7861 = smul.addr %s7860, 2
        %s7862 = scalar_lea.vmem %s26, %s7861
      $region136: #{_lambda_.1} parent=131 // pred_fallthru
        _
    $region132: #{_lambda_.1} parent=5 // pred_fallthru
      _
  $region6: #{_lambda_.1} parent=0 // loop_footer
    %s36 = sadd.s32 1, %s32
  $region7: #{_lambda_.1} parent=0 // loop_footer_branch
    %31 = sbr.rel target = $region3
  $region8: #{_lambda_.1} parent=0 // loop_exit
    _

</llo_original>
